<compile_context>
chip_gen: v6e
topology: v6e:2x2x1
jax: 0.10.0
libtpu: 0.0.40
codegen_flags: <defaults>
</compile_context>

<pallas_src>
import jax
import jax.numpy as jnp
from jax.experimental import pallas as pl
from jax.experimental.pallas import tpu as pltpu

CIN_PAD = 4          # layer-1 input channels padded 3 -> 4 with zeros
VMEM_LIMIT = 32 * 1024 * 1024


def _pick_toh(oh):
    """Output rows computed per conv grid step (must divide OH)."""
    for cand in (8, 4, 2, 1):
        if oh % cand == 0:
            return cand
    return 1


# ---------------------------------------------------------------------------
# Conv2d(3x3, no bias) + fused BN-statistics epilogue
# ---------------------------------------------------------------------------
def _make_conv_kernel(toh, ow, cin, cout):
    nrow = toh + 2  # haloed input rows needed for `toh` output rows

    def kernel(*refs):
        row_refs = refs[:nrow]                # each (1, 1, IW, Cin) bf16
        w_ref = refs[nrow]                    # (9*Cin, Cout) bf16
        y_ref, s_ref, q_ref = refs[nrow + 1:nrow + 4]

        w = w_ref[...]
        # Load halo rows once; do slicing/concat in f32 (bf16<->f32 is exact).
        rows = [r[0, 0].astype(jnp.float32) for r in row_refs]

        s = jnp.zeros((1, cout), jnp.float32)
        q = jnp.zeros((1, cout), jnp.float32)
        for t in range(toh):
            cols = []
            for dh in range(3):
                r = rows[t + dh]              # (IW, Cin)
                for dw in range(3):
                    cols.append(r[dw:dw + ow, :])
            patch = jnp.concatenate(cols, axis=1)          # (OW, 9*Cin)
            acc = jnp.dot(patch.astype(jnp.bfloat16), w,
                          preferred_element_type=jnp.float32)  # (OW, Cout) f32
            y_ref[0, t] = acc
            s = s + jnp.sum(acc, axis=0, keepdims=True)
            q = q + jnp.sum(acc * acc, axis=0, keepdims=True)
        s_ref[0, 0] = s
        q_ref[0, 0] = q

    return kernel


def conv3x3(x, w, *, padding):
    """x: (N, H, W, Cin) bf16, w: (9*Cin, Cout) bf16.

    Returns y (N, OH, OW, Cout) f32 plus per-block partial sums / sums of
    squares for the fused BatchNorm statistics.
    """
    if padding:
        x = jnp.pad(x, ((0, 0), (padding, padding), (padding, padding), (0, 0)))
    n, ih, iw, cin = x.shape
    cout = w.shape[1]
    oh, ow = ih - 2, iw - 2
    toh = _pick_toh(oh)
    t_blocks = oh // toh

    in_specs = [
        pl.BlockSpec((1, 1, iw, cin),
                     (lambda i, t, r=r: (i, t * toh + r, 0, 0)))
        for r in range(toh + 2)
    ] + [pl.BlockSpec((9 * cin, cout), lambda i, t: (0, 0))]

    out_shape = (
        jax.ShapeDtypeStruct((n, oh, ow, cout), jnp.float32),
        jax.ShapeDtypeStruct((n, t_blocks, 1, cout), jnp.float32),
        jax.ShapeDtypeStruct((n, t_blocks, 1, cout), jnp.float32),
    )
    out_specs = (
        pl.BlockSpec((1, toh, ow, cout), lambda i, t: (i, t, 0, 0)),
        pl.BlockSpec((1, 1, 1, cout), lambda i, t: (i, t, 0, 0)),
        pl.BlockSpec((1, 1, 1, cout), lambda i, t: (i, t, 0, 0)),
    )

    y, psum, psq = pl.pallas_call(
        _make_conv_kernel(toh, ow, cin, cout),
        out_shape=out_shape,
        grid_spec=pltpu.PrefetchScalarGridSpec(
            num_scalar_prefetch=0,
            grid=(n, t_blocks),
            in_specs=in_specs,
            out_specs=out_specs,
        ),
        compiler_params=pltpu.CompilerParams(
            dimension_semantics=("parallel", "parallel"),
            vmem_limit_bytes=VMEM_LIMIT,
        ),
    )(*([x] * (toh + 2)), w)
    return y, psum, psq


# ---------------------------------------------------------------------------
# Fused BatchNorm-apply + ReLU + MaxPool2d(2)  (layers 1 & 2)
# ---------------------------------------------------------------------------
def _make_bn_pool_kernel(c):
    def kernel(a_ref, b_ref, s_ref, t_ref, o_ref):
        s = s_ref[...]                        # (1, 2C)
        t = t_ref[...]
        za = jnp.maximum(a_ref[0, 0] * s + t, 0.0)   # (OWp, 2C)  even row
        zb = jnp.maximum(b_ref[0, 0] * s + t, 0.0)   # (OWp, 2C)  odd row
        m = jnp.maximum(za, zb)                      # row-pooled
        # lanes [:C] = even column, lanes [C:] = odd column (same channels)
        o_ref[0, 0] = jnp.maximum(m[:, :c], m[:, c:]).astype(o_ref.dtype)

    return kernel


def bn_relu_maxpool(y, scale, shift):
    """y: (N, OH, OW, C) f32 -> (N, OH//2, OW//2, C) bf16."""
    n, oh, ow, c = y.shape
    ohp, owp = oh // 2, ow // 2
    if ow % 2:  # MaxPool2d(2) floor: drop last column (stats already included it)
        y = y[:, :, :2 * owp, :]
    y2 = y.reshape(n, oh, owp, 2 * c)         # free, contiguous reshape
    s2 = jnp.concatenate([scale, scale]).reshape(1, 2 * c)
    t2 = jnp.concatenate([shift, shift]).reshape(1, 2 * c)

    return pl.pallas_call(
        _make_bn_pool_kernel(c),
        out_shape=jax.ShapeDtypeStruct((n, ohp, owp, c), jnp.bfloat16),
        grid_spec=pltpu.PrefetchScalarGridSpec(
            num_scalar_prefetch=0,
            grid=(n, ohp),
            in_specs=[
                pl.BlockSpec((1, 1, owp, 2 * c), lambda i, t: (i, 2 * t, 0, 0)),
                pl.BlockSpec((1, 1, owp, 2 * c), lambda i, t: (i, 2 * t + 1, 0, 0)),
                pl.BlockSpec((1, 2 * c), lambda i, t: (0, 0)),
                pl.BlockSpec((1, 2 * c), lambda i, t: (0, 0)),
            ],
            out_specs=pl.BlockSpec((1, 1, owp, c), lambda i, t: (i, t, 0, 0)),
        ),
        compiler_params=pltpu.CompilerParams(
            dimension_semantics=("parallel", "parallel"),
            vmem_limit_bytes=VMEM_LIMIT,
        ),
    )(y2, y2, s2, t2)


# ---------------------------------------------------------------------------
# BatchNorm-apply + ReLU (layers 3 & 4), lane-dense (rows/2, 128) tiling
# ---------------------------------------------------------------------------
def _bn_relu_apply_kernel(y_ref, s_ref, t_ref, o_ref):
    o_ref[...] = jnp.maximum(
        y_ref[...] * s_ref[...] + t_ref[...], 0.0
    ).astype(o_ref.dtype)


def bn_relu_apply(y_flat, scale, shift, out_dtype):
    """y_flat: (M, C=64) f32 -> (M, C) out_dtype, via a (M/2, 128) lane-dense view."""
    m, c = y_flat.shape
    m2 = (m + 1) // 2
    blk = 512 if m2 >= 512 else ((m2 + 7) // 8) * 8
    m2p = ((m2 + blk - 1) // blk) * blk
    mp = 2 * m2p
    if mp != m:
        y_flat = jnp.pad(y_flat, ((0, mp - m), (0, 0)))
    y2 = y_flat.reshape(m2p, 2 * c)
    s2 = jnp.concatenate([scale, scale]).reshape(1, 2 * c)
    t2 = jnp.concatenate([shift, shift]).reshape(1, 2 * c)

    out = pl.pallas_call(
        _bn_relu_apply_kernel,
        out_shape=jax.ShapeDtypeStruct((m2p, 2 * c), out_dtype),
        grid_spec=pltpu.PrefetchScalarGridSpec(
            num_scalar_prefetch=0,
            grid=(m2p // blk,),
            in_specs=[
                pl.BlockSpec((blk, 2 * c), lambda i: (i, 0)),
                pl.BlockSpec((1, 2 * c), lambda i: (0, 0)),
                pl.BlockSpec((1, 2 * c), lambda i: (0, 0)),
            ],
            out_specs=pl.BlockSpec((blk, 2 * c), lambda i: (i, 0)),
        ),
        compiler_params=pltpu.CompilerParams(
            dimension_semantics=("parallel",),
            vmem_limit_bytes=VMEM_LIMIT,
        ),
    )(y2, s2, t2)
    return out.reshape(mp, c)[:m]


# ---------------------------------------------------------------------------
# Parameters (deterministic in-script init; shapes match the PyTorch module)
# ---------------------------------------------------------------------------
def init_params(key):
    params = {}
    keys = jax.random.split(key, 4)
    cin = 3
    for i in range(4):
        cout = 64
        w = jax.random.normal(keys[i], (3, 3, cin, cout), jnp.float32)
        w = w * (1.0 / jnp.sqrt(9.0 * cin))
        if cin == 3:  # pad layer-1 input channels 3 -> 4 (zero rows: no-op math)
            w = jnp.pad(w, ((0, 0), (0, 0), (0, CIN_PAD - 3), (0, 0)))
            kdim = 9 * CIN_PAD
        else:
            kdim = 9 * cin
        # (kh, kw, ci) ordering matches the in-kernel patch concatenation order.
        params[f"w{i + 1}"] = w.reshape(kdim, cout).astype(jnp.bfloat16)
        # Conv bias intentionally omitted: exactly cancelled by train-mode BN.
        # BatchNorm2d(affine=True) default init: weight=1, bias=0.
        params[f"gamma{i + 1}"] = jnp.ones((cout,), jnp.float32)
        params[f"beta{i + 1}"] = jnp.zeros((cout,), jnp.float32)
        cin = cout
    return params


# ---------------------------------------------------------------------------
# CNNEncoder.forward
# ---------------------------------------------------------------------------
def _bn_scale_shift(psum, psq, gamma, beta, count):
    mean = jnp.sum(psum, axis=(0, 1, 2)) / count
    ex2 = jnp.sum(psq, axis=(0, 1, 2)) / count
    var = jnp.maximum(ex2 - mean * mean, 0.0)       # biased var, like PyTorch train mode
    inv = jax.lax.rsqrt(var + 1e-5)
    scale = gamma * inv
    shift = beta - mean * scale
    return scale, shift


@jax.jit
def cnn_encoder_forward(x_nchw, params):
    x = jnp.transpose(x_nchw, (0, 2, 3, 1))                       # NCHW -> NHWC
    x = jnp.pad(x, ((0, 0), (0, 0), (0, 0), (0, CIN_PAD - 3)))    # Cin 3 -> 4
    x = x.astype(jnp.bfloat16)

    def layer(inp, idx, padding, pool, out_dtype=jnp.bfloat16):
        y, psum, psq = conv3x3(inp, params[f"w{idx}"], padding=padding)
        n, oh, ow, c = y.shape
        scale, shift = _bn_scale_shift(
            psum, psq, params[f"gamma{idx}"], params[f"beta{idx}"], n * oh * ow)
        if pool:
            return bn_relu_maxpool(y, scale, shift)
        z = bn_relu_apply(y.reshape(-1, c), scale, shift, out_dtype)
        return z.reshape(n, oh, ow, c)

    out = layer(x, 1, padding=0, pool=True)        # conv + BN + ReLU + MaxPool(2)
    out = layer(out, 2, padding=0, pool=True)      # conv + BN + ReLU + MaxPool(2)
    out = layer(out, 3, padding=1, pool=False)     # conv + BN + ReLU
    out = layer(out, 4, padding=1, pool=False, out_dtype=jnp.float32)
    # TODO(synk): BatchNorm running_mean/var buffer updates (momentum=1) are
    # training-state bookkeeping and do not affect this forward output.
    return jnp.transpose(out, (0, 3, 1, 2))        # NHWC -> NCHW (match PyTorch)


if __name__ == "__main__":
    key = jax.random.PRNGKey(0)
    k_x, k_p = jax.random.split(key)
    # Small NCHW input consistent with the module (3 input channels):
    # 22x22 -> layer1 conv 20x20, pool 10x10 -> layer2 conv 8x8, pool 4x4
    # -> layers 3/4 (pad=1) keep 4x4.  Expected output: (2, 64, 4, 4).
    x = jax.random.normal(k_x, (2, 3, 22, 22), jnp.float32)
    params = init_params(k_p)

    out = cnn_encoder_forward(x, params)
    out = jax.block_until_ready(out)

    assert out.shape == (2, 64, 4, 4), out.shape
    assert bool(jnp.all(jnp.isfinite(out)))
    print("KERNEL_OK")
</pallas_src>

<mosaic_0001>
module attributes {stable_mosaic.version = 11 : i64} {
  func.func @kernel(%arg0: i32, %arg1: i32, %arg2: memref<1x1x22x4xbf16, #tpu.memory_space<vmem>>, %arg3: memref<1x1x22x4xbf16, #tpu.memory_space<vmem>>, %arg4: memref<1x1x22x4xbf16, #tpu.memory_space<vmem>>, %arg5: memref<1x1x22x4xbf16, #tpu.memory_space<vmem>>, %arg6: memref<1x1x22x4xbf16, #tpu.memory_space<vmem>>, %arg7: memref<1x1x22x4xbf16, #tpu.memory_space<vmem>>, %arg8: memref<36x64xbf16, #tpu.memory_space<vmem>>, %arg9: memref<1x4x20x64xf32, #tpu.memory_space<vmem>>, %arg10: memref<1x1x1x64xf32, #tpu.memory_space<vmem>>, %arg11: memref<1x1x1x64xf32, #tpu.memory_space<vmem>>) attributes {dimension_semantics = [#tpu.dimension_semantics<parallel>, #tpu.dimension_semantics<parallel>], iteration_bounds = array<i64: 2, 5>, scalar_prefetch = 0 : i64, scratch_operands = 0 : i64, tpu.core_type = #tpu.core_type<tc>, window_params = [{transform_indices = @transform_0, window_bounds = array<i64: 1, 1, 22, 4>}, {transform_indices = @transform_1, window_bounds = array<i64: 1, 1, 22, 4>}, {transform_indices = @transform_2, window_bounds = array<i64: 1, 1, 22, 4>}, {transform_indices = @transform_3, window_bounds = array<i64: 1, 1, 22, 4>}, {transform_indices = @transform_4, window_bounds = array<i64: 1, 1, 22, 4>}, {transform_indices = @transform_5, window_bounds = array<i64: 1, 1, 22, 4>}, {pipeline_mode = #tpu.pipeline_mode<synchronous>, transform_indices = @transform_6, window_bounds = array<i64: 36, 64>}, {transform_indices = @transform_7, window_bounds = array<i64: 1, 4, 20, 64>}, {transform_indices = @transform_8, window_bounds = array<i64: 1, 1, 1, 64>}, {transform_indices = @transform_9, window_bounds = array<i64: 1, 1, 1, 64>}]} {
    %c0 = arith.constant 0 : index
    %c0_0 = arith.constant 0 : index
    %0 = vector.load %arg8[%c0, %c0_0] : memref<36x64xbf16, #tpu.memory_space<vmem>>, vector<36x64xbf16>
    %c0_1 = arith.constant 0 : index
    %c0_2 = arith.constant 0 : index
    %c0_3 = arith.constant 0 : index
    %c0_4 = arith.constant 0 : index
    %1 = vector.load %arg2[%c0_1, %c0_2, %c0_3, %c0_4] : memref<1x1x22x4xbf16, #tpu.memory_space<vmem>>, vector<1x1x22x4xbf16>
    %2 = vector.shape_cast %1 : vector<1x1x22x4xbf16> to vector<22x4xbf16>
    %3 = arith.extf %2 : vector<22x4xbf16> to vector<22x4xf32>
    %c0_5 = arith.constant 0 : index
    %c0_6 = arith.constant 0 : index
    %c0_7 = arith.constant 0 : index
    %c0_8 = arith.constant 0 : index
    %4 = vector.load %arg3[%c0_5, %c0_6, %c0_7, %c0_8] : memref<1x1x22x4xbf16, #tpu.memory_space<vmem>>, vector<1x1x22x4xbf16>
    %5 = vector.shape_cast %4 : vector<1x1x22x4xbf16> to vector<22x4xbf16>
    %6 = arith.extf %5 : vector<22x4xbf16> to vector<22x4xf32>
    %c0_9 = arith.constant 0 : index
    %c0_10 = arith.constant 0 : index
    %c0_11 = arith.constant 0 : index
    %c0_12 = arith.constant 0 : index
    %7 = vector.load %arg4[%c0_9, %c0_10, %c0_11, %c0_12] : memref<1x1x22x4xbf16, #tpu.memory_space<vmem>>, vector<1x1x22x4xbf16>
    %8 = vector.shape_cast %7 : vector<1x1x22x4xbf16> to vector<22x4xbf16>
    %9 = arith.extf %8 : vector<22x4xbf16> to vector<22x4xf32>
    %c0_13 = arith.constant 0 : index
    %c0_14 = arith.constant 0 : index
    %c0_15 = arith.constant 0 : index
    %c0_16 = arith.constant 0 : index
    %10 = vector.load %arg5[%c0_13, %c0_14, %c0_15, %c0_16] : memref<1x1x22x4xbf16, #tpu.memory_space<vmem>>, vector<1x1x22x4xbf16>
    %11 = vector.shape_cast %10 : vector<1x1x22x4xbf16> to vector<22x4xbf16>
    %12 = arith.extf %11 : vector<22x4xbf16> to vector<22x4xf32>
    %c0_17 = arith.constant 0 : index
    %c0_18 = arith.constant 0 : index
    %c0_19 = arith.constant 0 : index
    %c0_20 = arith.constant 0 : index
    %13 = vector.load %arg6[%c0_17, %c0_18, %c0_19, %c0_20] : memref<1x1x22x4xbf16, #tpu.memory_space<vmem>>, vector<1x1x22x4xbf16>
    %14 = vector.shape_cast %13 : vector<1x1x22x4xbf16> to vector<22x4xbf16>
    %15 = arith.extf %14 : vector<22x4xbf16> to vector<22x4xf32>
    %c0_21 = arith.constant 0 : index
    %c0_22 = arith.constant 0 : index
    %c0_23 = arith.constant 0 : index
    %c0_24 = arith.constant 0 : index
    %16 = vector.load %arg7[%c0_21, %c0_22, %c0_23, %c0_24] : memref<1x1x22x4xbf16, #tpu.memory_space<vmem>>, vector<1x1x22x4xbf16>
    %17 = vector.shape_cast %16 : vector<1x1x22x4xbf16> to vector<22x4xbf16>
    %18 = arith.extf %17 : vector<22x4xbf16> to vector<22x4xf32>
    %cst = arith.constant 0.000000e+00 : f32
    %19 = vector.broadcast %cst : f32 to vector<1x64xf32>
    %cst_25 = arith.constant 0.000000e+00 : f32
    %20 = vector.broadcast %cst_25 : f32 to vector<1x64xf32>
    %21 = vector.extract_strided_slice %3 {offsets = [0, 0], sizes = [20, 4], strides = [1, 1]} : vector<22x4xf32> to vector<20x4xf32>
    %22 = vector.extract_strided_slice %3 {offsets = [1, 0], sizes = [20, 4], strides = [1, 1]} : vector<22x4xf32> to vector<20x4xf32>
    %23 = vector.extract_strided_slice %3 {offsets = [2, 0], sizes = [20, 4], strides = [1, 1]} : vector<22x4xf32> to vector<20x4xf32>
    %24 = vector.extract_strided_slice %6 {offsets = [0, 0], sizes = [20, 4], strides = [1, 1]} : vector<22x4xf32> to vector<20x4xf32>
    %25 = vector.extract_strided_slice %6 {offsets = [1, 0], sizes = [20, 4], strides = [1, 1]} : vector<22x4xf32> to vector<20x4xf32>
    %26 = vector.extract_strided_slice %6 {offsets = [2, 0], sizes = [20, 4], strides = [1, 1]} : vector<22x4xf32> to vector<20x4xf32>
    %27 = vector.extract_strided_slice %9 {offsets = [0, 0], sizes = [20, 4], strides = [1, 1]} : vector<22x4xf32> to vector<20x4xf32>
    %28 = vector.extract_strided_slice %9 {offsets = [1, 0], sizes = [20, 4], strides = [1, 1]} : vector<22x4xf32> to vector<20x4xf32>
    %29 = vector.extract_strided_slice %9 {offsets = [2, 0], sizes = [20, 4], strides = [1, 1]} : vector<22x4xf32> to vector<20x4xf32>
    %30 = tpu.concatenate %21, %22, %23, %24, %25, %26, %27, %28, %29 in 1 : vector<20x4xf32>, vector<20x4xf32>, vector<20x4xf32>, vector<20x4xf32>, vector<20x4xf32>, vector<20x4xf32>, vector<20x4xf32>, vector<20x4xf32>, vector<20x4xf32> -> vector<20x36xf32>
    %31 = arith.truncf %30 : vector<20x36xf32> to vector<20x36xbf16>
    %cst_26 = arith.constant dense<0.000000e+00> : vector<20x64xf32>
    %32 = tpu.matmul %31, %0, %cst_26 {dimension_numbers = #tpu.dot_dimension_numbers<[1], [0], [0], [1], [0, 0, 1, 1], [], []>} : vector<20x36xbf16>, vector<36x64xbf16>, vector<20x64xf32> -> vector<20x64xf32>
    %c0_27 = arith.constant 0 : index
    %c0_28 = arith.constant 0 : index
    %c0_29 = arith.constant 0 : index
    %c0_30 = arith.constant 0 : index
    %33 = vector.load %arg9[%c0_27, %c0_28, %c0_29, %c0_30] : memref<1x4x20x64xf32, #tpu.memory_space<vmem>>, vector<1x1x20x64xf32>
    %34 = vector.shape_cast %33 : vector<1x1x20x64xf32> to vector<20x64xf32>
    %35 = vector.shape_cast %32 : vector<20x64xf32> to vector<1x1x20x64xf32>
    tpu.vector_store %arg9[%c0_27, %c0_28, %c0_29, %c0_30], %35 {strides = array<i32>} : memref<1x4x20x64xf32, #tpu.memory_space<vmem>>, vector<1x1x20x64xf32>,
    %cst_31 = arith.constant dense<0.000000e+00> : vector<64xf32>
    %36 = vector.multi_reduction <add>, %32, %cst_31 [0] : vector<20x64xf32> to vector<64xf32>
    %37 = vector.shape_cast %36 : vector<64xf32> to vector<1x64xf32>
    %38 = arith.addf %19, %37 : vector<1x64xf32>
    %39 = arith.mulf %32, %32 : vector<20x64xf32>
    %cst_32 = arith.constant dense<0.000000e+00> : vector<64xf32>
    %40 = vector.multi_reduction <add>, %39, %cst_32 [0] : vector<20x64xf32> to vector<64xf32>
    %41 = vector.shape_cast %40 : vector<64xf32> to vector<1x64xf32>
    %42 = arith.addf %20, %41 : vector<1x64xf32>
    %43 = vector.extract_strided_slice %6 {offsets = [0, 0], sizes = [20, 4], strides = [1, 1]} : vector<22x4xf32> to vector<20x4xf32>
    %44 = vector.extract_strided_slice %6 {offsets = [1, 0], sizes = [20, 4], strides = [1, 1]} : vector<22x4xf32> to vector<20x4xf32>
    %45 = vector.extract_strided_slice %6 {offsets = [2, 0], sizes = [20, 4], strides = [1, 1]} : vector<22x4xf32> to vector<20x4xf32>
    %46 = vector.extract_strided_slice %9 {offsets = [0, 0], sizes = [20, 4], strides = [1, 1]} : vector<22x4xf32> to vector<20x4xf32>
    %47 = vector.extract_strided_slice %9 {offsets = [1, 0], sizes = [20, 4], strides = [1, 1]} : vector<22x4xf32> to vector<20x4xf32>
    %48 = vector.extract_strided_slice %9 {offsets = [2, 0], sizes = [20, 4], strides = [1, 1]} : vector<22x4xf32> to vector<20x4xf32>
    %49 = vector.extract_strided_slice %12 {offsets = [0, 0], sizes = [20, 4], strides = [1, 1]} : vector<22x4xf32> to vector<20x4xf32>
    %50 = vector.extract_strided_slice %12 {offsets = [1, 0], sizes = [20, 4], strides = [1, 1]} : vector<22x4xf32> to vector<20x4xf32>
    %51 = vector.extract_strided_slice %12 {offsets = [2, 0], sizes = [20, 4], strides = [1, 1]} : vector<22x4xf32> to vector<20x4xf32>
    %52 = tpu.concatenate %43, %44, %45, %46, %47, %48, %49, %50, %51 in 1 : vector<20x4xf32>, vector<20x4xf32>, vector<20x4xf32>, vector<20x4xf32>, vector<20x4xf32>, vector<20x4xf32>, vector<20x4xf32>, vector<20x4xf32>, vector<20x4xf32> -> vector<20x36xf32>
    %53 = arith.truncf %52 : vector<20x36xf32> to vector<20x36xbf16>
    %cst_33 = arith.constant dense<0.000000e+00> : vector<20x64xf32>
    %54 = tpu.matmul %53, %0, %cst_33 {dimension_numbers = #tpu.dot_dimension_numbers<[1], [0], [0], [1], [0, 0, 1, 1], [], []>} : vector<20x36xbf16>, vector<36x64xbf16>, vector<20x64xf32> -> vector<20x64xf32>
    %c0_34 = arith.constant 0 : index
    %c1 = arith.constant 1 : index
    %c0_35 = arith.constant 0 : index
    %c0_36 = arith.constant 0 : index
    %55 = vector.load %arg9[%c0_34, %c1, %c0_35, %c0_36] : memref<1x4x20x64xf32, #tpu.memory_space<vmem>>, vector<1x1x20x64xf32>
    %56 = vector.shape_cast %55 : vector<1x1x20x64xf32> to vector<20x64xf32>
    %57 = vector.shape_cast %54 : vector<20x64xf32> to vector<1x1x20x64xf32>
    tpu.vector_store %arg9[%c0_34, %c1, %c0_35, %c0_36], %57 {strides = array<i32>} : memref<1x4x20x64xf32, #tpu.memory_space<vmem>>, vector<1x1x20x64xf32>,
    %cst_37 = arith.constant dense<0.000000e+00> : vector<64xf32>
    %58 = vector.multi_reduction <add>, %54, %cst_37 [0] : vector<20x64xf32> to vector<64xf32>
    %59 = vector.shape_cast %58 : vector<64xf32> to vector<1x64xf32>
    %60 = arith.addf %38, %59 : vector<1x64xf32>
    %61 = arith.mulf %54, %54 : vector<20x64xf32>
    %cst_38 = arith.constant dense<0.000000e+00> : vector<64xf32>
    %62 = vector.multi_reduction <add>, %61, %cst_38 [0] : vector<20x64xf32> to vector<64xf32>
    %63 = vector.shape_cast %62 : vector<64xf32> to vector<1x64xf32>
    %64 = arith.addf %42, %63 : vector<1x64xf32>
    %65 = vector.extract_strided_slice %9 {offsets = [0, 0], sizes = [20, 4], strides = [1, 1]} : vector<22x4xf32> to vector<20x4xf32>
    %66 = vector.extract_strided_slice %9 {offsets = [1, 0], sizes = [20, 4], strides = [1, 1]} : vector<22x4xf32> to vector<20x4xf32>
    %67 = vector.extract_strided_slice %9 {offsets = [2, 0], sizes = [20, 4], strides = [1, 1]} : vector<22x4xf32> to vector<20x4xf32>
    %68 = vector.extract_strided_slice %12 {offsets = [0, 0], sizes = [20, 4], strides = [1, 1]} : vector<22x4xf32> to vector<20x4xf32>
    %69 = vector.extract_strided_slice %12 {offsets = [1, 0], sizes = [20, 4], strides = [1, 1]} : vector<22x4xf32> to vector<20x4xf32>
    %70 = vector.extract_strided_slice %12 {offsets = [2, 0], sizes = [20, 4], strides = [1, 1]} : vector<22x4xf32> to vector<20x4xf32>
    %71 = vector.extract_strided_slice %15 {offsets = [0, 0], sizes = [20, 4], strides = [1, 1]} : vector<22x4xf32> to vector<20x4xf32>
    %72 = vector.extract_strided_slice %15 {offsets = [1, 0], sizes = [20, 4], strides = [1, 1]} : vector<22x4xf32> to vector<20x4xf32>
    %73 = vector.extract_strided_slice %15 {offsets = [2, 0], sizes = [20, 4], strides = [1, 1]} : vector<22x4xf32> to vector<20x4xf32>
    %74 = tpu.concatenate %65, %66, %67, %68, %69, %70, %71, %72, %73 in 1 : vector<20x4xf32>, vector<20x4xf32>, vector<20x4xf32>, vector<20x4xf32>, vector<20x4xf32>, vector<20x4xf32>, vector<20x4xf32>, vector<20x4xf32>, vector<20x4xf32> -> vector<20x36xf32>
    %75 = arith.truncf %74 : vector<20x36xf32> to vector<20x36xbf16>
    %cst_39 = arith.constant dense<0.000000e+00> : vector<20x64xf32>
    %76 = tpu.matmul %75, %0, %cst_39 {dimension_numbers = #tpu.dot_dimension_numbers<[1], [0], [0], [1], [0, 0, 1, 1], [], []>} : vector<20x36xbf16>, vector<36x64xbf16>, vector<20x64xf32> -> vector<20x64xf32>
    %c0_40 = arith.constant 0 : index
    %c2 = arith.constant 2 : index
    %c0_41 = arith.constant 0 : index
    %c0_42 = arith.constant 0 : index
    %77 = vector.load %arg9[%c0_40, %c2, %c0_41, %c0_42] : memref<1x4x20x64xf32, #tpu.memory_space<vmem>>, vector<1x1x20x64xf32>
    %78 = vector.shape_cast %77 : vector<1x1x20x64xf32> to vector<20x64xf32>
    %79 = vector.shape_cast %76 : vector<20x64xf32> to vector<1x1x20x64xf32>
    tpu.vector_store %arg9[%c0_40, %c2, %c0_41, %c0_42], %79 {strides = array<i32>} : memref<1x4x20x64xf32, #tpu.memory_space<vmem>>, vector<1x1x20x64xf32>,
    %cst_43 = arith.constant dense<0.000000e+00> : vector<64xf32>
    %80 = vector.multi_reduction <add>, %76, %cst_43 [0] : vector<20x64xf32> to vector<64xf32>
    %81 = vector.shape_cast %80 : vector<64xf32> to vector<1x64xf32>
    %82 = arith.addf %60, %81 : vector<1x64xf32>
    %83 = arith.mulf %76, %76 : vector<20x64xf32>
    %cst_44 = arith.constant dense<0.000000e+00> : vector<64xf32>
    %84 = vector.multi_reduction <add>, %83, %cst_44 [0] : vector<20x64xf32> to vector<64xf32>
    %85 = vector.shape_cast %84 : vector<64xf32> to vector<1x64xf32>
    %86 = arith.addf %64, %85 : vector<1x64xf32>
    %87 = vector.extract_strided_slice %12 {offsets = [0, 0], sizes = [20, 4], strides = [1, 1]} : vector<22x4xf32> to vector<20x4xf32>
    %88 = vector.extract_strided_slice %12 {offsets = [1, 0], sizes = [20, 4], strides = [1, 1]} : vector<22x4xf32> to vector<20x4xf32>
    %89 = vector.extract_strided_slice %12 {offsets = [2, 0], sizes = [20, 4], strides = [1, 1]} : vector<22x4xf32> to vector<20x4xf32>
    %90 = vector.extract_strided_slice %15 {offsets = [0, 0], sizes = [20, 4], strides = [1, 1]} : vector<22x4xf32> to vector<20x4xf32>
    %91 = vector.extract_strided_slice %15 {offsets = [1, 0], sizes = [20, 4], strides = [1, 1]} : vector<22x4xf32> to vector<20x4xf32>
    %92 = vector.extract_strided_slice %15 {offsets = [2, 0], sizes = [20, 4], strides = [1, 1]} : vector<22x4xf32> to vector<20x4xf32>
    %93 = vector.extract_strided_slice %18 {offsets = [0, 0], sizes = [20, 4], strides = [1, 1]} : vector<22x4xf32> to vector<20x4xf32>
    %94 = vector.extract_strided_slice %18 {offsets = [1, 0], sizes = [20, 4], strides = [1, 1]} : vector<22x4xf32> to vector<20x4xf32>
    %95 = vector.extract_strided_slice %18 {offsets = [2, 0], sizes = [20, 4], strides = [1, 1]} : vector<22x4xf32> to vector<20x4xf32>
    %96 = tpu.concatenate %87, %88, %89, %90, %91, %92, %93, %94, %95 in 1 : vector<20x4xf32>, vector<20x4xf32>, vector<20x4xf32>, vector<20x4xf32>, vector<20x4xf32>, vector<20x4xf32>, vector<20x4xf32>, vector<20x4xf32>, vector<20x4xf32> -> vector<20x36xf32>
    %97 = arith.truncf %96 : vector<20x36xf32> to vector<20x36xbf16>
    %cst_45 = arith.constant dense<0.000000e+00> : vector<20x64xf32>
    %98 = tpu.matmul %97, %0, %cst_45 {dimension_numbers = #tpu.dot_dimension_numbers<[1], [0], [0], [1], [0, 0, 1, 1], [], []>} : vector<20x36xbf16>, vector<36x64xbf16>, vector<20x64xf32> -> vector<20x64xf32>
    %c0_46 = arith.constant 0 : index
    %c3 = arith.constant 3 : index
    %c0_47 = arith.constant 0 : index
    %c0_48 = arith.constant 0 : index
    %99 = vector.load %arg9[%c0_46, %c3, %c0_47, %c0_48] : memref<1x4x20x64xf32, #tpu.memory_space<vmem>>, vector<1x1x20x64xf32>
    %100 = vector.shape_cast %99 : vector<1x1x20x64xf32> to vector<20x64xf32>
    %101 = vector.shape_cast %98 : vector<20x64xf32> to vector<1x1x20x64xf32>
    tpu.vector_store %arg9[%c0_46, %c3, %c0_47, %c0_48], %101 {strides = array<i32>} : memref<1x4x20x64xf32, #tpu.memory_space<vmem>>, vector<1x1x20x64xf32>,
    %cst_49 = arith.constant dense<0.000000e+00> : vector<64xf32>
    %102 = vector.multi_reduction <add>, %98, %cst_49 [0] : vector<20x64xf32> to vector<64xf32>
    %103 = vector.shape_cast %102 : vector<64xf32> to vector<1x64xf32>
    %104 = arith.addf %82, %103 : vector<1x64xf32>
    %105 = arith.mulf %98, %98 : vector<20x64xf32>
    %cst_50 = arith.constant dense<0.000000e+00> : vector<64xf32>
    %106 = vector.multi_reduction <add>, %105, %cst_50 [0] : vector<20x64xf32> to vector<64xf32>
    %107 = vector.shape_cast %106 : vector<64xf32> to vector<1x64xf32>
    %108 = arith.addf %86, %107 : vector<1x64xf32>
    %c0_51 = arith.constant 0 : index
    %c0_52 = arith.constant 0 : index
    %c0_53 = arith.constant 0 : index
    %c0_54 = arith.constant 0 : index
    %109 = vector.load %arg10[%c0_51, %c0_52, %c0_53, %c0_54] : memref<1x1x1x64xf32, #tpu.memory_space<vmem>>, vector<1x1x1x64xf32>
    %110 = vector.shape_cast %109 : vector<1x1x1x64xf32> to vector<1x64xf32>
    %111 = vector.shape_cast %104 : vector<1x64xf32> to vector<1x1x1x64xf32>
    tpu.vector_store %arg10[%c0_51, %c0_52, %c0_53, %c0_54], %111 {strides = array<i32>} : memref<1x1x1x64xf32, #tpu.memory_space<vmem>>, vector<1x1x1x64xf32>,
    %c0_55 = arith.constant 0 : index
    %c0_56 = arith.constant 0 : index
    %c0_57 = arith.constant 0 : index
    %c0_58 = arith.constant 0 : index
    %112 = vector.load %arg11[%c0_55, %c0_56, %c0_57, %c0_58] : memref<1x1x1x64xf32, #tpu.memory_space<vmem>>, vector<1x1x1x64xf32>
    %113 = vector.shape_cast %112 : vector<1x1x1x64xf32> to vector<1x64xf32>
    %114 = vector.shape_cast %108 : vector<1x64xf32> to vector<1x1x1x64xf32>
    tpu.vector_store %arg11[%c0_55, %c0_56, %c0_57, %c0_58], %114 {strides = array<i32>} : memref<1x1x1x64xf32, #tpu.memory_space<vmem>>, vector<1x1x1x64xf32>,
    return
  }
  func.func @transform_0(%arg0: i32, %arg1: i32) -> (i32, i32, i32, i32) {
    %c4_i32 = arith.constant 4 : i32
    %0 = arith.muli %arg1, %c4_i32 : i32
    %c0_i32 = arith.constant 0 : i32
    %1 = arith.addi %0, %c0_i32 : i32
    %c0_i32_0 = arith.constant 0 : i32
    %c0_i32_1 = arith.constant 0 : i32
    %c0_i32_2 = arith.constant 0 : i32
    return %arg0, %1, %c0_i32_0, %c0_i32_1 : i32, i32, i32, i32
  }
  func.func @transform_1(%arg0: i32, %arg1: i32) -> (i32, i32, i32, i32) {
    %c4_i32 = arith.constant 4 : i32
    %0 = arith.muli %arg1, %c4_i32 : i32
    %c1_i32 = arith.constant 1 : i32
    %1 = arith.addi %0, %c1_i32 : i32
    %c0_i32 = arith.constant 0 : i32
    %c0_i32_0 = arith.constant 0 : i32
    %c0_i32_1 = arith.constant 0 : i32
    return %arg0, %1, %c0_i32, %c0_i32_0 : i32, i32, i32, i32
  }
  func.func @transform_2(%arg0: i32, %arg1: i32) -> (i32, i32, i32, i32) {
    %c4_i32 = arith.constant 4 : i32
    %0 = arith.muli %arg1, %c4_i32 : i32
    %c2_i32 = arith.constant 2 : i32
    %1 = arith.addi %0, %c2_i32 : i32
    %c0_i32 = arith.constant 0 : i32
    %c0_i32_0 = arith.constant 0 : i32
    %c0_i32_1 = arith.constant 0 : i32
    return %arg0, %1, %c0_i32, %c0_i32_0 : i32, i32, i32, i32
  }
  func.func @transform_3(%arg0: i32, %arg1: i32) -> (i32, i32, i32, i32) {
    %c4_i32 = arith.constant 4 : i32
    %0 = arith.muli %arg1, %c4_i32 : i32
    %c3_i32 = arith.constant 3 : i32
    %1 = arith.addi %0, %c3_i32 : i32
    %c0_i32 = arith.constant 0 : i32
    %c0_i32_0 = arith.constant 0 : i32
    %c0_i32_1 = arith.constant 0 : i32
    return %arg0, %1, %c0_i32, %c0_i32_0 : i32, i32, i32, i32
  }
  func.func @transform_4(%arg0: i32, %arg1: i32) -> (i32, i32, i32, i32) {
    %c4_i32 = arith.constant 4 : i32
    %0 = arith.muli %arg1, %c4_i32 : i32
    %c4_i32_0 = arith.constant 4 : i32
    %1 = arith.addi %0, %c4_i32_0 : i32
    %c0_i32 = arith.constant 0 : i32
    %c0_i32_1 = arith.constant 0 : i32
    %c0_i32_2 = arith.constant 0 : i32
    return %arg0, %1, %c0_i32, %c0_i32_1 : i32, i32, i32, i32
  }
  func.func @transform_5(%arg0: i32, %arg1: i32) -> (i32, i32, i32, i32) {
    %c4_i32 = arith.constant 4 : i32
    %0 = arith.muli %arg1, %c4_i32 : i32
    %c5_i32 = arith.constant 5 : i32
    %1 = arith.addi %0, %c5_i32 : i32
    %c0_i32 = arith.constant 0 : i32
    %c0_i32_0 = arith.constant 0 : i32
    %c0_i32_1 = arith.constant 0 : i32
    return %arg0, %1, %c0_i32, %c0_i32_0 : i32, i32, i32, i32
  }
  func.func @transform_6(%arg0: i32, %arg1: i32) -> (i32, i32) {
    %c0_i32 = arith.constant 0 : i32
    %c0_i32_0 = arith.constant 0 : i32
    %c0_i32_1 = arith.constant 0 : i32
    return %c0_i32, %c0_i32_0 : i32, i32
  }
  func.func @transform_7(%arg0: i32, %arg1: i32) -> (i32, i32, i32, i32) {
    %c0_i32 = arith.constant 0 : i32
    %c0_i32_0 = arith.constant 0 : i32
    %c0_i32_1 = arith.constant 0 : i32
    return %arg0, %arg1, %c0_i32, %c0_i32_0 : i32, i32, i32, i32
  }
  func.func @transform_8(%arg0: i32, %arg1: i32) -> (i32, i32, i32, i32) {
    %c0_i32 = arith.constant 0 : i32
    %c0_i32_0 = arith.constant 0 : i32
    %c0_i32_1 = arith.constant 0 : i32
    return %arg0, %arg1, %c0_i32, %c0_i32_0 : i32, i32, i32, i32
  }
  func.func @transform_9(%arg0: i32, %arg1: i32) -> (i32, i32, i32, i32) {
    %c0_i32 = arith.constant 0 : i32
    %c0_i32_0 = arith.constant 0 : i32
    %c0_i32_1 = arith.constant 0 : i32
    return %arg0, %arg1, %c0_i32, %c0_i32_0 : i32, i32, i32, i32
  }
}

module attributes {stable_mosaic.version = 11 : i64} {
  func.func @kernel(%arg0: i32, %arg1: i32, %arg2: memref<1x1x10x128xf32, #tpu.memory_space<vmem>>, %arg3: memref<1x1x10x128xf32, #tpu.memory_space<vmem>>, %arg4: memref<1x128xf32, #tpu.memory_space<vmem>>, %arg5: memref<1x128xf32, #tpu.memory_space<vmem>>, %arg6: memref<1x1x10x64xbf16, #tpu.memory_space<vmem>>) attributes {dimension_semantics = [#tpu.dimension_semantics<parallel>, #tpu.dimension_semantics<parallel>], iteration_bounds = array<i64: 2, 10>, scalar_prefetch = 0 : i64, scratch_operands = 0 : i64, tpu.core_type = #tpu.core_type<tc>, window_params = [{transform_indices = @transform_0, window_bounds = array<i64: 1, 1, 10, 128>}, {transform_indices = @transform_1, window_bounds = array<i64: 1, 1, 10, 128>}, {pipeline_mode = #tpu.pipeline_mode<synchronous>, transform_indices = @transform_2, window_bounds = array<i64: 1, 128>}, {pipeline_mode = #tpu.pipeline_mode<synchronous>, transform_indices = @transform_3, window_bounds = array<i64: 1, 128>}, {transform_indices = @transform_4, window_bounds = array<i64: 1, 1, 10, 64>}]} {
    %c0 = arith.constant 0 : index
    %c0_0 = arith.constant 0 : index
    %0 = vector.load %arg4[%c0, %c0_0] : memref<1x128xf32, #tpu.memory_space<vmem>>, vector<1x128xf32>
    %c0_1 = arith.constant 0 : index
    %c0_2 = arith.constant 0 : index
    %1 = vector.load %arg5[%c0_1, %c0_2] : memref<1x128xf32, #tpu.memory_space<vmem>>, vector<1x128xf32>
    %c0_3 = arith.constant 0 : index
    %c0_4 = arith.constant 0 : index
    %c0_5 = arith.constant 0 : index
    %c0_6 = arith.constant 0 : index
    %2 = vector.load %arg2[%c0_3, %c0_4, %c0_5, %c0_6] : memref<1x1x10x128xf32, #tpu.memory_space<vmem>>, vector<1x1x10x128xf32>
    %3 = vector.shape_cast %2 : vector<1x1x10x128xf32> to vector<10x128xf32>
    %4 = vector.broadcast %0 : vector<1x128xf32> to vector<10x128xf32>
    %5 = arith.mulf %3, %4 : vector<10x128xf32>
    %6 = vector.broadcast %1 : vector<1x128xf32> to vector<10x128xf32>
    %7 = arith.addf %5, %6 : vector<10x128xf32>
    %cst = arith.constant 0.000000e+00 : f32
    %8 = vector.broadcast %cst : f32 to vector<10x128xf32>
    %9 = arith.maximumf %7, %8 : vector<10x128xf32>
    %c0_7 = arith.constant 0 : index
    %c0_8 = arith.constant 0 : index
    %c0_9 = arith.constant 0 : index
    %c0_10 = arith.constant 0 : index
    %10 = vector.load %arg3[%c0_7, %c0_8, %c0_9, %c0_10] : memref<1x1x10x128xf32, #tpu.memory_space<vmem>>, vector<1x1x10x128xf32>
    %11 = vector.shape_cast %10 : vector<1x1x10x128xf32> to vector<10x128xf32>
    %12 = vector.broadcast %0 : vector<1x128xf32> to vector<10x128xf32>
    %13 = arith.mulf %11, %12 : vector<10x128xf32>
    %14 = vector.broadcast %1 : vector<1x128xf32> to vector<10x128xf32>
    %15 = arith.addf %13, %14 : vector<10x128xf32>
    %cst_11 = arith.constant 0.000000e+00 : f32
    %16 = vector.broadcast %cst_11 : f32 to vector<10x128xf32>
    %17 = arith.maximumf %15, %16 : vector<10x128xf32>
    %18 = arith.maximumf %9, %17 : vector<10x128xf32>
    %19 = vector.extract_strided_slice %18 {offsets = [0, 0], sizes = [10, 64], strides = [1, 1]} : vector<10x128xf32> to vector<10x64xf32>
    %20 = vector.extract_strided_slice %18 {offsets = [0, 64], sizes = [10, 64], strides = [1, 1]} : vector<10x128xf32> to vector<10x64xf32>
    %21 = arith.maximumf %19, %20 : vector<10x64xf32>
    %22 = arith.truncf %21 : vector<10x64xf32> to vector<10x64xbf16>
    %c0_12 = arith.constant 0 : index
    %c0_13 = arith.constant 0 : index
    %c0_14 = arith.constant 0 : index
    %c0_15 = arith.constant 0 : index
    %23 = vector.load %arg6[%c0_12, %c0_13, %c0_14, %c0_15] : memref<1x1x10x64xbf16, #tpu.memory_space<vmem>>, vector<1x1x10x64xbf16>
    %24 = vector.shape_cast %23 : vector<1x1x10x64xbf16> to vector<10x64xbf16>
    %25 = vector.shape_cast %22 : vector<10x64xbf16> to vector<1x1x10x64xbf16>
    tpu.vector_store %arg6[%c0_12, %c0_13, %c0_14, %c0_15], %25 {strides = array<i32>} : memref<1x1x10x64xbf16, #tpu.memory_space<vmem>>, vector<1x1x10x64xbf16>,
    return
  }
  func.func @transform_0(%arg0: i32, %arg1: i32) -> (i32, i32, i32, i32) {
    %c2_i32 = arith.constant 2 : i32
    %0 = arith.muli %c2_i32, %arg1 : i32
    %c0_i32 = arith.constant 0 : i32
    %c0_i32_0 = arith.constant 0 : i32
    %c0_i32_1 = arith.constant 0 : i32
    return %arg0, %0, %c0_i32, %c0_i32_0 : i32, i32, i32, i32
  }
  func.func @transform_1(%arg0: i32, %arg1: i32) -> (i32, i32, i32, i32) {
    %c2_i32 = arith.constant 2 : i32
    %0 = arith.muli %c2_i32, %arg1 : i32
    %c1_i32 = arith.constant 1 : i32
    %1 = arith.addi %0, %c1_i32 : i32
    %c0_i32 = arith.constant 0 : i32
    %c0_i32_0 = arith.constant 0 : i32
    %c0_i32_1 = arith.constant 0 : i32
    return %arg0, %1, %c0_i32, %c0_i32_0 : i32, i32, i32, i32
  }
  func.func @transform_2(%arg0: i32, %arg1: i32) -> (i32, i32) {
    %c0_i32 = arith.constant 0 : i32
    %c0_i32_0 = arith.constant 0 : i32
    %c0_i32_1 = arith.constant 0 : i32
    return %c0_i32, %c0_i32_0 : i32, i32
  }
  func.func @transform_3(%arg0: i32, %arg1: i32) -> (i32, i32) {
    %c0_i32 = arith.constant 0 : i32
    %c0_i32_0 = arith.constant 0 : i32
    %c0_i32_1 = arith.constant 0 : i32
    return %c0_i32, %c0_i32_0 : i32, i32
  }
  func.func @transform_4(%arg0: i32, %arg1: i32) -> (i32, i32, i32, i32) {
    %c0_i32 = arith.constant 0 : i32
    %c0_i32_0 = arith.constant 0 : i32
    %c0_i32_1 = arith.constant 0 : i32
    return %arg0, %arg1, %c0_i32, %c0_i32_0 : i32, i32, i32, i32
  }
}

module attributes {stable_mosaic.version = 11 : i64} {
  func.func @kernel(%arg0: i32, %arg1: i32, %arg2: memref<1x1x10x64xbf16, #tpu.memory_space<vmem>>, %arg3: memref<1x1x10x64xbf16, #tpu.memory_space<vmem>>, %arg4: memref<1x1x10x64xbf16, #tpu.memory_space<vmem>>, %arg5: memref<1x1x10x64xbf16, #tpu.memory_space<vmem>>, %arg6: memref<1x1x10x64xbf16, #tpu.memory_space<vmem>>, %arg7: memref<1x1x10x64xbf16, #tpu.memory_space<vmem>>, %arg8: memref<1x1x10x64xbf16, #tpu.memory_space<vmem>>, %arg9: memref<1x1x10x64xbf16, #tpu.memory_space<vmem>>, %arg10: memref<1x1x10x64xbf16, #tpu.memory_space<vmem>>, %arg11: memref<1x1x10x64xbf16, #tpu.memory_space<vmem>>, %arg12: memref<576x64xbf16, #tpu.memory_space<vmem>>, %arg13: memref<1x8x8x64xf32, #tpu.memory_space<vmem>>, %arg14: memref<1x1x1x64xf32, #tpu.memory_space<vmem>>, %arg15: memref<1x1x1x64xf32, #tpu.memory_space<vmem>>) attributes {dimension_semantics = [#tpu.dimension_semantics<parallel>, #tpu.dimension_semantics<parallel>], iteration_bounds = array<i64: 2, 1>, scalar_prefetch = 0 : i64, scratch_operands = 0 : i64, tpu.core_type = #tpu.core_type<tc>, window_params = [{transform_indices = @transform_0, window_bounds = array<i64: 1, 1, 10, 64>}, {transform_indices = @transform_1, window_bounds = array<i64: 1, 1, 10, 64>}, {transform_indices = @transform_2, window_bounds = array<i64: 1, 1, 10, 64>}, {transform_indices = @transform_3, window_bounds = array<i64: 1, 1, 10, 64>}, {transform_indices = @transform_4, window_bounds = array<i64: 1, 1, 10, 64>}, {transform_indices = @transform_5, window_bounds = array<i64: 1, 1, 10, 64>}, {transform_indices = @transform_6, window_bounds = array<i64: 1, 1, 10, 64>}, {transform_indices = @transform_7, window_bounds = array<i64: 1, 1, 10, 64>}, {transform_indices = @transform_8, window_bounds = array<i64: 1, 1, 10, 64>}, {transform_indices = @transform_9, window_bounds = array<i64: 1, 1, 10, 64>}, {pipeline_mode = #tpu.pipeline_mode<synchronous>, transform_indices = @transform_10, window_bounds = array<i64: 576, 64>}, {transform_indices = @transform_11, window_bounds = array<i64: 1, 8, 8, 64>}, {transform_indices = @transform_12, window_bounds = array<i64: 1, 1, 1, 64>}, {transform_indices = @transform_13, window_bounds = array<i64: 1, 1, 1, 64>}]} {
    %c0 = arith.constant 0 : index
    %c0_0 = arith.constant 0 : index
    %0 = vector.load %arg12[%c0, %c0_0] : memref<576x64xbf16, #tpu.memory_space<vmem>>, vector<576x64xbf16>
    %c0_1 = arith.constant 0 : index
    %c0_2 = arith.constant 0 : index
    %c0_3 = arith.constant 0 : index
    %c0_4 = arith.constant 0 : index
    %1 = vector.load %arg2[%c0_1, %c0_2, %c0_3, %c0_4] : memref<1x1x10x64xbf16, #tpu.memory_space<vmem>>, vector<1x1x10x64xbf16>
    %2 = vector.shape_cast %1 : vector<1x1x10x64xbf16> to vector<10x64xbf16>
    %3 = arith.extf %2 : vector<10x64xbf16> to vector<10x64xf32>
    %c0_5 = arith.constant 0 : index
    %c0_6 = arith.constant 0 : index
    %c0_7 = arith.constant 0 : index
    %c0_8 = arith.constant 0 : index
    %4 = vector.load %arg3[%c0_5, %c0_6, %c0_7, %c0_8] : memref<1x1x10x64xbf16, #tpu.memory_space<vmem>>, vector<1x1x10x64xbf16>
    %5 = vector.shape_cast %4 : vector<1x1x10x64xbf16> to vector<10x64xbf16>
    %6 = arith.extf %5 : vector<10x64xbf16> to vector<10x64xf32>
    %c0_9 = arith.constant 0 : index
    %c0_10 = arith.constant 0 : index
    %c0_11 = arith.constant 0 : index
    %c0_12 = arith.constant 0 : index
    %7 = vector.load %arg4[%c0_9, %c0_10, %c0_11, %c0_12] : memref<1x1x10x64xbf16, #tpu.memory_space<vmem>>, vector<1x1x10x64xbf16>
    %8 = vector.shape_cast %7 : vector<1x1x10x64xbf16> to vector<10x64xbf16>
    %9 = arith.extf %8 : vector<10x64xbf16> to vector<10x64xf32>
    %c0_13 = arith.constant 0 : index
    %c0_14 = arith.constant 0 : index
    %c0_15 = arith.constant 0 : index
    %c0_16 = arith.constant 0 : index
    %10 = vector.load %arg5[%c0_13, %c0_14, %c0_15, %c0_16] : memref<1x1x10x64xbf16, #tpu.memory_space<vmem>>, vector<1x1x10x64xbf16>
    %11 = vector.shape_cast %10 : vector<1x1x10x64xbf16> to vector<10x64xbf16>
    %12 = arith.extf %11 : vector<10x64xbf16> to vector<10x64xf32>
    %c0_17 = arith.constant 0 : index
    %c0_18 = arith.constant 0 : index
    %c0_19 = arith.constant 0 : index
    %c0_20 = arith.constant 0 : index
    %13 = vector.load %arg6[%c0_17, %c0_18, %c0_19, %c0_20] : memref<1x1x10x64xbf16, #tpu.memory_space<vmem>>, vector<1x1x10x64xbf16>
    %14 = vector.shape_cast %13 : vector<1x1x10x64xbf16> to vector<10x64xbf16>
    %15 = arith.extf %14 : vector<10x64xbf16> to vector<10x64xf32>
    %c0_21 = arith.constant 0 : index
    %c0_22 = arith.constant 0 : index
    %c0_23 = arith.constant 0 : index
    %c0_24 = arith.constant 0 : index
    %16 = vector.load %arg7[%c0_21, %c0_22, %c0_23, %c0_24] : memref<1x1x10x64xbf16, #tpu.memory_space<vmem>>, vector<1x1x10x64xbf16>
    %17 = vector.shape_cast %16 : vector<1x1x10x64xbf16> to vector<10x64xbf16>
    %18 = arith.extf %17 : vector<10x64xbf16> to vector<10x64xf32>
    %c0_25 = arith.constant 0 : index
    %c0_26 = arith.constant 0 : index
    %c0_27 = arith.constant 0 : index
    %c0_28 = arith.constant 0 : index
    %19 = vector.load %arg8[%c0_25, %c0_26, %c0_27, %c0_28] : memref<1x1x10x64xbf16, #tpu.memory_space<vmem>>, vector<1x1x10x64xbf16>
    %20 = vector.shape_cast %19 : vector<1x1x10x64xbf16> to vector<10x64xbf16>
    %21 = arith.extf %20 : vector<10x64xbf16> to vector<10x64xf32>
    %c0_29 = arith.constant 0 : index
    %c0_30 = arith.constant 0 : index
    %c0_31 = arith.constant 0 : index
    %c0_32 = arith.constant 0 : index
    %22 = vector.load %arg9[%c0_29, %c0_30, %c0_31, %c0_32] : memref<1x1x10x64xbf16, #tpu.memory_space<vmem>>, vector<1x1x10x64xbf16>
    %23 = vector.shape_cast %22 : vector<1x1x10x64xbf16> to vector<10x64xbf16>
    %24 = arith.extf %23 : vector<10x64xbf16> to vector<10x64xf32>
    %c0_33 = arith.constant 0 : index
    %c0_34 = arith.constant 0 : index
    %c0_35 = arith.constant 0 : index
    %c0_36 = arith.constant 0 : index
    %25 = vector.load %arg10[%c0_33, %c0_34, %c0_35, %c0_36] : memref<1x1x10x64xbf16, #tpu.memory_space<vmem>>, vector<1x1x10x64xbf16>
    %26 = vector.shape_cast %25 : vector<1x1x10x64xbf16> to vector<10x64xbf16>
    %27 = arith.extf %26 : vector<10x64xbf16> to vector<10x64xf32>
    %c0_37 = arith.constant 0 : index
    %c0_38 = arith.constant 0 : index
    %c0_39 = arith.constant 0 : index
    %c0_40 = arith.constant 0 : index
    %28 = vector.load %arg11[%c0_37, %c0_38, %c0_39, %c0_40] : memref<1x1x10x64xbf16, #tpu.memory_space<vmem>>, vector<1x1x10x64xbf16>
    %29 = vector.shape_cast %28 : vector<1x1x10x64xbf16> to vector<10x64xbf16>
    %30 = arith.extf %29 : vector<10x64xbf16> to vector<10x64xf32>
    %cst = arith.constant 0.000000e+00 : f32
    %31 = vector.broadcast %cst : f32 to vector<1x64xf32>
    %cst_41 = arith.constant 0.000000e+00 : f32
    %32 = vector.broadcast %cst_41 : f32 to vector<1x64xf32>
    %33 = vector.extract_strided_slice %3 {offsets = [0, 0], sizes = [8, 64], strides = [1, 1]} : vector<10x64xf32> to vector<8x64xf32>
    %34 = vector.extract_strided_slice %3 {offsets = [1, 0], sizes = [8, 64], strides = [1, 1]} : vector<10x64xf32> to vector<8x64xf32>
    %35 = vector.extract_strided_slice %3 {offsets = [2, 0], sizes = [8, 64], strides = [1, 1]} : vector<10x64xf32> to vector<8x64xf32>
    %36 = vector.extract_strided_slice %6 {offsets = [0, 0], sizes = [8, 64], strides = [1, 1]} : vector<10x64xf32> to vector<8x64xf32>
    %37 = vector.extract_strided_slice %6 {offsets = [1, 0], sizes = [8, 64], strides = [1, 1]} : vector<10x64xf32> to vector<8x64xf32>
    %38 = vector.extract_strided_slice %6 {offsets = [2, 0], sizes = [8, 64], strides = [1, 1]} : vector<10x64xf32> to vector<8x64xf32>
    %39 = vector.extract_strided_slice %9 {offsets = [0, 0], sizes = [8, 64], strides = [1, 1]} : vector<10x64xf32> to vector<8x64xf32>
    %40 = vector.extract_strided_slice %9 {offsets = [1, 0], sizes = [8, 64], strides = [1, 1]} : vector<10x64xf32> to vector<8x64xf32>
    %41 = vector.extract_strided_slice %9 {offsets = [2, 0], sizes = [8, 64], strides = [1, 1]} : vector<10x64xf32> to vector<8x64xf32>
    %42 = tpu.concatenate %33, %34, %35, %36, %37, %38, %39, %40, %41 in 1 : vector<8x64xf32>, vector<8x64xf32>, vector<8x64xf32>, vector<8x64xf32>, vector<8x64xf32>, vector<8x64xf32>, vector<8x64xf32>, vector<8x64xf32>, vector<8x64xf32> -> vector<8x576xf32>
    %43 = arith.truncf %42 : vector<8x576xf32> to vector<8x576xbf16>
    %cst_42 = arith.constant dense<0.000000e+00> : vector<8x64xf32>
    %44 = tpu.matmul %43, %0, %cst_42 {dimension_numbers = #tpu.dot_dimension_numbers<[1], [0], [0], [1], [0, 0, 1, 1], [], []>} : vector<8x576xbf16>, vector<576x64xbf16>, vector<8x64xf32> -> vector<8x64xf32>
    %c0_43 = arith.constant 0 : index
    %c0_44 = arith.constant 0 : index
    %c0_45 = arith.constant 0 : index
    %c0_46 = arith.constant 0 : index
    %45 = vector.load %arg13[%c0_43, %c0_44, %c0_45, %c0_46] : memref<1x8x8x64xf32, #tpu.memory_space<vmem>>, vector<1x1x8x64xf32>
    %46 = vector.shape_cast %45 : vector<1x1x8x64xf32> to vector<8x64xf32>
    %47 = vector.shape_cast %44 : vector<8x64xf32> to vector<1x1x8x64xf32>
    tpu.vector_store %arg13[%c0_43, %c0_44, %c0_45, %c0_46], %47 {strides = array<i32>} : memref<1x8x8x64xf32, #tpu.memory_space<vmem>>, vector<1x1x8x64xf32>,
    %cst_47 = arith.constant dense<0.000000e+00> : vector<64xf32>
    %48 = vector.multi_reduction <add>, %44, %cst_47 [0] : vector<8x64xf32> to vector<64xf32>
    %49 = vector.shape_cast %48 : vector<64xf32> to vector<1x64xf32>
    %50 = arith.addf %31, %49 : vector<1x64xf32>
    %51 = arith.mulf %44, %44 : vector<8x64xf32>
    %cst_48 = arith.constant dense<0.000000e+00> : vector<64xf32>
    %52 = vector.multi_reduction <add>, %51, %cst_48 [0] : vector<8x64xf32> to vector<64xf32>
    %53 = vector.shape_cast %52 : vector<64xf32> to vector<1x64xf32>
    %54 = arith.addf %32, %53 : vector<1x64xf32>
    %55 = vector.extract_strided_slice %6 {offsets = [0, 0], sizes = [8, 64], strides = [1, 1]} : vector<10x64xf32> to vector<8x64xf32>
    %56 = vector.extract_strided_slice %6 {offsets = [1, 0], sizes = [8, 64], strides = [1, 1]} : vector<10x64xf32> to vector<8x64xf32>
    %57 = vector.extract_strided_slice %6 {offsets = [2, 0], sizes = [8, 64], strides = [1, 1]} : vector<10x64xf32> to vector<8x64xf32>
    %58 = vector.extract_strided_slice %9 {offsets = [0, 0], sizes = [8, 64], strides = [1, 1]} : vector<10x64xf32> to vector<8x64xf32>
    %59 = vector.extract_strided_slice %9 {offsets = [1, 0], sizes = [8, 64], strides = [1, 1]} : vector<10x64xf32> to vector<8x64xf32>
    %60 = vector.extract_strided_slice %9 {offsets = [2, 0], sizes = [8, 64], strides = [1, 1]} : vector<10x64xf32> to vector<8x64xf32>
    %61 = vector.extract_strided_slice %12 {offsets = [0, 0], sizes = [8, 64], strides = [1, 1]} : vector<10x64xf32> to vector<8x64xf32>
    %62 = vector.extract_strided_slice %12 {offsets = [1, 0], sizes = [8, 64], strides = [1, 1]} : vector<10x64xf32> to vector<8x64xf32>
    %63 = vector.extract_strided_slice %12 {offsets = [2, 0], sizes = [8, 64], strides = [1, 1]} : vector<10x64xf32> to vector<8x64xf32>
    %64 = tpu.concatenate %55, %56, %57, %58, %59, %60, %61, %62, %63 in 1 : vector<8x64xf32>, vector<8x64xf32>, vector<8x64xf32>, vector<8x64xf32>, vector<8x64xf32>, vector<8x64xf32>, vector<8x64xf32>, vector<8x64xf32>, vector<8x64xf32> -> vector<8x576xf32>
    %65 = arith.truncf %64 : vector<8x576xf32> to vector<8x576xbf16>
    %cst_49 = arith.constant dense<0.000000e+00> : vector<8x64xf32>
    %66 = tpu.matmul %65, %0, %cst_49 {dimension_numbers = #tpu.dot_dimension_numbers<[1], [0], [0], [1], [0, 0, 1, 1], [], []>} : vector<8x576xbf16>, vector<576x64xbf16>, vector<8x64xf32> -> vector<8x64xf32>
    %c0_50 = arith.constant 0 : index
    %c1 = arith.constant 1 : index
    %c0_51 = arith.constant 0 : index
    %c0_52 = arith.constant 0 : index
    %67 = vector.load %arg13[%c0_50, %c1, %c0_51, %c0_52] : memref<1x8x8x64xf32, #tpu.memory_space<vmem>>, vector<1x1x8x64xf32>
    %68 = vector.shape_cast %67 : vector<1x1x8x64xf32> to vector<8x64xf32>
    %69 = vector.shape_cast %66 : vector<8x64xf32> to vector<1x1x8x64xf32>
    tpu.vector_store %arg13[%c0_50, %c1, %c0_51, %c0_52], %69 {strides = array<i32>} : memref<1x8x8x64xf32, #tpu.memory_space<vmem>>, vector<1x1x8x64xf32>,
    %cst_53 = arith.constant dense<0.000000e+00> : vector<64xf32>
    %70 = vector.multi_reduction <add>, %66, %cst_53 [0] : vector<8x64xf32> to vector<64xf32>
    %71 = vector.shape_cast %70 : vector<64xf32> to vector<1x64xf32>
    %72 = arith.addf %50, %71 : vector<1x64xf32>
    %73 = arith.mulf %66, %66 : vector<8x64xf32>
    %cst_54 = arith.constant dense<0.000000e+00> : vector<64xf32>
    %74 = vector.multi_reduction <add>, %73, %cst_54 [0] : vector<8x64xf32> to vector<64xf32>
    %75 = vector.shape_cast %74 : vector<64xf32> to vector<1x64xf32>
    %76 = arith.addf %54, %75 : vector<1x64xf32>
    %77 = vector.extract_strided_slice %9 {offsets = [0, 0], sizes = [8, 64], strides = [1, 1]} : vector<10x64xf32> to vector<8x64xf32>
    %78 = vector.extract_strided_slice %9 {offsets = [1, 0], sizes = [8, 64], strides = [1, 1]} : vector<10x64xf32> to vector<8x64xf32>
    %79 = vector.extract_strided_slice %9 {offsets = [2, 0], sizes = [8, 64], strides = [1, 1]} : vector<10x64xf32> to vector<8x64xf32>
    %80 = vector.extract_strided_slice %12 {offsets = [0, 0], sizes = [8, 64], strides = [1, 1]} : vector<10x64xf32> to vector<8x64xf32>
    %81 = vector.extract_strided_slice %12 {offsets = [1, 0], sizes = [8, 64], strides = [1, 1]} : vector<10x64xf32> to vector<8x64xf32>
    %82 = vector.extract_strided_slice %12 {offsets = [2, 0], sizes = [8, 64], strides = [1, 1]} : vector<10x64xf32> to vector<8x64xf32>
    %83 = vector.extract_strided_slice %15 {offsets = [0, 0], sizes = [8, 64], strides = [1, 1]} : vector<10x64xf32> to vector<8x64xf32>
    %84 = vector.extract_strided_slice %15 {offsets = [1, 0], sizes = [8, 64], strides = [1, 1]} : vector<10x64xf32> to vector<8x64xf32>
    %85 = vector.extract_strided_slice %15 {offsets = [2, 0], sizes = [8, 64], strides = [1, 1]} : vector<10x64xf32> to vector<8x64xf32>
    %86 = tpu.concatenate %77, %78, %79, %80, %81, %82, %83, %84, %85 in 1 : vector<8x64xf32>, vector<8x64xf32>, vector<8x64xf32>, vector<8x64xf32>, vector<8x64xf32>, vector<8x64xf32>, vector<8x64xf32>, vector<8x64xf32>, vector<8x64xf32> -> vector<8x576xf32>
    %87 = arith.truncf %86 : vector<8x576xf32> to vector<8x576xbf16>
    %cst_55 = arith.constant dense<0.000000e+00> : vector<8x64xf32>
    %88 = tpu.matmul %87, %0, %cst_55 {dimension_numbers = #tpu.dot_dimension_numbers<[1], [0], [0], [1], [0, 0, 1, 1], [], []>} : vector<8x576xbf16>, vector<576x64xbf16>, vector<8x64xf32> -> vector<8x64xf32>
    %c0_56 = arith.constant 0 : index
    %c2 = arith.constant 2 : index
    %c0_57 = arith.constant 0 : index
    %c0_58 = arith.constant 0 : index
    %89 = vector.load %arg13[%c0_56, %c2, %c0_57, %c0_58] : memref<1x8x8x64xf32, #tpu.memory_space<vmem>>, vector<1x1x8x64xf32>
    %90 = vector.shape_cast %89 : vector<1x1x8x64xf32> to vector<8x64xf32>
    %91 = vector.shape_cast %88 : vector<8x64xf32> to vector<1x1x8x64xf32>
    tpu.vector_store %arg13[%c0_56, %c2, %c0_57, %c0_58], %91 {strides = array<i32>} : memref<1x8x8x64xf32, #tpu.memory_space<vmem>>, vector<1x1x8x64xf32>,
    %cst_59 = arith.constant dense<0.000000e+00> : vector<64xf32>
    %92 = vector.multi_reduction <add>, %88, %cst_59 [0] : vector<8x64xf32> to vector<64xf32>
    %93 = vector.shape_cast %92 : vector<64xf32> to vector<1x64xf32>
    %94 = arith.addf %72, %93 : vector<1x64xf32>
    %95 = arith.mulf %88, %88 : vector<8x64xf32>
    %cst_60 = arith.constant dense<0.000000e+00> : vector<64xf32>
    %96 = vector.multi_reduction <add>, %95, %cst_60 [0] : vector<8x64xf32> to vector<64xf32>
    %97 = vector.shape_cast %96 : vector<64xf32> to vector<1x64xf32>
    %98 = arith.addf %76, %97 : vector<1x64xf32>
    %99 = vector.extract_strided_slice %12 {offsets = [0, 0], sizes = [8, 64], strides = [1, 1]} : vector<10x64xf32> to vector<8x64xf32>
    %100 = vector.extract_strided_slice %12 {offsets = [1, 0], sizes = [8, 64], strides = [1, 1]} : vector<10x64xf32> to vector<8x64xf32>
    %101 = vector.extract_strided_slice %12 {offsets = [2, 0], sizes = [8, 64], strides = [1, 1]} : vector<10x64xf32> to vector<8x64xf32>
    %102 = vector.extract_strided_slice %15 {offsets = [0, 0], sizes = [8, 64], strides = [1, 1]} : vector<10x64xf32> to vector<8x64xf32>
    %103 = vector.extract_strided_slice %15 {offsets = [1, 0], sizes = [8, 64], strides = [1, 1]} : vector<10x64xf32> to vector<8x64xf32>
    %104 = vector.extract_strided_slice %15 {offsets = [2, 0], sizes = [8, 64], strides = [1, 1]} : vector<10x64xf32> to vector<8x64xf32>
    %105 = vector.extract_strided_slice %18 {offsets = [0, 0], sizes = [8, 64], strides = [1, 1]} : vector<10x64xf32> to vector<8x64xf32>
    %106 = vector.extract_strided_slice %18 {offsets = [1, 0], sizes = [8, 64], strides = [1, 1]} : vector<10x64xf32> to vector<8x64xf32>
    %107 = vector.extract_strided_slice %18 {offsets = [2, 0], sizes = [8, 64], strides = [1, 1]} : vector<10x64xf32> to vector<8x64xf32>
    %108 = tpu.concatenate %99, %100, %101, %102, %103, %104, %105, %106, %107 in 1 : vector<8x64xf32>, vector<8x64xf32>, vector<8x64xf32>, vector<8x64xf32>, vector<8x64xf32>, vector<8x64xf32>, vector<8x64xf32>, vector<8x64xf32>, vector<8x64xf32> -> vector<8x576xf32>
    %109 = arith.truncf %108 : vector<8x576xf32> to vector<8x576xbf16>
    %cst_61 = arith.constant dense<0.000000e+00> : vector<8x64xf32>
    %110 = tpu.matmul %109, %0, %cst_61 {dimension_numbers = #tpu.dot_dimension_numbers<[1], [0], [0], [1], [0, 0, 1, 1], [], []>} : vector<8x576xbf16>, vector<576x64xbf16>, vector<8x64xf32> -> vector<8x64xf32>
    %c0_62 = arith.constant 0 : index
    %c3 = arith.constant 3 : index
    %c0_63 = arith.constant 0 : index
    %c0_64 = arith.constant 0 : index
    %111 = vector.load %arg13[%c0_62, %c3, %c0_63, %c0_64] : memref<1x8x8x64xf32, #tpu.memory_space<vmem>>, vector<1x1x8x64xf32>
    %112 = vector.shape_cast %111 : vector<1x1x8x64xf32> to vector<8x64xf32>
    %113 = vector.shape_cast %110 : vector<8x64xf32> to vector<1x1x8x64xf32>
    tpu.vector_store %arg13[%c0_62, %c3, %c0_63, %c0_64], %113 {strides = array<i32>} : memref<1x8x8x64xf32, #tpu.memory_space<vmem>>, vector<1x1x8x64xf32>,
    %cst_65 = arith.constant dense<0.000000e+00> : vector<64xf32>
    %114 = vector.multi_reduction <add>, %110, %cst_65 [0] : vector<8x64xf32> to vector<64xf32>
    %115 = vector.shape_cast %114 : vector<64xf32> to vector<1x64xf32>
    %116 = arith.addf %94, %115 : vector<1x64xf32>
    %117 = arith.mulf %110, %110 : vector<8x64xf32>
    %cst_66 = arith.constant dense<0.000000e+00> : vector<64xf32>
    %118 = vector.multi_reduction <add>, %117, %cst_66 [0] : vector<8x64xf32> to vector<64xf32>
    %119 = vector.shape_cast %118 : vector<64xf32> to vector<1x64xf32>
    %120 = arith.addf %98, %119 : vector<1x64xf32>
    %121 = vector.extract_strided_slice %15 {offsets = [0, 0], sizes = [8, 64], strides = [1, 1]} : vector<10x64xf32> to vector<8x64xf32>
    %122 = vector.extract_strided_slice %15 {offsets = [1, 0], sizes = [8, 64], strides = [1, 1]} : vector<10x64xf32> to vector<8x64xf32>
    %123 = vector.extract_strided_slice %15 {offsets = [2, 0], sizes = [8, 64], strides = [1, 1]} : vector<10x64xf32> to vector<8x64xf32>
    %124 = vector.extract_strided_slice %18 {offsets = [0, 0], sizes = [8, 64], strides = [1, 1]} : vector<10x64xf32> to vector<8x64xf32>
    %125 = vector.extract_strided_slice %18 {offsets = [1, 0], sizes = [8, 64], strides = [1, 1]} : vector<10x64xf32> to vector<8x64xf32>
    %126 = vector.extract_strided_slice %18 {offsets = [2, 0], sizes = [8, 64], strides = [1, 1]} : vector<10x64xf32> to vector<8x64xf32>
    %127 = vector.extract_strided_slice %21 {offsets = [0, 0], sizes = [8, 64], strides = [1, 1]} : vector<10x64xf32> to vector<8x64xf32>
    %128 = vector.extract_strided_slice %21 {offsets = [1, 0], sizes = [8, 64], strides = [1, 1]} : vector<10x64xf32> to vector<8x64xf32>
    %129 = vector.extract_strided_slice %21 {offsets = [2, 0], sizes = [8, 64], strides = [1, 1]} : vector<10x64xf32> to vector<8x64xf32>
    %130 = tpu.concatenate %121, %122, %123, %124, %125, %126, %127, %128, %129 in 1 : vector<8x64xf32>, vector<8x64xf32>, vector<8x64xf32>, vector<8x64xf32>, vector<8x64xf32>, vector<8x64xf32>, vector<8x64xf32>, vector<8x64xf32>, vector<8x64xf32> -> vector<8x576xf32>
    %131 = arith.truncf %130 : vector<8x576xf32> to vector<8x576xbf16>
    %cst_67 = arith.constant dense<0.000000e+00> : vector<8x64xf32>
    %132 = tpu.matmul %131, %0, %cst_67 {dimension_numbers = #tpu.dot_dimension_numbers<[1], [0], [0], [1], [0, 0, 1, 1], [], []>} : vector<8x576xbf16>, vector<576x64xbf16>, vector<8x64xf32> -> vector<8x64xf32>
    %c0_68 = arith.constant 0 : index
    %c4 = arith.constant 4 : index
    %c0_69 = arith.constant 0 : index
    %c0_70 = arith.constant 0 : index
    %133 = vector.load %arg13[%c0_68, %c4, %c0_69, %c0_70] : memref<1x8x8x64xf32, #tpu.memory_space<vmem>>, vector<1x1x8x64xf32>
    %134 = vector.shape_cast %133 : vector<1x1x8x64xf32> to vector<8x64xf32>
    %135 = vector.shape_cast %132 : vector<8x64xf32> to vector<1x1x8x64xf32>
    tpu.vector_store %arg13[%c0_68, %c4, %c0_69, %c0_70], %135 {strides = array<i32>} : memref<1x8x8x64xf32, #tpu.memory_space<vmem>>, vector<1x1x8x64xf32>,
    %cst_71 = arith.constant dense<0.000000e+00> : vector<64xf32>
    %136 = vector.multi_reduction <add>, %132, %cst_71 [0] : vector<8x64xf32> to vector<64xf32>
    %137 = vector.shape_cast %136 : vector<64xf32> to vector<1x64xf32>
    %138 = arith.addf %116, %137 : vector<1x64xf32>
    %139 = arith.mulf %132, %132 : vector<8x64xf32>
    %cst_72 = arith.constant dense<0.000000e+00> : vector<64xf32>
    %140 = vector.multi_reduction <add>, %139, %cst_72 [0] : vector<8x64xf32> to vector<64xf32>
    %141 = vector.shape_cast %140 : vector<64xf32> to vector<1x64xf32>
    %142 = arith.addf %120, %141 : vector<1x64xf32>
    %143 = vector.extract_strided_slice %18 {offsets = [0, 0], sizes = [8, 64], strides = [1, 1]} : vector<10x64xf32> to vector<8x64xf32>
    %144 = vector.extract_strided_slice %18 {offsets = [1, 0], sizes = [8, 64], strides = [1, 1]} : vector<10x64xf32> to vector<8x64xf32>
    %145 = vector.extract_strided_slice %18 {offsets = [2, 0], sizes = [8, 64], strides = [1, 1]} : vector<10x64xf32> to vector<8x64xf32>
    %146 = vector.extract_strided_slice %21 {offsets = [0, 0], sizes = [8, 64], strides = [1, 1]} : vector<10x64xf32> to vector<8x64xf32>
    %147 = vector.extract_strided_slice %21 {offsets = [1, 0], sizes = [8, 64], strides = [1, 1]} : vector<10x64xf32> to vector<8x64xf32>
    %148 = vector.extract_strided_slice %21 {offsets = [2, 0], sizes = [8, 64], strides = [1, 1]} : vector<10x64xf32> to vector<8x64xf32>
    %149 = vector.extract_strided_slice %24 {offsets = [0, 0], sizes = [8, 64], strides = [1, 1]} : vector<10x64xf32> to vector<8x64xf32>
    %150 = vector.extract_strided_slice %24 {offsets = [1, 0], sizes = [8, 64], strides = [1, 1]} : vector<10x64xf32> to vector<8x64xf32>
    %151 = vector.extract_strided_slice %24 {offsets = [2, 0], sizes = [8, 64], strides = [1, 1]} : vector<10x64xf32> to vector<8x64xf32>
    %152 = tpu.concatenate %143, %144, %145, %146, %147, %148, %149, %150, %151 in 1 : vector<8x64xf32>, vector<8x64xf32>, vector<8x64xf32>, vector<8x64xf32>, vector<8x64xf32>, vector<8x64xf32>, vector<8x64xf32>, vector<8x64xf32>, vector<8x64xf32> -> vector<8x576xf32>
    %153 = arith.truncf %152 : vector<8x576xf32> to vector<8x576xbf16>
    %cst_73 = arith.constant dense<0.000000e+00> : vector<8x64xf32>
    %154 = tpu.matmul %153, %0, %cst_73 {dimension_numbers = #tpu.dot_dimension_numbers<[1], [0], [0], [1], [0, 0, 1, 1], [], []>} : vector<8x576xbf16>, vector<576x64xbf16>, vector<8x64xf32> -> vector<8x64xf32>
    %c0_74 = arith.constant 0 : index
    %c5 = arith.constant 5 : index
    %c0_75 = arith.constant 0 : index
    %c0_76 = arith.constant 0 : index
    %155 = vector.load %arg13[%c0_74, %c5, %c0_75, %c0_76] : memref<1x8x8x64xf32, #tpu.memory_space<vmem>>, vector<1x1x8x64xf32>
    %156 = vector.shape_cast %155 : vector<1x1x8x64xf32> to vector<8x64xf32>
    %157 = vector.shape_cast %154 : vector<8x64xf32> to vector<1x1x8x64xf32>
    tpu.vector_store %arg13[%c0_74, %c5, %c0_75, %c0_76], %157 {strides = array<i32>} : memref<1x8x8x64xf32, #tpu.memory_space<vmem>>, vector<1x1x8x64xf32>,
    %cst_77 = arith.constant dense<0.000000e+00> : vector<64xf32>
    %158 = vector.multi_reduction <add>, %154, %cst_77 [0] : vector<8x64xf32> to vector<64xf32>
    %159 = vector.shape_cast %158 : vector<64xf32> to vector<1x64xf32>
    %160 = arith.addf %138, %159 : vector<1x64xf32>
    %161 = arith.mulf %154, %154 : vector<8x64xf32>
    %cst_78 = arith.constant dense<0.000000e+00> : vector<64xf32>
    %162 = vector.multi_reduction <add>, %161, %cst_78 [0] : vector<8x64xf32> to vector<64xf32>
    %163 = vector.shape_cast %162 : vector<64xf32> to vector<1x64xf32>
    %164 = arith.addf %142, %163 : vector<1x64xf32>
    %165 = vector.extract_strided_slice %21 {offsets = [0, 0], sizes = [8, 64], strides = [1, 1]} : vector<10x64xf32> to vector<8x64xf32>
    %166 = vector.extract_strided_slice %21 {offsets = [1, 0], sizes = [8, 64], strides = [1, 1]} : vector<10x64xf32> to vector<8x64xf32>
    %167 = vector.extract_strided_slice %21 {offsets = [2, 0], sizes = [8, 64], strides = [1, 1]} : vector<10x64xf32> to vector<8x64xf32>
    %168 = vector.extract_strided_slice %24 {offsets = [0, 0], sizes = [8, 64], strides = [1, 1]} : vector<10x64xf32> to vector<8x64xf32>
    %169 = vector.extract_strided_slice %24 {offsets = [1, 0], sizes = [8, 64], strides = [1, 1]} : vector<10x64xf32> to vector<8x64xf32>
    %170 = vector.extract_strided_slice %24 {offsets = [2, 0], sizes = [8, 64], strides = [1, 1]} : vector<10x64xf32> to vector<8x64xf32>
    %171 = vector.extract_strided_slice %27 {offsets = [0, 0], sizes = [8, 64], strides = [1, 1]} : vector<10x64xf32> to vector<8x64xf32>
    %172 = vector.extract_strided_slice %27 {offsets = [1, 0], sizes = [8, 64], strides = [1, 1]} : vector<10x64xf32> to vector<8x64xf32>
    %173 = vector.extract_strided_slice %27 {offsets = [2, 0], sizes = [8, 64], strides = [1, 1]} : vector<10x64xf32> to vector<8x64xf32>
    %174 = tpu.concatenate %165, %166, %167, %168, %169, %170, %171, %172, %173 in 1 : vector<8x64xf32>, vector<8x64xf32>, vector<8x64xf32>, vector<8x64xf32>, vector<8x64xf32>, vector<8x64xf32>, vector<8x64xf32>, vector<8x64xf32>, vector<8x64xf32> -> vector<8x576xf32>
    %175 = arith.truncf %174 : vector<8x576xf32> to vector<8x576xbf16>
    %cst_79 = arith.constant dense<0.000000e+00> : vector<8x64xf32>
    %176 = tpu.matmul %175, %0, %cst_79 {dimension_numbers = #tpu.dot_dimension_numbers<[1], [0], [0], [1], [0, 0, 1, 1], [], []>} : vector<8x576xbf16>, vector<576x64xbf16>, vector<8x64xf32> -> vector<8x64xf32>
    %c0_80 = arith.constant 0 : index
    %c6 = arith.constant 6 : index
    %c0_81 = arith.constant 0 : index
    %c0_82 = arith.constant 0 : index
    %177 = vector.load %arg13[%c0_80, %c6, %c0_81, %c0_82] : memref<1x8x8x64xf32, #tpu.memory_space<vmem>>, vector<1x1x8x64xf32>
    %178 = vector.shape_cast %177 : vector<1x1x8x64xf32> to vector<8x64xf32>
    %179 = vector.shape_cast %176 : vector<8x64xf32> to vector<1x1x8x64xf32>
    tpu.vector_store %arg13[%c0_80, %c6, %c0_81, %c0_82], %179 {strides = array<i32>} : memref<1x8x8x64xf32, #tpu.memory_space<vmem>>, vector<1x1x8x64xf32>,
    %cst_83 = arith.constant dense<0.000000e+00> : vector<64xf32>
    %180 = vector.multi_reduction <add>, %176, %cst_83 [0] : vector<8x64xf32> to vector<64xf32>
    %181 = vector.shape_cast %180 : vector<64xf32> to vector<1x64xf32>
    %182 = arith.addf %160, %181 : vector<1x64xf32>
    %183 = arith.mulf %176, %176 : vector<8x64xf32>
    %cst_84 = arith.constant dense<0.000000e+00> : vector<64xf32>
    %184 = vector.multi_reduction <add>, %183, %cst_84 [0] : vector<8x64xf32> to vector<64xf32>
    %185 = vector.shape_cast %184 : vector<64xf32> to vector<1x64xf32>
    %186 = arith.addf %164, %185 : vector<1x64xf32>
    %187 = vector.extract_strided_slice %24 {offsets = [0, 0], sizes = [8, 64], strides = [1, 1]} : vector<10x64xf32> to vector<8x64xf32>
    %188 = vector.extract_strided_slice %24 {offsets = [1, 0], sizes = [8, 64], strides = [1, 1]} : vector<10x64xf32> to vector<8x64xf32>
    %189 = vector.extract_strided_slice %24 {offsets = [2, 0], sizes = [8, 64], strides = [1, 1]} : vector<10x64xf32> to vector<8x64xf32>
    %190 = vector.extract_strided_slice %27 {offsets = [0, 0], sizes = [8, 64], strides = [1, 1]} : vector<10x64xf32> to vector<8x64xf32>
    %191 = vector.extract_strided_slice %27 {offsets = [1, 0], sizes = [8, 64], strides = [1, 1]} : vector<10x64xf32> to vector<8x64xf32>
    %192 = vector.extract_strided_slice %27 {offsets = [2, 0], sizes = [8, 64], strides = [1, 1]} : vector<10x64xf32> to vector<8x64xf32>
    %193 = vector.extract_strided_slice %30 {offsets = [0, 0], sizes = [8, 64], strides = [1, 1]} : vector<10x64xf32> to vector<8x64xf32>
    %194 = vector.extract_strided_slice %30 {offsets = [1, 0], sizes = [8, 64], strides = [1, 1]} : vector<10x64xf32> to vector<8x64xf32>
    %195 = vector.extract_strided_slice %30 {offsets = [2, 0], sizes = [8, 64], strides = [1, 1]} : vector<10x64xf32> to vector<8x64xf32>
    %196 = tpu.concatenate %187, %188, %189, %190, %191, %192, %193, %194, %195 in 1 : vector<8x64xf32>, vector<8x64xf32>, vector<8x64xf32>, vector<8x64xf32>, vector<8x64xf32>, vector<8x64xf32>, vector<8x64xf32>, vector<8x64xf32>, vector<8x64xf32> -> vector<8x576xf32>
    %197 = arith.truncf %196 : vector<8x576xf32> to vector<8x576xbf16>
    %cst_85 = arith.constant dense<0.000000e+00> : vector<8x64xf32>
    %198 = tpu.matmul %197, %0, %cst_85 {dimension_numbers = #tpu.dot_dimension_numbers<[1], [0], [0], [1], [0, 0, 1, 1], [], []>} : vector<8x576xbf16>, vector<576x64xbf16>, vector<8x64xf32> -> vector<8x64xf32>
    %c0_86 = arith.constant 0 : index
    %c7 = arith.constant 7 : index
    %c0_87 = arith.constant 0 : index
    %c0_88 = arith.constant 0 : index
    %199 = vector.load %arg13[%c0_86, %c7, %c0_87, %c0_88] : memref<1x8x8x64xf32, #tpu.memory_space<vmem>>, vector<1x1x8x64xf32>
    %200 = vector.shape_cast %199 : vector<1x1x8x64xf32> to vector<8x64xf32>
    %201 = vector.shape_cast %198 : vector<8x64xf32> to vector<1x1x8x64xf32>
    tpu.vector_store %arg13[%c0_86, %c7, %c0_87, %c0_88], %201 {strides = array<i32>} : memref<1x8x8x64xf32, #tpu.memory_space<vmem>>, vector<1x1x8x64xf32>,
    %cst_89 = arith.constant dense<0.000000e+00> : vector<64xf32>
    %202 = vector.multi_reduction <add>, %198, %cst_89 [0] : vector<8x64xf32> to vector<64xf32>
    %203 = vector.shape_cast %202 : vector<64xf32> to vector<1x64xf32>
    %204 = arith.addf %182, %203 : vector<1x64xf32>
    %205 = arith.mulf %198, %198 : vector<8x64xf32>
    %cst_90 = arith.constant dense<0.000000e+00> : vector<64xf32>
    %206 = vector.multi_reduction <add>, %205, %cst_90 [0] : vector<8x64xf32> to vector<64xf32>
    %207 = vector.shape_cast %206 : vector<64xf32> to vector<1x64xf32>
    %208 = arith.addf %186, %207 : vector<1x64xf32>
    %c0_91 = arith.constant 0 : index
    %c0_92 = arith.constant 0 : index
    %c0_93 = arith.constant 0 : index
    %c0_94 = arith.constant 0 : index
    %209 = vector.load %arg14[%c0_91, %c0_92, %c0_93, %c0_94] : memref<1x1x1x64xf32, #tpu.memory_space<vmem>>, vector<1x1x1x64xf32>
    %210 = vector.shape_cast %209 : vector<1x1x1x64xf32> to vector<1x64xf32>
    %211 = vector.shape_cast %204 : vector<1x64xf32> to vector<1x1x1x64xf32>
    tpu.vector_store %arg14[%c0_91, %c0_92, %c0_93, %c0_94], %211 {strides = array<i32>} : memref<1x1x1x64xf32, #tpu.memory_space<vmem>>, vector<1x1x1x64xf32>,
    %c0_95 = arith.constant 0 : index
    %c0_96 = arith.constant 0 : index
    %c0_97 = arith.constant 0 : index
    %c0_98 = arith.constant 0 : index
    %212 = vector.load %arg15[%c0_95, %c0_96, %c0_97, %c0_98] : memref<1x1x1x64xf32, #tpu.memory_space<vmem>>, vector<1x1x1x64xf32>
    %213 = vector.shape_cast %212 : vector<1x1x1x64xf32> to vector<1x64xf32>
    %214 = vector.shape_cast %208 : vector<1x64xf32> to vector<1x1x1x64xf32>
    tpu.vector_store %arg15[%c0_95, %c0_96, %c0_97, %c0_98], %214 {strides = array<i32>} : memref<1x1x1x64xf32, #tpu.memory_space<vmem>>, vector<1x1x1x64xf32>,
    return
  }
  func.func @transform_0(%arg0: i32, %arg1: i32) -> (i32, i32, i32, i32) {
    %c8_i32 = arith.constant 8 : i32
    %0 = arith.muli %arg1, %c8_i32 : i32
    %c0_i32 = arith.constant 0 : i32
    %1 = arith.addi %0, %c0_i32 : i32
    %c0_i32_0 = arith.constant 0 : i32
    %c0_i32_1 = arith.constant 0 : i32
    %c0_i32_2 = arith.constant 0 : i32
    return %arg0, %1, %c0_i32_0, %c0_i32_1 : i32, i32, i32, i32
  }
  func.func @transform_1(%arg0: i32, %arg1: i32) -> (i32, i32, i32, i32) {
    %c8_i32 = arith.constant 8 : i32
    %0 = arith.muli %arg1, %c8_i32 : i32
    %c1_i32 = arith.constant 1 : i32
    %1 = arith.addi %0, %c1_i32 : i32
    %c0_i32 = arith.constant 0 : i32
    %c0_i32_0 = arith.constant 0 : i32
    %c0_i32_1 = arith.constant 0 : i32
    return %arg0, %1, %c0_i32, %c0_i32_0 : i32, i32, i32, i32
  }
  func.func @transform_2(%arg0: i32, %arg1: i32) -> (i32, i32, i32, i32) {
    %c8_i32 = arith.constant 8 : i32
    %0 = arith.muli %arg1, %c8_i32 : i32
    %c2_i32 = arith.constant 2 : i32
    %1 = arith.addi %0, %c2_i32 : i32
    %c0_i32 = arith.constant 0 : i32
    %c0_i32_0 = arith.constant 0 : i32
    %c0_i32_1 = arith.constant 0 : i32
    return %arg0, %1, %c0_i32, %c0_i32_0 : i32, i32, i32, i32
  }
  func.func @transform_3(%arg0: i32, %arg1: i32) -> (i32, i32, i32, i32) {
    %c8_i32 = arith.constant 8 : i32
    %0 = arith.muli %arg1, %c8_i32 : i32
    %c3_i32 = arith.constant 3 : i32
    %1 = arith.addi %0, %c3_i32 : i32
    %c0_i32 = arith.constant 0 : i32
    %c0_i32_0 = arith.constant 0 : i32
    %c0_i32_1 = arith.constant 0 : i32
    return %arg0, %1, %c0_i32, %c0_i32_0 : i32, i32, i32, i32
  }
  func.func @transform_4(%arg0: i32, %arg1: i32) -> (i32, i32, i32, i32) {
    %c8_i32 = arith.constant 8 : i32
    %0 = arith.muli %arg1, %c8_i32 : i32
    %c4_i32 = arith.constant 4 : i32
    %1 = arith.addi %0, %c4_i32 : i32
    %c0_i32 = arith.constant 0 : i32
    %c0_i32_0 = arith.constant 0 : i32
    %c0_i32_1 = arith.constant 0 : i32
    return %arg0, %1, %c0_i32, %c0_i32_0 : i32, i32, i32, i32
  }
  func.func @transform_5(%arg0: i32, %arg1: i32) -> (i32, i32, i32, i32) {
    %c8_i32 = arith.constant 8 : i32
    %0 = arith.muli %arg1, %c8_i32 : i32
    %c5_i32 = arith.constant 5 : i32
    %1 = arith.addi %0, %c5_i32 : i32
    %c0_i32 = arith.constant 0 : i32
    %c0_i32_0 = arith.constant 0 : i32
    %c0_i32_1 = arith.constant 0 : i32
    return %arg0, %1, %c0_i32, %c0_i32_0 : i32, i32, i32, i32
  }
  func.func @transform_6(%arg0: i32, %arg1: i32) -> (i32, i32, i32, i32) {
    %c8_i32 = arith.constant 8 : i32
    %0 = arith.muli %arg1, %c8_i32 : i32
    %c6_i32 = arith.constant 6 : i32
    %1 = arith.addi %0, %c6_i32 : i32
    %c0_i32 = arith.constant 0 : i32
    %c0_i32_0 = arith.constant 0 : i32
    %c0_i32_1 = arith.constant 0 : i32
    return %arg0, %1, %c0_i32, %c0_i32_0 : i32, i32, i32, i32
  }
  func.func @transform_7(%arg0: i32, %arg1: i32) -> (i32, i32, i32, i32) {
    %c8_i32 = arith.constant 8 : i32
    %0 = arith.muli %arg1, %c8_i32 : i32
    %c7_i32 = arith.constant 7 : i32
    %1 = arith.addi %0, %c7_i32 : i32
    %c0_i32 = arith.constant 0 : i32
    %c0_i32_0 = arith.constant 0 : i32
    %c0_i32_1 = arith.constant 0 : i32
    return %arg0, %1, %c0_i32, %c0_i32_0 : i32, i32, i32, i32
  }
  func.func @transform_8(%arg0: i32, %arg1: i32) -> (i32, i32, i32, i32) {
    %c8_i32 = arith.constant 8 : i32
    %0 = arith.muli %arg1, %c8_i32 : i32
    %c8_i32_0 = arith.constant 8 : i32
    %1 = arith.addi %0, %c8_i32_0 : i32
    %c0_i32 = arith.constant 0 : i32
    %c0_i32_1 = arith.constant 0 : i32
    %c0_i32_2 = arith.constant 0 : i32
    return %arg0, %1, %c0_i32, %c0_i32_1 : i32, i32, i32, i32
  }
  func.func @transform_9(%arg0: i32, %arg1: i32) -> (i32, i32, i32, i32) {
    %c8_i32 = arith.constant 8 : i32
    %0 = arith.muli %arg1, %c8_i32 : i32
    %c9_i32 = arith.constant 9 : i32
    %1 = arith.addi %0, %c9_i32 : i32
    %c0_i32 = arith.constant 0 : i32
    %c0_i32_0 = arith.constant 0 : i32
    %c0_i32_1 = arith.constant 0 : i32
    return %arg0, %1, %c0_i32, %c0_i32_0 : i32, i32, i32, i32
  }
  func.func @transform_10(%arg0: i32, %arg1: i32) -> (i32, i32) {
    %c0_i32 = arith.constant 0 : i32
    %c0_i32_0 = arith.constant 0 : i32
    %c0_i32_1 = arith.constant 0 : i32
    return %c0_i32, %c0_i32_0 : i32, i32
  }
  func.func @transform_11(%arg0: i32, %arg1: i32) -> (i32, i32, i32, i32) {
    %c0_i32 = arith.constant 0 : i32
    %c0_i32_0 = arith.constant 0 : i32
    %c0_i32_1 = arith.constant 0 : i32
    return %arg0, %arg1, %c0_i32, %c0_i32_0 : i32, i32, i32, i32
  }
  func.func @transform_12(%arg0: i32, %arg1: i32) -> (i32, i32, i32, i32) {
    %c0_i32 = arith.constant 0 : i32
    %c0_i32_0 = arith.constant 0 : i32
    %c0_i32_1 = arith.constant 0 : i32
    return %arg0, %arg1, %c0_i32, %c0_i32_0 : i32, i32, i32, i32
  }
  func.func @transform_13(%arg0: i32, %arg1: i32) -> (i32, i32, i32, i32) {
    %c0_i32 = arith.constant 0 : i32
    %c0_i32_0 = arith.constant 0 : i32
    %c0_i32_1 = arith.constant 0 : i32
    return %arg0, %arg1, %c0_i32, %c0_i32_0 : i32, i32, i32, i32
  }
}

module attributes {stable_mosaic.version = 11 : i64} {
  func.func @kernel(%arg0: i32, %arg1: i32, %arg2: memref<1x1x4x128xf32, #tpu.memory_space<vmem>>, %arg3: memref<1x1x4x128xf32, #tpu.memory_space<vmem>>, %arg4: memref<1x128xf32, #tpu.memory_space<vmem>>, %arg5: memref<1x128xf32, #tpu.memory_space<vmem>>, %arg6: memref<1x1x4x64xbf16, #tpu.memory_space<vmem>>) attributes {dimension_semantics = [#tpu.dimension_semantics<parallel>, #tpu.dimension_semantics<parallel>], iteration_bounds = array<i64: 2, 4>, scalar_prefetch = 0 : i64, scratch_operands = 0 : i64, tpu.core_type = #tpu.core_type<tc>, window_params = [{transform_indices = @transform_0, window_bounds = array<i64: 1, 1, 4, 128>}, {transform_indices = @transform_1, window_bounds = array<i64: 1, 1, 4, 128>}, {pipeline_mode = #tpu.pipeline_mode<synchronous>, transform_indices = @transform_2, window_bounds = array<i64: 1, 128>}, {pipeline_mode = #tpu.pipeline_mode<synchronous>, transform_indices = @transform_3, window_bounds = array<i64: 1, 128>}, {transform_indices = @transform_4, window_bounds = array<i64: 1, 1, 4, 64>}]} {
    %c0 = arith.constant 0 : index
    %c0_0 = arith.constant 0 : index
    %0 = vector.load %arg4[%c0, %c0_0] : memref<1x128xf32, #tpu.memory_space<vmem>>, vector<1x128xf32>
    %c0_1 = arith.constant 0 : index
    %c0_2 = arith.constant 0 : index
    %1 = vector.load %arg5[%c0_1, %c0_2] : memref<1x128xf32, #tpu.memory_space<vmem>>, vector<1x128xf32>
    %c0_3 = arith.constant 0 : index
    %c0_4 = arith.constant 0 : index
    %c0_5 = arith.constant 0 : index
    %c0_6 = arith.constant 0 : index
    %2 = vector.load %arg2[%c0_3, %c0_4, %c0_5, %c0_6] : memref<1x1x4x128xf32, #tpu.memory_space<vmem>>, vector<1x1x4x128xf32>
    %3 = vector.shape_cast %2 : vector<1x1x4x128xf32> to vector<4x128xf32>
    %4 = vector.broadcast %0 : vector<1x128xf32> to vector<4x128xf32>
    %5 = arith.mulf %3, %4 : vector<4x128xf32>
    %6 = vector.broadcast %1 : vector<1x128xf32> to vector<4x128xf32>
    %7 = arith.addf %5, %6 : vector<4x128xf32>
    %cst = arith.constant 0.000000e+00 : f32
    %8 = vector.broadcast %cst : f32 to vector<4x128xf32>
    %9 = arith.maximumf %7, %8 : vector<4x128xf32>
    %c0_7 = arith.constant 0 : index
    %c0_8 = arith.constant 0 : index
    %c0_9 = arith.constant 0 : index
    %c0_10 = arith.constant 0 : index
    %10 = vector.load %arg3[%c0_7, %c0_8, %c0_9, %c0_10] : memref<1x1x4x128xf32, #tpu.memory_space<vmem>>, vector<1x1x4x128xf32>
    %11 = vector.shape_cast %10 : vector<1x1x4x128xf32> to vector<4x128xf32>
    %12 = vector.broadcast %0 : vector<1x128xf32> to vector<4x128xf32>
    %13 = arith.mulf %11, %12 : vector<4x128xf32>
    %14 = vector.broadcast %1 : vector<1x128xf32> to vector<4x128xf32>
    %15 = arith.addf %13, %14 : vector<4x128xf32>
    %cst_11 = arith.constant 0.000000e+00 : f32
    %16 = vector.broadcast %cst_11 : f32 to vector<4x128xf32>
    %17 = arith.maximumf %15, %16 : vector<4x128xf32>
    %18 = arith.maximumf %9, %17 : vector<4x128xf32>
    %19 = vector.extract_strided_slice %18 {offsets = [0, 0], sizes = [4, 64], strides = [1, 1]} : vector<4x128xf32> to vector<4x64xf32>
    %20 = vector.extract_strided_slice %18 {offsets = [0, 64], sizes = [4, 64], strides = [1, 1]} : vector<4x128xf32> to vector<4x64xf32>
    %21 = arith.maximumf %19, %20 : vector<4x64xf32>
    %22 = arith.truncf %21 : vector<4x64xf32> to vector<4x64xbf16>
    %c0_12 = arith.constant 0 : index
    %c0_13 = arith.constant 0 : index
    %c0_14 = arith.constant 0 : index
    %c0_15 = arith.constant 0 : index
    %23 = vector.load %arg6[%c0_12, %c0_13, %c0_14, %c0_15] : memref<1x1x4x64xbf16, #tpu.memory_space<vmem>>, vector<1x1x4x64xbf16>
    %24 = vector.shape_cast %23 : vector<1x1x4x64xbf16> to vector<4x64xbf16>
    %25 = vector.shape_cast %22 : vector<4x64xbf16> to vector<1x1x4x64xbf16>
    tpu.vector_store %arg6[%c0_12, %c0_13, %c0_14, %c0_15], %25 {strides = array<i32>} : memref<1x1x4x64xbf16, #tpu.memory_space<vmem>>, vector<1x1x4x64xbf16>,
    return
  }
  func.func @transform_0(%arg0: i32, %arg1: i32) -> (i32, i32, i32, i32) {
    %c2_i32 = arith.constant 2 : i32
    %0 = arith.muli %c2_i32, %arg1 : i32
    %c0_i32 = arith.constant 0 : i32
    %c0_i32_0 = arith.constant 0 : i32
    %c0_i32_1 = arith.constant 0 : i32
    return %arg0, %0, %c0_i32, %c0_i32_0 : i32, i32, i32, i32
  }
  func.func @transform_1(%arg0: i32, %arg1: i32) -> (i32, i32, i32, i32) {
    %c2_i32 = arith.constant 2 : i32
    %0 = arith.muli %c2_i32, %arg1 : i32
    %c1_i32 = arith.constant 1 : i32
    %1 = arith.addi %0, %c1_i32 : i32
    %c0_i32 = arith.constant 0 : i32
    %c0_i32_0 = arith.constant 0 : i32
    %c0_i32_1 = arith.constant 0 : i32
    return %arg0, %1, %c0_i32, %c0_i32_0 : i32, i32, i32, i32
  }
  func.func @transform_2(%arg0: i32, %arg1: i32) -> (i32, i32) {
    %c0_i32 = arith.constant 0 : i32
    %c0_i32_0 = arith.constant 0 : i32
    %c0_i32_1 = arith.constant 0 : i32
    return %c0_i32, %c0_i32_0 : i32, i32
  }
  func.func @transform_3(%arg0: i32, %arg1: i32) -> (i32, i32) {
    %c0_i32 = arith.constant 0 : i32
    %c0_i32_0 = arith.constant 0 : i32
    %c0_i32_1 = arith.constant 0 : i32
    return %c0_i32, %c0_i32_0 : i32, i32
  }
  func.func @transform_4(%arg0: i32, %arg1: i32) -> (i32, i32, i32, i32) {
    %c0_i32 = arith.constant 0 : i32
    %c0_i32_0 = arith.constant 0 : i32
    %c0_i32_1 = arith.constant 0 : i32
    return %arg0, %arg1, %c0_i32, %c0_i32_0 : i32, i32, i32, i32
  }
}

module attributes {stable_mosaic.version = 11 : i64} {
  func.func @kernel(%arg0: i32, %arg1: i32, %arg2: memref<1x1x6x64xbf16, #tpu.memory_space<vmem>>, %arg3: memref<1x1x6x64xbf16, #tpu.memory_space<vmem>>, %arg4: memref<1x1x6x64xbf16, #tpu.memory_space<vmem>>, %arg5: memref<1x1x6x64xbf16, #tpu.memory_space<vmem>>, %arg6: memref<1x1x6x64xbf16, #tpu.memory_space<vmem>>, %arg7: memref<1x1x6x64xbf16, #tpu.memory_space<vmem>>, %arg8: memref<576x64xbf16, #tpu.memory_space<vmem>>, %arg9: memref<1x4x4x64xf32, #tpu.memory_space<vmem>>, %arg10: memref<1x1x1x64xf32, #tpu.memory_space<vmem>>, %arg11: memref<1x1x1x64xf32, #tpu.memory_space<vmem>>) attributes {dimension_semantics = [#tpu.dimension_semantics<parallel>, #tpu.dimension_semantics<parallel>], iteration_bounds = array<i64: 2, 1>, scalar_prefetch = 0 : i64, scratch_operands = 0 : i64, tpu.core_type = #tpu.core_type<tc>, window_params = [{transform_indices = @transform_0, window_bounds = array<i64: 1, 1, 6, 64>}, {transform_indices = @transform_1, window_bounds = array<i64: 1, 1, 6, 64>}, {transform_indices = @transform_2, window_bounds = array<i64: 1, 1, 6, 64>}, {transform_indices = @transform_3, window_bounds = array<i64: 1, 1, 6, 64>}, {transform_indices = @transform_4, window_bounds = array<i64: 1, 1, 6, 64>}, {transform_indices = @transform_5, window_bounds = array<i64: 1, 1, 6, 64>}, {pipeline_mode = #tpu.pipeline_mode<synchronous>, transform_indices = @transform_6, window_bounds = array<i64: 576, 64>}, {transform_indices = @transform_7, window_bounds = array<i64: 1, 4, 4, 64>}, {transform_indices = @transform_8, window_bounds = array<i64: 1, 1, 1, 64>}, {transform_indices = @transform_9, window_bounds = array<i64: 1, 1, 1, 64>}]} {
    %c0 = arith.constant 0 : index
    %c0_0 = arith.constant 0 : index
    %0 = vector.load %arg8[%c0, %c0_0] : memref<576x64xbf16, #tpu.memory_space<vmem>>, vector<576x64xbf16>
    %c0_1 = arith.constant 0 : index
    %c0_2 = arith.constant 0 : index
    %c0_3 = arith.constant 0 : index
    %c0_4 = arith.constant 0 : index
    %1 = vector.load %arg2[%c0_1, %c0_2, %c0_3, %c0_4] : memref<1x1x6x64xbf16, #tpu.memory_space<vmem>>, vector<1x1x6x64xbf16>
    %2 = vector.shape_cast %1 : vector<1x1x6x64xbf16> to vector<6x64xbf16>
    %3 = arith.extf %2 : vector<6x64xbf16> to vector<6x64xf32>
    %c0_5 = arith.constant 0 : index
    %c0_6 = arith.constant 0 : index
    %c0_7 = arith.constant 0 : index
    %c0_8 = arith.constant 0 : index
    %4 = vector.load %arg3[%c0_5, %c0_6, %c0_7, %c0_8] : memref<1x1x6x64xbf16, #tpu.memory_space<vmem>>, vector<1x1x6x64xbf16>
    %5 = vector.shape_cast %4 : vector<1x1x6x64xbf16> to vector<6x64xbf16>
    %6 = arith.extf %5 : vector<6x64xbf16> to vector<6x64xf32>
    %c0_9 = arith.constant 0 : index
    %c0_10 = arith.constant 0 : index
    %c0_11 = arith.constant 0 : index
    %c0_12 = arith.constant 0 : index
    %7 = vector.load %arg4[%c0_9, %c0_10, %c0_11, %c0_12] : memref<1x1x6x64xbf16, #tpu.memory_space<vmem>>, vector<1x1x6x64xbf16>
    %8 = vector.shape_cast %7 : vector<1x1x6x64xbf16> to vector<6x64xbf16>
    %9 = arith.extf %8 : vector<6x64xbf16> to vector<6x64xf32>
    %c0_13 = arith.constant 0 : index
    %c0_14 = arith.constant 0 : index
    %c0_15 = arith.constant 0 : index
    %c0_16 = arith.constant 0 : index
    %10 = vector.load %arg5[%c0_13, %c0_14, %c0_15, %c0_16] : memref<1x1x6x64xbf16, #tpu.memory_space<vmem>>, vector<1x1x6x64xbf16>
    %11 = vector.shape_cast %10 : vector<1x1x6x64xbf16> to vector<6x64xbf16>
    %12 = arith.extf %11 : vector<6x64xbf16> to vector<6x64xf32>
    %c0_17 = arith.constant 0 : index
    %c0_18 = arith.constant 0 : index
    %c0_19 = arith.constant 0 : index
    %c0_20 = arith.constant 0 : index
    %13 = vector.load %arg6[%c0_17, %c0_18, %c0_19, %c0_20] : memref<1x1x6x64xbf16, #tpu.memory_space<vmem>>, vector<1x1x6x64xbf16>
    %14 = vector.shape_cast %13 : vector<1x1x6x64xbf16> to vector<6x64xbf16>
    %15 = arith.extf %14 : vector<6x64xbf16> to vector<6x64xf32>
    %c0_21 = arith.constant 0 : index
    %c0_22 = arith.constant 0 : index
    %c0_23 = arith.constant 0 : index
    %c0_24 = arith.constant 0 : index
    %16 = vector.load %arg7[%c0_21, %c0_22, %c0_23, %c0_24] : memref<1x1x6x64xbf16, #tpu.memory_space<vmem>>, vector<1x1x6x64xbf16>
    %17 = vector.shape_cast %16 : vector<1x1x6x64xbf16> to vector<6x64xbf16>
    %18 = arith.extf %17 : vector<6x64xbf16> to vector<6x64xf32>
    %cst = arith.constant 0.000000e+00 : f32
    %19 = vector.broadcast %cst : f32 to vector<1x64xf32>
    %cst_25 = arith.constant 0.000000e+00 : f32
    %20 = vector.broadcast %cst_25 : f32 to vector<1x64xf32>
    %21 = vector.extract_strided_slice %3 {offsets = [0, 0], sizes = [4, 64], strides = [1, 1]} : vector<6x64xf32> to vector<4x64xf32>
    %22 = vector.extract_strided_slice %3 {offsets = [1, 0], sizes = [4, 64], strides = [1, 1]} : vector<6x64xf32> to vector<4x64xf32>
    %23 = vector.extract_strided_slice %3 {offsets = [2, 0], sizes = [4, 64], strides = [1, 1]} : vector<6x64xf32> to vector<4x64xf32>
    %24 = vector.extract_strided_slice %6 {offsets = [0, 0], sizes = [4, 64], strides = [1, 1]} : vector<6x64xf32> to vector<4x64xf32>
    %25 = vector.extract_strided_slice %6 {offsets = [1, 0], sizes = [4, 64], strides = [1, 1]} : vector<6x64xf32> to vector<4x64xf32>
    %26 = vector.extract_strided_slice %6 {offsets = [2, 0], sizes = [4, 64], strides = [1, 1]} : vector<6x64xf32> to vector<4x64xf32>
    %27 = vector.extract_strided_slice %9 {offsets = [0, 0], sizes = [4, 64], strides = [1, 1]} : vector<6x64xf32> to vector<4x64xf32>
    %28 = vector.extract_strided_slice %9 {offsets = [1, 0], sizes = [4, 64], strides = [1, 1]} : vector<6x64xf32> to vector<4x64xf32>
    %29 = vector.extract_strided_slice %9 {offsets = [2, 0], sizes = [4, 64], strides = [1, 1]} : vector<6x64xf32> to vector<4x64xf32>
    %30 = tpu.concatenate %21, %22, %23, %24, %25, %26, %27, %28, %29 in 1 : vector<4x64xf32>, vector<4x64xf32>, vector<4x64xf32>, vector<4x64xf32>, vector<4x64xf32>, vector<4x64xf32>, vector<4x64xf32>, vector<4x64xf32>, vector<4x64xf32> -> vector<4x576xf32>
    %31 = arith.truncf %30 : vector<4x576xf32> to vector<4x576xbf16>
    %cst_26 = arith.constant dense<0.000000e+00> : vector<4x64xf32>
    %32 = tpu.matmul %31, %0, %cst_26 {dimension_numbers = #tpu.dot_dimension_numbers<[1], [0], [0], [1], [0, 0, 1, 1], [], []>} : vector<4x576xbf16>, vector<576x64xbf16>, vector<4x64xf32> -> vector<4x64xf32>
    %c0_27 = arith.constant 0 : index
    %c0_28 = arith.constant 0 : index
    %c0_29 = arith.constant 0 : index
    %c0_30 = arith.constant 0 : index
    %33 = vector.load %arg9[%c0_27, %c0_28, %c0_29, %c0_30] : memref<1x4x4x64xf32, #tpu.memory_space<vmem>>, vector<1x1x4x64xf32>
    %34 = vector.shape_cast %33 : vector<1x1x4x64xf32> to vector<4x64xf32>
    %35 = vector.shape_cast %32 : vector<4x64xf32> to vector<1x1x4x64xf32>
    tpu.vector_store %arg9[%c0_27, %c0_28, %c0_29, %c0_30], %35 {strides = array<i32>} : memref<1x4x4x64xf32, #tpu.memory_space<vmem>>, vector<1x1x4x64xf32>,
    %cst_31 = arith.constant dense<0.000000e+00> : vector<64xf32>
    %36 = vector.multi_reduction <add>, %32, %cst_31 [0] : vector<4x64xf32> to vector<64xf32>
    %37 = vector.shape_cast %36 : vector<64xf32> to vector<1x64xf32>
    %38 = arith.addf %19, %37 : vector<1x64xf32>
    %39 = arith.mulf %32, %32 : vector<4x64xf32>
    %cst_32 = arith.constant dense<0.000000e+00> : vector<64xf32>
    %40 = vector.multi_reduction <add>, %39, %cst_32 [0] : vector<4x64xf32> to vector<64xf32>
    %41 = vector.shape_cast %40 : vector<64xf32> to vector<1x64xf32>
    %42 = arith.addf %20, %41 : vector<1x64xf32>
    %43 = vector.extract_strided_slice %6 {offsets = [0, 0], sizes = [4, 64], strides = [1, 1]} : vector<6x64xf32> to vector<4x64xf32>
    %44 = vector.extract_strided_slice %6 {offsets = [1, 0], sizes = [4, 64], strides = [1, 1]} : vector<6x64xf32> to vector<4x64xf32>
    %45 = vector.extract_strided_slice %6 {offsets = [2, 0], sizes = [4, 64], strides = [1, 1]} : vector<6x64xf32> to vector<4x64xf32>
    %46 = vector.extract_strided_slice %9 {offsets = [0, 0], sizes = [4, 64], strides = [1, 1]} : vector<6x64xf32> to vector<4x64xf32>
    %47 = vector.extract_strided_slice %9 {offsets = [1, 0], sizes = [4, 64], strides = [1, 1]} : vector<6x64xf32> to vector<4x64xf32>
    %48 = vector.extract_strided_slice %9 {offsets = [2, 0], sizes = [4, 64], strides = [1, 1]} : vector<6x64xf32> to vector<4x64xf32>
    %49 = vector.extract_strided_slice %12 {offsets = [0, 0], sizes = [4, 64], strides = [1, 1]} : vector<6x64xf32> to vector<4x64xf32>
    %50 = vector.extract_strided_slice %12 {offsets = [1, 0], sizes = [4, 64], strides = [1, 1]} : vector<6x64xf32> to vector<4x64xf32>
    %51 = vector.extract_strided_slice %12 {offsets = [2, 0], sizes = [4, 64], strides = [1, 1]} : vector<6x64xf32> to vector<4x64xf32>
    %52 = tpu.concatenate %43, %44, %45, %46, %47, %48, %49, %50, %51 in 1 : vector<4x64xf32>, vector<4x64xf32>, vector<4x64xf32>, vector<4x64xf32>, vector<4x64xf32>, vector<4x64xf32>, vector<4x64xf32>, vector<4x64xf32>, vector<4x64xf32> -> vector<4x576xf32>
    %53 = arith.truncf %52 : vector<4x576xf32> to vector<4x576xbf16>
    %cst_33 = arith.constant dense<0.000000e+00> : vector<4x64xf32>
    %54 = tpu.matmul %53, %0, %cst_33 {dimension_numbers = #tpu.dot_dimension_numbers<[1], [0], [0], [1], [0, 0, 1, 1], [], []>} : vector<4x576xbf16>, vector<576x64xbf16>, vector<4x64xf32> -> vector<4x64xf32>
    %c0_34 = arith.constant 0 : index
    %c1 = arith.constant 1 : index
    %c0_35 = arith.constant 0 : index
    %c0_36 = arith.constant 0 : index
    %55 = vector.load %arg9[%c0_34, %c1, %c0_35, %c0_36] : memref<1x4x4x64xf32, #tpu.memory_space<vmem>>, vector<1x1x4x64xf32>
    %56 = vector.shape_cast %55 : vector<1x1x4x64xf32> to vector<4x64xf32>
    %57 = vector.shape_cast %54 : vector<4x64xf32> to vector<1x1x4x64xf32>
    tpu.vector_store %arg9[%c0_34, %c1, %c0_35, %c0_36], %57 {strides = array<i32>} : memref<1x4x4x64xf32, #tpu.memory_space<vmem>>, vector<1x1x4x64xf32>,
    %cst_37 = arith.constant dense<0.000000e+00> : vector<64xf32>
    %58 = vector.multi_reduction <add>, %54, %cst_37 [0] : vector<4x64xf32> to vector<64xf32>
    %59 = vector.shape_cast %58 : vector<64xf32> to vector<1x64xf32>
    %60 = arith.addf %38, %59 : vector<1x64xf32>
    %61 = arith.mulf %54, %54 : vector<4x64xf32>
    %cst_38 = arith.constant dense<0.000000e+00> : vector<64xf32>
    %62 = vector.multi_reduction <add>, %61, %cst_38 [0] : vector<4x64xf32> to vector<64xf32>
    %63 = vector.shape_cast %62 : vector<64xf32> to vector<1x64xf32>
    %64 = arith.addf %42, %63 : vector<1x64xf32>
    %65 = vector.extract_strided_slice %9 {offsets = [0, 0], sizes = [4, 64], strides = [1, 1]} : vector<6x64xf32> to vector<4x64xf32>
    %66 = vector.extract_strided_slice %9 {offsets = [1, 0], sizes = [4, 64], strides = [1, 1]} : vector<6x64xf32> to vector<4x64xf32>
    %67 = vector.extract_strided_slice %9 {offsets = [2, 0], sizes = [4, 64], strides = [1, 1]} : vector<6x64xf32> to vector<4x64xf32>
    %68 = vector.extract_strided_slice %12 {offsets = [0, 0], sizes = [4, 64], strides = [1, 1]} : vector<6x64xf32> to vector<4x64xf32>
    %69 = vector.extract_strided_slice %12 {offsets = [1, 0], sizes = [4, 64], strides = [1, 1]} : vector<6x64xf32> to vector<4x64xf32>
    %70 = vector.extract_strided_slice %12 {offsets = [2, 0], sizes = [4, 64], strides = [1, 1]} : vector<6x64xf32> to vector<4x64xf32>
    %71 = vector.extract_strided_slice %15 {offsets = [0, 0], sizes = [4, 64], strides = [1, 1]} : vector<6x64xf32> to vector<4x64xf32>
    %72 = vector.extract_strided_slice %15 {offsets = [1, 0], sizes = [4, 64], strides = [1, 1]} : vector<6x64xf32> to vector<4x64xf32>
    %73 = vector.extract_strided_slice %15 {offsets = [2, 0], sizes = [4, 64], strides = [1, 1]} : vector<6x64xf32> to vector<4x64xf32>
    %74 = tpu.concatenate %65, %66, %67, %68, %69, %70, %71, %72, %73 in 1 : vector<4x64xf32>, vector<4x64xf32>, vector<4x64xf32>, vector<4x64xf32>, vector<4x64xf32>, vector<4x64xf32>, vector<4x64xf32>, vector<4x64xf32>, vector<4x64xf32> -> vector<4x576xf32>
    %75 = arith.truncf %74 : vector<4x576xf32> to vector<4x576xbf16>
    %cst_39 = arith.constant dense<0.000000e+00> : vector<4x64xf32>
    %76 = tpu.matmul %75, %0, %cst_39 {dimension_numbers = #tpu.dot_dimension_numbers<[1], [0], [0], [1], [0, 0, 1, 1], [], []>} : vector<4x576xbf16>, vector<576x64xbf16>, vector<4x64xf32> -> vector<4x64xf32>
    %c0_40 = arith.constant 0 : index
    %c2 = arith.constant 2 : index
    %c0_41 = arith.constant 0 : index
    %c0_42 = arith.constant 0 : index
    %77 = vector.load %arg9[%c0_40, %c2, %c0_41, %c0_42] : memref<1x4x4x64xf32, #tpu.memory_space<vmem>>, vector<1x1x4x64xf32>
    %78 = vector.shape_cast %77 : vector<1x1x4x64xf32> to vector<4x64xf32>
    %79 = vector.shape_cast %76 : vector<4x64xf32> to vector<1x1x4x64xf32>
    tpu.vector_store %arg9[%c0_40, %c2, %c0_41, %c0_42], %79 {strides = array<i32>} : memref<1x4x4x64xf32, #tpu.memory_space<vmem>>, vector<1x1x4x64xf32>,
    %cst_43 = arith.constant dense<0.000000e+00> : vector<64xf32>
    %80 = vector.multi_reduction <add>, %76, %cst_43 [0] : vector<4x64xf32> to vector<64xf32>
    %81 = vector.shape_cast %80 : vector<64xf32> to vector<1x64xf32>
    %82 = arith.addf %60, %81 : vector<1x64xf32>
    %83 = arith.mulf %76, %76 : vector<4x64xf32>
    %cst_44 = arith.constant dense<0.000000e+00> : vector<64xf32>
    %84 = vector.multi_reduction <add>, %83, %cst_44 [0] : vector<4x64xf32> to vector<64xf32>
    %85 = vector.shape_cast %84 : vector<64xf32> to vector<1x64xf32>
    %86 = arith.addf %64, %85 : vector<1x64xf32>
    %87 = vector.extract_strided_slice %12 {offsets = [0, 0], sizes = [4, 64], strides = [1, 1]} : vector<6x64xf32> to vector<4x64xf32>
    %88 = vector.extract_strided_slice %12 {offsets = [1, 0], sizes = [4, 64], strides = [1, 1]} : vector<6x64xf32> to vector<4x64xf32>
    %89 = vector.extract_strided_slice %12 {offsets = [2, 0], sizes = [4, 64], strides = [1, 1]} : vector<6x64xf32> to vector<4x64xf32>
    %90 = vector.extract_strided_slice %15 {offsets = [0, 0], sizes = [4, 64], strides = [1, 1]} : vector<6x64xf32> to vector<4x64xf32>
    %91 = vector.extract_strided_slice %15 {offsets = [1, 0], sizes = [4, 64], strides = [1, 1]} : vector<6x64xf32> to vector<4x64xf32>
    %92 = vector.extract_strided_slice %15 {offsets = [2, 0], sizes = [4, 64], strides = [1, 1]} : vector<6x64xf32> to vector<4x64xf32>
    %93 = vector.extract_strided_slice %18 {offsets = [0, 0], sizes = [4, 64], strides = [1, 1]} : vector<6x64xf32> to vector<4x64xf32>
    %94 = vector.extract_strided_slice %18 {offsets = [1, 0], sizes = [4, 64], strides = [1, 1]} : vector<6x64xf32> to vector<4x64xf32>
    %95 = vector.extract_strided_slice %18 {offsets = [2, 0], sizes = [4, 64], strides = [1, 1]} : vector<6x64xf32> to vector<4x64xf32>
    %96 = tpu.concatenate %87, %88, %89, %90, %91, %92, %93, %94, %95 in 1 : vector<4x64xf32>, vector<4x64xf32>, vector<4x64xf32>, vector<4x64xf32>, vector<4x64xf32>, vector<4x64xf32>, vector<4x64xf32>, vector<4x64xf32>, vector<4x64xf32> -> vector<4x576xf32>
    %97 = arith.truncf %96 : vector<4x576xf32> to vector<4x576xbf16>
    %cst_45 = arith.constant dense<0.000000e+00> : vector<4x64xf32>
    %98 = tpu.matmul %97, %0, %cst_45 {dimension_numbers = #tpu.dot_dimension_numbers<[1], [0], [0], [1], [0, 0, 1, 1], [], []>} : vector<4x576xbf16>, vector<576x64xbf16>, vector<4x64xf32> -> vector<4x64xf32>
    %c0_46 = arith.constant 0 : index
    %c3 = arith.constant 3 : index
    %c0_47 = arith.constant 0 : index
    %c0_48 = arith.constant 0 : index
    %99 = vector.load %arg9[%c0_46, %c3, %c0_47, %c0_48] : memref<1x4x4x64xf32, #tpu.memory_space<vmem>>, vector<1x1x4x64xf32>
    %100 = vector.shape_cast %99 : vector<1x1x4x64xf32> to vector<4x64xf32>
    %101 = vector.shape_cast %98 : vector<4x64xf32> to vector<1x1x4x64xf32>
    tpu.vector_store %arg9[%c0_46, %c3, %c0_47, %c0_48], %101 {strides = array<i32>} : memref<1x4x4x64xf32, #tpu.memory_space<vmem>>, vector<1x1x4x64xf32>,
    %cst_49 = arith.constant dense<0.000000e+00> : vector<64xf32>
    %102 = vector.multi_reduction <add>, %98, %cst_49 [0] : vector<4x64xf32> to vector<64xf32>
    %103 = vector.shape_cast %102 : vector<64xf32> to vector<1x64xf32>
    %104 = arith.addf %82, %103 : vector<1x64xf32>
    %105 = arith.mulf %98, %98 : vector<4x64xf32>
    %cst_50 = arith.constant dense<0.000000e+00> : vector<64xf32>
    %106 = vector.multi_reduction <add>, %105, %cst_50 [0] : vector<4x64xf32> to vector<64xf32>
    %107 = vector.shape_cast %106 : vector<64xf32> to vector<1x64xf32>
    %108 = arith.addf %86, %107 : vector<1x64xf32>
    %c0_51 = arith.constant 0 : index
    %c0_52 = arith.constant 0 : index
    %c0_53 = arith.constant 0 : index
    %c0_54 = arith.constant 0 : index
    %109 = vector.load %arg10[%c0_51, %c0_52, %c0_53, %c0_54] : memref<1x1x1x64xf32, #tpu.memory_space<vmem>>, vector<1x1x1x64xf32>
    %110 = vector.shape_cast %109 : vector<1x1x1x64xf32> to vector<1x64xf32>
    %111 = vector.shape_cast %104 : vector<1x64xf32> to vector<1x1x1x64xf32>
    tpu.vector_store %arg10[%c0_51, %c0_52, %c0_53, %c0_54], %111 {strides = array<i32>} : memref<1x1x1x64xf32, #tpu.memory_space<vmem>>, vector<1x1x1x64xf32>,
    %c0_55 = arith.constant 0 : index
    %c0_56 = arith.constant 0 : index
    %c0_57 = arith.constant 0 : index
    %c0_58 = arith.constant 0 : index
    %112 = vector.load %arg11[%c0_55, %c0_56, %c0_57, %c0_58] : memref<1x1x1x64xf32, #tpu.memory_space<vmem>>, vector<1x1x1x64xf32>
    %113 = vector.shape_cast %112 : vector<1x1x1x64xf32> to vector<1x64xf32>
    %114 = vector.shape_cast %108 : vector<1x64xf32> to vector<1x1x1x64xf32>
    tpu.vector_store %arg11[%c0_55, %c0_56, %c0_57, %c0_58], %114 {strides = array<i32>} : memref<1x1x1x64xf32, #tpu.memory_space<vmem>>, vector<1x1x1x64xf32>,
    return
  }
  func.func @transform_0(%arg0: i32, %arg1: i32) -> (i32, i32, i32, i32) {
    %c4_i32 = arith.constant 4 : i32
    %0 = arith.muli %arg1, %c4_i32 : i32
    %c0_i32 = arith.constant 0 : i32
    %1 = arith.addi %0, %c0_i32 : i32
    %c0_i32_0 = arith.constant 0 : i32
    %c0_i32_1 = arith.constant 0 : i32
    %c0_i32_2 = arith.constant 0 : i32
    return %arg0, %1, %c0_i32_0, %c0_i32_1 : i32, i32, i32, i32
  }
  func.func @transform_1(%arg0: i32, %arg1: i32) -> (i32, i32, i32, i32) {
    %c4_i32 = arith.constant 4 : i32
    %0 = arith.muli %arg1, %c4_i32 : i32
    %c1_i32 = arith.constant 1 : i32
    %1 = arith.addi %0, %c1_i32 : i32
    %c0_i32 = arith.constant 0 : i32
    %c0_i32_0 = arith.constant 0 : i32
    %c0_i32_1 = arith.constant 0 : i32
    return %arg0, %1, %c0_i32, %c0_i32_0 : i32, i32, i32, i32
  }
  func.func @transform_2(%arg0: i32, %arg1: i32) -> (i32, i32, i32, i32) {
    %c4_i32 = arith.constant 4 : i32
    %0 = arith.muli %arg1, %c4_i32 : i32
    %c2_i32 = arith.constant 2 : i32
    %1 = arith.addi %0, %c2_i32 : i32
    %c0_i32 = arith.constant 0 : i32
    %c0_i32_0 = arith.constant 0 : i32
    %c0_i32_1 = arith.constant 0 : i32
    return %arg0, %1, %c0_i32, %c0_i32_0 : i32, i32, i32, i32
  }
  func.func @transform_3(%arg0: i32, %arg1: i32) -> (i32, i32, i32, i32) {
    %c4_i32 = arith.constant 4 : i32
    %0 = arith.muli %arg1, %c4_i32 : i32
    %c3_i32 = arith.constant 3 : i32
    %1 = arith.addi %0, %c3_i32 : i32
    %c0_i32 = arith.constant 0 : i32
    %c0_i32_0 = arith.constant 0 : i32
    %c0_i32_1 = arith.constant 0 : i32
    return %arg0, %1, %c0_i32, %c0_i32_0 : i32, i32, i32, i32
  }
  func.func @transform_4(%arg0: i32, %arg1: i32) -> (i32, i32, i32, i32) {
    %c4_i32 = arith.constant 4 : i32
    %0 = arith.muli %arg1, %c4_i32 : i32
    %c4_i32_0 = arith.constant 4 : i32
    %1 = arith.addi %0, %c4_i32_0 : i32
    %c0_i32 = arith.constant 0 : i32
    %c0_i32_1 = arith.constant 0 : i32
    %c0_i32_2 = arith.constant 0 : i32
    return %arg0, %1, %c0_i32, %c0_i32_1 : i32, i32, i32, i32
  }
  func.func @transform_5(%arg0: i32, %arg1: i32) -> (i32, i32, i32, i32) {
    %c4_i32 = arith.constant 4 : i32
    %0 = arith.muli %arg1, %c4_i32 : i32
    %c5_i32 = arith.constant 5 : i32
    %1 = arith.addi %0, %c5_i32 : i32
    %c0_i32 = arith.constant 0 : i32
    %c0_i32_0 = arith.constant 0 : i32
    %c0_i32_1 = arith.constant 0 : i32
    return %arg0, %1, %c0_i32, %c0_i32_0 : i32, i32, i32, i32
  }
  func.func @transform_6(%arg0: i32, %arg1: i32) -> (i32, i32) {
    %c0_i32 = arith.constant 0 : i32
    %c0_i32_0 = arith.constant 0 : i32
    %c0_i32_1 = arith.constant 0 : i32
    return %c0_i32, %c0_i32_0 : i32, i32
  }
  func.func @transform_7(%arg0: i32, %arg1: i32) -> (i32, i32, i32, i32) {
    %c0_i32 = arith.constant 0 : i32
    %c0_i32_0 = arith.constant 0 : i32
    %c0_i32_1 = arith.constant 0 : i32
    return %arg0, %arg1, %c0_i32, %c0_i32_0 : i32, i32, i32, i32
  }
  func.func @transform_8(%arg0: i32, %arg1: i32) -> (i32, i32, i32, i32) {
    %c0_i32 = arith.constant 0 : i32
    %c0_i32_0 = arith.constant 0 : i32
    %c0_i32_1 = arith.constant 0 : i32
    return %arg0, %arg1, %c0_i32, %c0_i32_0 : i32, i32, i32, i32
  }
  func.func @transform_9(%arg0: i32, %arg1: i32) -> (i32, i32, i32, i32) {
    %c0_i32 = arith.constant 0 : i32
    %c0_i32_0 = arith.constant 0 : i32
    %c0_i32_1 = arith.constant 0 : i32
    return %arg0, %arg1, %c0_i32, %c0_i32_0 : i32, i32, i32, i32
  }
}

module attributes {stable_mosaic.version = 11 : i64} {
  func.func @_bn_relu_apply_kernel(%arg0: i32, %arg1: memref<16x128xf32, #tpu.memory_space<vmem>>, %arg2: memref<1x128xf32, #tpu.memory_space<vmem>>, %arg3: memref<1x128xf32, #tpu.memory_space<vmem>>, %arg4: memref<16x128xbf16, #tpu.memory_space<vmem>>) attributes {dimension_semantics = [#tpu.dimension_semantics<parallel>], iteration_bounds = array<i64: 1>, scalar_prefetch = 0 : i64, scratch_operands = 0 : i64, tpu.core_type = #tpu.core_type<tc>, window_params = [{transform_indices = @transform_0, window_bounds = array<i64: 16, 128>}, {pipeline_mode = #tpu.pipeline_mode<synchronous>, transform_indices = @transform_1, window_bounds = array<i64: 1, 128>}, {pipeline_mode = #tpu.pipeline_mode<synchronous>, transform_indices = @transform_2, window_bounds = array<i64: 1, 128>}, {transform_indices = @transform_3, window_bounds = array<i64: 16, 128>}]} {
    %c0 = arith.constant 0 : index
    %c0_0 = arith.constant 0 : index
    %0 = vector.load %arg1[%c0, %c0_0] : memref<16x128xf32, #tpu.memory_space<vmem>>, vector<16x128xf32>
    %c0_1 = arith.constant 0 : index
    %c0_2 = arith.constant 0 : index
    %1 = vector.load %arg2[%c0_1, %c0_2] : memref<1x128xf32, #tpu.memory_space<vmem>>, vector<1x128xf32>
    %2 = vector.broadcast %1 : vector<1x128xf32> to vector<16x128xf32>
    %3 = arith.mulf %0, %2 : vector<16x128xf32>
    %c0_3 = arith.constant 0 : index
    %c0_4 = arith.constant 0 : index
    %4 = vector.load %arg3[%c0_3, %c0_4] : memref<1x128xf32, #tpu.memory_space<vmem>>, vector<1x128xf32>
    %5 = vector.broadcast %4 : vector<1x128xf32> to vector<16x128xf32>
    %6 = arith.addf %3, %5 : vector<16x128xf32>
    %cst = arith.constant 0.000000e+00 : f32
    %7 = vector.broadcast %cst : f32 to vector<16x128xf32>
    %8 = arith.maximumf %6, %7 : vector<16x128xf32>
    %9 = arith.truncf %8 : vector<16x128xf32> to vector<16x128xbf16>
    %c0_5 = arith.constant 0 : index
    %c0_6 = arith.constant 0 : index
    %10 = vector.load %arg4[%c0_5, %c0_6] : memref<16x128xbf16, #tpu.memory_space<vmem>>, vector<16x128xbf16>
    tpu.vector_store %arg4[%c0_5, %c0_6], %9 {strides = array<i32>} : memref<16x128xbf16, #tpu.memory_space<vmem>>, vector<16x128xbf16>,
    return
  }
  func.func @transform_0(%arg0: i32) -> (i32, i32) {
    %c0_i32 = arith.constant 0 : i32
    %c0_i32_0 = arith.constant 0 : i32
    return %arg0, %c0_i32 : i32, i32
  }
  func.func @transform_1(%arg0: i32) -> (i32, i32) {
    %c0_i32 = arith.constant 0 : i32
    %c0_i32_0 = arith.constant 0 : i32
    %c0_i32_1 = arith.constant 0 : i32
    return %c0_i32, %c0_i32_0 : i32, i32
  }
  func.func @transform_2(%arg0: i32) -> (i32, i32) {
    %c0_i32 = arith.constant 0 : i32
    %c0_i32_0 = arith.constant 0 : i32
    %c0_i32_1 = arith.constant 0 : i32
    return %c0_i32, %c0_i32_0 : i32, i32
  }
  func.func @transform_3(%arg0: i32) -> (i32, i32) {
    %c0_i32 = arith.constant 0 : i32
    %c0_i32_0 = arith.constant 0 : i32
    return %arg0, %c0_i32 : i32, i32
  }
}

module attributes {stable_mosaic.version = 11 : i64} {
  func.func @_bn_relu_apply_kernel(%arg0: i32, %arg1: memref<16x128xf32, #tpu.memory_space<vmem>>, %arg2: memref<1x128xf32, #tpu.memory_space<vmem>>, %arg3: memref<1x128xf32, #tpu.memory_space<vmem>>, %arg4: memref<16x128xf32, #tpu.memory_space<vmem>>) attributes {dimension_semantics = [#tpu.dimension_semantics<parallel>], iteration_bounds = array<i64: 1>, scalar_prefetch = 0 : i64, scratch_operands = 0 : i64, tpu.core_type = #tpu.core_type<tc>, window_params = [{transform_indices = @transform_0, window_bounds = array<i64: 16, 128>}, {pipeline_mode = #tpu.pipeline_mode<synchronous>, transform_indices = @transform_1, window_bounds = array<i64: 1, 128>}, {pipeline_mode = #tpu.pipeline_mode<synchronous>, transform_indices = @transform_2, window_bounds = array<i64: 1, 128>}, {transform_indices = @transform_3, window_bounds = array<i64: 16, 128>}]} {
    %c0 = arith.constant 0 : index
    %c0_0 = arith.constant 0 : index
    %0 = vector.load %arg1[%c0, %c0_0] : memref<16x128xf32, #tpu.memory_space<vmem>>, vector<16x128xf32>
    %c0_1 = arith.constant 0 : index
    %c0_2 = arith.constant 0 : index
    %1 = vector.load %arg2[%c0_1, %c0_2] : memref<1x128xf32, #tpu.memory_space<vmem>>, vector<1x128xf32>
    %2 = vector.broadcast %1 : vector<1x128xf32> to vector<16x128xf32>
    %3 = arith.mulf %0, %2 : vector<16x128xf32>
    %c0_3 = arith.constant 0 : index
    %c0_4 = arith.constant 0 : index
    %4 = vector.load %arg3[%c0_3, %c0_4] : memref<1x128xf32, #tpu.memory_space<vmem>>, vector<1x128xf32>
    %5 = vector.broadcast %4 : vector<1x128xf32> to vector<16x128xf32>
    %6 = arith.addf %3, %5 : vector<16x128xf32>
    %cst = arith.constant 0.000000e+00 : f32
    %7 = vector.broadcast %cst : f32 to vector<16x128xf32>
    %8 = arith.maximumf %6, %7 : vector<16x128xf32>
    %c0_5 = arith.constant 0 : index
    %c0_6 = arith.constant 0 : index
    %9 = vector.load %arg4[%c0_5, %c0_6] : memref<16x128xf32, #tpu.memory_space<vmem>>, vector<16x128xf32>
    tpu.vector_store %arg4[%c0_5, %c0_6], %8 {strides = array<i32>} : memref<16x128xf32, #tpu.memory_space<vmem>>, vector<16x128xf32>,
    return
  }
  func.func @transform_0(%arg0: i32) -> (i32, i32) {
    %c0_i32 = arith.constant 0 : i32
    %c0_i32_0 = arith.constant 0 : i32
    return %arg0, %c0_i32 : i32, i32
  }
  func.func @transform_1(%arg0: i32) -> (i32, i32) {
    %c0_i32 = arith.constant 0 : i32
    %c0_i32_0 = arith.constant 0 : i32
    %c0_i32_1 = arith.constant 0 : i32
    return %c0_i32, %c0_i32_0 : i32, i32
  }
  func.func @transform_2(%arg0: i32) -> (i32, i32) {
    %c0_i32 = arith.constant 0 : i32
    %c0_i32_0 = arith.constant 0 : i32
    %c0_i32_1 = arith.constant 0 : i32
    return %c0_i32, %c0_i32_0 : i32, i32
  }
  func.func @transform_3(%arg0: i32) -> (i32, i32) {
    %c0_i32 = arith.constant 0 : i32
    %c0_i32_0 = arith.constant 0 : i32
    return %arg0, %c0_i32 : i32, i32
  }
}

</mosaic_0001>

<llo_original>
// kernel: cnn_encoder_forward.8
$region0: #{cnn_encoder_forward.8}
  #allocation0 [shape = 'u32[]', space=smem, size = 0x4, offset = 0x4, fixed_abs, tag = 'smem constant byte address 0x4 - core index']
  #allocation1 [shape = 'u32[144,128]{1,0:T(1,128)}', space=vmem, size = 0x12000, scoped, tag = 'internal scratch']
  %s0 = inlined_call_operand.vmem [shape: bf16[2,22,22,4], index: 0, kind: input, shape index: {}, may-alias: {0,1,2,3,4,5}]
  %s1 = inlined_call_operand.vmem [shape: bf16[2,22,22,4], index: 1, kind: input, shape index: {}, may-alias: {0,1,2,3,4,5}]
  %s2 = inlined_call_operand.vmem [shape: bf16[2,22,22,4], index: 2, kind: input, shape index: {}, may-alias: {0,1,2,3,4,5}]
  %s3 = inlined_call_operand.vmem [shape: bf16[2,22,22,4], index: 3, kind: input, shape index: {}, may-alias: {0,1,2,3,4,5}]
  %s4 = inlined_call_operand.vmem [shape: bf16[2,22,22,4], index: 4, kind: input, shape index: {}, may-alias: {0,1,2,3,4,5}]
  %s5 = inlined_call_operand.vmem [shape: bf16[2,22,22,4], index: 5, kind: input, shape index: {}, may-alias: {0,1,2,3,4,5}]
  %s6 = inlined_call_operand.vmem [shape: bf16[36,64], index: 6, kind: input, shape index: {}]
  %s7 = inlined_call_operand.vmem [shape: f32[2,20,20,64], index: 7, kind: output, shape index: {0}]
  %s8 = inlined_call_operand.vmem [shape: f32[2,5,1,64], index: 8, kind: output, shape index: {1}]
  %s9 = inlined_call_operand.vmem [shape: f32[2,5,1,64], index: 9, kind: output, shape index: {2}]
  %10 = xla_tuple %s7, %s8, %s9
  %s11 = sld [smem:[#allocation0]]
  $region77: #{cnn_encoder_forward.8} parent=0
    _
  %s13 = ssub.s32 1, %s11
  %s14 = scalar_select 0, %s13, %s11
  loop: start=0, step=1, limit=12
  $region2: #{cnn_encoder_forward.8} parent=0 // loop_pre_header
    _
  $region3: #{cnn_encoder_forward.8} parent=0 // loop_header
    %s16 = sphi 0, %s20
    %p17 = scmp.ge.s32.totalorder %s16, 12
    %s23 = sphi 0, %s35
    %s24 = sphi 0, %s31
    %s25 = sphi 0, %s23
    %s26 = sphi 0, %s24
    %s27 = sphi 0, %s25
    %s28 = sphi 0, %s26
    %s42 = sphi 0, %s44
    %s45 = sphi 0, %s42
    %s46 = sphi 0, %s45
    %s62 = sphi 0, %s46
    %s74 = sphi 0, %s76
    %s77 = sphi 0, %s74
    %s78 = sphi 0, %s77
    %s94 = sphi 0, %s78
    %s106 = sphi 0, %s108
    %s109 = sphi 0, %s106
    %s110 = sphi 0, %s109
    %s126 = sphi 0, %s110
    %s138 = sphi 0, %s140
    %s141 = sphi 0, %s138
    %s142 = sphi 0, %s141
    %s158 = sphi 0, %s142
    %s170 = sphi 0, %s172
    %s173 = sphi 0, %s170
    %s174 = sphi 0, %s173
    %s190 = sphi 0, %s174
    %s202 = sphi 0, %s204
    %s205 = sphi 0, %s202
    %s206 = sphi 0, %s205
    %s222 = sphi 0, %s206
    %s226 = sphi 0, %s226
    %s228 = sphi 0, %s226
    %s229 = sphi 0, %s228
    %s243 = sphi 0, %s229
    %s251 = sphi 0, %s253
    %s254 = sphi 0, %s251
    %s255 = sphi 0, %s254
    %s271 = sphi 0, %s255
    %s279 = sphi 0, %s281
    %s282 = sphi 0, %s279
    %s283 = sphi 0, %s282
    %s299 = sphi 0, %s283
    %s307 = sphi 0, %s309
    %s310 = sphi 0, %s307
    %s311 = sphi 0, %s310
    %s327 = sphi 0, %s311
  $region4: #{cnn_encoder_forward.8} parent=0 // loop_header_branch
    %19 = sbr.rel (%p17) target = $region8
  $region5: #{cnn_encoder_forward.8} parent=0 // loop_body
    %s21 = ssub.s32 %s16, 1
    %s22 = ssub.s32 %s16, 2
    %s29 = sadd.s32 1, %s24
    %p30 = scmp.ge.s32.totalorder %s29, 5
    %s31 = scalar_select %p30, 0, %s29
    %s32 = sadd.s32 1, %s23
    %s33 = scalar_select %p30, %s32, %s23
    %p34 = scmp.ge.s32.totalorder %s33, 2
    %s35 = scalar_select %p34, 0, %s33
    %s36 = smul.u32 %s24, 4
    %s37 = smul.u32 %s31, 4
    %s38 = ssub.s32 %s23, %s35
    %s39 = ssub.s32 %s36, %s37
    %s40 = sor.u32 %s38, %s39
    %p41 = scmp.eq.s32.totalorder %s40, 0
    %s43 = sadd.s32 %s42, 1
    %s44 = scalar_select %p41, %s42, %s43
    %p47 = pneg %p41
    %p48 = scmp.eq.s32.totalorder %s16, 9
    %p49 = por %p47, %p48
    %p50 = scmp.ne.s32.totalorder %s42, %s45
    %p51 = scmp.eq.s32.totalorder %s16, 0
    %p52 = por %p50, %p51
    %p53 = scmp.ne.s32.totalorder %s42, %s45
    %p54 = scmp.eq.s32.totalorder %s21, 9
    %p55 = por %p53, %p54
    %p56 = scmp.ne.s32.totalorder %s45, %s46
    %p57 = scmp.eq.s32.totalorder %s21, 0
    %p58 = por %p56, %p57
    %p59 = scmp.ne.s32.totalorder %s45, %s46
    %p60 = scmp.eq.s32.totalorder %s22, 9
    %p61 = por %p59, %p60
    %p63 = scmp.ne.s32.totalorder %s46, %s62
    %p64 = scmp.eq.s32.totalorder %s22, 0
    %p65 = por %p63, %p64
    %s66 = smul.u32 %s24, 4
    %s67 = sadd.s32 %s66, 1
    %s68 = smul.u32 %s31, 4
    %s69 = sadd.s32 %s68, 1
    %s70 = ssub.s32 %s23, %s35
    %s71 = ssub.s32 %s67, %s69
    %s72 = sor.u32 %s70, %s71
    %p73 = scmp.eq.s32.totalorder %s72, 0
    %s75 = sadd.s32 %s74, 1
    %s76 = scalar_select %p73, %s74, %s75
    %p79 = pneg %p73
    %p80 = scmp.eq.s32.totalorder %s16, 9
    %p81 = por %p79, %p80
    %p82 = scmp.ne.s32.totalorder %s74, %s77
    %p83 = scmp.eq.s32.totalorder %s16, 0
    %p84 = por %p82, %p83
    %p85 = scmp.ne.s32.totalorder %s74, %s77
    %p86 = scmp.eq.s32.totalorder %s21, 9
    %p87 = por %p85, %p86
    %p88 = scmp.ne.s32.totalorder %s77, %s78
    %p89 = scmp.eq.s32.totalorder %s21, 0
    %p90 = por %p88, %p89
    %p91 = scmp.ne.s32.totalorder %s77, %s78
    %p92 = scmp.eq.s32.totalorder %s22, 9
    %p93 = por %p91, %p92
    %p95 = scmp.ne.s32.totalorder %s78, %s94
    %p96 = scmp.eq.s32.totalorder %s22, 0
    %p97 = por %p95, %p96
    %s98 = smul.u32 %s24, 4
    %s99 = sadd.s32 %s98, 2
    %s100 = smul.u32 %s31, 4
    %s101 = sadd.s32 %s100, 2
    %s102 = ssub.s32 %s23, %s35
    %s103 = ssub.s32 %s99, %s101
    %s104 = sor.u32 %s102, %s103
    %p105 = scmp.eq.s32.totalorder %s104, 0
    %s107 = sadd.s32 %s106, 1
    %s108 = scalar_select %p105, %s106, %s107
    %p111 = pneg %p105
    %p112 = scmp.eq.s32.totalorder %s16, 9
    %p113 = por %p111, %p112
    %p114 = scmp.ne.s32.totalorder %s106, %s109
    %p115 = scmp.eq.s32.totalorder %s16, 0
    %p116 = por %p114, %p115
    %p117 = scmp.ne.s32.totalorder %s106, %s109
    %p118 = scmp.eq.s32.totalorder %s21, 9
    %p119 = por %p117, %p118
    %p120 = scmp.ne.s32.totalorder %s109, %s110
    %p121 = scmp.eq.s32.totalorder %s21, 0
    %p122 = por %p120, %p121
    %p123 = scmp.ne.s32.totalorder %s109, %s110
    %p124 = scmp.eq.s32.totalorder %s22, 9
    %p125 = por %p123, %p124
    %p127 = scmp.ne.s32.totalorder %s110, %s126
    %p128 = scmp.eq.s32.totalorder %s22, 0
    %p129 = por %p127, %p128
    %s130 = smul.u32 %s24, 4
    %s131 = sadd.s32 %s130, 3
    %s132 = smul.u32 %s31, 4
    %s133 = sadd.s32 %s132, 3
    %s134 = ssub.s32 %s23, %s35
    %s135 = ssub.s32 %s131, %s133
    %s136 = sor.u32 %s134, %s135
    %p137 = scmp.eq.s32.totalorder %s136, 0
    %s139 = sadd.s32 %s138, 1
    %s140 = scalar_select %p137, %s138, %s139
    %p143 = pneg %p137
    %p144 = scmp.eq.s32.totalorder %s16, 9
    %p145 = por %p143, %p144
    %p146 = scmp.ne.s32.totalorder %s138, %s141
    %p147 = scmp.eq.s32.totalorder %s16, 0
    %p148 = por %p146, %p147
    %p149 = scmp.ne.s32.totalorder %s138, %s141
    %p150 = scmp.eq.s32.totalorder %s21, 9
    %p151 = por %p149, %p150
    %p152 = scmp.ne.s32.totalorder %s141, %s142
    %p153 = scmp.eq.s32.totalorder %s21, 0
    %p154 = por %p152, %p153
    %p155 = scmp.ne.s32.totalorder %s141, %s142
    %p156 = scmp.eq.s32.totalorder %s22, 9
    %p157 = por %p155, %p156
    %p159 = scmp.ne.s32.totalorder %s142, %s158
    %p160 = scmp.eq.s32.totalorder %s22, 0
    %p161 = por %p159, %p160
    %s162 = smul.u32 %s24, 4
    %s163 = sadd.s32 %s162, 4
    %s164 = smul.u32 %s31, 4
    %s165 = sadd.s32 %s164, 4
    %s166 = ssub.s32 %s23, %s35
    %s167 = ssub.s32 %s163, %s165
    %s168 = sor.u32 %s166, %s167
    %p169 = scmp.eq.s32.totalorder %s168, 0
    %s171 = sadd.s32 %s170, 1
    %s172 = scalar_select %p169, %s170, %s171
    %p175 = pneg %p169
    %p176 = scmp.eq.s32.totalorder %s16, 9
    %p177 = por %p175, %p176
    %p178 = scmp.ne.s32.totalorder %s170, %s173
    %p179 = scmp.eq.s32.totalorder %s16, 0
    %p180 = por %p178, %p179
    %p181 = scmp.ne.s32.totalorder %s170, %s173
    %p182 = scmp.eq.s32.totalorder %s21, 9
    %p183 = por %p181, %p182
    %p184 = scmp.ne.s32.totalorder %s173, %s174
    %p185 = scmp.eq.s32.totalorder %s21, 0
    %p186 = por %p184, %p185
    %p187 = scmp.ne.s32.totalorder %s173, %s174
    %p188 = scmp.eq.s32.totalorder %s22, 9
    %p189 = por %p187, %p188
    %p191 = scmp.ne.s32.totalorder %s174, %s190
    %p192 = scmp.eq.s32.totalorder %s22, 0
    %p193 = por %p191, %p192
    %s194 = smul.u32 %s24, 4
    %s195 = sadd.s32 %s194, 5
    %s196 = smul.u32 %s31, 4
    %s197 = sadd.s32 %s196, 5
    %s198 = ssub.s32 %s23, %s35
    %s199 = ssub.s32 %s195, %s197
    %s200 = sor.u32 %s198, %s199
    %p201 = scmp.eq.s32.totalorder %s200, 0
    %s203 = sadd.s32 %s202, 1
    %s204 = scalar_select %p201, %s202, %s203
    %p207 = pneg %p201
    %p208 = scmp.eq.s32.totalorder %s16, 9
    %p209 = por %p207, %p208
    %p210 = scmp.ne.s32.totalorder %s202, %s205
    %p211 = scmp.eq.s32.totalorder %s16, 0
    %p212 = por %p210, %p211
    %p213 = scmp.ne.s32.totalorder %s202, %s205
    %p214 = scmp.eq.s32.totalorder %s21, 9
    %p215 = por %p213, %p214
    %p216 = scmp.ne.s32.totalorder %s205, %s206
    %p217 = scmp.eq.s32.totalorder %s21, 0
    %p218 = por %p216, %p217
    %p219 = scmp.ne.s32.totalorder %s205, %s206
    %p220 = scmp.eq.s32.totalorder %s22, 9
    %p221 = por %p219, %p220
    %p223 = scmp.ne.s32.totalorder %s206, %s222
    %p224 = scmp.eq.s32.totalorder %s22, 0
    %p225 = por %p223, %p224
    %s227 = sadd.s32 %s226, 1
    %p230 = scmp.eq.s32.totalorder %s16, 9
    %p231 = scmp.ne.s32.totalorder %s226, %s228
    %p232 = scmp.eq.s32.totalorder %s16, 0
    %p233 = por %p231, %p232
    %p234 = scmp.ne.s32.totalorder %s226, %s228
    %p235 = scmp.eq.s32.totalorder %s21, 9
    %p236 = por %p234, %p235
    %p237 = scmp.ne.s32.totalorder %s228, %s229
    %p238 = scmp.eq.s32.totalorder %s21, 0
    %p239 = por %p237, %p238
    %p240 = scmp.ne.s32.totalorder %s228, %s229
    %p241 = scmp.eq.s32.totalorder %s22, 9
    %p242 = por %p240, %p241
    %p244 = scmp.ne.s32.totalorder %s229, %s243
    %p245 = scmp.eq.s32.totalorder %s22, 0
    %p246 = por %p244, %p245
    %s247 = ssub.s32 %s23, %s35
    %s248 = ssub.s32 %s24, %s31
    %s249 = sor.u32 %s247, %s248
    %p250 = scmp.eq.s32.totalorder %s249, 0
    %s252 = sadd.s32 %s251, 1
    %s253 = scalar_select %p250, %s251, %s252
    %p256 = pneg %p250
    %p257 = scmp.eq.s32.totalorder %s16, 9
    %p258 = por %p256, %p257
    %p259 = scmp.ne.s32.totalorder %s251, %s254
    %p260 = scmp.eq.s32.totalorder %s16, 0
    %p261 = por %p259, %p260
    %p262 = scmp.ne.s32.totalorder %s251, %s254
    %p263 = scmp.eq.s32.totalorder %s21, 9
    %p264 = por %p262, %p263
    %p265 = scmp.ne.s32.totalorder %s254, %s255
    %p266 = scmp.eq.s32.totalorder %s21, 0
    %p267 = por %p265, %p266
    %p268 = scmp.ne.s32.totalorder %s254, %s255
    %p269 = scmp.eq.s32.totalorder %s22, 9
    %p270 = por %p268, %p269
    %p272 = scmp.ne.s32.totalorder %s255, %s271
    %p273 = scmp.eq.s32.totalorder %s22, 0
    %p274 = por %p272, %p273
    %s275 = ssub.s32 %s23, %s35
    %s276 = ssub.s32 %s24, %s31
    %s277 = sor.u32 %s275, %s276
    %p278 = scmp.eq.s32.totalorder %s277, 0
    %s280 = sadd.s32 %s279, 1
    %s281 = scalar_select %p278, %s279, %s280
    %p284 = pneg %p278
    %p285 = scmp.eq.s32.totalorder %s16, 9
    %p286 = por %p284, %p285
    %p287 = scmp.ne.s32.totalorder %s279, %s282
    %p288 = scmp.eq.s32.totalorder %s16, 0
    %p289 = por %p287, %p288
    %p290 = scmp.ne.s32.totalorder %s279, %s282
    %p291 = scmp.eq.s32.totalorder %s21, 9
    %p292 = por %p290, %p291
    %p293 = scmp.ne.s32.totalorder %s282, %s283
    %p294 = scmp.eq.s32.totalorder %s21, 0
    %p295 = por %p293, %p294
    %p296 = scmp.ne.s32.totalorder %s282, %s283
    %p297 = scmp.eq.s32.totalorder %s22, 9
    %p298 = por %p296, %p297
    %p300 = scmp.ne.s32.totalorder %s283, %s299
    %p301 = scmp.eq.s32.totalorder %s22, 0
    %p302 = por %p300, %p301
    %s303 = ssub.s32 %s23, %s35
    %s304 = ssub.s32 %s24, %s31
    %s305 = sor.u32 %s303, %s304
    %p306 = scmp.eq.s32.totalorder %s305, 0
    %s308 = sadd.s32 %s307, 1
    %s309 = scalar_select %p306, %s307, %s308
    %p312 = pneg %p306
    %p313 = scmp.eq.s32.totalorder %s16, 9
    %p314 = por %p312, %p313
    %p315 = scmp.ne.s32.totalorder %s307, %s310
    %p316 = scmp.eq.s32.totalorder %s16, 0
    %p317 = por %p315, %p316
    %p318 = scmp.ne.s32.totalorder %s307, %s310
    %p319 = scmp.eq.s32.totalorder %s21, 9
    %p320 = por %p318, %p319
    %p321 = scmp.ne.s32.totalorder %s310, %s311
    %p322 = scmp.eq.s32.totalorder %s21, 0
    %p323 = por %p321, %p322
    %p324 = scmp.ne.s32.totalorder %s310, %s311
    %p325 = scmp.eq.s32.totalorder %s22, 9
    %p326 = por %p324, %p325
    %p328 = scmp.ne.s32.totalorder %s311, %s327
    %p329 = scmp.eq.s32.totalorder %s22, 0
    %p330 = por %p328, %p329
    %p331 = scmp.le.s32.totalorder 1, %s16
    %p332 = scmp.lt.s32.totalorder %s16, 11
    %p333 = pnand %p331, %p332
    %p334 = pneg %p333
    // Predicated region
    $region9: #{cnn_encoder_forward.8} parent=5 // pred_check
      _
    $region10: #{cnn_encoder_forward.8} parent=5 // pred_check_branch
      %336 = sbr.rel (%p333) target = $region12
    $region11: #{cnn_encoder_forward.8} parent=5 // pred_region
      %s337 = ssub.s32 %s16, 1
      // Predicated region
      $region13: #{cnn_encoder_forward.8} parent=11 // pred_check
        %p338 = pneg %p239
      $region14: #{cnn_encoder_forward.8} parent=11 // pred_check_branch
        %340 = sbr.rel (%p338) target = $region16
      $region15: #{cnn_encoder_forward.8} parent=11 // pred_region
        _
      $region16: #{cnn_encoder_forward.8} parent=11 // pred_fallthru
        _
    $region12: #{cnn_encoder_forward.8} parent=5 // pred_fallthru
      _
    %p341 = scmp.lt.s32.totalorder %s16, 10
    // Predicated region
    $region17: #{cnn_encoder_forward.8} parent=5 // pred_check
      %p342 = pneg %p341
    $region18: #{cnn_encoder_forward.8} parent=5 // pred_check_branch
      %344 = sbr.rel (%p342) target = $region20
    $region19: #{cnn_encoder_forward.8} parent=5 // pred_region
      // Predicated region
      $region21: #{cnn_encoder_forward.8} parent=19 // pred_check
        %p345 = pneg %p52
      $region22: #{cnn_encoder_forward.8} parent=19 // pred_check_branch
        %347 = sbr.rel (%p345) target = $region24
      $region23: #{cnn_encoder_forward.8} parent=19 // pred_region
        %s348 = smul.u32 %s24, 4
        %p349 = scmp.lt.s32.totalorder %s23, 1
        %s350 = scalar_select %p349, %s23, 1
        %p351 = scmp.lt.s32.totalorder %s348, 21
        %s352 = scalar_select %p351, %s348, 21
        %s353 = smul.addr %s352, 3
        %s354 = smul.addr %s350, 66
        %s355 = sadd.s32 %s353, %s354
        %s356 = smul.addr %s355, 4
        %s357 = scalar_lea.vmem %s0, %s356
        %s358 = smul.u32 %s24, 4
      $region24: #{cnn_encoder_forward.8} parent=19 // pred_fallthru
        _
      // Predicated region
      $region25: #{cnn_encoder_forward.8} parent=19 // pred_check
        %p359 = pneg %p84
      $region26: #{cnn_encoder_forward.8} parent=19 // pred_check_branch
        %361 = sbr.rel (%p359) target = $region28
      $region27: #{cnn_encoder_forward.8} parent=19 // pred_region
        %s362 = smul.u32 %s24, 4
        %s363 = sadd.s32 %s362, 1
        %p364 = scmp.lt.s32.totalorder %s23, 1
        %s365 = scalar_select %p364, %s23, 1
        %p366 = scmp.lt.s32.totalorder %s363, 21
        %s367 = scalar_select %p366, %s363, 21
        %s368 = smul.addr %s367, 3
        %s369 = smul.addr %s365, 66
        %s370 = sadd.s32 %s368, %s369
        %s371 = smul.addr %s370, 4
        %s372 = scalar_lea.vmem %s1, %s371
        %s373 = smul.u32 %s24, 4
        %s374 = sadd.s32 %s373, 1
      $region28: #{cnn_encoder_forward.8} parent=19 // pred_fallthru
        _
      // Predicated region
      $region29: #{cnn_encoder_forward.8} parent=19 // pred_check
        %p375 = pneg %p116
      $region30: #{cnn_encoder_forward.8} parent=19 // pred_check_branch
        %377 = sbr.rel (%p375) target = $region32
      $region31: #{cnn_encoder_forward.8} parent=19 // pred_region
        %s378 = smul.u32 %s24, 4
        %s379 = sadd.s32 %s378, 2
        %p380 = scmp.lt.s32.totalorder %s23, 1
        %s381 = scalar_select %p380, %s23, 1
        %p382 = scmp.lt.s32.totalorder %s379, 21
        %s383 = scalar_select %p382, %s379, 21
        %s384 = smul.addr %s383, 3
        %s385 = smul.addr %s381, 66
        %s386 = sadd.s32 %s384, %s385
        %s387 = smul.addr %s386, 4
        %s388 = scalar_lea.vmem %s2, %s387
        %s389 = smul.u32 %s24, 4
        %s390 = sadd.s32 %s389, 2
      $region32: #{cnn_encoder_forward.8} parent=19 // pred_fallthru
        _
      // Predicated region
      $region33: #{cnn_encoder_forward.8} parent=19 // pred_check
        %p391 = pneg %p148
      $region34: #{cnn_encoder_forward.8} parent=19 // pred_check_branch
        %393 = sbr.rel (%p391) target = $region36
      $region35: #{cnn_encoder_forward.8} parent=19 // pred_region
        %s394 = smul.u32 %s24, 4
        %s395 = sadd.s32 %s394, 3
        %p396 = scmp.lt.s32.totalorder %s23, 1
        %s397 = scalar_select %p396, %s23, 1
        %p398 = scmp.lt.s32.totalorder %s395, 21
        %s399 = scalar_select %p398, %s395, 21
        %s400 = smul.addr %s399, 3
        %s401 = smul.addr %s397, 66
        %s402 = sadd.s32 %s400, %s401
        %s403 = smul.addr %s402, 4
        %s404 = scalar_lea.vmem %s3, %s403
        %s405 = smul.u32 %s24, 4
        %s406 = sadd.s32 %s405, 3
      $region36: #{cnn_encoder_forward.8} parent=19 // pred_fallthru
        _
      // Predicated region
      $region37: #{cnn_encoder_forward.8} parent=19 // pred_check
        %p407 = pneg %p180
      $region38: #{cnn_encoder_forward.8} parent=19 // pred_check_branch
        %409 = sbr.rel (%p407) target = $region40
      $region39: #{cnn_encoder_forward.8} parent=19 // pred_region
        %s410 = smul.u32 %s24, 4
        %s411 = sadd.s32 %s410, 4
        %p412 = scmp.lt.s32.totalorder %s23, 1
        %s413 = scalar_select %p412, %s23, 1
        %p414 = scmp.lt.s32.totalorder %s411, 21
        %s415 = scalar_select %p414, %s411, 21
        %s416 = smul.addr %s415, 3
        %s417 = smul.addr %s413, 66
        %s418 = sadd.s32 %s416, %s417
        %s419 = smul.addr %s418, 4
        %s420 = scalar_lea.vmem %s4, %s419
        %s421 = smul.u32 %s24, 4
        %s422 = sadd.s32 %s421, 4
      $region40: #{cnn_encoder_forward.8} parent=19 // pred_fallthru
        _
      // Predicated region
      $region41: #{cnn_encoder_forward.8} parent=19 // pred_check
        %p423 = pneg %p212
      $region42: #{cnn_encoder_forward.8} parent=19 // pred_check_branch
        %425 = sbr.rel (%p423) target = $region44
      $region43: #{cnn_encoder_forward.8} parent=19 // pred_region
        %s426 = smul.u32 %s24, 4
        %s427 = sadd.s32 %s426, 5
        %p428 = scmp.lt.s32.totalorder %s23, 1
        %s429 = scalar_select %p428, %s23, 1
        %p430 = scmp.lt.s32.totalorder %s427, 21
        %s431 = scalar_select %p430, %s427, 21
        %s432 = smul.addr %s431, 3
        %s433 = smul.addr %s429, 66
        %s434 = sadd.s32 %s432, %s433
        %s435 = smul.addr %s434, 4
        %s436 = scalar_lea.vmem %s5, %s435
        %s437 = smul.u32 %s24, 4
        %s438 = sadd.s32 %s437, 5
      $region44: #{cnn_encoder_forward.8} parent=19 // pred_fallthru
        _
    $region20: #{cnn_encoder_forward.8} parent=5 // pred_fallthru
      _
    %p439 = scmp.le.s32.totalorder 1, %s16
    %p440 = scmp.lt.s32.totalorder %s16, 11
    %p441 = pnand %p439, %p440
    %p442 = pneg %p441
    // Predicated region
    $region45: #{cnn_encoder_forward.8} parent=5 // pred_check
      _
    $region46: #{cnn_encoder_forward.8} parent=5 // pred_check_branch
      %444 = sbr.rel (%p441) target = $region48
    $region47: #{cnn_encoder_forward.8} parent=5 // pred_region
      %s445 = ssub.s32 %s16, 1
      %s446 = smul.u32 %s26, 4
      %p447 = scmp.lt.s32.totalorder %s25, 1
      %s448 = scalar_select %p447, %s25, 1
      %p449 = scmp.lt.s32.totalorder %s446, 21
      %s450 = scalar_select %p449, %s446, 21
      %s451 = smul.addr %s450, 3
      %s452 = smul.addr %s448, 66
      %s453 = sadd.s32 %s451, %s452
      %s454 = smul.addr %s453, 4
      %s455 = scalar_lea.vmem %s0, %s454
      %p456 = pneg %p58
      %p457 = pneg %p55
      %s458 = smul.u32 %s26, 4
      %s459 = sadd.s32 %s458, 1
      %p460 = scmp.lt.s32.totalorder %s25, 1
      %s461 = scalar_select %p460, %s25, 1
      %p462 = scmp.lt.s32.totalorder %s459, 21
      %s463 = scalar_select %p462, %s459, 21
      %s464 = smul.addr %s463, 3
      %s465 = smul.addr %s461, 66
      %s466 = sadd.s32 %s464, %s465
      %s467 = smul.addr %s466, 4
      %s468 = scalar_lea.vmem %s1, %s467
      %p469 = pneg %p90
      %p470 = pneg %p87
      %s471 = smul.u32 %s26, 4
      %s472 = sadd.s32 %s471, 2
      %p473 = scmp.lt.s32.totalorder %s25, 1
      %s474 = scalar_select %p473, %s25, 1
      %p475 = scmp.lt.s32.totalorder %s472, 21
      %s476 = scalar_select %p475, %s472, 21
      %s477 = smul.addr %s476, 3
      %s478 = smul.addr %s474, 66
      %s479 = sadd.s32 %s477, %s478
      %s480 = smul.addr %s479, 4
      %s481 = scalar_lea.vmem %s2, %s480
      %p482 = pneg %p122
      %p483 = pneg %p119
      %s484 = smul.u32 %s26, 4
      %s485 = sadd.s32 %s484, 3
      %p486 = scmp.lt.s32.totalorder %s25, 1
      %s487 = scalar_select %p486, %s25, 1
      %p488 = scmp.lt.s32.totalorder %s485, 21
      %s489 = scalar_select %p488, %s485, 21
      %s490 = smul.addr %s489, 3
      %s491 = smul.addr %s487, 66
      %s492 = sadd.s32 %s490, %s491
      %s493 = smul.addr %s492, 4
      %s494 = scalar_lea.vmem %s3, %s493
      %p495 = pneg %p154
      %p496 = pneg %p151
      %s497 = smul.u32 %s26, 4
      %s498 = sadd.s32 %s497, 4
      %p499 = scmp.lt.s32.totalorder %s25, 1
      %s500 = scalar_select %p499, %s25, 1
      %p501 = scmp.lt.s32.totalorder %s498, 21
      %s502 = scalar_select %p501, %s498, 21
      %s503 = smul.addr %s502, 3
      %s504 = smul.addr %s500, 66
      %s505 = sadd.s32 %s503, %s504
      %s506 = smul.addr %s505, 4
      %s507 = scalar_lea.vmem %s4, %s506
      %p508 = pneg %p186
      %p509 = pneg %p183
      %s510 = smul.u32 %s26, 4
      %s511 = sadd.s32 %s510, 5
      %p512 = scmp.lt.s32.totalorder %s25, 1
      %s513 = scalar_select %p512, %s25, 1
      %p514 = scmp.lt.s32.totalorder %s511, 21
      %s515 = scalar_select %p514, %s511, 21
      %s516 = smul.addr %s515, 3
      %s517 = smul.addr %s513, 66
      %s518 = sadd.s32 %s516, %s517
      %s519 = smul.addr %s518, 4
      %s520 = scalar_lea.vmem %s5, %s519
      %p521 = pneg %p218
      %p522 = pneg %p215
      %p523 = pneg %p239
      %p524 = pneg %p236
      %p525 = pneg %p267
      %p526 = pneg %p264
      %s527 = smul.u32 4, %s26
      %p528 = scmp.lt.s32.totalorder %s25, 1
      %s529 = scalar_select %p528, %s25, 1
      %p530 = scmp.lt.s32.totalorder %s527, 19
      %s531 = scalar_select %p530, %s527, 19
      %s532 = smul.addr %s531, 3
      %s533 = smul.addr %s529, 60
      %s534 = sadd.s32 %s532, %s533
      %s535 = smul.addr %s534, 8
      %s536 = scalar_lea.vmem %s7, %s535
      %p537 = pneg %p295
      %p538 = pneg %p292
      %p539 = scmp.lt.s32.totalorder %s25, 1
      %s540 = scalar_select %p539, %s25, 1
      %p541 = scmp.lt.s32.totalorder %s26, 4
      %s542 = scalar_select %p541, %s26, 4
      %s543 = smul.addr %s540, 5
      %s544 = sadd.s32 %s542, %s543
      %s545 = scalar_lea.vmem %s8, %s544
      %p546 = pneg %p323
      %p547 = pneg %p320
      %p548 = scmp.lt.s32.totalorder %s25, 1
      %s549 = scalar_select %p548, %s25, 1
      %p550 = scmp.lt.s32.totalorder %s26, 4
      %s551 = scalar_select %p550, %s26, 4
      %s552 = smul.addr %s549, 5
      %s553 = sadd.s32 %s551, %s552
      %s554 = scalar_lea.vmem %s9, %s553
      %s555 = smul.u32 %s26, 4
      %p556 = scmp.lt.s32.totalorder %s25, 1
      %s557 = scalar_select %p556, %s25, 1
      %p558 = scmp.lt.s32.totalorder %s555, 21
      %s559 = scalar_select %p558, %s555, 21
      %s560 = smul.addr %s559, 3
      %s561 = smul.addr %s557, 66
      %s562 = sadd.s32 %s560, %s561
      %s563 = smul.addr %s562, 4
      %s564 = scalar_lea.vmem %s0, %s563
      %s565 = smul.u32 %s26, 4
      %s566 = smul.u32 %s26, 4
      %s567 = sadd.s32 %s566, 1
      %p568 = scmp.lt.s32.totalorder %s25, 1
      %s569 = scalar_select %p568, %s25, 1
      %p570 = scmp.lt.s32.totalorder %s567, 21
      %s571 = scalar_select %p570, %s567, 21
      %s572 = smul.addr %s571, 3
      %s573 = smul.addr %s569, 66
      %s574 = sadd.s32 %s572, %s573
      %s575 = smul.addr %s574, 4
      %s576 = scalar_lea.vmem %s1, %s575
      %s577 = smul.u32 %s26, 4
      %s578 = sadd.s32 %s577, 1
      %s579 = smul.u32 %s26, 4
      %s580 = sadd.s32 %s579, 2
      %p581 = scmp.lt.s32.totalorder %s25, 1
      %s582 = scalar_select %p581, %s25, 1
      %p583 = scmp.lt.s32.totalorder %s580, 21
      %s584 = scalar_select %p583, %s580, 21
      %s585 = smul.addr %s584, 3
      %s586 = smul.addr %s582, 66
      %s587 = sadd.s32 %s585, %s586
      %s588 = smul.addr %s587, 4
      %s589 = scalar_lea.vmem %s2, %s588
      %s590 = smul.u32 %s26, 4
      %s591 = sadd.s32 %s590, 2
      %s592 = smul.u32 %s26, 4
      %s593 = sadd.s32 %s592, 3
      %p594 = scmp.lt.s32.totalorder %s25, 1
      %s595 = scalar_select %p594, %s25, 1
      %p596 = scmp.lt.s32.totalorder %s593, 21
      %s597 = scalar_select %p596, %s593, 21
      %s598 = smul.addr %s597, 3
      %s599 = smul.addr %s595, 66
      %s600 = sadd.s32 %s598, %s599
      %s601 = smul.addr %s600, 4
      %s602 = scalar_lea.vmem %s3, %s601
      %s603 = smul.u32 %s26, 4
      %s604 = sadd.s32 %s603, 3
      %s605 = smul.u32 %s26, 4
      %s606 = sadd.s32 %s605, 4
      %p607 = scmp.lt.s32.totalorder %s25, 1
      %s608 = scalar_select %p607, %s25, 1
      %p609 = scmp.lt.s32.totalorder %s606, 21
      %s610 = scalar_select %p609, %s606, 21
      %s611 = smul.addr %s610, 3
      %s612 = smul.addr %s608, 66
      %s613 = sadd.s32 %s611, %s612
      %s614 = smul.addr %s613, 4
      %s615 = scalar_lea.vmem %s4, %s614
      %s616 = smul.u32 %s26, 4
      %s617 = sadd.s32 %s616, 4
      %s618 = smul.u32 %s26, 4
      %s619 = sadd.s32 %s618, 5
      %p620 = scmp.lt.s32.totalorder %s25, 1
      %s621 = scalar_select %p620, %s25, 1
      %p622 = scmp.lt.s32.totalorder %s619, 21
      %s623 = scalar_select %p622, %s619, 21
      %s624 = smul.addr %s623, 3
      %s625 = smul.addr %s621, 66
      %s626 = sadd.s32 %s624, %s625
      %s627 = smul.addr %s626, 4
      %s628 = scalar_lea.vmem %s5, %s627
      %s629 = smul.u32 %s26, 4
      %s630 = sadd.s32 %s629, 5
      %s631 = smul.u32 4, %s26
      %p632 = scmp.lt.s32.totalorder %s25, 1
      %s633 = scalar_select %p632, %s25, 1
      %p634 = scmp.lt.s32.totalorder %s631, 19
      %s635 = scalar_select %p634, %s631, 19
      %s636 = smul.addr %s635, 3
      %s637 = smul.addr %s633, 60
      %s638 = sadd.s32 %s636, %s637
      %s639 = smul.addr %s638, 8
      %s640 = scalar_lea.vmem %s7, %s639
      %s641 = smul.u32 4, %s26
      %p642 = scmp.lt.s32.totalorder %s25, 1
      %s643 = scalar_select %p642, %s25, 1
      %p644 = scmp.lt.s32.totalorder %s26, 4
      %s645 = scalar_select %p644, %s26, 4
      %s646 = smul.addr %s643, 5
      %s647 = sadd.s32 %s645, %s646
      %s648 = scalar_lea.vmem %s8, %s647
      %p649 = scmp.lt.s32.totalorder %s25, 1
      %s650 = scalar_select %p649, %s25, 1
      %p651 = scmp.lt.s32.totalorder %s26, 4
      %s652 = scalar_select %p651, %s26, 4
      %s653 = smul.addr %s650, 5
      %s654 = sadd.s32 %s652, %s653
      %s655 = scalar_lea.vmem %s9, %s654
      %v657 = vld [vmem:[%s6] sm:$0xf]
      %v658 = vld [vmem:[%s6 + $0x4] sm:$0xf]
      %v659 = vld [vmem:[%s6 + $0x8] sm:$0xf]
      %v660 = vld [vmem:[%s6 + $0xc] sm:$0xf]
      %v661 = vld [vmem:[%s6 + $0x10] sm:$0x3]
      %v662 = vld [vmem:[%s564] sm:$0xf]
      %v663 = vld [vmem:[%s564 + $0x4] sm:$0xf]
      %v664 = vld [vmem:[%s564 + $0x8] sm:$0x7]
      %v665 = vunpack.c.l.bf16 %v662
      %v666 = vunpack.c.l.bf16 %v663
      %v667 = vunpack.c.l.bf16 %v664
      %v668 = vld [vmem:[%s576] sm:$0xf]
      %v669 = vld [vmem:[%s576 + $0x4] sm:$0xf]
      %v670 = vld [vmem:[%s576 + $0x8] sm:$0x7]
      %v671 = vunpack.c.l.bf16 %v668
      %v672 = vunpack.c.l.bf16 %v669
      %v673 = vunpack.c.l.bf16 %v670
      %v674 = vld [vmem:[%s589] sm:$0xf]
      %v675 = vld [vmem:[%s589 + $0x4] sm:$0xf]
      %v676 = vld [vmem:[%s589 + $0x8] sm:$0x7]
      %v677 = vunpack.c.l.bf16 %v674
      %v678 = vunpack.c.l.bf16 %v675
      %v679 = vunpack.c.l.bf16 %v676
      %v680 = vld [vmem:[%s602] sm:$0xf]
      %v681 = vld [vmem:[%s602 + $0x4] sm:$0xf]
      %v682 = vld [vmem:[%s602 + $0x8] sm:$0x7]
      %v683 = vunpack.c.l.bf16 %v680
      %v684 = vunpack.c.l.bf16 %v681
      %v685 = vunpack.c.l.bf16 %v682
      %v686 = vld [vmem:[%s615] sm:$0xf]
      %v687 = vld [vmem:[%s615 + $0x4] sm:$0xf]
      %v688 = vld [vmem:[%s615 + $0x8] sm:$0x7]
      %v689 = vunpack.c.l.bf16 %v686
      %v690 = vunpack.c.l.bf16 %v687
      %v691 = vunpack.c.l.bf16 %v688
      %v692 = vld [vmem:[%s628] sm:$0xf]
      %v693 = vld [vmem:[%s628 + $0x4] sm:$0xf]
      %v694 = vld [vmem:[%s628 + $0x8] sm:$0x7]
      %v695 = vunpack.c.l.bf16 %v692
      %v696 = vunpack.c.l.bf16 %v693
      %v697 = vunpack.c.l.bf16 %v694
      %vm701 = vcmask 1046528
      %v702 = vrot.slane %v665, 1
      %v703 = vrot.slane %v666, 1
      %v704 = vsel %vm701, %v702, %v703
      %v705 = vrot.slane %v667, 1
      %v706 = vsel %vm701, %v703, %v705
      %707 = vrot.lane.b32.xlu0 %v704, 4
      %v708 = vpop.permute.xlu0 %707
      %709 = vrot.lane.b32.xlu0 %v706, 4
      %v710 = vpop.permute.xlu0 %709
      %711 = vrot.lane.b32.xlu0 %v705, 4
      %v712 = vpop.permute.xlu0 %711
      %vm716 = vcmask 1045504
      %v717 = vrot.slane %v665, 2
      %v718 = vrot.slane %v666, 2
      %v719 = vsel %vm716, %v717, %v718
      %v720 = vrot.slane %v667, 2
      %v721 = vsel %vm716, %v718, %v720
      %722 = vrot.lane.b32.xlu0 %v719, 8
      %v723 = vpop.permute.xlu0 %722
      %724 = vrot.lane.b32.xlu0 %v721, 8
      %v725 = vpop.permute.xlu0 %724
      %726 = vrot.lane.b32.xlu0 %v720, 8
      %v727 = vpop.permute.xlu0 %726
      %734 = vrot.lane.b32.xlu0 %v671, 12
      %v735 = vpop.permute.xlu0 %734
      %736 = vrot.lane.b32.xlu0 %v672, 12
      %v737 = vpop.permute.xlu0 %736
      %738 = vrot.lane.b32.xlu0 %v673, 12
      %v739 = vpop.permute.xlu0 %738
      %v743 = vrot.slane %v671, 1
      %v744 = vrot.slane %v672, 1
      %v745 = vsel %vm701, %v743, %v744
      %v746 = vrot.slane %v673, 1
      %v747 = vsel %vm701, %v744, %v746
      %748 = vrot.lane.b32.xlu0 %v745, 16
      %v749 = vpop.permute.xlu0 %748
      %750 = vrot.lane.b32.xlu0 %v747, 16
      %v751 = vpop.permute.xlu0 %750
      %752 = vrot.lane.b32.xlu0 %v746, 16
      %v753 = vpop.permute.xlu0 %752
      %v757 = vrot.slane %v671, 2
      %v758 = vrot.slane %v672, 2
      %v759 = vsel %vm716, %v757, %v758
      %v760 = vrot.slane %v673, 2
      %v761 = vsel %vm716, %v758, %v760
      %762 = vrot.lane.b32.xlu0 %v759, 20
      %v763 = vpop.permute.xlu0 %762
      %764 = vrot.lane.b32.xlu0 %v761, 20
      %v765 = vpop.permute.xlu0 %764
      %766 = vrot.lane.b32.xlu0 %v760, 20
      %v767 = vpop.permute.xlu0 %766
      %774 = vrot.lane.b32.xlu0 %v677, 24
      %v775 = vpop.permute.xlu0 %774
      %776 = vrot.lane.b32.xlu0 %v678, 24
      %v777 = vpop.permute.xlu0 %776
      %778 = vrot.lane.b32.xlu0 %v679, 24
      %v779 = vpop.permute.xlu0 %778
      %v783 = vrot.slane %v677, 1
      %v784 = vrot.slane %v678, 1
      %v785 = vsel %vm701, %v783, %v784
      %v786 = vrot.slane %v679, 1
      %v787 = vsel %vm701, %v784, %v786
      %788 = vrot.lane.b32.xlu0 %v785, 28
      %v789 = vpop.permute.xlu0 %788
      %790 = vrot.lane.b32.xlu0 %v787, 28
      %v791 = vpop.permute.xlu0 %790
      %792 = vrot.lane.b32.xlu0 %v786, 28
      %v793 = vpop.permute.xlu0 %792
      %v797 = vrot.slane %v677, 2
      %v798 = vrot.slane %v678, 2
      %v799 = vsel %vm716, %v797, %v798
      %v800 = vrot.slane %v679, 2
      %v801 = vsel %vm716, %v798, %v800
      %802 = vrot.lane.b32.xlu0 %v799, 32
      %v803 = vpop.permute.xlu0 %802
      %804 = vrot.lane.b32.xlu0 %v801, 32
      %v805 = vpop.permute.xlu0 %804
      %806 = vrot.lane.b32.xlu0 %v800, 32
      %v807 = vpop.permute.xlu0 %806
      %vm811 = vcmask 31744
      %v812 = vsel %vm811, %v665, %v708
      %v813 = vsel %vm811, %v666, %v710
      %v814 = vsel %vm811, %v667, %v712
      %vm815 = vcmask 64512
      %v816 = vsel %vm815, %v812, %v723
      %v817 = vsel %vm815, %v813, %v725
      %v818 = vsel %vm815, %v814, %v727
      %vm819 = vcmask 97280
      %v820 = vsel %vm819, %v816, %v735
      %v821 = vsel %vm819, %v817, %v737
      %v822 = vsel %vm819, %v818, %v739
      %vm823 = vcmask 130048
      %v824 = vsel %vm823, %v820, %v749
      %v825 = vsel %vm823, %v821, %v751
      %v826 = vsel %vm823, %v822, %v753
      %vm827 = vcmask 162816
      %v828 = vsel %vm827, %v824, %v763
      %v829 = vsel %vm827, %v825, %v765
      %v830 = vsel %vm827, %v826, %v767
      %vm831 = vcmask 195584
      %v832 = vsel %vm831, %v828, %v775
      %v833 = vsel %vm831, %v829, %v777
      %v834 = vsel %vm831, %v830, %v779
      %vm835 = vcmask 228352
      %v836 = vsel %vm835, %v832, %v789
      %v837 = vsel %vm835, %v833, %v791
      %v838 = vsel %vm835, %v834, %v793
      %vm839 = vcmask 261120
      %v840 = vsel %vm839, %v836, %v803
      %v841 = vsel %vm839, %v837, %v805
      %v842 = vsel %vm839, %v838, %v807
      %v843 = vpack.c.bf16 %v841, %v840
      %v844 = vpack.c.bf16 %v842, %v842
      %v850 = vunpack.c.l.b16 %v657
      %v851 = vunpack.c.l.b16 %v658
      %v852 = vunpack.c.l.b16 %v659
      %v853 = vunpack.c.l.b16 %v660
      %v854 = vunpack.c.l.b16 %v661
      %v855 = vpack.c.b16 %v851, %v850
      %v856 = vpack.c.b16 %v853, %v852
      %v857 = vpack.c.b16 %v854, %v854
      %vm860 = vcmask 293888
      %v862 = vsel %vm860, %v843, 0
      %v865 = vsel %vm860, %v844, 0
      %vm867 = vcmask 1041408
      %v869 = vsel %vm867, %v857, 0
      %871 = vmatprep.subr.bf16.mxu0 0
      %872 = vmatpush1.bf16.msra.mxu0 0
      %873 = vmatprep.subr.bf16.mxu0 0
      %874 = vmatpush1.bf16.msra.mxu0 0
      %875 = vmatprep.subr.bf16.mxu0 0
      %876 = vmatpush1.bf16.msra.mxu0 0
      %877 = vmatprep.subr.bf16.mxu0 0
      %878 = vmatpush1.bf16.msra.mxu0 0
      %879 = vmatprep.subr.bf16.mxu0 0
      %880 = vmatpush1.bf16.msra.mxu0 0
      %881 = vmatprep.subr.bf16.mxu0 0
      %882 = vmatpush1.bf16.msra.mxu0 %v869
      %883 = vmatprep.subr.bf16.mxu0 0
      %884 = vmatpush1.bf16.msra.mxu0 %v856
      %885 = vmatprep.subr.bf16.mxu0 0
      %886 = vmatpush1.bf16.msra.mxu0 %v855
      %887 = vmatprep.subr.bf16.mxu0 0
      %888 = vmatpush2.bf16.msra.mxu0 0
      %889 = vmatprep.subr.bf16.mxu0 0
      %890 = vmatpush2.bf16.msra.mxu0 0
      %891 = vmatprep.subr.bf16.mxu0 0
      %892 = vmatpush2.bf16.msra.mxu0 0
      %893 = vmatprep.subr.bf16.mxu0 0
      %894 = vmatpush2.bf16.msra.mxu0 0
      %895 = vmatprep.subr.bf16.mxu0 0
      %896 = vmatpush2.bf16.msra.mxu0 0
      %897 = vmatprep.subr.bf16.mxu0 0
      %898 = vmatpush2.bf16.msra.mxu0 0
      %899 = vmatprep.subr.bf16.mxu0 0
      %900 = vmatpush2.bf16.msra.mxu0 0
      %901 = vmatprep.subr.bf16.mxu0 0
      %902 = vmatpush2.bf16.msra.mxu0 0
      %903 = vmatprep.mubr.bf16.mxu0 0
      %904 = vmatmul.mubr.bf16.gmra.mxu0 %v862
      %v905 = vpop.f32.mrf.mxu0
      %v906 = vadd.f32 0.0, %v905
      %v907 = vpop.f32.mrf.mxu0
      %v908 = vpop.f32.mrf.mxu0
      %v909 = vadd.f32 0.0, %v908
      %v910 = vpop.f32.mrf.mxu0
      %911 = vmatprep.mubr.bf16.mxu0 0
      %912 = vmatmul.mubr.bf16.gmra.mxu0 %v865
      %v913 = vpop.f32.mrf.mxu0
      %v914 = vadd.f32 0.0, %v913
      %v915 = vpop.f32.mrf.mxu0
      %v916 = vpop.f32.mrf.mxu0
      %v917 = vpop.f32.mrf.mxu0
      %918 = vdwg.mxu0
      %vm919 = vcmask 523264
      %920 = vst.msk [vmem:[%s640] sm:$0xff] %vm919, %v906
      %921 = vst.msk [vmem:[%s640 + $0x8] sm:$0xff] %vm919, %v909
      %vm922 = vcmask 519168
      %923 = vst.msk [vmem:[%s640 + $0x10] sm:$0xf] %vm922, %v914
      %v924 = vsel %vm919, %v906, 0.0
      %v925 = vsel %vm919, %v909, 0.0
      %v926 = vadd.f32 %v924, %v925
      %v927 = vsel %vm922, %v914, 0.0
      %v928 = vadd.f32 %v926, %v927
      %v929 = vrot.slane %v928, 4
      %v930 = vadd.f32 %v928, %v929
      %v931 = vrot.slane %v930, 2
      %v932 = vadd.f32 %v930, %v931
      %v933 = vrot.slane %v932, 1
      %v934 = vadd.f32 %v932, %v933
      %v935 = vadd.f32 %v934, 0.0
      %v936 = vmul.f32 %v906, %v906
      %v937 = vmul.f32 %v909, %v909
      %v938 = vmul.f32 %v914, %v914
      %v939 = vsel %vm919, %v936, 0.0
      %v940 = vsel %vm919, %v937, 0.0
      %v941 = vadd.f32 %v939, %v940
      %v942 = vsel %vm922, %v938, 0.0
      %v943 = vadd.f32 %v941, %v942
      %v944 = vrot.slane %v943, 4
      %v945 = vadd.f32 %v943, %v944
      %v946 = vrot.slane %v945, 2
      %v947 = vadd.f32 %v945, %v946
      %v948 = vrot.slane %v947, 1
      %v949 = vadd.f32 %v947, %v948
      %v950 = vadd.f32 %v949, 0.0
      %951 = vrot.lane.b32.xlu0 %v745, 4
      %v952 = vpop.permute.xlu0 %951
      %953 = vrot.lane.b32.xlu0 %v747, 4
      %v954 = vpop.permute.xlu0 %953
      %955 = vrot.lane.b32.xlu0 %v746, 4
      %v956 = vpop.permute.xlu0 %955
      %960 = vrot.lane.b32.xlu0 %v759, 8
      %v961 = vpop.permute.xlu0 %960
      %962 = vrot.lane.b32.xlu0 %v761, 8
      %v963 = vpop.permute.xlu0 %962
      %964 = vrot.lane.b32.xlu0 %v760, 8
      %v965 = vpop.permute.xlu0 %964
      %969 = vrot.lane.b32.xlu0 %v677, 12
      %v970 = vpop.permute.xlu0 %969
      %971 = vrot.lane.b32.xlu0 %v678, 12
      %v972 = vpop.permute.xlu0 %971
      %973 = vrot.lane.b32.xlu0 %v679, 12
      %v974 = vpop.permute.xlu0 %973
      %978 = vrot.lane.b32.xlu0 %v785, 16
      %v979 = vpop.permute.xlu0 %978
      %980 = vrot.lane.b32.xlu0 %v787, 16
      %v981 = vpop.permute.xlu0 %980
      %982 = vrot.lane.b32.xlu0 %v786, 16
      %v983 = vpop.permute.xlu0 %982
      %987 = vrot.lane.b32.xlu0 %v799, 20
      %v988 = vpop.permute.xlu0 %987
      %989 = vrot.lane.b32.xlu0 %v801, 20
      %v990 = vpop.permute.xlu0 %989
      %991 = vrot.lane.b32.xlu0 %v800, 20
      %v992 = vpop.permute.xlu0 %991
      %999 = vrot.lane.b32.xlu0 %v683, 24
      %v1000 = vpop.permute.xlu0 %999
      %1001 = vrot.lane.b32.xlu0 %v684, 24
      %v1002 = vpop.permute.xlu0 %1001
      %1003 = vrot.lane.b32.xlu0 %v685, 24
      %v1004 = vpop.permute.xlu0 %1003
      %v1008 = vrot.slane %v683, 1
      %v1009 = vrot.slane %v684, 1
      %v1010 = vsel %vm701, %v1008, %v1009
      %v1011 = vrot.slane %v685, 1
      %v1012 = vsel %vm701, %v1009, %v1011
      %1013 = vrot.lane.b32.xlu0 %v1010, 28
      %v1014 = vpop.permute.xlu0 %1013
      %1015 = vrot.lane.b32.xlu0 %v1012, 28
      %v1016 = vpop.permute.xlu0 %1015
      %1017 = vrot.lane.b32.xlu0 %v1011, 28
      %v1018 = vpop.permute.xlu0 %1017
      %v1022 = vrot.slane %v683, 2
      %v1023 = vrot.slane %v684, 2
      %v1024 = vsel %vm716, %v1022, %v1023
      %v1025 = vrot.slane %v685, 2
      %v1026 = vsel %vm716, %v1023, %v1025
      %1027 = vrot.lane.b32.xlu0 %v1024, 32
      %v1028 = vpop.permute.xlu0 %1027
      %1029 = vrot.lane.b32.xlu0 %v1026, 32
      %v1030 = vpop.permute.xlu0 %1029
      %1031 = vrot.lane.b32.xlu0 %v1025, 32
      %v1032 = vpop.permute.xlu0 %1031
      %v1036 = vsel %vm811, %v671, %v952
      %v1037 = vsel %vm811, %v672, %v954
      %v1038 = vsel %vm811, %v673, %v956
      %v1039 = vsel %vm815, %v1036, %v961
      %v1040 = vsel %vm815, %v1037, %v963
      %v1041 = vsel %vm815, %v1038, %v965
      %v1042 = vsel %vm819, %v1039, %v970
      %v1043 = vsel %vm819, %v1040, %v972
      %v1044 = vsel %vm819, %v1041, %v974
      %v1045 = vsel %vm823, %v1042, %v979
      %v1046 = vsel %vm823, %v1043, %v981
      %v1047 = vsel %vm823, %v1044, %v983
      %v1048 = vsel %vm827, %v1045, %v988
      %v1049 = vsel %vm827, %v1046, %v990
      %v1050 = vsel %vm827, %v1047, %v992
      %v1051 = vsel %vm831, %v1048, %v1000
      %v1052 = vsel %vm831, %v1049, %v1002
      %v1053 = vsel %vm831, %v1050, %v1004
      %v1054 = vsel %vm835, %v1051, %v1014
      %v1055 = vsel %vm835, %v1052, %v1016
      %v1056 = vsel %vm835, %v1053, %v1018
      %v1057 = vsel %vm839, %v1054, %v1028
      %v1058 = vsel %vm839, %v1055, %v1030
      %v1059 = vsel %vm839, %v1056, %v1032
      %v1060 = vpack.c.bf16 %v1058, %v1057
      %v1061 = vpack.c.bf16 %v1059, %v1059
      %v1063 = vsel %vm860, %v1060, 0
      %v1066 = vsel %vm860, %v1061, 0
      %1068 = vmatprep.subr.bf16.mxu0 0
      %1069 = vmatpush1.bf16.msra.mxu0 0
      %1070 = vmatprep.subr.bf16.mxu0 0
      %1071 = vmatpush1.bf16.msra.mxu0 0
      %1072 = vmatprep.subr.bf16.mxu0 0
      %1073 = vmatpush1.bf16.msra.mxu0 0
      %1074 = vmatprep.subr.bf16.mxu0 0
      %1075 = vmatpush1.bf16.msra.mxu0 0
      %1076 = vmatprep.subr.bf16.mxu0 0
      %1077 = vmatpush1.bf16.msra.mxu0 0
      %1078 = vmatprep.subr.bf16.mxu0 0
      %1079 = vmatpush1.bf16.msra.mxu0 %v869
      %1080 = vmatprep.subr.bf16.mxu0 0
      %1081 = vmatpush1.bf16.msra.mxu0 %v856
      %1082 = vmatprep.subr.bf16.mxu0 0
      %1083 = vmatpush1.bf16.msra.mxu0 %v855
      %1084 = vmatprep.subr.bf16.mxu0 0
      %1085 = vmatpush2.bf16.msra.mxu0 0
      %1086 = vmatprep.subr.bf16.mxu0 0
      %1087 = vmatpush2.bf16.msra.mxu0 0
      %1088 = vmatprep.subr.bf16.mxu0 0
      %1089 = vmatpush2.bf16.msra.mxu0 0
      %1090 = vmatprep.subr.bf16.mxu0 0
      %1091 = vmatpush2.bf16.msra.mxu0 0
      %1092 = vmatprep.subr.bf16.mxu0 0
      %1093 = vmatpush2.bf16.msra.mxu0 0
      %1094 = vmatprep.subr.bf16.mxu0 0
      %1095 = vmatpush2.bf16.msra.mxu0 0
      %1096 = vmatprep.subr.bf16.mxu0 0
      %1097 = vmatpush2.bf16.msra.mxu0 0
      %1098 = vmatprep.subr.bf16.mxu0 0
      %1099 = vmatpush2.bf16.msra.mxu0 0
      %1100 = vmatprep.mubr.bf16.mxu0 0
      %1101 = vmatmul.mubr.bf16.gmra.mxu0 %v1063
      %v1102 = vpop.f32.mrf.mxu0
      %v1103 = vadd.f32 0.0, %v1102
      %v1104 = vpop.f32.mrf.mxu0
      %v1105 = vpop.f32.mrf.mxu0
      %v1106 = vadd.f32 0.0, %v1105
      %v1107 = vpop.f32.mrf.mxu0
      %1108 = vmatprep.mubr.bf16.mxu0 0
      %1109 = vmatmul.mubr.bf16.gmra.mxu0 %v1066
      %v1110 = vpop.f32.mrf.mxu0
      %v1111 = vadd.f32 0.0, %v1110
      %v1112 = vpop.f32.mrf.mxu0
      %v1113 = vpop.f32.mrf.mxu0
      %v1114 = vpop.f32.mrf.mxu0
      %1115 = vdwg.mxu0
      %s1116 = scalar_lea.vmem %s640, 24
      %1117 = vst.msk [vmem:[%s1116] sm:$0xff] %vm919, %v1103
      %1118 = vst.msk [vmem:[%s1116 + $0x8] sm:$0xff] %vm919, %v1106
      %1119 = vst.msk [vmem:[%s1116 + $0x10] sm:$0xf] %vm922, %v1111
      %v1120 = vsel %vm919, %v1103, 0.0
      %v1121 = vsel %vm919, %v1106, 0.0
      %v1122 = vadd.f32 %v1120, %v1121
      %v1123 = vsel %vm922, %v1111, 0.0
      %v1124 = vadd.f32 %v1122, %v1123
      %v1125 = vrot.slane %v1124, 4
      %v1126 = vadd.f32 %v1124, %v1125
      %v1127 = vrot.slane %v1126, 2
      %v1128 = vadd.f32 %v1126, %v1127
      %v1129 = vrot.slane %v1128, 1
      %v1130 = vadd.f32 %v1128, %v1129
      %v1131 = vadd.f32 %v935, %v1130
      %v1132 = vmul.f32 %v1103, %v1103
      %v1133 = vmul.f32 %v1106, %v1106
      %v1134 = vmul.f32 %v1111, %v1111
      %v1135 = vsel %vm919, %v1132, 0.0
      %v1136 = vsel %vm919, %v1133, 0.0
      %v1137 = vadd.f32 %v1135, %v1136
      %v1138 = vsel %vm922, %v1134, 0.0
      %v1139 = vadd.f32 %v1137, %v1138
      %v1140 = vrot.slane %v1139, 4
      %v1141 = vadd.f32 %v1139, %v1140
      %v1142 = vrot.slane %v1141, 2
      %v1143 = vadd.f32 %v1141, %v1142
      %v1144 = vrot.slane %v1143, 1
      %v1145 = vadd.f32 %v1143, %v1144
      %v1146 = vadd.f32 %v950, %v1145
      %1147 = vrot.lane.b32.xlu0 %v785, 4
      %v1148 = vpop.permute.xlu0 %1147
      %1149 = vrot.lane.b32.xlu0 %v787, 4
      %v1150 = vpop.permute.xlu0 %1149
      %1151 = vrot.lane.b32.xlu0 %v786, 4
      %v1152 = vpop.permute.xlu0 %1151
      %1156 = vrot.lane.b32.xlu0 %v799, 8
      %v1157 = vpop.permute.xlu0 %1156
      %1158 = vrot.lane.b32.xlu0 %v801, 8
      %v1159 = vpop.permute.xlu0 %1158
      %1160 = vrot.lane.b32.xlu0 %v800, 8
      %v1161 = vpop.permute.xlu0 %1160
      %1165 = vrot.lane.b32.xlu0 %v683, 12
      %v1166 = vpop.permute.xlu0 %1165
      %1167 = vrot.lane.b32.xlu0 %v684, 12
      %v1168 = vpop.permute.xlu0 %1167
      %1169 = vrot.lane.b32.xlu0 %v685, 12
      %v1170 = vpop.permute.xlu0 %1169
      %1174 = vrot.lane.b32.xlu0 %v1010, 16
      %v1175 = vpop.permute.xlu0 %1174
      %1176 = vrot.lane.b32.xlu0 %v1012, 16
      %v1177 = vpop.permute.xlu0 %1176
      %1178 = vrot.lane.b32.xlu0 %v1011, 16
      %v1179 = vpop.permute.xlu0 %1178
      %1183 = vrot.lane.b32.xlu0 %v1024, 20
      %v1184 = vpop.permute.xlu0 %1183
      %1185 = vrot.lane.b32.xlu0 %v1026, 20
      %v1186 = vpop.permute.xlu0 %1185
      %1187 = vrot.lane.b32.xlu0 %v1025, 20
      %v1188 = vpop.permute.xlu0 %1187
      %1195 = vrot.lane.b32.xlu0 %v689, 24
      %v1196 = vpop.permute.xlu0 %1195
      %1197 = vrot.lane.b32.xlu0 %v690, 24
      %v1198 = vpop.permute.xlu0 %1197
      %1199 = vrot.lane.b32.xlu0 %v691, 24
      %v1200 = vpop.permute.xlu0 %1199
      %v1204 = vrot.slane %v689, 1
      %v1205 = vrot.slane %v690, 1
      %v1206 = vsel %vm701, %v1204, %v1205
      %v1207 = vrot.slane %v691, 1
      %v1208 = vsel %vm701, %v1205, %v1207
      %1209 = vrot.lane.b32.xlu0 %v1206, 28
      %v1210 = vpop.permute.xlu0 %1209
      %1211 = vrot.lane.b32.xlu0 %v1208, 28
      %v1212 = vpop.permute.xlu0 %1211
      %1213 = vrot.lane.b32.xlu0 %v1207, 28
      %v1214 = vpop.permute.xlu0 %1213
      %v1218 = vrot.slane %v689, 2
      %v1219 = vrot.slane %v690, 2
      %v1220 = vsel %vm716, %v1218, %v1219
      %v1221 = vrot.slane %v691, 2
      %v1222 = vsel %vm716, %v1219, %v1221
      %1223 = vrot.lane.b32.xlu0 %v1220, 32
      %v1224 = vpop.permute.xlu0 %1223
      %1225 = vrot.lane.b32.xlu0 %v1222, 32
      %v1226 = vpop.permute.xlu0 %1225
      %1227 = vrot.lane.b32.xlu0 %v1221, 32
      %v1228 = vpop.permute.xlu0 %1227
      %v1232 = vsel %vm811, %v677, %v1148
      %v1233 = vsel %vm811, %v678, %v1150
      %v1234 = vsel %vm811, %v679, %v1152
      %v1235 = vsel %vm815, %v1232, %v1157
      %v1236 = vsel %vm815, %v1233, %v1159
      %v1237 = vsel %vm815, %v1234, %v1161
      %v1238 = vsel %vm819, %v1235, %v1166
      %v1239 = vsel %vm819, %v1236, %v1168
      %v1240 = vsel %vm819, %v1237, %v1170
      %v1241 = vsel %vm823, %v1238, %v1175
      %v1242 = vsel %vm823, %v1239, %v1177
      %v1243 = vsel %vm823, %v1240, %v1179
      %v1244 = vsel %vm827, %v1241, %v1184
      %v1245 = vsel %vm827, %v1242, %v1186
      %v1246 = vsel %vm827, %v1243, %v1188
      %v1247 = vsel %vm831, %v1244, %v1196
      %v1248 = vsel %vm831, %v1245, %v1198
      %v1249 = vsel %vm831, %v1246, %v1200
      %v1250 = vsel %vm835, %v1247, %v1210
      %v1251 = vsel %vm835, %v1248, %v1212
      %v1252 = vsel %vm835, %v1249, %v1214
      %v1253 = vsel %vm839, %v1250, %v1224
      %v1254 = vsel %vm839, %v1251, %v1226
      %v1255 = vsel %vm839, %v1252, %v1228
      %v1256 = vpack.c.bf16 %v1254, %v1253
      %v1257 = vpack.c.bf16 %v1255, %v1255
      %v1259 = vsel %vm860, %v1256, 0
      %v1262 = vsel %vm860, %v1257, 0
      %1264 = vmatprep.subr.bf16.mxu0 0
      %1265 = vmatpush1.bf16.msra.mxu0 0
      %1266 = vmatprep.subr.bf16.mxu0 0
      %1267 = vmatpush1.bf16.msra.mxu0 0
      %1268 = vmatprep.subr.bf16.mxu0 0
      %1269 = vmatpush1.bf16.msra.mxu0 0
      %1270 = vmatprep.subr.bf16.mxu0 0
      %1271 = vmatpush1.bf16.msra.mxu0 0
      %1272 = vmatprep.subr.bf16.mxu0 0
      %1273 = vmatpush1.bf16.msra.mxu0 0
      %1274 = vmatprep.subr.bf16.mxu0 0
      %1275 = vmatpush1.bf16.msra.mxu0 %v869
      %1276 = vmatprep.subr.bf16.mxu0 0
      %1277 = vmatpush1.bf16.msra.mxu0 %v856
      %1278 = vmatprep.subr.bf16.mxu0 0
      %1279 = vmatpush1.bf16.msra.mxu0 %v855
      %1280 = vmatprep.subr.bf16.mxu0 0
      %1281 = vmatpush2.bf16.msra.mxu0 0
      %1282 = vmatprep.subr.bf16.mxu0 0
      %1283 = vmatpush2.bf16.msra.mxu0 0
      %1284 = vmatprep.subr.bf16.mxu0 0
      %1285 = vmatpush2.bf16.msra.mxu0 0
      %1286 = vmatprep.subr.bf16.mxu0 0
      %1287 = vmatpush2.bf16.msra.mxu0 0
      %1288 = vmatprep.subr.bf16.mxu0 0
      %1289 = vmatpush2.bf16.msra.mxu0 0
      %1290 = vmatprep.subr.bf16.mxu0 0
      %1291 = vmatpush2.bf16.msra.mxu0 0
      %1292 = vmatprep.subr.bf16.mxu0 0
      %1293 = vmatpush2.bf16.msra.mxu0 0
      %1294 = vmatprep.subr.bf16.mxu0 0
      %1295 = vmatpush2.bf16.msra.mxu0 0
      %1296 = vmatprep.mubr.bf16.mxu0 0
      %1297 = vmatmul.mubr.bf16.gmra.mxu0 %v1259
      %v1298 = vpop.f32.mrf.mxu0
      %v1299 = vadd.f32 0.0, %v1298
      %v1300 = vpop.f32.mrf.mxu0
      %v1301 = vpop.f32.mrf.mxu0
      %v1302 = vadd.f32 0.0, %v1301
      %v1303 = vpop.f32.mrf.mxu0
      %1304 = vmatprep.mubr.bf16.mxu0 0
      %1305 = vmatmul.mubr.bf16.gmra.mxu0 %v1262
      %v1306 = vpop.f32.mrf.mxu0
      %v1307 = vadd.f32 0.0, %v1306
      %v1308 = vpop.f32.mrf.mxu0
      %v1309 = vpop.f32.mrf.mxu0
      %v1310 = vpop.f32.mrf.mxu0
      %1311 = vdwg.mxu0
      %s1312 = scalar_lea.vmem %s640, 48
      %1313 = vst.msk [vmem:[%s1312] sm:$0xff] %vm919, %v1299
      %1314 = vst.msk [vmem:[%s1312 + $0x8] sm:$0xff] %vm919, %v1302
      %1315 = vst.msk [vmem:[%s1312 + $0x10] sm:$0xf] %vm922, %v1307
      %v1316 = vsel %vm919, %v1299, 0.0
      %v1317 = vsel %vm919, %v1302, 0.0
      %v1318 = vadd.f32 %v1316, %v1317
      %v1319 = vsel %vm922, %v1307, 0.0
      %v1320 = vadd.f32 %v1318, %v1319
      %v1321 = vrot.slane %v1320, 4
      %v1322 = vadd.f32 %v1320, %v1321
      %v1323 = vrot.slane %v1322, 2
      %v1324 = vadd.f32 %v1322, %v1323
      %v1325 = vrot.slane %v1324, 1
      %v1326 = vadd.f32 %v1324, %v1325
      %v1327 = vadd.f32 %v1131, %v1326
      %v1328 = vmul.f32 %v1299, %v1299
      %v1329 = vmul.f32 %v1302, %v1302
      %v1330 = vmul.f32 %v1307, %v1307
      %v1331 = vsel %vm919, %v1328, 0.0
      %v1332 = vsel %vm919, %v1329, 0.0
      %v1333 = vadd.f32 %v1331, %v1332
      %v1334 = vsel %vm922, %v1330, 0.0
      %v1335 = vadd.f32 %v1333, %v1334
      %v1336 = vrot.slane %v1335, 4
      %v1337 = vadd.f32 %v1335, %v1336
      %v1338 = vrot.slane %v1337, 2
      %v1339 = vadd.f32 %v1337, %v1338
      %v1340 = vrot.slane %v1339, 1
      %v1341 = vadd.f32 %v1339, %v1340
      %v1342 = vadd.f32 %v1146, %v1341
      %1343 = vrot.lane.b32.xlu0 %v1010, 4
      %v1344 = vpop.permute.xlu0 %1343
      %1345 = vrot.lane.b32.xlu0 %v1012, 4
      %v1346 = vpop.permute.xlu0 %1345
      %1347 = vrot.lane.b32.xlu0 %v1011, 4
      %v1348 = vpop.permute.xlu0 %1347
      %1352 = vrot.lane.b32.xlu0 %v1024, 8
      %v1353 = vpop.permute.xlu0 %1352
      %1354 = vrot.lane.b32.xlu0 %v1026, 8
      %v1355 = vpop.permute.xlu0 %1354
      %1356 = vrot.lane.b32.xlu0 %v1025, 8
      %v1357 = vpop.permute.xlu0 %1356
      %1361 = vrot.lane.b32.xlu0 %v689, 12
      %v1362 = vpop.permute.xlu0 %1361
      %1363 = vrot.lane.b32.xlu0 %v690, 12
      %v1364 = vpop.permute.xlu0 %1363
      %1365 = vrot.lane.b32.xlu0 %v691, 12
      %v1366 = vpop.permute.xlu0 %1365
      %1370 = vrot.lane.b32.xlu0 %v1206, 16
      %v1371 = vpop.permute.xlu0 %1370
      %1372 = vrot.lane.b32.xlu0 %v1208, 16
      %v1373 = vpop.permute.xlu0 %1372
      %1374 = vrot.lane.b32.xlu0 %v1207, 16
      %v1375 = vpop.permute.xlu0 %1374
      %1379 = vrot.lane.b32.xlu0 %v1220, 20
      %v1380 = vpop.permute.xlu0 %1379
      %1381 = vrot.lane.b32.xlu0 %v1222, 20
      %v1382 = vpop.permute.xlu0 %1381
      %1383 = vrot.lane.b32.xlu0 %v1221, 20
      %v1384 = vpop.permute.xlu0 %1383
      %1391 = vrot.lane.b32.xlu0 %v695, 24
      %v1392 = vpop.permute.xlu0 %1391
      %1393 = vrot.lane.b32.xlu0 %v696, 24
      %v1394 = vpop.permute.xlu0 %1393
      %1395 = vrot.lane.b32.xlu0 %v697, 24
      %v1396 = vpop.permute.xlu0 %1395
      %v1400 = vrot.slane %v695, 1
      %v1401 = vrot.slane %v696, 1
      %v1402 = vsel %vm701, %v1400, %v1401
      %v1403 = vrot.slane %v697, 1
      %v1404 = vsel %vm701, %v1401, %v1403
      %1405 = vrot.lane.b32.xlu0 %v1402, 28
      %v1406 = vpop.permute.xlu0 %1405
      %1407 = vrot.lane.b32.xlu0 %v1404, 28
      %v1408 = vpop.permute.xlu0 %1407
      %1409 = vrot.lane.b32.xlu0 %v1403, 28
      %v1410 = vpop.permute.xlu0 %1409
      %v1414 = vrot.slane %v695, 2
      %v1415 = vrot.slane %v696, 2
      %v1416 = vsel %vm716, %v1414, %v1415
      %v1417 = vrot.slane %v697, 2
      %v1418 = vsel %vm716, %v1415, %v1417
      %1419 = vrot.lane.b32.xlu0 %v1416, 32
      %v1420 = vpop.permute.xlu0 %1419
      %1421 = vrot.lane.b32.xlu0 %v1418, 32
      %v1422 = vpop.permute.xlu0 %1421
      %1423 = vrot.lane.b32.xlu0 %v1417, 32
      %v1424 = vpop.permute.xlu0 %1423
      %v1428 = vsel %vm811, %v683, %v1344
      %v1429 = vsel %vm811, %v684, %v1346
      %v1430 = vsel %vm811, %v685, %v1348
      %v1431 = vsel %vm815, %v1428, %v1353
      %v1432 = vsel %vm815, %v1429, %v1355
      %v1433 = vsel %vm815, %v1430, %v1357
      %v1434 = vsel %vm819, %v1431, %v1362
      %v1435 = vsel %vm819, %v1432, %v1364
      %v1436 = vsel %vm819, %v1433, %v1366
      %v1437 = vsel %vm823, %v1434, %v1371
      %v1438 = vsel %vm823, %v1435, %v1373
      %v1439 = vsel %vm823, %v1436, %v1375
      %v1440 = vsel %vm827, %v1437, %v1380
      %v1441 = vsel %vm827, %v1438, %v1382
      %v1442 = vsel %vm827, %v1439, %v1384
      %v1443 = vsel %vm831, %v1440, %v1392
      %v1444 = vsel %vm831, %v1441, %v1394
      %v1445 = vsel %vm831, %v1442, %v1396
      %v1446 = vsel %vm835, %v1443, %v1406
      %v1447 = vsel %vm835, %v1444, %v1408
      %v1448 = vsel %vm835, %v1445, %v1410
      %v1449 = vsel %vm839, %v1446, %v1420
      %v1450 = vsel %vm839, %v1447, %v1422
      %v1451 = vsel %vm839, %v1448, %v1424
      %v1452 = vpack.c.bf16 %v1450, %v1449
      %v1453 = vpack.c.bf16 %v1451, %v1451
      %v1455 = vsel %vm860, %v1452, 0
      %v1458 = vsel %vm860, %v1453, 0
      %1460 = vmatprep.subr.bf16.mxu0 0
      %1461 = vmatpush1.bf16.msra.mxu0 0
      %1462 = vmatprep.subr.bf16.mxu0 0
      %1463 = vmatpush1.bf16.msra.mxu0 0
      %1464 = vmatprep.subr.bf16.mxu0 0
      %1465 = vmatpush1.bf16.msra.mxu0 0
      %1466 = vmatprep.subr.bf16.mxu0 0
      %1467 = vmatpush1.bf16.msra.mxu0 0
      %1468 = vmatprep.subr.bf16.mxu0 0
      %1469 = vmatpush1.bf16.msra.mxu0 0
      %1470 = vmatprep.subr.bf16.mxu0 0
      %1471 = vmatpush1.bf16.msra.mxu0 %v869
      %1472 = vmatprep.subr.bf16.mxu0 0
      %1473 = vmatpush1.bf16.msra.mxu0 %v856
      %1474 = vmatprep.subr.bf16.mxu0 0
      %1475 = vmatpush1.bf16.msra.mxu0 %v855
      %1476 = vmatprep.subr.bf16.mxu0 0
      %1477 = vmatpush2.bf16.msra.mxu0 0
      %1478 = vmatprep.subr.bf16.mxu0 0
      %1479 = vmatpush2.bf16.msra.mxu0 0
      %1480 = vmatprep.subr.bf16.mxu0 0
      %1481 = vmatpush2.bf16.msra.mxu0 0
      %1482 = vmatprep.subr.bf16.mxu0 0
      %1483 = vmatpush2.bf16.msra.mxu0 0
      %1484 = vmatprep.subr.bf16.mxu0 0
      %1485 = vmatpush2.bf16.msra.mxu0 0
      %1486 = vmatprep.subr.bf16.mxu0 0
      %1487 = vmatpush2.bf16.msra.mxu0 0
      %1488 = vmatprep.subr.bf16.mxu0 0
      %1489 = vmatpush2.bf16.msra.mxu0 0
      %1490 = vmatprep.subr.bf16.mxu0 0
      %1491 = vmatpush2.bf16.msra.mxu0 0
      %1492 = vmatprep.mubr.bf16.mxu0 0
      %1493 = vmatmul.mubr.bf16.gmra.mxu0 %v1455
      %v1494 = vpop.f32.mrf.mxu0
      %v1495 = vadd.f32 0.0, %v1494
      %v1496 = vpop.f32.mrf.mxu0
      %v1497 = vpop.f32.mrf.mxu0
      %v1498 = vadd.f32 0.0, %v1497
      %v1499 = vpop.f32.mrf.mxu0
      %1500 = vmatprep.mubr.bf16.mxu0 0
      %1501 = vmatmul.mubr.bf16.gmra.mxu0 %v1458
      %v1502 = vpop.f32.mrf.mxu0
      %v1503 = vadd.f32 0.0, %v1502
      %v1504 = vpop.f32.mrf.mxu0
      %v1505 = vpop.f32.mrf.mxu0
      %v1506 = vpop.f32.mrf.mxu0
      %1507 = vdwg.mxu0
      %s1508 = scalar_lea.vmem %s640, 72
      %1509 = vst.msk [vmem:[%s1508] sm:$0xff] %vm919, %v1495
      %1510 = vst.msk [vmem:[%s1508 + $0x8] sm:$0xff] %vm919, %v1498
      %1511 = vst.msk [vmem:[%s1508 + $0x10] sm:$0xf] %vm922, %v1503
      %v1512 = vsel %vm919, %v1495, 0.0
      %v1513 = vsel %vm919, %v1498, 0.0
      %v1514 = vadd.f32 %v1512, %v1513
      %v1515 = vsel %vm922, %v1503, 0.0
      %v1516 = vadd.f32 %v1514, %v1515
      %v1517 = vrot.slane %v1516, 4
      %v1518 = vadd.f32 %v1516, %v1517
      %v1519 = vrot.slane %v1518, 2
      %v1520 = vadd.f32 %v1518, %v1519
      %v1521 = vrot.slane %v1520, 1
      %v1522 = vadd.f32 %v1520, %v1521
      %v1523 = vadd.f32 %v1327, %v1522
      %v1524 = vmul.f32 %v1495, %v1495
      %v1525 = vmul.f32 %v1498, %v1498
      %v1526 = vmul.f32 %v1503, %v1503
      %v1527 = vsel %vm919, %v1524, 0.0
      %v1528 = vsel %vm919, %v1525, 0.0
      %v1529 = vadd.f32 %v1527, %v1528
      %v1530 = vsel %vm922, %v1526, 0.0
      %v1531 = vadd.f32 %v1529, %v1530
      %v1532 = vrot.slane %v1531, 4
      %v1533 = vadd.f32 %v1531, %v1532
      %v1534 = vrot.slane %v1533, 2
      %v1535 = vadd.f32 %v1533, %v1534
      %v1536 = vrot.slane %v1535, 1
      %v1537 = vadd.f32 %v1535, %v1536
      %v1538 = vadd.f32 %v1342, %v1537
      %vm1539 = vcmask 516096
      %1540 = vst.msk [vmem:[%s648] sm:$0x1] %vm1539, %v1523
      %1541 = vst.msk [vmem:[%s655] sm:$0x1] %vm1539, %v1538
      %s1542 = smul.u32 4, %s26
      %p1543 = scmp.lt.s32.totalorder %s25, 1
      %s1544 = scalar_select %p1543, %s25, 1
      %p1545 = scmp.lt.s32.totalorder %s1542, 19
      %s1546 = scalar_select %p1545, %s1542, 19
      %s1547 = smul.addr %s1546, 3
      %s1548 = smul.addr %s1544, 60
      %s1549 = sadd.s32 %s1547, %s1548
      %s1550 = smul.addr %s1549, 8
      %s1551 = scalar_lea.vmem %s7, %s1550
      %p1552 = scmp.lt.s32.totalorder %s25, 1
      %s1553 = scalar_select %p1552, %s25, 1
      %p1554 = scmp.lt.s32.totalorder %s26, 4
      %s1555 = scalar_select %p1554, %s26, 4
      %s1556 = smul.addr %s1553, 5
      %s1557 = sadd.s32 %s1555, %s1556
      %s1558 = scalar_lea.vmem %s8, %s1557
      %p1559 = scmp.lt.s32.totalorder %s25, 1
      %s1560 = scalar_select %p1559, %s25, 1
      %p1561 = scmp.lt.s32.totalorder %s26, 4
      %s1562 = scalar_select %p1561, %s26, 4
      %s1563 = smul.addr %s1560, 5
      %s1564 = sadd.s32 %s1562, %s1563
      %s1565 = scalar_lea.vmem %s9, %s1564
      // Predicated region
      $region49: #{cnn_encoder_forward.8} parent=47 // pred_check
        %p1566 = pneg %p264
      $region50: #{cnn_encoder_forward.8} parent=47 // pred_check_branch
        %1568 = sbr.rel (%p1566) target = $region52
      $region51: #{cnn_encoder_forward.8} parent=47 // pred_region
        %s1569 = smul.u32 4, %s26
      $region52: #{cnn_encoder_forward.8} parent=47 // pred_fallthru
        _
      // Predicated region
      $region53: #{cnn_encoder_forward.8} parent=47 // pred_check
        %p1570 = pneg %p292
      $region54: #{cnn_encoder_forward.8} parent=47 // pred_check_branch
        %1572 = sbr.rel (%p1570) target = $region56
      $region55: #{cnn_encoder_forward.8} parent=47 // pred_region
        _
      $region56: #{cnn_encoder_forward.8} parent=47 // pred_fallthru
        _
      // Predicated region
      $region57: #{cnn_encoder_forward.8} parent=47 // pred_check
        %p1573 = pneg %p320
      $region58: #{cnn_encoder_forward.8} parent=47 // pred_check_branch
        %1575 = sbr.rel (%p1573) target = $region60
      $region59: #{cnn_encoder_forward.8} parent=47 // pred_region
        _
      $region60: #{cnn_encoder_forward.8} parent=47 // pred_fallthru
        _
    $region48: #{cnn_encoder_forward.8} parent=5 // pred_fallthru
      _
    %p1576 = scmp.le.s32.totalorder 2, %s16
    // Predicated region
    $region61: #{cnn_encoder_forward.8} parent=5 // pred_check
      %p1577 = pneg %p1576
    $region62: #{cnn_encoder_forward.8} parent=5 // pred_check_branch
      %1579 = sbr.rel (%p1577) target = $region64
    $region63: #{cnn_encoder_forward.8} parent=5 // pred_region
      %s1580 = ssub.s32 %s16, 2
      // Predicated region
      $region65: #{cnn_encoder_forward.8} parent=63 // pred_check
        %p1581 = pneg %p270
      $region66: #{cnn_encoder_forward.8} parent=63 // pred_check_branch
        %1583 = sbr.rel (%p1581) target = $region68
      $region67: #{cnn_encoder_forward.8} parent=63 // pred_region
        %s1584 = smul.u32 4, %s28
        %p1585 = scmp.lt.s32.totalorder %s27, 1
        %s1586 = scalar_select %p1585, %s27, 1
        %p1587 = scmp.lt.s32.totalorder %s1584, 19
        %s1588 = scalar_select %p1587, %s1584, 19
        %s1589 = smul.addr %s1588, 3
        %s1590 = smul.addr %s1586, 60
        %s1591 = sadd.s32 %s1589, %s1590
        %s1592 = smul.addr %s1591, 8
        %s1593 = scalar_lea.vmem %s7, %s1592
      $region68: #{cnn_encoder_forward.8} parent=63 // pred_fallthru
        _
      // Predicated region
      $region69: #{cnn_encoder_forward.8} parent=63 // pred_check
        %p1594 = pneg %p298
      $region70: #{cnn_encoder_forward.8} parent=63 // pred_check_branch
        %1596 = sbr.rel (%p1594) target = $region72
      $region71: #{cnn_encoder_forward.8} parent=63 // pred_region
        %p1597 = scmp.lt.s32.totalorder %s27, 1
        %s1598 = scalar_select %p1597, %s27, 1
        %p1599 = scmp.lt.s32.totalorder %s28, 4
        %s1600 = scalar_select %p1599, %s28, 4
        %s1601 = smul.addr %s1598, 5
        %s1602 = sadd.s32 %s1600, %s1601
        %s1603 = scalar_lea.vmem %s8, %s1602
      $region72: #{cnn_encoder_forward.8} parent=63 // pred_fallthru
        _
      // Predicated region
      $region73: #{cnn_encoder_forward.8} parent=63 // pred_check
        %p1604 = pneg %p326
      $region74: #{cnn_encoder_forward.8} parent=63 // pred_check_branch
        %1606 = sbr.rel (%p1604) target = $region76
      $region75: #{cnn_encoder_forward.8} parent=63 // pred_region
        %p1607 = scmp.lt.s32.totalorder %s27, 1
        %s1608 = scalar_select %p1607, %s27, 1
        %p1609 = scmp.lt.s32.totalorder %s28, 4
        %s1610 = scalar_select %p1609, %s28, 4
        %s1611 = smul.addr %s1608, 5
        %s1612 = sadd.s32 %s1610, %s1611
        %s1613 = scalar_lea.vmem %s9, %s1612
      $region76: #{cnn_encoder_forward.8} parent=63 // pred_fallthru
        _
    $region64: #{cnn_encoder_forward.8} parent=5 // pred_fallthru
      _
  $region6: #{cnn_encoder_forward.8} parent=0 // loop_footer
    %s20 = sadd.s32 1, %s16
  $region7: #{cnn_encoder_forward.8} parent=0 // loop_footer_branch
    %15 = sbr.rel target = $region3
  $region8: #{cnn_encoder_forward.8} parent=0 // loop_exit
    _

// kernel: cnn_encoder_forward.9
$region0: #{cnn_encoder_forward.9}
  #allocation0 [shape = 'u32[]', space=smem, size = 0x4, offset = 0x4, fixed_abs, tag = 'smem constant byte address 0x4 - core index']
  #allocation1 [shape = 'u32[144,128]{1,0:T(1,128)}', space=vmem, size = 0x12000, scoped, tag = 'internal scratch']
  %s0 = inlined_call_operand.vmem [shape: f32[2,20,10,128], index: 0, kind: input, shape index: {}, may-alias: {0,1}]
  %s1 = inlined_call_operand.vmem [shape: f32[2,20,10,128], index: 1, kind: input, shape index: {}, may-alias: {0,1}]
  %s2 = inlined_call_operand.vmem [shape: f32[1,128], index: 2, kind: input, shape index: {}]
  %s3 = inlined_call_operand.vmem [shape: f32[1,128], index: 3, kind: input, shape index: {}]
  %s4 = inlined_call_operand.vmem [shape: bf16[2,10,10,64], index: 4, kind: output, shape index: {}]
  %s5 = sld [smem:[#allocation0]]
  $region49: #{cnn_encoder_forward.9} parent=0
    _
  %s7 = ssub.s32 1, %s5
  %s8 = scalar_select 0, %s7, %s5
  loop: start=0, step=1, limit=22
  $region2: #{cnn_encoder_forward.9} parent=0 // loop_pre_header
    _
  $region3: #{cnn_encoder_forward.9} parent=0 // loop_header
    %s10 = sphi 0, %s14
    %p11 = scmp.ge.s32.totalorder %s10, 22
    %s17 = sphi 0, %s29
    %s18 = sphi 0, %s25
    %s19 = sphi 0, %s17
    %s20 = sphi 0, %s18
    %s21 = sphi 0, %s19
    %s22 = sphi 0, %s20
    %s36 = sphi 0, %s38
    %s39 = sphi 0, %s36
    %s40 = sphi 0, %s39
    %s56 = sphi 0, %s40
    %s68 = sphi 0, %s70
    %s71 = sphi 0, %s68
    %s72 = sphi 0, %s71
    %s88 = sphi 0, %s72
    %s92 = sphi 0, %s92
    %s94 = sphi 0, %s92
    %s95 = sphi 0, %s94
    %s109 = sphi 0, %s95
    %s113 = sphi 0, %s113
    %s115 = sphi 0, %s113
    %s116 = sphi 0, %s115
    %s130 = sphi 0, %s116
    %s138 = sphi 0, %s140
    %s141 = sphi 0, %s138
    %s142 = sphi 0, %s141
    %s158 = sphi 0, %s142
  $region4: #{cnn_encoder_forward.9} parent=0 // loop_header_branch
    %13 = sbr.rel (%p11) target = $region8
  $region5: #{cnn_encoder_forward.9} parent=0 // loop_body
    %s15 = ssub.s32 %s10, 1
    %s16 = ssub.s32 %s10, 2
    %s23 = sadd.s32 1, %s18
    %p24 = scmp.ge.s32.totalorder %s23, 10
    %s25 = scalar_select %p24, 0, %s23
    %s26 = sadd.s32 1, %s17
    %s27 = scalar_select %p24, %s26, %s17
    %p28 = scmp.ge.s32.totalorder %s27, 2
    %s29 = scalar_select %p28, 0, %s27
    %s30 = smul.u32 %s18, 2
    %s31 = smul.u32 %s25, 2
    %s32 = ssub.s32 %s17, %s29
    %s33 = ssub.s32 %s30, %s31
    %s34 = sor.u32 %s32, %s33
    %p35 = scmp.eq.s32.totalorder %s34, 0
    %s37 = sadd.s32 %s36, 1
    %s38 = scalar_select %p35, %s36, %s37
    %p41 = pneg %p35
    %p42 = scmp.eq.s32.totalorder %s10, 19
    %p43 = por %p41, %p42
    %p44 = scmp.ne.s32.totalorder %s36, %s39
    %p45 = scmp.eq.s32.totalorder %s10, 0
    %p46 = por %p44, %p45
    %p47 = scmp.ne.s32.totalorder %s36, %s39
    %p48 = scmp.eq.s32.totalorder %s15, 19
    %p49 = por %p47, %p48
    %p50 = scmp.ne.s32.totalorder %s39, %s40
    %p51 = scmp.eq.s32.totalorder %s15, 0
    %p52 = por %p50, %p51
    %p53 = scmp.ne.s32.totalorder %s39, %s40
    %p54 = scmp.eq.s32.totalorder %s16, 19
    %p55 = por %p53, %p54
    %p57 = scmp.ne.s32.totalorder %s40, %s56
    %p58 = scmp.eq.s32.totalorder %s16, 0
    %p59 = por %p57, %p58
    %s60 = smul.u32 %s18, 2
    %s61 = sadd.s32 %s60, 1
    %s62 = smul.u32 %s25, 2
    %s63 = sadd.s32 %s62, 1
    %s64 = ssub.s32 %s17, %s29
    %s65 = ssub.s32 %s61, %s63
    %s66 = sor.u32 %s64, %s65
    %p67 = scmp.eq.s32.totalorder %s66, 0
    %s69 = sadd.s32 %s68, 1
    %s70 = scalar_select %p67, %s68, %s69
    %p73 = pneg %p67
    %p74 = scmp.eq.s32.totalorder %s10, 19
    %p75 = por %p73, %p74
    %p76 = scmp.ne.s32.totalorder %s68, %s71
    %p77 = scmp.eq.s32.totalorder %s10, 0
    %p78 = por %p76, %p77
    %p79 = scmp.ne.s32.totalorder %s68, %s71
    %p80 = scmp.eq.s32.totalorder %s15, 19
    %p81 = por %p79, %p80
    %p82 = scmp.ne.s32.totalorder %s71, %s72
    %p83 = scmp.eq.s32.totalorder %s15, 0
    %p84 = por %p82, %p83
    %p85 = scmp.ne.s32.totalorder %s71, %s72
    %p86 = scmp.eq.s32.totalorder %s16, 19
    %p87 = por %p85, %p86
    %p89 = scmp.ne.s32.totalorder %s72, %s88
    %p90 = scmp.eq.s32.totalorder %s16, 0
    %p91 = por %p89, %p90
    %s93 = sadd.s32 %s92, 1
    %p96 = scmp.eq.s32.totalorder %s10, 19
    %p97 = scmp.ne.s32.totalorder %s92, %s94
    %p98 = scmp.eq.s32.totalorder %s10, 0
    %p99 = por %p97, %p98
    %p100 = scmp.ne.s32.totalorder %s92, %s94
    %p101 = scmp.eq.s32.totalorder %s15, 19
    %p102 = por %p100, %p101
    %p103 = scmp.ne.s32.totalorder %s94, %s95
    %p104 = scmp.eq.s32.totalorder %s15, 0
    %p105 = por %p103, %p104
    %p106 = scmp.ne.s32.totalorder %s94, %s95
    %p107 = scmp.eq.s32.totalorder %s16, 19
    %p108 = por %p106, %p107
    %p110 = scmp.ne.s32.totalorder %s95, %s109
    %p111 = scmp.eq.s32.totalorder %s16, 0
    %p112 = por %p110, %p111
    %s114 = sadd.s32 %s113, 1
    %p117 = scmp.eq.s32.totalorder %s10, 19
    %p118 = scmp.ne.s32.totalorder %s113, %s115
    %p119 = scmp.eq.s32.totalorder %s10, 0
    %p120 = por %p118, %p119
    %p121 = scmp.ne.s32.totalorder %s113, %s115
    %p122 = scmp.eq.s32.totalorder %s15, 19
    %p123 = por %p121, %p122
    %p124 = scmp.ne.s32.totalorder %s115, %s116
    %p125 = scmp.eq.s32.totalorder %s15, 0
    %p126 = por %p124, %p125
    %p127 = scmp.ne.s32.totalorder %s115, %s116
    %p128 = scmp.eq.s32.totalorder %s16, 19
    %p129 = por %p127, %p128
    %p131 = scmp.ne.s32.totalorder %s116, %s130
    %p132 = scmp.eq.s32.totalorder %s16, 0
    %p133 = por %p131, %p132
    %s134 = ssub.s32 %s17, %s29
    %s135 = ssub.s32 %s18, %s25
    %s136 = sor.u32 %s134, %s135
    %p137 = scmp.eq.s32.totalorder %s136, 0
    %s139 = sadd.s32 %s138, 1
    %s140 = scalar_select %p137, %s138, %s139
    %p143 = pneg %p137
    %p144 = scmp.eq.s32.totalorder %s10, 19
    %p145 = por %p143, %p144
    %p146 = scmp.ne.s32.totalorder %s138, %s141
    %p147 = scmp.eq.s32.totalorder %s10, 0
    %p148 = por %p146, %p147
    %p149 = scmp.ne.s32.totalorder %s138, %s141
    %p150 = scmp.eq.s32.totalorder %s15, 19
    %p151 = por %p149, %p150
    %p152 = scmp.ne.s32.totalorder %s141, %s142
    %p153 = scmp.eq.s32.totalorder %s15, 0
    %p154 = por %p152, %p153
    %p155 = scmp.ne.s32.totalorder %s141, %s142
    %p156 = scmp.eq.s32.totalorder %s16, 19
    %p157 = por %p155, %p156
    %p159 = scmp.ne.s32.totalorder %s142, %s158
    %p160 = scmp.eq.s32.totalorder %s16, 0
    %p161 = por %p159, %p160
    %p162 = scmp.le.s32.totalorder 1, %s10
    %p163 = scmp.lt.s32.totalorder %s10, 21
    %p164 = pnand %p162, %p163
    %p165 = pneg %p164
    // Predicated region
    $region9: #{cnn_encoder_forward.9} parent=5 // pred_check
      _
    $region10: #{cnn_encoder_forward.9} parent=5 // pred_check_branch
      %167 = sbr.rel (%p164) target = $region12
    $region11: #{cnn_encoder_forward.9} parent=5 // pred_region
      %s168 = ssub.s32 %s10, 1
      // Predicated region
      $region13: #{cnn_encoder_forward.9} parent=11 // pred_check
        %p169 = pneg %p105
      $region14: #{cnn_encoder_forward.9} parent=11 // pred_check_branch
        %171 = sbr.rel (%p169) target = $region16
      $region15: #{cnn_encoder_forward.9} parent=11 // pred_region
        _
      $region16: #{cnn_encoder_forward.9} parent=11 // pred_fallthru
        _
      // Predicated region
      $region17: #{cnn_encoder_forward.9} parent=11 // pred_check
        %p172 = pneg %p126
      $region18: #{cnn_encoder_forward.9} parent=11 // pred_check_branch
        %174 = sbr.rel (%p172) target = $region20
      $region19: #{cnn_encoder_forward.9} parent=11 // pred_region
        _
      $region20: #{cnn_encoder_forward.9} parent=11 // pred_fallthru
        _
    $region12: #{cnn_encoder_forward.9} parent=5 // pred_fallthru
      _
    %p175 = scmp.lt.s32.totalorder %s10, 20
    // Predicated region
    $region21: #{cnn_encoder_forward.9} parent=5 // pred_check
      %p176 = pneg %p175
    $region22: #{cnn_encoder_forward.9} parent=5 // pred_check_branch
      %178 = sbr.rel (%p176) target = $region24
    $region23: #{cnn_encoder_forward.9} parent=5 // pred_region
      // Predicated region
      $region25: #{cnn_encoder_forward.9} parent=23 // pred_check
        %p179 = pneg %p46
      $region26: #{cnn_encoder_forward.9} parent=23 // pred_check_branch
        %181 = sbr.rel (%p179) target = $region28
      $region27: #{cnn_encoder_forward.9} parent=23 // pred_region
        %s182 = smul.u32 %s18, 2
        %p183 = scmp.lt.s32.totalorder %s17, 1
        %s184 = scalar_select %p183, %s17, 1
        %p185 = scmp.lt.s32.totalorder %s182, 19
        %s186 = scalar_select %p185, %s182, 19
        %s187 = smul.addr %s186, 2
        %s188 = smul.addr %s184, 40
        %s189 = sadd.s32 %s187, %s188
        %s190 = smul.addr %s189, 8
        %s191 = scalar_lea.vmem %s0, %s190
        %s192 = smul.u32 %s18, 2
      $region28: #{cnn_encoder_forward.9} parent=23 // pred_fallthru
        _
      // Predicated region
      $region29: #{cnn_encoder_forward.9} parent=23 // pred_check
        %p193 = pneg %p78
      $region30: #{cnn_encoder_forward.9} parent=23 // pred_check_branch
        %195 = sbr.rel (%p193) target = $region32
      $region31: #{cnn_encoder_forward.9} parent=23 // pred_region
        %s196 = smul.u32 %s18, 2
        %s197 = sadd.s32 %s196, 1
        %p198 = scmp.lt.s32.totalorder %s17, 1
        %s199 = scalar_select %p198, %s17, 1
        %p200 = scmp.lt.s32.totalorder %s197, 19
        %s201 = scalar_select %p200, %s197, 19
        %s202 = smul.addr %s201, 2
        %s203 = smul.addr %s199, 40
        %s204 = sadd.s32 %s202, %s203
        %s205 = smul.addr %s204, 8
        %s206 = scalar_lea.vmem %s1, %s205
        %s207 = smul.u32 %s18, 2
        %s208 = sadd.s32 %s207, 1
      $region32: #{cnn_encoder_forward.9} parent=23 // pred_fallthru
        _
    $region24: #{cnn_encoder_forward.9} parent=5 // pred_fallthru
      _
    %p209 = scmp.le.s32.totalorder 1, %s10
    %p210 = scmp.lt.s32.totalorder %s10, 21
    %p211 = pnand %p209, %p210
    %p212 = pneg %p211
    // Predicated region
    $region33: #{cnn_encoder_forward.9} parent=5 // pred_check
      _
    $region34: #{cnn_encoder_forward.9} parent=5 // pred_check_branch
      %214 = sbr.rel (%p211) target = $region36
    $region35: #{cnn_encoder_forward.9} parent=5 // pred_region
      %s215 = ssub.s32 %s10, 1
      %s216 = smul.u32 %s20, 2
      %p217 = scmp.lt.s32.totalorder %s19, 1
      %s218 = scalar_select %p217, %s19, 1
      %p219 = scmp.lt.s32.totalorder %s216, 19
      %s220 = scalar_select %p219, %s216, 19
      %s221 = smul.addr %s220, 2
      %s222 = smul.addr %s218, 40
      %s223 = sadd.s32 %s221, %s222
      %s224 = smul.addr %s223, 8
      %s225 = scalar_lea.vmem %s0, %s224
      %p226 = pneg %p52
      %p227 = pneg %p49
      %s228 = smul.u32 %s20, 2
      %s229 = sadd.s32 %s228, 1
      %p230 = scmp.lt.s32.totalorder %s19, 1
      %s231 = scalar_select %p230, %s19, 1
      %p232 = scmp.lt.s32.totalorder %s229, 19
      %s233 = scalar_select %p232, %s229, 19
      %s234 = smul.addr %s233, 2
      %s235 = smul.addr %s231, 40
      %s236 = sadd.s32 %s234, %s235
      %s237 = smul.addr %s236, 8
      %s238 = scalar_lea.vmem %s1, %s237
      %p239 = pneg %p84
      %p240 = pneg %p81
      %p241 = pneg %p105
      %p242 = pneg %p102
      %p243 = pneg %p126
      %p244 = pneg %p123
      %p245 = pneg %p154
      %p246 = pneg %p151
      %p247 = scmp.lt.s32.totalorder %s19, 1
      %s248 = scalar_select %p247, %s19, 1
      %p249 = scmp.lt.s32.totalorder %s20, 9
      %s250 = scalar_select %p249, %s20, 9
      %s251 = smul.addr %s250, 2
      %s252 = smul.addr %s248, 20
      %s253 = sadd.s32 %s251, %s252
      %s254 = smul.addr %s253, 4
      %s255 = scalar_lea.vmem %s4, %s254
      %s256 = smul.u32 %s20, 2
      %p257 = scmp.lt.s32.totalorder %s19, 1
      %s258 = scalar_select %p257, %s19, 1
      %p259 = scmp.lt.s32.totalorder %s256, 19
      %s260 = scalar_select %p259, %s256, 19
      %s261 = smul.addr %s260, 2
      %s262 = smul.addr %s258, 40
      %s263 = sadd.s32 %s261, %s262
      %s264 = smul.addr %s263, 8
      %s265 = scalar_lea.vmem %s0, %s264
      %s266 = smul.u32 %s20, 2
      %s267 = smul.u32 %s20, 2
      %s268 = sadd.s32 %s267, 1
      %p269 = scmp.lt.s32.totalorder %s19, 1
      %s270 = scalar_select %p269, %s19, 1
      %p271 = scmp.lt.s32.totalorder %s268, 19
      %s272 = scalar_select %p271, %s268, 19
      %s273 = smul.addr %s272, 2
      %s274 = smul.addr %s270, 40
      %s275 = sadd.s32 %s273, %s274
      %s276 = smul.addr %s275, 8
      %s277 = scalar_lea.vmem %s1, %s276
      %s278 = smul.u32 %s20, 2
      %s279 = sadd.s32 %s278, 1
      %p280 = scmp.lt.s32.totalorder %s19, 1
      %s281 = scalar_select %p280, %s19, 1
      %p282 = scmp.lt.s32.totalorder %s20, 9
      %s283 = scalar_select %p282, %s20, 9
      %s284 = smul.addr %s283, 2
      %s285 = smul.addr %s281, 20
      %s286 = sadd.s32 %s284, %s285
      %s287 = smul.addr %s286, 4
      %s288 = scalar_lea.vmem %s4, %s287
      %v289 = vld [vmem:[%s2] sm:$0x1]
      %v290 = vld [vmem:[%s3] sm:$0x1]
      %v291 = vld [vmem:[%s265] sm:$0xff]
      %v292 = vld [vmem:[%s265 + $0x8] sm:$0x3]
      %v294 = vlaneseq
      %v295 = vshrl.u32 %v294, 7
      %v296 = vsub.s32 0, %v295
      %v297 = vrot.slane %v289, %v296
      %v299 = vmul.f32 %v291, %v297
      %v300 = vmul.f32 %v292, %v297
      %v302 = vlaneseq
      %v303 = vshrl.u32 %v302, 7
      %v304 = vsub.s32 0, %v303
      %v305 = vrot.slane %v290, %v304
      %v307 = vadd.f32 %v299, %v305
      %v308 = vadd.f32 %v300, %v305
      %v309 = vmax.f32 %v307, 0.0
      %v310 = vmax.f32 %v308, 0.0
      %v311 = vld [vmem:[%s277] sm:$0xff]
      %v312 = vld [vmem:[%s277 + $0x8] sm:$0x3]
      %v313 = vmul.f32 %v311, %v297
      %v314 = vmul.f32 %v312, %v297
      %v315 = vadd.f32 %v313, %v305
      %v316 = vadd.f32 %v314, %v305
      %v317 = vmax.f32 %v315, 0.0
      %v318 = vmax.f32 %v316, 0.0
      %v319 = vmax.f32 %v309, %v317
      %v320 = vmax.f32 %v310, %v318
      %323 = vrot.lane.b32.xlu0 %v319, 64
      %v324 = vpop.permute.xlu0 %323
      %325 = vrot.lane.b32.xlu0 %v320, 64
      %v326 = vpop.permute.xlu0 %325
      %v329 = vmax.f32 %v319, %v324
      %v330 = vmax.f32 %v320, %v326
      %v331 = vpack.c.bf16 %v330, %v329
      %v333 = vunpack.c.l.b16 %v331
      %v334 = vunpack.c.h.b16 %v331
      %v335 = vpack.c.b16 %v333, %v333
      %v336 = vpack.c.b16 %v334, %v334
      %vm339 = vcmask 519168
      %340 = vst.msk [vmem:[%s288] sm:$0xf] %vm339, %v335
      %vm341 = vcmask 516096
      %342 = vst.msk [vmem:[%s288 + $0x4] sm:$0x1] %vm341, %v336
      %p343 = scmp.lt.s32.totalorder %s19, 1
      %s344 = scalar_select %p343, %s19, 1
      %p345 = scmp.lt.s32.totalorder %s20, 9
      %s346 = scalar_select %p345, %s20, 9
      %s347 = smul.addr %s346, 2
      %s348 = smul.addr %s344, 20
      %s349 = sadd.s32 %s347, %s348
      %s350 = smul.addr %s349, 4
      %s351 = scalar_lea.vmem %s4, %s350
      // Predicated region
      $region37: #{cnn_encoder_forward.9} parent=35 // pred_check
        %p352 = pneg %p151
      $region38: #{cnn_encoder_forward.9} parent=35 // pred_check_branch
        %354 = sbr.rel (%p352) target = $region40
      $region39: #{cnn_encoder_forward.9} parent=35 // pred_region
        _
      $region40: #{cnn_encoder_forward.9} parent=35 // pred_fallthru
        _
    $region36: #{cnn_encoder_forward.9} parent=5 // pred_fallthru
      _
    %p355 = scmp.le.s32.totalorder 2, %s10
    // Predicated region
    $region41: #{cnn_encoder_forward.9} parent=5 // pred_check
      %p356 = pneg %p355
    $region42: #{cnn_encoder_forward.9} parent=5 // pred_check_branch
      %358 = sbr.rel (%p356) target = $region44
    $region43: #{cnn_encoder_forward.9} parent=5 // pred_region
      %s359 = ssub.s32 %s10, 2
      // Predicated region
      $region45: #{cnn_encoder_forward.9} parent=43 // pred_check
        %p360 = pneg %p157
      $region46: #{cnn_encoder_forward.9} parent=43 // pred_check_branch
        %362 = sbr.rel (%p360) target = $region48
      $region47: #{cnn_encoder_forward.9} parent=43 // pred_region
        %p363 = scmp.lt.s32.totalorder %s21, 1
        %s364 = scalar_select %p363, %s21, 1
        %p365 = scmp.lt.s32.totalorder %s22, 9
        %s366 = scalar_select %p365, %s22, 9
        %s367 = smul.addr %s366, 2
        %s368 = smul.addr %s364, 20
        %s369 = sadd.s32 %s367, %s368
        %s370 = smul.addr %s369, 4
        %s371 = scalar_lea.vmem %s4, %s370
      $region48: #{cnn_encoder_forward.9} parent=43 // pred_fallthru
        _
    $region44: #{cnn_encoder_forward.9} parent=5 // pred_fallthru
      _
  $region6: #{cnn_encoder_forward.9} parent=0 // loop_footer
    %s14 = sadd.s32 1, %s10
  $region7: #{cnn_encoder_forward.9} parent=0 // loop_footer_branch
    %9 = sbr.rel target = $region3
  $region8: #{cnn_encoder_forward.9} parent=0 // loop_exit
    _

// kernel: cnn_encoder_forward.11
$region0: #{cnn_encoder_forward.11}
  #allocation0 [shape = 'u32[]', space=smem, size = 0x4, offset = 0x4, fixed_abs, tag = 'smem constant byte address 0x4 - core index']
  #allocation1 [shape = 'u32[144,128]{1,0:T(1,128)}', space=vmem, size = 0x12000, scoped, tag = 'internal scratch']
  %s0 = inlined_call_operand.vmem [shape: f32[2,8,4,128], index: 0, kind: input, shape index: {}, may-alias: {0,1}]
  %s1 = inlined_call_operand.vmem [shape: f32[2,8,4,128], index: 1, kind: input, shape index: {}, may-alias: {0,1}]
  %s2 = inlined_call_operand.vmem [shape: f32[1,128], index: 2, kind: input, shape index: {}]
  %s3 = inlined_call_operand.vmem [shape: f32[1,128], index: 3, kind: input, shape index: {}]
  %s4 = inlined_call_operand.vmem [shape: bf16[2,4,4,64], index: 4, kind: output, shape index: {}]
  %s5 = sld [smem:[#allocation0]]
  $region49: #{cnn_encoder_forward.11} parent=0
    _
  %s7 = ssub.s32 1, %s5
  %s8 = scalar_select 0, %s7, %s5
  loop: start=0, step=1, limit=10
  $region2: #{cnn_encoder_forward.11} parent=0 // loop_pre_header
    _
  $region3: #{cnn_encoder_forward.11} parent=0 // loop_header
    %s10 = sphi 0, %s14
    %p11 = scmp.ge.s32.totalorder %s10, 10
    %s17 = sphi 0, %s29
    %s18 = sphi 0, %s25
    %s19 = sphi 0, %s17
    %s20 = sphi 0, %s18
    %s21 = sphi 0, %s19
    %s22 = sphi 0, %s20
    %s36 = sphi 0, %s38
    %s39 = sphi 0, %s36
    %s40 = sphi 0, %s39
    %s56 = sphi 0, %s40
    %s68 = sphi 0, %s70
    %s71 = sphi 0, %s68
    %s72 = sphi 0, %s71
    %s88 = sphi 0, %s72
    %s92 = sphi 0, %s92
    %s94 = sphi 0, %s92
    %s95 = sphi 0, %s94
    %s109 = sphi 0, %s95
    %s113 = sphi 0, %s113
    %s115 = sphi 0, %s113
    %s116 = sphi 0, %s115
    %s130 = sphi 0, %s116
    %s138 = sphi 0, %s140
    %s141 = sphi 0, %s138
    %s142 = sphi 0, %s141
    %s158 = sphi 0, %s142
  $region4: #{cnn_encoder_forward.11} parent=0 // loop_header_branch
    %13 = sbr.rel (%p11) target = $region8
  $region5: #{cnn_encoder_forward.11} parent=0 // loop_body
    %s15 = ssub.s32 %s10, 1
    %s16 = ssub.s32 %s10, 2
    %s23 = sadd.s32 1, %s18
    %p24 = scmp.ge.s32.totalorder %s23, 4
    %s25 = scalar_select %p24, 0, %s23
    %s26 = sadd.s32 1, %s17
    %s27 = scalar_select %p24, %s26, %s17
    %p28 = scmp.ge.s32.totalorder %s27, 2
    %s29 = scalar_select %p28, 0, %s27
    %s30 = smul.u32 %s18, 2
    %s31 = smul.u32 %s25, 2
    %s32 = ssub.s32 %s17, %s29
    %s33 = ssub.s32 %s30, %s31
    %s34 = sor.u32 %s32, %s33
    %p35 = scmp.eq.s32.totalorder %s34, 0
    %s37 = sadd.s32 %s36, 1
    %s38 = scalar_select %p35, %s36, %s37
    %p41 = pneg %p35
    %p42 = scmp.eq.s32.totalorder %s10, 7
    %p43 = por %p41, %p42
    %p44 = scmp.ne.s32.totalorder %s36, %s39
    %p45 = scmp.eq.s32.totalorder %s10, 0
    %p46 = por %p44, %p45
    %p47 = scmp.ne.s32.totalorder %s36, %s39
    %p48 = scmp.eq.s32.totalorder %s15, 7
    %p49 = por %p47, %p48
    %p50 = scmp.ne.s32.totalorder %s39, %s40
    %p51 = scmp.eq.s32.totalorder %s15, 0
    %p52 = por %p50, %p51
    %p53 = scmp.ne.s32.totalorder %s39, %s40
    %p54 = scmp.eq.s32.totalorder %s16, 7
    %p55 = por %p53, %p54
    %p57 = scmp.ne.s32.totalorder %s40, %s56
    %p58 = scmp.eq.s32.totalorder %s16, 0
    %p59 = por %p57, %p58
    %s60 = smul.u32 %s18, 2
    %s61 = sadd.s32 %s60, 1
    %s62 = smul.u32 %s25, 2
    %s63 = sadd.s32 %s62, 1
    %s64 = ssub.s32 %s17, %s29
    %s65 = ssub.s32 %s61, %s63
    %s66 = sor.u32 %s64, %s65
    %p67 = scmp.eq.s32.totalorder %s66, 0
    %s69 = sadd.s32 %s68, 1
    %s70 = scalar_select %p67, %s68, %s69
    %p73 = pneg %p67
    %p74 = scmp.eq.s32.totalorder %s10, 7
    %p75 = por %p73, %p74
    %p76 = scmp.ne.s32.totalorder %s68, %s71
    %p77 = scmp.eq.s32.totalorder %s10, 0
    %p78 = por %p76, %p77
    %p79 = scmp.ne.s32.totalorder %s68, %s71
    %p80 = scmp.eq.s32.totalorder %s15, 7
    %p81 = por %p79, %p80
    %p82 = scmp.ne.s32.totalorder %s71, %s72
    %p83 = scmp.eq.s32.totalorder %s15, 0
    %p84 = por %p82, %p83
    %p85 = scmp.ne.s32.totalorder %s71, %s72
    %p86 = scmp.eq.s32.totalorder %s16, 7
    %p87 = por %p85, %p86
    %p89 = scmp.ne.s32.totalorder %s72, %s88
    %p90 = scmp.eq.s32.totalorder %s16, 0
    %p91 = por %p89, %p90
    %s93 = sadd.s32 %s92, 1
    %p96 = scmp.eq.s32.totalorder %s10, 7
    %p97 = scmp.ne.s32.totalorder %s92, %s94
    %p98 = scmp.eq.s32.totalorder %s10, 0
    %p99 = por %p97, %p98
    %p100 = scmp.ne.s32.totalorder %s92, %s94
    %p101 = scmp.eq.s32.totalorder %s15, 7
    %p102 = por %p100, %p101
    %p103 = scmp.ne.s32.totalorder %s94, %s95
    %p104 = scmp.eq.s32.totalorder %s15, 0
    %p105 = por %p103, %p104
    %p106 = scmp.ne.s32.totalorder %s94, %s95
    %p107 = scmp.eq.s32.totalorder %s16, 7
    %p108 = por %p106, %p107
    %p110 = scmp.ne.s32.totalorder %s95, %s109
    %p111 = scmp.eq.s32.totalorder %s16, 0
    %p112 = por %p110, %p111
    %s114 = sadd.s32 %s113, 1
    %p117 = scmp.eq.s32.totalorder %s10, 7
    %p118 = scmp.ne.s32.totalorder %s113, %s115
    %p119 = scmp.eq.s32.totalorder %s10, 0
    %p120 = por %p118, %p119
    %p121 = scmp.ne.s32.totalorder %s113, %s115
    %p122 = scmp.eq.s32.totalorder %s15, 7
    %p123 = por %p121, %p122
    %p124 = scmp.ne.s32.totalorder %s115, %s116
    %p125 = scmp.eq.s32.totalorder %s15, 0
    %p126 = por %p124, %p125
    %p127 = scmp.ne.s32.totalorder %s115, %s116
    %p128 = scmp.eq.s32.totalorder %s16, 7
    %p129 = por %p127, %p128
    %p131 = scmp.ne.s32.totalorder %s116, %s130
    %p132 = scmp.eq.s32.totalorder %s16, 0
    %p133 = por %p131, %p132
    %s134 = ssub.s32 %s17, %s29
    %s135 = ssub.s32 %s18, %s25
    %s136 = sor.u32 %s134, %s135
    %p137 = scmp.eq.s32.totalorder %s136, 0
    %s139 = sadd.s32 %s138, 1
    %s140 = scalar_select %p137, %s138, %s139
    %p143 = pneg %p137
    %p144 = scmp.eq.s32.totalorder %s10, 7
    %p145 = por %p143, %p144
    %p146 = scmp.ne.s32.totalorder %s138, %s141
    %p147 = scmp.eq.s32.totalorder %s10, 0
    %p148 = por %p146, %p147
    %p149 = scmp.ne.s32.totalorder %s138, %s141
    %p150 = scmp.eq.s32.totalorder %s15, 7
    %p151 = por %p149, %p150
    %p152 = scmp.ne.s32.totalorder %s141, %s142
    %p153 = scmp.eq.s32.totalorder %s15, 0
    %p154 = por %p152, %p153
    %p155 = scmp.ne.s32.totalorder %s141, %s142
    %p156 = scmp.eq.s32.totalorder %s16, 7
    %p157 = por %p155, %p156
    %p159 = scmp.ne.s32.totalorder %s142, %s158
    %p160 = scmp.eq.s32.totalorder %s16, 0
    %p161 = por %p159, %p160
    %p162 = scmp.le.s32.totalorder 1, %s10
    %p163 = scmp.lt.s32.totalorder %s10, 9
    %p164 = pnand %p162, %p163
    %p165 = pneg %p164
    // Predicated region
    $region9: #{cnn_encoder_forward.11} parent=5 // pred_check
      _
    $region10: #{cnn_encoder_forward.11} parent=5 // pred_check_branch
      %167 = sbr.rel (%p164) target = $region12
    $region11: #{cnn_encoder_forward.11} parent=5 // pred_region
      %s168 = ssub.s32 %s10, 1
      // Predicated region
      $region13: #{cnn_encoder_forward.11} parent=11 // pred_check
        %p169 = pneg %p105
      $region14: #{cnn_encoder_forward.11} parent=11 // pred_check_branch
        %171 = sbr.rel (%p169) target = $region16
      $region15: #{cnn_encoder_forward.11} parent=11 // pred_region
        _
      $region16: #{cnn_encoder_forward.11} parent=11 // pred_fallthru
        _
      // Predicated region
      $region17: #{cnn_encoder_forward.11} parent=11 // pred_check
        %p172 = pneg %p126
      $region18: #{cnn_encoder_forward.11} parent=11 // pred_check_branch
        %174 = sbr.rel (%p172) target = $region20
      $region19: #{cnn_encoder_forward.11} parent=11 // pred_region
        _
      $region20: #{cnn_encoder_forward.11} parent=11 // pred_fallthru
        _
    $region12: #{cnn_encoder_forward.11} parent=5 // pred_fallthru
      _
    %p175 = scmp.lt.s32.totalorder %s10, 8
    // Predicated region
    $region21: #{cnn_encoder_forward.11} parent=5 // pred_check
      %p176 = pneg %p175
    $region22: #{cnn_encoder_forward.11} parent=5 // pred_check_branch
      %178 = sbr.rel (%p176) target = $region24
    $region23: #{cnn_encoder_forward.11} parent=5 // pred_region
      // Predicated region
      $region25: #{cnn_encoder_forward.11} parent=23 // pred_check
        %p179 = pneg %p46
      $region26: #{cnn_encoder_forward.11} parent=23 // pred_check_branch
        %181 = sbr.rel (%p179) target = $region28
      $region27: #{cnn_encoder_forward.11} parent=23 // pred_region
        %s182 = smul.u32 %s18, 2
        %p183 = scmp.lt.s32.totalorder %s17, 1
        %s184 = scalar_select %p183, %s17, 1
        %p185 = scmp.lt.s32.totalorder %s182, 7
        %s186 = scalar_select %p185, %s182, 7
        %s187 = smul.addr %s184, 8
        %s188 = sadd.s32 %s186, %s187
        %s189 = smul.addr %s188, 4
        %s190 = scalar_lea.vmem %s0, %s189
        %s191 = smul.u32 %s18, 2
      $region28: #{cnn_encoder_forward.11} parent=23 // pred_fallthru
        _
      // Predicated region
      $region29: #{cnn_encoder_forward.11} parent=23 // pred_check
        %p192 = pneg %p78
      $region30: #{cnn_encoder_forward.11} parent=23 // pred_check_branch
        %194 = sbr.rel (%p192) target = $region32
      $region31: #{cnn_encoder_forward.11} parent=23 // pred_region
        %s195 = smul.u32 %s18, 2
        %s196 = sadd.s32 %s195, 1
        %p197 = scmp.lt.s32.totalorder %s17, 1
        %s198 = scalar_select %p197, %s17, 1
        %p199 = scmp.lt.s32.totalorder %s196, 7
        %s200 = scalar_select %p199, %s196, 7
        %s201 = smul.addr %s198, 8
        %s202 = sadd.s32 %s200, %s201
        %s203 = smul.addr %s202, 4
        %s204 = scalar_lea.vmem %s1, %s203
        %s205 = smul.u32 %s18, 2
        %s206 = sadd.s32 %s205, 1
      $region32: #{cnn_encoder_forward.11} parent=23 // pred_fallthru
        _
    $region24: #{cnn_encoder_forward.11} parent=5 // pred_fallthru
      _
    %p207 = scmp.le.s32.totalorder 1, %s10
    %p208 = scmp.lt.s32.totalorder %s10, 9
    %p209 = pnand %p207, %p208
    %p210 = pneg %p209
    // Predicated region
    $region33: #{cnn_encoder_forward.11} parent=5 // pred_check
      _
    $region34: #{cnn_encoder_forward.11} parent=5 // pred_check_branch
      %212 = sbr.rel (%p209) target = $region36
    $region35: #{cnn_encoder_forward.11} parent=5 // pred_region
      %s213 = ssub.s32 %s10, 1
      %s214 = smul.u32 %s20, 2
      %p215 = scmp.lt.s32.totalorder %s19, 1
      %s216 = scalar_select %p215, %s19, 1
      %p217 = scmp.lt.s32.totalorder %s214, 7
      %s218 = scalar_select %p217, %s214, 7
      %s219 = smul.addr %s216, 8
      %s220 = sadd.s32 %s218, %s219
      %s221 = smul.addr %s220, 4
      %s222 = scalar_lea.vmem %s0, %s221
      %p223 = pneg %p52
      %p224 = pneg %p49
      %s225 = smul.u32 %s20, 2
      %s226 = sadd.s32 %s225, 1
      %p227 = scmp.lt.s32.totalorder %s19, 1
      %s228 = scalar_select %p227, %s19, 1
      %p229 = scmp.lt.s32.totalorder %s226, 7
      %s230 = scalar_select %p229, %s226, 7
      %s231 = smul.addr %s228, 8
      %s232 = sadd.s32 %s230, %s231
      %s233 = smul.addr %s232, 4
      %s234 = scalar_lea.vmem %s1, %s233
      %p235 = pneg %p84
      %p236 = pneg %p81
      %p237 = pneg %p105
      %p238 = pneg %p102
      %p239 = pneg %p126
      %p240 = pneg %p123
      %p241 = pneg %p154
      %p242 = pneg %p151
      %p243 = scmp.lt.s32.totalorder %s19, 1
      %s244 = scalar_select %p243, %s19, 1
      %p245 = scmp.lt.s32.totalorder %s20, 3
      %s246 = scalar_select %p245, %s20, 3
      %s247 = smul.addr %s244, 4
      %s248 = sadd.s32 %s246, %s247
      %s249 = smul.addr %s248, 2
      %s250 = scalar_lea.vmem %s4, %s249
      %s251 = smul.u32 %s20, 2
      %p252 = scmp.lt.s32.totalorder %s19, 1
      %s253 = scalar_select %p252, %s19, 1
      %p254 = scmp.lt.s32.totalorder %s251, 7
      %s255 = scalar_select %p254, %s251, 7
      %s256 = smul.addr %s253, 8
      %s257 = sadd.s32 %s255, %s256
      %s258 = smul.addr %s257, 4
      %s259 = scalar_lea.vmem %s0, %s258
      %s260 = smul.u32 %s20, 2
      %s261 = smul.u32 %s20, 2
      %s262 = sadd.s32 %s261, 1
      %p263 = scmp.lt.s32.totalorder %s19, 1
      %s264 = scalar_select %p263, %s19, 1
      %p265 = scmp.lt.s32.totalorder %s262, 7
      %s266 = scalar_select %p265, %s262, 7
      %s267 = smul.addr %s264, 8
      %s268 = sadd.s32 %s266, %s267
      %s269 = smul.addr %s268, 4
      %s270 = scalar_lea.vmem %s1, %s269
      %s271 = smul.u32 %s20, 2
      %s272 = sadd.s32 %s271, 1
      %p273 = scmp.lt.s32.totalorder %s19, 1
      %s274 = scalar_select %p273, %s19, 1
      %p275 = scmp.lt.s32.totalorder %s20, 3
      %s276 = scalar_select %p275, %s20, 3
      %s277 = smul.addr %s274, 4
      %s278 = sadd.s32 %s276, %s277
      %s279 = smul.addr %s278, 2
      %s280 = scalar_lea.vmem %s4, %s279
      %v281 = vld [vmem:[%s2] sm:$0x1]
      %v282 = vld [vmem:[%s3] sm:$0x1]
      %v283 = vld [vmem:[%s259] sm:$0xf]
      %v285 = vlaneseq
      %v286 = vshrl.u32 %v285, 7
      %v287 = vsub.s32 0, %v286
      %v288 = vrot.slane %v281, %v287
      %v290 = vmul.f32 %v283, %v288
      %v292 = vlaneseq
      %v293 = vshrl.u32 %v292, 7
      %v294 = vsub.s32 0, %v293
      %v295 = vrot.slane %v282, %v294
      %v297 = vadd.f32 %v290, %v295
      %v298 = vmax.f32 %v297, 0.0
      %v299 = vld [vmem:[%s270] sm:$0xf]
      %v300 = vmul.f32 %v299, %v288
      %v301 = vadd.f32 %v300, %v295
      %v302 = vmax.f32 %v301, 0.0
      %v303 = vmax.f32 %v298, %v302
      %305 = vrot.lane.b32.xlu0 %v303, 64
      %v306 = vpop.permute.xlu0 %305
      %v308 = vmax.f32 %v303, %v306
      %v309 = vpack.c.bf16 %v308, %v308
      %vm310 = vcmask 517120
      %311 = vst.msk [vmem:[%s280] sm:$0x3] %vm310, %v309
      %p312 = scmp.lt.s32.totalorder %s19, 1
      %s313 = scalar_select %p312, %s19, 1
      %p314 = scmp.lt.s32.totalorder %s20, 3
      %s315 = scalar_select %p314, %s20, 3
      %s316 = smul.addr %s313, 4
      %s317 = sadd.s32 %s315, %s316
      %s318 = smul.addr %s317, 2
      %s319 = scalar_lea.vmem %s4, %s318
      // Predicated region
      $region37: #{cnn_encoder_forward.11} parent=35 // pred_check
        %p320 = pneg %p151
      $region38: #{cnn_encoder_forward.11} parent=35 // pred_check_branch
        %322 = sbr.rel (%p320) target = $region40
      $region39: #{cnn_encoder_forward.11} parent=35 // pred_region
        _
      $region40: #{cnn_encoder_forward.11} parent=35 // pred_fallthru
        _
    $region36: #{cnn_encoder_forward.11} parent=5 // pred_fallthru
      _
    %p323 = scmp.le.s32.totalorder 2, %s10
    // Predicated region
    $region41: #{cnn_encoder_forward.11} parent=5 // pred_check
      %p324 = pneg %p323
    $region42: #{cnn_encoder_forward.11} parent=5 // pred_check_branch
      %326 = sbr.rel (%p324) target = $region44
    $region43: #{cnn_encoder_forward.11} parent=5 // pred_region
      %s327 = ssub.s32 %s10, 2
      // Predicated region
      $region45: #{cnn_encoder_forward.11} parent=43 // pred_check
        %p328 = pneg %p157
      $region46: #{cnn_encoder_forward.11} parent=43 // pred_check_branch
        %330 = sbr.rel (%p328) target = $region48
      $region47: #{cnn_encoder_forward.11} parent=43 // pred_region
        %p331 = scmp.lt.s32.totalorder %s21, 1
        %s332 = scalar_select %p331, %s21, 1
        %p333 = scmp.lt.s32.totalorder %s22, 3
        %s334 = scalar_select %p333, %s22, 3
        %s335 = smul.addr %s332, 4
        %s336 = sadd.s32 %s334, %s335
        %s337 = smul.addr %s336, 2
        %s338 = scalar_lea.vmem %s4, %s337
      $region48: #{cnn_encoder_forward.11} parent=43 // pred_fallthru
        _
    $region44: #{cnn_encoder_forward.11} parent=5 // pred_fallthru
      _
  $region6: #{cnn_encoder_forward.11} parent=0 // loop_footer
    %s14 = sadd.s32 1, %s10
  $region7: #{cnn_encoder_forward.11} parent=0 // loop_footer_branch
    %9 = sbr.rel target = $region3
  $region8: #{cnn_encoder_forward.11} parent=0 // loop_exit
    _

// kernel: cnn_encoder_forward.13
$region0: #{cnn_encoder_forward.13}
  #allocation0 [shape = 'u32[]', space=smem, size = 0x4, offset = 0x4, fixed_abs, tag = 'smem constant byte address 0x4 - core index']
  #allocation1 [shape = 'u32[144,128]{1,0:T(1,128)}', space=vmem, size = 0x12000, scoped, tag = 'internal scratch']
  %s0 = inlined_call_operand.vmem [shape: f32[16,128], index: 0, kind: input, shape index: {}]
  %s1 = inlined_call_operand.vmem [shape: f32[1,128], index: 1, kind: input, shape index: {}]
  %s2 = inlined_call_operand.vmem [shape: f32[1,128], index: 2, kind: input, shape index: {}]
  %s3 = inlined_call_operand.vmem [shape: bf16[16,128], index: 3, kind: output, shape index: {}]
  %s4 = sld [smem:[#allocation0]]
  $region22: #{cnn_encoder_forward.13} parent=0
    _
  %s6 = ssub.s32 1, %s4
  %s7 = scalar_select 0, %s6, %s4
  // Predicated region
  $region2: #{cnn_encoder_forward.13} parent=0 // pred_check
    _
  $region3: #{cnn_encoder_forward.13} parent=0 // pred_check_branch
    %9 = sbr.rel (0) target = $region5
  $region4: #{cnn_encoder_forward.13} parent=0 // pred_region
    _
  $region5: #{cnn_encoder_forward.13} parent=0 // pred_fallthru
    _
  // Predicated region
  $region6: #{cnn_encoder_forward.13} parent=0 // pred_check
    _
  $region7: #{cnn_encoder_forward.13} parent=0 // pred_check_branch
    %11 = sbr.rel (0) target = $region9
  $region8: #{cnn_encoder_forward.13} parent=0 // pred_region
    _
  $region9: #{cnn_encoder_forward.13} parent=0 // pred_fallthru
    _
  // Predicated region
  $region10: #{cnn_encoder_forward.13} parent=0 // pred_check
    _
  $region11: #{cnn_encoder_forward.13} parent=0 // pred_check_branch
    %13 = sbr.rel (0) target = $region13
  $region12: #{cnn_encoder_forward.13} parent=0 // pred_region
    _
  $region13: #{cnn_encoder_forward.13} parent=0 // pred_fallthru
    _
  %v14 = vld [vmem:[%s0] sm:$0xff]
  %v15 = vld [vmem:[%s0 + $0x8] sm:$0xff]
  %v16 = vld [vmem:[%s1] sm:$0x1]
  %v18 = vlaneseq
  %v19 = vshrl.u32 %v18, 7
  %v20 = vsub.s32 0, %v19
  %v21 = vrot.slane %v16, %v20
  %v23 = vmul.f32 %v14, %v21
  %v24 = vmul.f32 %v15, %v21
  %v25 = vld [vmem:[%s2] sm:$0x1]
  %v27 = vlaneseq
  %v28 = vshrl.u32 %v27, 7
  %v29 = vsub.s32 0, %v28
  %v30 = vrot.slane %v25, %v29
  %v32 = vadd.f32 %v23, %v30
  %v33 = vadd.f32 %v24, %v30
  %v34 = vmax.f32 %v32, 0.0
  %v35 = vmax.f32 %v33, 0.0
  %v36 = vpack.c.bf16 %v35, %v34
  %v38 = vunpack.c.l.b16 %v36
  %v39 = vunpack.c.h.b16 %v36
  %v40 = vpack.c.b16 %v38, %v38
  %v41 = vpack.c.b16 %v39, %v39
  %44 = vst [vmem:[%s3] sm:$0xf] %v40
  %45 = vst [vmem:[%s3 + $0x4] sm:$0xf] %v41
  // Predicated region
  $region14: #{cnn_encoder_forward.13} parent=0 // pred_check
    _
  $region15: #{cnn_encoder_forward.13} parent=0 // pred_check_branch
    %47 = sbr.rel (0) target = $region17
  $region16: #{cnn_encoder_forward.13} parent=0 // pred_region
    _
  $region17: #{cnn_encoder_forward.13} parent=0 // pred_fallthru
    _
  // Predicated region
  $region18: #{cnn_encoder_forward.13} parent=0 // pred_check
    _
  $region19: #{cnn_encoder_forward.13} parent=0 // pred_check_branch
    %49 = sbr.rel (0) target = $region21
  $region20: #{cnn_encoder_forward.13} parent=0 // pred_region
    _
  $region21: #{cnn_encoder_forward.13} parent=0 // pred_fallthru
    _

// kernel: cnn_encoder_forward.15
$region0: #{cnn_encoder_forward.15}
  #allocation0 [shape = 'u32[]', space=smem, size = 0x4, offset = 0x4, fixed_abs, tag = 'smem constant byte address 0x4 - core index']
  #allocation1 [shape = 'u32[144,128]{1,0:T(1,128)}', space=vmem, size = 0x12000, scoped, tag = 'internal scratch']
  %s0 = inlined_call_operand.vmem [shape: f32[16,128], index: 0, kind: input, shape index: {}]
  %s1 = inlined_call_operand.vmem [shape: f32[1,128], index: 1, kind: input, shape index: {}]
  %s2 = inlined_call_operand.vmem [shape: f32[1,128], index: 2, kind: input, shape index: {}]
  %s3 = inlined_call_operand.vmem [shape: f32[16,128], index: 3, kind: output, shape index: {}]
  %s4 = sld [smem:[#allocation0]]
  $region22: #{cnn_encoder_forward.15} parent=0
    _
  %s6 = ssub.s32 1, %s4
  %s7 = scalar_select 0, %s6, %s4
  // Predicated region
  $region2: #{cnn_encoder_forward.15} parent=0 // pred_check
    _
  $region3: #{cnn_encoder_forward.15} parent=0 // pred_check_branch
    %9 = sbr.rel (0) target = $region5
  $region4: #{cnn_encoder_forward.15} parent=0 // pred_region
    _
  $region5: #{cnn_encoder_forward.15} parent=0 // pred_fallthru
    _
  // Predicated region
  $region6: #{cnn_encoder_forward.15} parent=0 // pred_check
    _
  $region7: #{cnn_encoder_forward.15} parent=0 // pred_check_branch
    %11 = sbr.rel (0) target = $region9
  $region8: #{cnn_encoder_forward.15} parent=0 // pred_region
    _
  $region9: #{cnn_encoder_forward.15} parent=0 // pred_fallthru
    _
  // Predicated region
  $region10: #{cnn_encoder_forward.15} parent=0 // pred_check
    _
  $region11: #{cnn_encoder_forward.15} parent=0 // pred_check_branch
    %13 = sbr.rel (0) target = $region13
  $region12: #{cnn_encoder_forward.15} parent=0 // pred_region
    _
  $region13: #{cnn_encoder_forward.15} parent=0 // pred_fallthru
    _
  %v14 = vld [vmem:[%s0] sm:$0xff]
  %v15 = vld [vmem:[%s0 + $0x8] sm:$0xff]
  %v16 = vld [vmem:[%s1] sm:$0x1]
  %v18 = vlaneseq
  %v19 = vshrl.u32 %v18, 7
  %v20 = vsub.s32 0, %v19
  %v21 = vrot.slane %v16, %v20
  %v23 = vmul.f32 %v14, %v21
  %v24 = vmul.f32 %v15, %v21
  %v25 = vld [vmem:[%s2] sm:$0x1]
  %v27 = vlaneseq
  %v28 = vshrl.u32 %v27, 7
  %v29 = vsub.s32 0, %v28
  %v30 = vrot.slane %v25, %v29
  %v32 = vadd.f32 %v23, %v30
  %v33 = vadd.f32 %v24, %v30
  %v34 = vmax.f32 %v32, 0.0
  %v35 = vmax.f32 %v33, 0.0
  %36 = vst [vmem:[%s3] sm:$0xff] %v34
  %37 = vst [vmem:[%s3 + $0x8] sm:$0xff] %v35
  // Predicated region
  $region14: #{cnn_encoder_forward.15} parent=0 // pred_check
    _
  $region15: #{cnn_encoder_forward.15} parent=0 // pred_check_branch
    %39 = sbr.rel (0) target = $region17
  $region16: #{cnn_encoder_forward.15} parent=0 // pred_region
    _
  $region17: #{cnn_encoder_forward.15} parent=0 // pred_fallthru
    _
  // Predicated region
  $region18: #{cnn_encoder_forward.15} parent=0 // pred_check
    _
  $region19: #{cnn_encoder_forward.15} parent=0 // pred_check_branch
    %41 = sbr.rel (0) target = $region21
  $region20: #{cnn_encoder_forward.15} parent=0 // pred_region
    _
  $region21: #{cnn_encoder_forward.15} parent=0 // pred_fallthru
    _

// kernel: cnn_encoder_forward.12
$region0: #{cnn_encoder_forward.12}
  #allocation0 [shape = 'u32[]', space=smem, size = 0x4, offset = 0x4, fixed_abs, tag = 'smem constant byte address 0x4 - core index']
  #allocation1 [shape = 'u32[144,128]{1,0:T(1,128)}', space=vmem, size = 0x12000, scoped, tag = 'internal scratch']
  %s0 = inlined_call_operand.vmem [shape: bf16[2,6,6,64], index: 0, kind: input, shape index: {}, may-alias: {0,1,2,3,4,5}]
  %s1 = inlined_call_operand.vmem [shape: bf16[2,6,6,64], index: 1, kind: input, shape index: {}, may-alias: {0,1,2,3,4,5}]
  %s2 = inlined_call_operand.vmem [shape: bf16[2,6,6,64], index: 2, kind: input, shape index: {}, may-alias: {0,1,2,3,4,5}]
  %s3 = inlined_call_operand.vmem [shape: bf16[2,6,6,64], index: 3, kind: input, shape index: {}, may-alias: {0,1,2,3,4,5}]
  %s4 = inlined_call_operand.vmem [shape: bf16[2,6,6,64], index: 4, kind: input, shape index: {}, may-alias: {0,1,2,3,4,5}]
  %s5 = inlined_call_operand.vmem [shape: bf16[2,6,6,64], index: 5, kind: input, shape index: {}, may-alias: {0,1,2,3,4,5}]
  %s6 = inlined_call_operand.vmem [shape: bf16[576,64], index: 6, kind: input, shape index: {}]
  %s7 = inlined_call_operand.vmem [shape: f32[2,4,4,64], index: 7, kind: output, shape index: {0}]
  %s8 = inlined_call_operand.vmem [shape: f32[2,1,1,64], index: 8, kind: output, shape index: {1}]
  %s9 = inlined_call_operand.vmem [shape: f32[2,1,1,64], index: 9, kind: output, shape index: {2}]
  %10 = xla_tuple %s7, %s8, %s9
  %s11 = sld [smem:[#allocation0]]
  $region77: #{cnn_encoder_forward.12} parent=0
    _
  %s13 = ssub.s32 1, %s11
  %s14 = scalar_select 0, %s13, %s11
  loop: start=0, step=1, limit=4
  $region2: #{cnn_encoder_forward.12} parent=0 // loop_pre_header
    _
  $region3: #{cnn_encoder_forward.12} parent=0 // loop_header
    %s16 = sphi 0, %s20
    %p17 = scmp.ge.s32.totalorder %s16, 4
    %s23 = sphi 0, %s35
    %s24 = sphi 0, %s31
    %s25 = sphi 0, %s23
    %s26 = sphi 0, %s24
    %s27 = sphi 0, %s25
    %s28 = sphi 0, %s26
    %s42 = sphi 0, %s44
    %s45 = sphi 0, %s42
    %s46 = sphi 0, %s45
    %s62 = sphi 0, %s46
    %s74 = sphi 0, %s76
    %s77 = sphi 0, %s74
    %s78 = sphi 0, %s77
    %s94 = sphi 0, %s78
    %s106 = sphi 0, %s108
    %s109 = sphi 0, %s106
    %s110 = sphi 0, %s109
    %s126 = sphi 0, %s110
    %s138 = sphi 0, %s140
    %s141 = sphi 0, %s138
    %s142 = sphi 0, %s141
    %s158 = sphi 0, %s142
    %s170 = sphi 0, %s172
    %s173 = sphi 0, %s170
    %s174 = sphi 0, %s173
    %s190 = sphi 0, %s174
    %s202 = sphi 0, %s204
    %s205 = sphi 0, %s202
    %s206 = sphi 0, %s205
    %s222 = sphi 0, %s206
    %s226 = sphi 0, %s226
    %s228 = sphi 0, %s226
    %s229 = sphi 0, %s228
    %s243 = sphi 0, %s229
    %s251 = sphi 0, %s253
    %s254 = sphi 0, %s251
    %s255 = sphi 0, %s254
    %s271 = sphi 0, %s255
    %s279 = sphi 0, %s281
    %s282 = sphi 0, %s279
    %s283 = sphi 0, %s282
    %s299 = sphi 0, %s283
    %s307 = sphi 0, %s309
    %s310 = sphi 0, %s307
    %s311 = sphi 0, %s310
    %s327 = sphi 0, %s311
  $region4: #{cnn_encoder_forward.12} parent=0 // loop_header_branch
    %19 = sbr.rel (%p17) target = $region8
  $region5: #{cnn_encoder_forward.12} parent=0 // loop_body
    %s21 = ssub.s32 %s16, 1
    %s22 = ssub.s32 %s16, 2
    %s29 = sadd.s32 1, %s24
    %p30 = scmp.ge.s32.totalorder %s29, 1
    %s31 = scalar_select %p30, 0, %s29
    %s32 = sadd.s32 1, %s23
    %s33 = scalar_select %p30, %s32, %s23
    %p34 = scmp.ge.s32.totalorder %s33, 2
    %s35 = scalar_select %p34, 0, %s33
    %s36 = smul.u32 %s24, 4
    %s37 = smul.u32 %s31, 4
    %s38 = ssub.s32 %s23, %s35
    %s39 = ssub.s32 %s36, %s37
    %s40 = sor.u32 %s38, %s39
    %p41 = scmp.eq.s32.totalorder %s40, 0
    %s43 = sadd.s32 %s42, 1
    %s44 = scalar_select %p41, %s42, %s43
    %p47 = pneg %p41
    %p48 = scmp.eq.s32.totalorder %s16, 1
    %p49 = por %p47, %p48
    %p50 = scmp.ne.s32.totalorder %s42, %s45
    %p51 = scmp.eq.s32.totalorder %s16, 0
    %p52 = por %p50, %p51
    %p53 = scmp.ne.s32.totalorder %s42, %s45
    %p54 = scmp.eq.s32.totalorder %s21, 1
    %p55 = por %p53, %p54
    %p56 = scmp.ne.s32.totalorder %s45, %s46
    %p57 = scmp.eq.s32.totalorder %s21, 0
    %p58 = por %p56, %p57
    %p59 = scmp.ne.s32.totalorder %s45, %s46
    %p60 = scmp.eq.s32.totalorder %s22, 1
    %p61 = por %p59, %p60
    %p63 = scmp.ne.s32.totalorder %s46, %s62
    %p64 = scmp.eq.s32.totalorder %s22, 0
    %p65 = por %p63, %p64
    %s66 = smul.u32 %s24, 4
    %s67 = sadd.s32 %s66, 1
    %s68 = smul.u32 %s31, 4
    %s69 = sadd.s32 %s68, 1
    %s70 = ssub.s32 %s23, %s35
    %s71 = ssub.s32 %s67, %s69
    %s72 = sor.u32 %s70, %s71
    %p73 = scmp.eq.s32.totalorder %s72, 0
    %s75 = sadd.s32 %s74, 1
    %s76 = scalar_select %p73, %s74, %s75
    %p79 = pneg %p73
    %p80 = scmp.eq.s32.totalorder %s16, 1
    %p81 = por %p79, %p80
    %p82 = scmp.ne.s32.totalorder %s74, %s77
    %p83 = scmp.eq.s32.totalorder %s16, 0
    %p84 = por %p82, %p83
    %p85 = scmp.ne.s32.totalorder %s74, %s77
    %p86 = scmp.eq.s32.totalorder %s21, 1
    %p87 = por %p85, %p86
    %p88 = scmp.ne.s32.totalorder %s77, %s78
    %p89 = scmp.eq.s32.totalorder %s21, 0
    %p90 = por %p88, %p89
    %p91 = scmp.ne.s32.totalorder %s77, %s78
    %p92 = scmp.eq.s32.totalorder %s22, 1
    %p93 = por %p91, %p92
    %p95 = scmp.ne.s32.totalorder %s78, %s94
    %p96 = scmp.eq.s32.totalorder %s22, 0
    %p97 = por %p95, %p96
    %s98 = smul.u32 %s24, 4
    %s99 = sadd.s32 %s98, 2
    %s100 = smul.u32 %s31, 4
    %s101 = sadd.s32 %s100, 2
    %s102 = ssub.s32 %s23, %s35
    %s103 = ssub.s32 %s99, %s101
    %s104 = sor.u32 %s102, %s103
    %p105 = scmp.eq.s32.totalorder %s104, 0
    %s107 = sadd.s32 %s106, 1
    %s108 = scalar_select %p105, %s106, %s107
    %p111 = pneg %p105
    %p112 = scmp.eq.s32.totalorder %s16, 1
    %p113 = por %p111, %p112
    %p114 = scmp.ne.s32.totalorder %s106, %s109
    %p115 = scmp.eq.s32.totalorder %s16, 0
    %p116 = por %p114, %p115
    %p117 = scmp.ne.s32.totalorder %s106, %s109
    %p118 = scmp.eq.s32.totalorder %s21, 1
    %p119 = por %p117, %p118
    %p120 = scmp.ne.s32.totalorder %s109, %s110
    %p121 = scmp.eq.s32.totalorder %s21, 0
    %p122 = por %p120, %p121
    %p123 = scmp.ne.s32.totalorder %s109, %s110
    %p124 = scmp.eq.s32.totalorder %s22, 1
    %p125 = por %p123, %p124
    %p127 = scmp.ne.s32.totalorder %s110, %s126
    %p128 = scmp.eq.s32.totalorder %s22, 0
    %p129 = por %p127, %p128
    %s130 = smul.u32 %s24, 4
    %s131 = sadd.s32 %s130, 3
    %s132 = smul.u32 %s31, 4
    %s133 = sadd.s32 %s132, 3
    %s134 = ssub.s32 %s23, %s35
    %s135 = ssub.s32 %s131, %s133
    %s136 = sor.u32 %s134, %s135
    %p137 = scmp.eq.s32.totalorder %s136, 0
    %s139 = sadd.s32 %s138, 1
    %s140 = scalar_select %p137, %s138, %s139
    %p143 = pneg %p137
    %p144 = scmp.eq.s32.totalorder %s16, 1
    %p145 = por %p143, %p144
    %p146 = scmp.ne.s32.totalorder %s138, %s141
    %p147 = scmp.eq.s32.totalorder %s16, 0
    %p148 = por %p146, %p147
    %p149 = scmp.ne.s32.totalorder %s138, %s141
    %p150 = scmp.eq.s32.totalorder %s21, 1
    %p151 = por %p149, %p150
    %p152 = scmp.ne.s32.totalorder %s141, %s142
    %p153 = scmp.eq.s32.totalorder %s21, 0
    %p154 = por %p152, %p153
    %p155 = scmp.ne.s32.totalorder %s141, %s142
    %p156 = scmp.eq.s32.totalorder %s22, 1
    %p157 = por %p155, %p156
    %p159 = scmp.ne.s32.totalorder %s142, %s158
    %p160 = scmp.eq.s32.totalorder %s22, 0
    %p161 = por %p159, %p160
    %s162 = smul.u32 %s24, 4
    %s163 = sadd.s32 %s162, 4
    %s164 = smul.u32 %s31, 4
    %s165 = sadd.s32 %s164, 4
    %s166 = ssub.s32 %s23, %s35
    %s167 = ssub.s32 %s163, %s165
    %s168 = sor.u32 %s166, %s167
    %p169 = scmp.eq.s32.totalorder %s168, 0
    %s171 = sadd.s32 %s170, 1
    %s172 = scalar_select %p169, %s170, %s171
    %p175 = pneg %p169
    %p176 = scmp.eq.s32.totalorder %s16, 1
    %p177 = por %p175, %p176
    %p178 = scmp.ne.s32.totalorder %s170, %s173
    %p179 = scmp.eq.s32.totalorder %s16, 0
    %p180 = por %p178, %p179
    %p181 = scmp.ne.s32.totalorder %s170, %s173
    %p182 = scmp.eq.s32.totalorder %s21, 1
    %p183 = por %p181, %p182
    %p184 = scmp.ne.s32.totalorder %s173, %s174
    %p185 = scmp.eq.s32.totalorder %s21, 0
    %p186 = por %p184, %p185
    %p187 = scmp.ne.s32.totalorder %s173, %s174
    %p188 = scmp.eq.s32.totalorder %s22, 1
    %p189 = por %p187, %p188
    %p191 = scmp.ne.s32.totalorder %s174, %s190
    %p192 = scmp.eq.s32.totalorder %s22, 0
    %p193 = por %p191, %p192
    %s194 = smul.u32 %s24, 4
    %s195 = sadd.s32 %s194, 5
    %s196 = smul.u32 %s31, 4
    %s197 = sadd.s32 %s196, 5
    %s198 = ssub.s32 %s23, %s35
    %s199 = ssub.s32 %s195, %s197
    %s200 = sor.u32 %s198, %s199
    %p201 = scmp.eq.s32.totalorder %s200, 0
    %s203 = sadd.s32 %s202, 1
    %s204 = scalar_select %p201, %s202, %s203
    %p207 = pneg %p201
    %p208 = scmp.eq.s32.totalorder %s16, 1
    %p209 = por %p207, %p208
    %p210 = scmp.ne.s32.totalorder %s202, %s205
    %p211 = scmp.eq.s32.totalorder %s16, 0
    %p212 = por %p210, %p211
    %p213 = scmp.ne.s32.totalorder %s202, %s205
    %p214 = scmp.eq.s32.totalorder %s21, 1
    %p215 = por %p213, %p214
    %p216 = scmp.ne.s32.totalorder %s205, %s206
    %p217 = scmp.eq.s32.totalorder %s21, 0
    %p218 = por %p216, %p217
    %p219 = scmp.ne.s32.totalorder %s205, %s206
    %p220 = scmp.eq.s32.totalorder %s22, 1
    %p221 = por %p219, %p220
    %p223 = scmp.ne.s32.totalorder %s206, %s222
    %p224 = scmp.eq.s32.totalorder %s22, 0
    %p225 = por %p223, %p224
    %s227 = sadd.s32 %s226, 1
    %p230 = scmp.eq.s32.totalorder %s16, 1
    %p231 = scmp.ne.s32.totalorder %s226, %s228
    %p232 = scmp.eq.s32.totalorder %s16, 0
    %p233 = por %p231, %p232
    %p234 = scmp.ne.s32.totalorder %s226, %s228
    %p235 = scmp.eq.s32.totalorder %s21, 1
    %p236 = por %p234, %p235
    %p237 = scmp.ne.s32.totalorder %s228, %s229
    %p238 = scmp.eq.s32.totalorder %s21, 0
    %p239 = por %p237, %p238
    %p240 = scmp.ne.s32.totalorder %s228, %s229
    %p241 = scmp.eq.s32.totalorder %s22, 1
    %p242 = por %p240, %p241
    %p244 = scmp.ne.s32.totalorder %s229, %s243
    %p245 = scmp.eq.s32.totalorder %s22, 0
    %p246 = por %p244, %p245
    %s247 = ssub.s32 %s23, %s35
    %s248 = ssub.s32 %s24, %s31
    %s249 = sor.u32 %s247, %s248
    %p250 = scmp.eq.s32.totalorder %s249, 0
    %s252 = sadd.s32 %s251, 1
    %s253 = scalar_select %p250, %s251, %s252
    %p256 = pneg %p250
    %p257 = scmp.eq.s32.totalorder %s16, 1
    %p258 = por %p256, %p257
    %p259 = scmp.ne.s32.totalorder %s251, %s254
    %p260 = scmp.eq.s32.totalorder %s16, 0
    %p261 = por %p259, %p260
    %p262 = scmp.ne.s32.totalorder %s251, %s254
    %p263 = scmp.eq.s32.totalorder %s21, 1
    %p264 = por %p262, %p263
    %p265 = scmp.ne.s32.totalorder %s254, %s255
    %p266 = scmp.eq.s32.totalorder %s21, 0
    %p267 = por %p265, %p266
    %p268 = scmp.ne.s32.totalorder %s254, %s255
    %p269 = scmp.eq.s32.totalorder %s22, 1
    %p270 = por %p268, %p269
    %p272 = scmp.ne.s32.totalorder %s255, %s271
    %p273 = scmp.eq.s32.totalorder %s22, 0
    %p274 = por %p272, %p273
    %s275 = ssub.s32 %s23, %s35
    %s276 = ssub.s32 %s24, %s31
    %s277 = sor.u32 %s275, %s276
    %p278 = scmp.eq.s32.totalorder %s277, 0
    %s280 = sadd.s32 %s279, 1
    %s281 = scalar_select %p278, %s279, %s280
    %p284 = pneg %p278
    %p285 = scmp.eq.s32.totalorder %s16, 1
    %p286 = por %p284, %p285
    %p287 = scmp.ne.s32.totalorder %s279, %s282
    %p288 = scmp.eq.s32.totalorder %s16, 0
    %p289 = por %p287, %p288
    %p290 = scmp.ne.s32.totalorder %s279, %s282
    %p291 = scmp.eq.s32.totalorder %s21, 1
    %p292 = por %p290, %p291
    %p293 = scmp.ne.s32.totalorder %s282, %s283
    %p294 = scmp.eq.s32.totalorder %s21, 0
    %p295 = por %p293, %p294
    %p296 = scmp.ne.s32.totalorder %s282, %s283
    %p297 = scmp.eq.s32.totalorder %s22, 1
    %p298 = por %p296, %p297
    %p300 = scmp.ne.s32.totalorder %s283, %s299
    %p301 = scmp.eq.s32.totalorder %s22, 0
    %p302 = por %p300, %p301
    %s303 = ssub.s32 %s23, %s35
    %s304 = ssub.s32 %s24, %s31
    %s305 = sor.u32 %s303, %s304
    %p306 = scmp.eq.s32.totalorder %s305, 0
    %s308 = sadd.s32 %s307, 1
    %s309 = scalar_select %p306, %s307, %s308
    %p312 = pneg %p306
    %p313 = scmp.eq.s32.totalorder %s16, 1
    %p314 = por %p312, %p313
    %p315 = scmp.ne.s32.totalorder %s307, %s310
    %p316 = scmp.eq.s32.totalorder %s16, 0
    %p317 = por %p315, %p316
    %p318 = scmp.ne.s32.totalorder %s307, %s310
    %p319 = scmp.eq.s32.totalorder %s21, 1
    %p320 = por %p318, %p319
    %p321 = scmp.ne.s32.totalorder %s310, %s311
    %p322 = scmp.eq.s32.totalorder %s21, 0
    %p323 = por %p321, %p322
    %p324 = scmp.ne.s32.totalorder %s310, %s311
    %p325 = scmp.eq.s32.totalorder %s22, 1
    %p326 = por %p324, %p325
    %p328 = scmp.ne.s32.totalorder %s311, %s327
    %p329 = scmp.eq.s32.totalorder %s22, 0
    %p330 = por %p328, %p329
    %p331 = scmp.le.s32.totalorder 1, %s16
    %p332 = scmp.lt.s32.totalorder %s16, 3
    %p333 = pnand %p331, %p332
    %p334 = pneg %p333
    // Predicated region
    $region9: #{cnn_encoder_forward.12} parent=5 // pred_check
      _
    $region10: #{cnn_encoder_forward.12} parent=5 // pred_check_branch
      %336 = sbr.rel (%p333) target = $region12
    $region11: #{cnn_encoder_forward.12} parent=5 // pred_region
      %s337 = ssub.s32 %s16, 1
      // Predicated region
      $region13: #{cnn_encoder_forward.12} parent=11 // pred_check
        %p338 = pneg %p239
      $region14: #{cnn_encoder_forward.12} parent=11 // pred_check_branch
        %340 = sbr.rel (%p338) target = $region16
      $region15: #{cnn_encoder_forward.12} parent=11 // pred_region
        _
      $region16: #{cnn_encoder_forward.12} parent=11 // pred_fallthru
        _
    $region12: #{cnn_encoder_forward.12} parent=5 // pred_fallthru
      _
    %p341 = scmp.lt.s32.totalorder %s16, 2
    // Predicated region
    $region17: #{cnn_encoder_forward.12} parent=5 // pred_check
      %p342 = pneg %p341
    $region18: #{cnn_encoder_forward.12} parent=5 // pred_check_branch
      %344 = sbr.rel (%p342) target = $region20
    $region19: #{cnn_encoder_forward.12} parent=5 // pred_region
      // Predicated region
      $region21: #{cnn_encoder_forward.12} parent=19 // pred_check
        %p345 = pneg %p52
      $region22: #{cnn_encoder_forward.12} parent=19 // pred_check_branch
        %347 = sbr.rel (%p345) target = $region24
      $region23: #{cnn_encoder_forward.12} parent=19 // pred_region
        %s348 = smul.u32 %s24, 4
        %p349 = scmp.lt.s32.totalorder %s23, 1
        %s350 = scalar_select %p349, %s23, 1
        %p351 = scmp.lt.s32.totalorder %s348, 5
        %s352 = scalar_select %p351, %s348, 5
        %s353 = smul.addr %s350, 6
        %s354 = sadd.s32 %s352, %s353
        %s355 = smul.addr %s354, 4
        %s356 = scalar_lea.vmem %s0, %s355
        %s357 = smul.u32 %s24, 4
      $region24: #{cnn_encoder_forward.12} parent=19 // pred_fallthru
        _
      // Predicated region
      $region25: #{cnn_encoder_forward.12} parent=19 // pred_check
        %p358 = pneg %p84
      $region26: #{cnn_encoder_forward.12} parent=19 // pred_check_branch
        %360 = sbr.rel (%p358) target = $region28
      $region27: #{cnn_encoder_forward.12} parent=19 // pred_region
        %s361 = smul.u32 %s24, 4
        %s362 = sadd.s32 %s361, 1
        %p363 = scmp.lt.s32.totalorder %s23, 1
        %s364 = scalar_select %p363, %s23, 1
        %p365 = scmp.lt.s32.totalorder %s362, 5
        %s366 = scalar_select %p365, %s362, 5
        %s367 = smul.addr %s364, 6
        %s368 = sadd.s32 %s366, %s367
        %s369 = smul.addr %s368, 4
        %s370 = scalar_lea.vmem %s1, %s369
        %s371 = smul.u32 %s24, 4
        %s372 = sadd.s32 %s371, 1
      $region28: #{cnn_encoder_forward.12} parent=19 // pred_fallthru
        _
      // Predicated region
      $region29: #{cnn_encoder_forward.12} parent=19 // pred_check
        %p373 = pneg %p116
      $region30: #{cnn_encoder_forward.12} parent=19 // pred_check_branch
        %375 = sbr.rel (%p373) target = $region32
      $region31: #{cnn_encoder_forward.12} parent=19 // pred_region
        %s376 = smul.u32 %s24, 4
        %s377 = sadd.s32 %s376, 2
        %p378 = scmp.lt.s32.totalorder %s23, 1
        %s379 = scalar_select %p378, %s23, 1
        %p380 = scmp.lt.s32.totalorder %s377, 5
        %s381 = scalar_select %p380, %s377, 5
        %s382 = smul.addr %s379, 6
        %s383 = sadd.s32 %s381, %s382
        %s384 = smul.addr %s383, 4
        %s385 = scalar_lea.vmem %s2, %s384
        %s386 = smul.u32 %s24, 4
        %s387 = sadd.s32 %s386, 2
      $region32: #{cnn_encoder_forward.12} parent=19 // pred_fallthru
        _
      // Predicated region
      $region33: #{cnn_encoder_forward.12} parent=19 // pred_check
        %p388 = pneg %p148
      $region34: #{cnn_encoder_forward.12} parent=19 // pred_check_branch
        %390 = sbr.rel (%p388) target = $region36
      $region35: #{cnn_encoder_forward.12} parent=19 // pred_region
        %s391 = smul.u32 %s24, 4
        %s392 = sadd.s32 %s391, 3
        %p393 = scmp.lt.s32.totalorder %s23, 1
        %s394 = scalar_select %p393, %s23, 1
        %p395 = scmp.lt.s32.totalorder %s392, 5
        %s396 = scalar_select %p395, %s392, 5
        %s397 = smul.addr %s394, 6
        %s398 = sadd.s32 %s396, %s397
        %s399 = smul.addr %s398, 4
        %s400 = scalar_lea.vmem %s3, %s399
        %s401 = smul.u32 %s24, 4
        %s402 = sadd.s32 %s401, 3
      $region36: #{cnn_encoder_forward.12} parent=19 // pred_fallthru
        _
      // Predicated region
      $region37: #{cnn_encoder_forward.12} parent=19 // pred_check
        %p403 = pneg %p180
      $region38: #{cnn_encoder_forward.12} parent=19 // pred_check_branch
        %405 = sbr.rel (%p403) target = $region40
      $region39: #{cnn_encoder_forward.12} parent=19 // pred_region
        %s406 = smul.u32 %s24, 4
        %s407 = sadd.s32 %s406, 4
        %p408 = scmp.lt.s32.totalorder %s23, 1
        %s409 = scalar_select %p408, %s23, 1
        %p410 = scmp.lt.s32.totalorder %s407, 5
        %s411 = scalar_select %p410, %s407, 5
        %s412 = smul.addr %s409, 6
        %s413 = sadd.s32 %s411, %s412
        %s414 = smul.addr %s413, 4
        %s415 = scalar_lea.vmem %s4, %s414
        %s416 = smul.u32 %s24, 4
        %s417 = sadd.s32 %s416, 4
      $region40: #{cnn_encoder_forward.12} parent=19 // pred_fallthru
        _
      // Predicated region
      $region41: #{cnn_encoder_forward.12} parent=19 // pred_check
        %p418 = pneg %p212
      $region42: #{cnn_encoder_forward.12} parent=19 // pred_check_branch
        %420 = sbr.rel (%p418) target = $region44
      $region43: #{cnn_encoder_forward.12} parent=19 // pred_region
        %s421 = smul.u32 %s24, 4
        %s422 = sadd.s32 %s421, 5
        %p423 = scmp.lt.s32.totalorder %s23, 1
        %s424 = scalar_select %p423, %s23, 1
        %p425 = scmp.lt.s32.totalorder %s422, 5
        %s426 = scalar_select %p425, %s422, 5
        %s427 = smul.addr %s424, 6
        %s428 = sadd.s32 %s426, %s427
        %s429 = smul.addr %s428, 4
        %s430 = scalar_lea.vmem %s5, %s429
        %s431 = smul.u32 %s24, 4
        %s432 = sadd.s32 %s431, 5
      $region44: #{cnn_encoder_forward.12} parent=19 // pred_fallthru
        _
    $region20: #{cnn_encoder_forward.12} parent=5 // pred_fallthru
      _
    %p433 = scmp.le.s32.totalorder 1, %s16
    %p434 = scmp.lt.s32.totalorder %s16, 3
    %p435 = pnand %p433, %p434
    %p436 = pneg %p435
    // Predicated region
    $region45: #{cnn_encoder_forward.12} parent=5 // pred_check
      _
    $region46: #{cnn_encoder_forward.12} parent=5 // pred_check_branch
      %438 = sbr.rel (%p435) target = $region48
    $region47: #{cnn_encoder_forward.12} parent=5 // pred_region
      %s439 = ssub.s32 %s16, 1
      %s440 = smul.u32 %s26, 4
      %p441 = scmp.lt.s32.totalorder %s25, 1
      %s442 = scalar_select %p441, %s25, 1
      %p443 = scmp.lt.s32.totalorder %s440, 5
      %s444 = scalar_select %p443, %s440, 5
      %s445 = smul.addr %s442, 6
      %s446 = sadd.s32 %s444, %s445
      %s447 = smul.addr %s446, 4
      %s448 = scalar_lea.vmem %s0, %s447
      %p449 = pneg %p58
      %p450 = pneg %p55
      %s451 = smul.u32 %s26, 4
      %s452 = sadd.s32 %s451, 1
      %p453 = scmp.lt.s32.totalorder %s25, 1
      %s454 = scalar_select %p453, %s25, 1
      %p455 = scmp.lt.s32.totalorder %s452, 5
      %s456 = scalar_select %p455, %s452, 5
      %s457 = smul.addr %s454, 6
      %s458 = sadd.s32 %s456, %s457
      %s459 = smul.addr %s458, 4
      %s460 = scalar_lea.vmem %s1, %s459
      %p461 = pneg %p90
      %p462 = pneg %p87
      %s463 = smul.u32 %s26, 4
      %s464 = sadd.s32 %s463, 2
      %p465 = scmp.lt.s32.totalorder %s25, 1
      %s466 = scalar_select %p465, %s25, 1
      %p467 = scmp.lt.s32.totalorder %s464, 5
      %s468 = scalar_select %p467, %s464, 5
      %s469 = smul.addr %s466, 6
      %s470 = sadd.s32 %s468, %s469
      %s471 = smul.addr %s470, 4
      %s472 = scalar_lea.vmem %s2, %s471
      %p473 = pneg %p122
      %p474 = pneg %p119
      %s475 = smul.u32 %s26, 4
      %s476 = sadd.s32 %s475, 3
      %p477 = scmp.lt.s32.totalorder %s25, 1
      %s478 = scalar_select %p477, %s25, 1
      %p479 = scmp.lt.s32.totalorder %s476, 5
      %s480 = scalar_select %p479, %s476, 5
      %s481 = smul.addr %s478, 6
      %s482 = sadd.s32 %s480, %s481
      %s483 = smul.addr %s482, 4
      %s484 = scalar_lea.vmem %s3, %s483
      %p485 = pneg %p154
      %p486 = pneg %p151
      %s487 = smul.u32 %s26, 4
      %s488 = sadd.s32 %s487, 4
      %p489 = scmp.lt.s32.totalorder %s25, 1
      %s490 = scalar_select %p489, %s25, 1
      %p491 = scmp.lt.s32.totalorder %s488, 5
      %s492 = scalar_select %p491, %s488, 5
      %s493 = smul.addr %s490, 6
      %s494 = sadd.s32 %s492, %s493
      %s495 = smul.addr %s494, 4
      %s496 = scalar_lea.vmem %s4, %s495
      %p497 = pneg %p186
      %p498 = pneg %p183
      %s499 = smul.u32 %s26, 4
      %s500 = sadd.s32 %s499, 5
      %p501 = scmp.lt.s32.totalorder %s25, 1
      %s502 = scalar_select %p501, %s25, 1
      %p503 = scmp.lt.s32.totalorder %s500, 5
      %s504 = scalar_select %p503, %s500, 5
      %s505 = smul.addr %s502, 6
      %s506 = sadd.s32 %s504, %s505
      %s507 = smul.addr %s506, 4
      %s508 = scalar_lea.vmem %s5, %s507
      %p509 = pneg %p218
      %p510 = pneg %p215
      %p511 = pneg %p239
      %p512 = pneg %p236
      %p513 = pneg %p267
      %p514 = pneg %p264
      %s515 = smul.u32 4, %s26
      %p516 = scmp.lt.s32.totalorder %s25, 1
      %s517 = scalar_select %p516, %s25, 1
      %p518 = scmp.lt.s32.totalorder %s515, 3
      %s519 = scalar_select %p518, %s515, 3
      %s520 = smul.addr %s517, 4
      %s521 = sadd.s32 %s519, %s520
      %s522 = smul.addr %s521, 4
      %s523 = scalar_lea.vmem %s7, %s522
      %p524 = pneg %p295
      %p525 = pneg %p292
      %p526 = scmp.lt.s32.totalorder %s25, 1
      %s527 = scalar_select %p526, %s25, 1
      %p528 = scmp.lt.s32.totalorder %s26, 0
      %s529 = scalar_select %p528, %s26, 0
      %s530 = sadd.s32 %s529, %s527
      %s531 = scalar_lea.vmem %s8, %s530
      %p532 = pneg %p323
      %p533 = pneg %p320
      %p534 = scmp.lt.s32.totalorder %s25, 1
      %s535 = scalar_select %p534, %s25, 1
      %p536 = scmp.lt.s32.totalorder %s26, 0
      %s537 = scalar_select %p536, %s26, 0
      %s538 = sadd.s32 %s537, %s535
      %s539 = scalar_lea.vmem %s9, %s538
      %s540 = smul.u32 %s26, 4
      %p541 = scmp.lt.s32.totalorder %s25, 1
      %s542 = scalar_select %p541, %s25, 1
      %p543 = scmp.lt.s32.totalorder %s540, 5
      %s544 = scalar_select %p543, %s540, 5
      %s545 = smul.addr %s542, 6
      %s546 = sadd.s32 %s544, %s545
      %s547 = smul.addr %s546, 4
      %s548 = scalar_lea.vmem %s0, %s547
      %s549 = smul.u32 %s26, 4
      %s550 = smul.u32 %s26, 4
      %s551 = sadd.s32 %s550, 1
      %p552 = scmp.lt.s32.totalorder %s25, 1
      %s553 = scalar_select %p552, %s25, 1
      %p554 = scmp.lt.s32.totalorder %s551, 5
      %s555 = scalar_select %p554, %s551, 5
      %s556 = smul.addr %s553, 6
      %s557 = sadd.s32 %s555, %s556
      %s558 = smul.addr %s557, 4
      %s559 = scalar_lea.vmem %s1, %s558
      %s560 = smul.u32 %s26, 4
      %s561 = sadd.s32 %s560, 1
      %s562 = smul.u32 %s26, 4
      %s563 = sadd.s32 %s562, 2
      %p564 = scmp.lt.s32.totalorder %s25, 1
      %s565 = scalar_select %p564, %s25, 1
      %p566 = scmp.lt.s32.totalorder %s563, 5
      %s567 = scalar_select %p566, %s563, 5
      %s568 = smul.addr %s565, 6
      %s569 = sadd.s32 %s567, %s568
      %s570 = smul.addr %s569, 4
      %s571 = scalar_lea.vmem %s2, %s570
      %s572 = smul.u32 %s26, 4
      %s573 = sadd.s32 %s572, 2
      %s574 = smul.u32 %s26, 4
      %s575 = sadd.s32 %s574, 3
      %p576 = scmp.lt.s32.totalorder %s25, 1
      %s577 = scalar_select %p576, %s25, 1
      %p578 = scmp.lt.s32.totalorder %s575, 5
      %s579 = scalar_select %p578, %s575, 5
      %s580 = smul.addr %s577, 6
      %s581 = sadd.s32 %s579, %s580
      %s582 = smul.addr %s581, 4
      %s583 = scalar_lea.vmem %s3, %s582
      %s584 = smul.u32 %s26, 4
      %s585 = sadd.s32 %s584, 3
      %s586 = smul.u32 %s26, 4
      %s587 = sadd.s32 %s586, 4
      %p588 = scmp.lt.s32.totalorder %s25, 1
      %s589 = scalar_select %p588, %s25, 1
      %p590 = scmp.lt.s32.totalorder %s587, 5
      %s591 = scalar_select %p590, %s587, 5
      %s592 = smul.addr %s589, 6
      %s593 = sadd.s32 %s591, %s592
      %s594 = smul.addr %s593, 4
      %s595 = scalar_lea.vmem %s4, %s594
      %s596 = smul.u32 %s26, 4
      %s597 = sadd.s32 %s596, 4
      %s598 = smul.u32 %s26, 4
      %s599 = sadd.s32 %s598, 5
      %p600 = scmp.lt.s32.totalorder %s25, 1
      %s601 = scalar_select %p600, %s25, 1
      %p602 = scmp.lt.s32.totalorder %s599, 5
      %s603 = scalar_select %p602, %s599, 5
      %s604 = smul.addr %s601, 6
      %s605 = sadd.s32 %s603, %s604
      %s606 = smul.addr %s605, 4
      %s607 = scalar_lea.vmem %s5, %s606
      %s608 = smul.u32 %s26, 4
      %s609 = sadd.s32 %s608, 5
      %s610 = smul.u32 4, %s26
      %p611 = scmp.lt.s32.totalorder %s25, 1
      %s612 = scalar_select %p611, %s25, 1
      %p613 = scmp.lt.s32.totalorder %s610, 3
      %s614 = scalar_select %p613, %s610, 3
      %s615 = smul.addr %s612, 4
      %s616 = sadd.s32 %s614, %s615
      %s617 = smul.addr %s616, 4
      %s618 = scalar_lea.vmem %s7, %s617
      %s619 = smul.u32 4, %s26
      %p620 = scmp.lt.s32.totalorder %s25, 1
      %s621 = scalar_select %p620, %s25, 1
      %p622 = scmp.lt.s32.totalorder %s26, 0
      %s623 = scalar_select %p622, %s26, 0
      %s624 = sadd.s32 %s623, %s621
      %s625 = scalar_lea.vmem %s8, %s624
      %p626 = scmp.lt.s32.totalorder %s25, 1
      %s627 = scalar_select %p626, %s25, 1
      %p628 = scmp.lt.s32.totalorder %s26, 0
      %s629 = scalar_select %p628, %s26, 0
      %s630 = sadd.s32 %s629, %s627
      %s631 = scalar_lea.vmem %s9, %s630
      %v633 = vld [vmem:[%s6] sm:$0xf]
      %v634 = vld [vmem:[%s6 + $0x4] sm:$0xf]
      %v635 = vld [vmem:[%s6 + $0x8] sm:$0xf]
      %v636 = vld [vmem:[%s6 + $0xc] sm:$0xf]
      %v637 = vld [vmem:[%s6 + $0x10] sm:$0xf]
      %v638 = vld [vmem:[%s6 + $0x14] sm:$0xf]
      %v639 = vld [vmem:[%s6 + $0x18] sm:$0xf]
      %v640 = vld [vmem:[%s6 + $0x1c] sm:$0xf]
      %v641 = vld [vmem:[%s6 + $0x20] sm:$0xf]
      %v642 = vld [vmem:[%s6 + $0x24] sm:$0xf]
      %v643 = vld [vmem:[%s6 + $0x28] sm:$0xf]
      %v644 = vld [vmem:[%s6 + $0x2c] sm:$0xf]
      %v645 = vld [vmem:[%s6 + $0x30] sm:$0xf]
      %v646 = vld [vmem:[%s6 + $0x34] sm:$0xf]
      %v647 = vld [vmem:[%s6 + $0x38] sm:$0xf]
      %v648 = vld [vmem:[%s6 + $0x3c] sm:$0xf]
      %v649 = vld [vmem:[%s6 + $0x40] sm:$0xf]
      %v650 = vld [vmem:[%s6 + $0x44] sm:$0xf]
      %v651 = vld [vmem:[%s6 + $0x48] sm:$0xf]
      %v652 = vld [vmem:[%s6 + $0x4c] sm:$0xf]
      %v653 = vld [vmem:[%s6 + $0x50] sm:$0xf]
      %v654 = vld [vmem:[%s6 + $0x54] sm:$0xf]
      %v655 = vld [vmem:[%s6 + $0x58] sm:$0xf]
      %v656 = vld [vmem:[%s6 + $0x5c] sm:$0xf]
      %v657 = vld [vmem:[%s6 + $0x60] sm:$0xf]
      %v658 = vld [vmem:[%s6 + $0x64] sm:$0xf]
      %v659 = vld [vmem:[%s6 + $0x68] sm:$0xf]
      %v660 = vld [vmem:[%s6 + $0x6c] sm:$0xf]
      %v661 = vld [vmem:[%s6 + $0x70] sm:$0xf]
      %v662 = vld [vmem:[%s6 + $0x74] sm:$0xf]
      %v663 = vld [vmem:[%s6 + $0x78] sm:$0xf]
      %v664 = vld [vmem:[%s6 + $0x7c] sm:$0xf]
      %v665 = vld [vmem:[%s6 + $0x80] sm:$0xf]
      %v666 = vld [vmem:[%s6 + $0x84] sm:$0xf]
      %v667 = vld [vmem:[%s6 + $0x88] sm:$0xf]
      %v668 = vld [vmem:[%s6 + $0x8c] sm:$0xf]
      %v669 = vld [vmem:[%s6 + $0x90] sm:$0xf]
      %v670 = vld [vmem:[%s6 + $0x94] sm:$0xf]
      %v671 = vld [vmem:[%s6 + $0x98] sm:$0xf]
      %v672 = vld [vmem:[%s6 + $0x9c] sm:$0xf]
      %v673 = vld [vmem:[%s6 + $0xa0] sm:$0xf]
      %v674 = vld [vmem:[%s6 + $0xa4] sm:$0xf]
      %v675 = vld [vmem:[%s6 + $0xa8] sm:$0xf]
      %v676 = vld [vmem:[%s6 + $0xac] sm:$0xf]
      %v677 = vld [vmem:[%s6 + $0xb0] sm:$0xf]
      %v678 = vld [vmem:[%s6 + $0xb4] sm:$0xf]
      %v679 = vld [vmem:[%s6 + $0xb8] sm:$0xf]
      %v680 = vld [vmem:[%s6 + $0xbc] sm:$0xf]
      %v681 = vld [vmem:[%s6 + $0xc0] sm:$0xf]
      %v682 = vld [vmem:[%s6 + $0xc4] sm:$0xf]
      %v683 = vld [vmem:[%s6 + $0xc8] sm:$0xf]
      %v684 = vld [vmem:[%s6 + $0xcc] sm:$0xf]
      %v685 = vld [vmem:[%s6 + $0xd0] sm:$0xf]
      %v686 = vld [vmem:[%s6 + $0xd4] sm:$0xf]
      %v687 = vld [vmem:[%s6 + $0xd8] sm:$0xf]
      %v688 = vld [vmem:[%s6 + $0xdc] sm:$0xf]
      %v689 = vld [vmem:[%s6 + $0xe0] sm:$0xf]
      %v690 = vld [vmem:[%s6 + $0xe4] sm:$0xf]
      %v691 = vld [vmem:[%s6 + $0xe8] sm:$0xf]
      %v692 = vld [vmem:[%s6 + $0xec] sm:$0xf]
      %v693 = vld [vmem:[%s6 + $0xf0] sm:$0xf]
      %v694 = vld [vmem:[%s6 + $0xf4] sm:$0xf]
      %v695 = vld [vmem:[%s6 + $0xf8] sm:$0xf]
      %v696 = vld [vmem:[%s6 + $0xfc] sm:$0xf]
      %v697 = vld [vmem:[%s6 + $0x100] sm:$0xf]
      %v698 = vld [vmem:[%s6 + $0x104] sm:$0xf]
      %v699 = vld [vmem:[%s6 + $0x108] sm:$0xf]
      %v700 = vld [vmem:[%s6 + $0x10c] sm:$0xf]
      %v701 = vld [vmem:[%s6 + $0x110] sm:$0xf]
      %v702 = vld [vmem:[%s6 + $0x114] sm:$0xf]
      %v703 = vld [vmem:[%s6 + $0x118] sm:$0xf]
      %v704 = vld [vmem:[%s6 + $0x11c] sm:$0xf]
      %v705 = vld [vmem:[%s548] sm:$0x7]
      %v706 = vunpack.c.l.bf16 %v705
      %v707 = vld [vmem:[%s559] sm:$0x7]
      %v708 = vunpack.c.l.bf16 %v707
      %v709 = vld [vmem:[%s571] sm:$0x7]
      %v710 = vunpack.c.l.bf16 %v709
      %v711 = vld [vmem:[%s583] sm:$0x7]
      %v712 = vunpack.c.l.bf16 %v711
      %v713 = vld [vmem:[%s595] sm:$0x7]
      %v714 = vunpack.c.l.bf16 %v713
      %v715 = vld [vmem:[%s607] sm:$0x7]
      %v716 = vunpack.c.l.bf16 %v715
      %v718 = vrot.slane %v706, 1
      %719 = vrot.lane.b32.xlu0 %v718, 64
      %v720 = vpop.permute.xlu0 %719
      %v722 = vrot.slane %v706, 2
      %725 = vrot.lane.b32.xlu0 %v708, 64
      %v726 = vpop.permute.xlu0 %725
      %v728 = vrot.slane %v708, 1
      %v730 = vrot.slane %v708, 2
      %731 = vrot.lane.b32.xlu0 %v730, 64
      %v732 = vpop.permute.xlu0 %731
      %v735 = vrot.slane %v710, 1
      %736 = vrot.lane.b32.xlu0 %v735, 64
      %v737 = vpop.permute.xlu0 %736
      %v739 = vrot.slane %v710, 2
      %vm741 = vcmask 523264
      %v742 = vsel %vm741, %v706, %v720
      %v743 = vsel %vm741, %v722, %v726
      %v744 = vsel %vm741, %v728, %v732
      %v745 = vsel %vm741, %v710, %v737
      %v746 = vpack.c.bf16 %v742, %v742
      %v747 = vpack.c.bf16 %v743, %v743
      %v748 = vpack.c.bf16 %v744, %v744
      %v749 = vpack.c.bf16 %v745, %v745
      %v750 = vpack.c.bf16 %v739, %v739
      %v823 = vunpack.c.l.b16 %v633
      %v824 = vunpack.c.l.b16 %v634
      %v825 = vunpack.c.l.b16 %v635
      %v826 = vunpack.c.l.b16 %v636
      %v827 = vunpack.c.l.b16 %v637
      %v828 = vunpack.c.l.b16 %v638
      %v829 = vunpack.c.l.b16 %v639
      %v830 = vunpack.c.l.b16 %v640
      %v831 = vunpack.c.l.b16 %v641
      %v832 = vunpack.c.l.b16 %v642
      %v833 = vunpack.c.l.b16 %v643
      %v834 = vunpack.c.l.b16 %v644
      %v835 = vunpack.c.l.b16 %v645
      %v836 = vunpack.c.l.b16 %v646
      %v837 = vunpack.c.l.b16 %v647
      %v838 = vunpack.c.l.b16 %v648
      %v839 = vunpack.c.l.b16 %v649
      %v840 = vunpack.c.l.b16 %v650
      %v841 = vunpack.c.l.b16 %v651
      %v842 = vunpack.c.l.b16 %v652
      %v843 = vunpack.c.l.b16 %v653
      %v844 = vunpack.c.l.b16 %v654
      %v845 = vunpack.c.l.b16 %v655
      %v846 = vunpack.c.l.b16 %v656
      %v847 = vunpack.c.l.b16 %v657
      %v848 = vunpack.c.l.b16 %v658
      %v849 = vunpack.c.l.b16 %v659
      %v850 = vunpack.c.l.b16 %v660
      %v851 = vunpack.c.l.b16 %v661
      %v852 = vunpack.c.l.b16 %v662
      %v853 = vunpack.c.l.b16 %v663
      %v854 = vunpack.c.l.b16 %v664
      %v855 = vunpack.c.l.b16 %v665
      %v856 = vunpack.c.l.b16 %v666
      %v857 = vunpack.c.l.b16 %v667
      %v858 = vunpack.c.l.b16 %v668
      %v859 = vunpack.c.l.b16 %v669
      %v860 = vunpack.c.l.b16 %v670
      %v861 = vunpack.c.l.b16 %v671
      %v862 = vunpack.c.l.b16 %v672
      %v863 = vunpack.c.l.b16 %v673
      %v864 = vunpack.c.l.b16 %v674
      %v865 = vunpack.c.l.b16 %v675
      %v866 = vunpack.c.l.b16 %v676
      %v867 = vunpack.c.l.b16 %v677
      %v868 = vunpack.c.l.b16 %v678
      %v869 = vunpack.c.l.b16 %v679
      %v870 = vunpack.c.l.b16 %v680
      %v871 = vunpack.c.l.b16 %v681
      %v872 = vunpack.c.l.b16 %v682
      %v873 = vunpack.c.l.b16 %v683
      %v874 = vunpack.c.l.b16 %v684
      %v875 = vunpack.c.l.b16 %v685
      %v876 = vunpack.c.l.b16 %v686
      %v877 = vunpack.c.l.b16 %v687
      %v878 = vunpack.c.l.b16 %v688
      %v879 = vunpack.c.l.b16 %v689
      %v880 = vunpack.c.l.b16 %v690
      %v881 = vunpack.c.l.b16 %v691
      %v882 = vunpack.c.l.b16 %v692
      %v883 = vunpack.c.l.b16 %v693
      %v884 = vunpack.c.l.b16 %v694
      %v885 = vunpack.c.l.b16 %v695
      %v886 = vunpack.c.l.b16 %v696
      %v887 = vunpack.c.l.b16 %v697
      %v888 = vunpack.c.l.b16 %v698
      %v889 = vunpack.c.l.b16 %v699
      %v890 = vunpack.c.l.b16 %v700
      %v891 = vunpack.c.l.b16 %v701
      %v892 = vunpack.c.l.b16 %v702
      %v893 = vunpack.c.l.b16 %v703
      %v894 = vunpack.c.l.b16 %v704
      %v895 = vpack.c.b16 %v824, %v823
      %v896 = vpack.c.b16 %v826, %v825
      %v897 = vpack.c.b16 %v828, %v827
      %v898 = vpack.c.b16 %v830, %v829
      %v899 = vpack.c.b16 %v832, %v831
      %v900 = vpack.c.b16 %v834, %v833
      %v901 = vpack.c.b16 %v836, %v835
      %v902 = vpack.c.b16 %v838, %v837
      %v903 = vpack.c.b16 %v840, %v839
      %v904 = vpack.c.b16 %v842, %v841
      %v905 = vpack.c.b16 %v844, %v843
      %v906 = vpack.c.b16 %v846, %v845
      %v907 = vpack.c.b16 %v848, %v847
      %v908 = vpack.c.b16 %v850, %v849
      %v909 = vpack.c.b16 %v852, %v851
      %v910 = vpack.c.b16 %v854, %v853
      %v911 = vpack.c.b16 %v856, %v855
      %v912 = vpack.c.b16 %v858, %v857
      %v913 = vpack.c.b16 %v860, %v859
      %v914 = vpack.c.b16 %v862, %v861
      %v915 = vpack.c.b16 %v864, %v863
      %v916 = vpack.c.b16 %v866, %v865
      %v917 = vpack.c.b16 %v868, %v867
      %v918 = vpack.c.b16 %v870, %v869
      %v919 = vpack.c.b16 %v872, %v871
      %v920 = vpack.c.b16 %v874, %v873
      %v921 = vpack.c.b16 %v876, %v875
      %v922 = vpack.c.b16 %v878, %v877
      %v923 = vpack.c.b16 %v880, %v879
      %v924 = vpack.c.b16 %v882, %v881
      %v925 = vpack.c.b16 %v884, %v883
      %v926 = vpack.c.b16 %v886, %v885
      %v927 = vpack.c.b16 %v888, %v887
      %v928 = vpack.c.b16 %v890, %v889
      %v929 = vpack.c.b16 %v892, %v891
      %v930 = vpack.c.b16 %v894, %v893
      %v968 = vsel %vm741, %v750, 0
      %970 = vmatprep.subr.bf16.mxu0 0
      %971 = vmatpush1.bf16.msra.mxu0 %v902
      %972 = vmatprep.subr.bf16.mxu0 0
      %973 = vmatpush1.bf16.msra.mxu0 %v901
      %974 = vmatprep.subr.bf16.mxu0 0
      %975 = vmatpush1.bf16.msra.mxu0 %v900
      %976 = vmatprep.subr.bf16.mxu0 0
      %977 = vmatpush1.bf16.msra.mxu0 %v899
      %978 = vmatprep.subr.bf16.mxu0 0
      %979 = vmatpush1.bf16.msra.mxu0 %v898
      %980 = vmatprep.subr.bf16.mxu0 0
      %981 = vmatpush1.bf16.msra.mxu0 %v897
      %982 = vmatprep.subr.bf16.mxu0 0
      %983 = vmatpush1.bf16.msra.mxu0 %v896
      %984 = vmatprep.subr.bf16.mxu0 0
      %985 = vmatpush1.bf16.msra.mxu0 %v895
      %986 = vmatprep.subr.bf16.mxu0 0
      %987 = vmatpush2.bf16.msra.mxu0 %v910
      %988 = vmatprep.subr.bf16.mxu0 0
      %989 = vmatpush2.bf16.msra.mxu0 %v909
      %990 = vmatprep.subr.bf16.mxu0 0
      %991 = vmatpush2.bf16.msra.mxu0 %v908
      %992 = vmatprep.subr.bf16.mxu0 0
      %993 = vmatpush2.bf16.msra.mxu0 %v907
      %994 = vmatprep.subr.bf16.mxu0 0
      %995 = vmatpush2.bf16.msra.mxu0 %v906
      %996 = vmatprep.subr.bf16.mxu0 0
      %997 = vmatpush2.bf16.msra.mxu0 %v905
      %998 = vmatprep.subr.bf16.mxu0 0
      %999 = vmatpush2.bf16.msra.mxu0 %v904
      %1000 = vmatprep.subr.bf16.mxu0 0
      %1001 = vmatpush2.bf16.msra.mxu0 %v903
      %1002 = vmatprep.mubr.bf16.mxu0 %v747
      %1003 = vmatmul.mubr.bf16.gmra.mxu0 %v746
      %v1004 = vpop.f32.mrf.mxu0
      %v1005 = vadd.f32 0.0, %v1004
      %v1006 = vpop.f32.mrf.mxu0
      %v1007 = vpop.f32.mrf.mxu0
      %v1008 = vpop.f32.mrf.mxu0
      %1009 = vdwg.mxu0
      %1010 = vmatprep.subr.bf16.mxu0 0
      %1011 = vmatpush1.bf16.msra.mxu0 %v918
      %1012 = vmatprep.subr.bf16.mxu0 0
      %1013 = vmatpush1.bf16.msra.mxu0 %v917
      %1014 = vmatprep.subr.bf16.mxu0 0
      %1015 = vmatpush1.bf16.msra.mxu0 %v916
      %1016 = vmatprep.subr.bf16.mxu0 0
      %1017 = vmatpush1.bf16.msra.mxu0 %v915
      %1018 = vmatprep.subr.bf16.mxu0 0
      %1019 = vmatpush1.bf16.msra.mxu0 %v914
      %1020 = vmatprep.subr.bf16.mxu0 0
      %1021 = vmatpush1.bf16.msra.mxu0 %v913
      %1022 = vmatprep.subr.bf16.mxu0 0
      %1023 = vmatpush1.bf16.msra.mxu0 %v912
      %1024 = vmatprep.subr.bf16.mxu0 0
      %1025 = vmatpush1.bf16.msra.mxu0 %v911
      %1026 = vmatprep.subr.bf16.mxu0 0
      %1027 = vmatpush2.bf16.msra.mxu0 %v926
      %1028 = vmatprep.subr.bf16.mxu0 0
      %1029 = vmatpush2.bf16.msra.mxu0 %v925
      %1030 = vmatprep.subr.bf16.mxu0 0
      %1031 = vmatpush2.bf16.msra.mxu0 %v924
      %1032 = vmatprep.subr.bf16.mxu0 0
      %1033 = vmatpush2.bf16.msra.mxu0 %v923
      %1034 = vmatprep.subr.bf16.mxu0 0
      %1035 = vmatpush2.bf16.msra.mxu0 %v922
      %1036 = vmatprep.subr.bf16.mxu0 0
      %1037 = vmatpush2.bf16.msra.mxu0 %v921
      %1038 = vmatprep.subr.bf16.mxu0 0
      %1039 = vmatpush2.bf16.msra.mxu0 %v920
      %1040 = vmatprep.subr.bf16.mxu0 0
      %1041 = vmatpush2.bf16.msra.mxu0 %v919
      %1042 = vmatprep.mubr.bf16.mxu0 %v749
      %1043 = vmatmul.mubr.bf16.gmra.mxu0 %v748
      %v1044 = vpop.f32.mrf.mxu0
      %v1045 = vadd.f32 %v1005, %v1044
      %v1046 = vpop.f32.mrf.mxu0
      %v1047 = vpop.f32.mrf.mxu0
      %v1048 = vpop.f32.mrf.mxu0
      %1049 = vdwg.mxu0
      %1050 = vmatprep.subr.bf16.mxu0 0
      %1051 = vmatpush1.bf16.msra.mxu0 0
      %1052 = vmatprep.subr.bf16.mxu0 0
      %1053 = vmatpush1.bf16.msra.mxu0 0
      %1054 = vmatprep.subr.bf16.mxu0 0
      %1055 = vmatpush1.bf16.msra.mxu0 0
      %1056 = vmatprep.subr.bf16.mxu0 0
      %1057 = vmatpush1.bf16.msra.mxu0 0
      %1058 = vmatprep.subr.bf16.mxu0 0
      %1059 = vmatpush1.bf16.msra.mxu0 %v930
      %1060 = vmatprep.subr.bf16.mxu0 0
      %1061 = vmatpush1.bf16.msra.mxu0 %v929
      %1062 = vmatprep.subr.bf16.mxu0 0
      %1063 = vmatpush1.bf16.msra.mxu0 %v928
      %1064 = vmatprep.subr.bf16.mxu0 0
      %1065 = vmatpush1.bf16.msra.mxu0 %v927
      %1066 = vmatprep.subr.bf16.mxu0 0
      %1067 = vmatpush2.bf16.msra.mxu0 0
      %1068 = vmatprep.subr.bf16.mxu0 0
      %1069 = vmatpush2.bf16.msra.mxu0 0
      %1070 = vmatprep.subr.bf16.mxu0 0
      %1071 = vmatpush2.bf16.msra.mxu0 0
      %1072 = vmatprep.subr.bf16.mxu0 0
      %1073 = vmatpush2.bf16.msra.mxu0 0
      %1074 = vmatprep.subr.bf16.mxu0 0
      %1075 = vmatpush2.bf16.msra.mxu0 0
      %1076 = vmatprep.subr.bf16.mxu0 0
      %1077 = vmatpush2.bf16.msra.mxu0 0
      %1078 = vmatprep.subr.bf16.mxu0 0
      %1079 = vmatpush2.bf16.msra.mxu0 0
      %1080 = vmatprep.subr.bf16.mxu0 0
      %1081 = vmatpush2.bf16.msra.mxu0 0
      %1082 = vmatprep.mubr.bf16.mxu0 0
      %1083 = vmatmul.mubr.bf16.gmra.mxu0 %v968
      %v1084 = vpop.f32.mrf.mxu0
      %v1085 = vadd.f32 %v1045, %v1084
      %v1086 = vpop.f32.mrf.mxu0
      %v1087 = vpop.f32.mrf.mxu0
      %v1088 = vpop.f32.mrf.mxu0
      %1089 = vdwg.mxu0
      %vm1090 = vcmask 519168
      %1091 = vst.msk [vmem:[%s618] sm:$0xf] %vm1090, %v1085
      %v1092 = vsel %vm1090, %v1085, 0.0
      %v1093 = vrot.slane %v1092, 4
      %v1094 = vadd.f32 %v1092, %v1093
      %v1095 = vrot.slane %v1094, 2
      %v1096 = vadd.f32 %v1094, %v1095
      %v1097 = vrot.slane %v1096, 1
      %v1098 = vadd.f32 %v1096, %v1097
      %v1099 = vadd.f32 %v1098, 0.0
      %v1100 = vmul.f32 %v1085, %v1085
      %v1101 = vsel %vm1090, %v1100, 0.0
      %v1102 = vrot.slane %v1101, 4
      %v1103 = vadd.f32 %v1101, %v1102
      %v1104 = vrot.slane %v1103, 2
      %v1105 = vadd.f32 %v1103, %v1104
      %v1106 = vrot.slane %v1105, 1
      %v1107 = vadd.f32 %v1105, %v1106
      %v1108 = vadd.f32 %v1107, 0.0
      %1109 = vrot.lane.b32.xlu0 %v728, 64
      %v1110 = vpop.permute.xlu0 %1109
      %1113 = vrot.lane.b32.xlu0 %v710, 64
      %v1114 = vpop.permute.xlu0 %1113
      %1117 = vrot.lane.b32.xlu0 %v739, 64
      %v1118 = vpop.permute.xlu0 %1117
      %v1121 = vrot.slane %v712, 1
      %1122 = vrot.lane.b32.xlu0 %v1121, 64
      %v1123 = vpop.permute.xlu0 %1122
      %v1125 = vrot.slane %v712, 2
      %v1127 = vsel %vm741, %v708, %v1110
      %v1128 = vsel %vm741, %v730, %v1114
      %v1129 = vsel %vm741, %v735, %v1118
      %v1130 = vsel %vm741, %v712, %v1123
      %v1131 = vpack.c.bf16 %v1127, %v1127
      %v1132 = vpack.c.bf16 %v1128, %v1128
      %v1133 = vpack.c.bf16 %v1129, %v1129
      %v1134 = vpack.c.bf16 %v1130, %v1130
      %v1135 = vpack.c.bf16 %v1125, %v1125
      %v1137 = vsel %vm741, %v1135, 0
      %1139 = vmatprep.subr.bf16.mxu0 0
      %1140 = vmatpush1.bf16.msra.mxu0 %v902
      %1141 = vmatprep.subr.bf16.mxu0 0
      %1142 = vmatpush1.bf16.msra.mxu0 %v901
      %1143 = vmatprep.subr.bf16.mxu0 0
      %1144 = vmatpush1.bf16.msra.mxu0 %v900
      %1145 = vmatprep.subr.bf16.mxu0 0
      %1146 = vmatpush1.bf16.msra.mxu0 %v899
      %1147 = vmatprep.subr.bf16.mxu0 0
      %1148 = vmatpush1.bf16.msra.mxu0 %v898
      %1149 = vmatprep.subr.bf16.mxu0 0
      %1150 = vmatpush1.bf16.msra.mxu0 %v897
      %1151 = vmatprep.subr.bf16.mxu0 0
      %1152 = vmatpush1.bf16.msra.mxu0 %v896
      %1153 = vmatprep.subr.bf16.mxu0 0
      %1154 = vmatpush1.bf16.msra.mxu0 %v895
      %1155 = vmatprep.subr.bf16.mxu0 0
      %1156 = vmatpush2.bf16.msra.mxu0 %v910
      %1157 = vmatprep.subr.bf16.mxu0 0
      %1158 = vmatpush2.bf16.msra.mxu0 %v909
      %1159 = vmatprep.subr.bf16.mxu0 0
      %1160 = vmatpush2.bf16.msra.mxu0 %v908
      %1161 = vmatprep.subr.bf16.mxu0 0
      %1162 = vmatpush2.bf16.msra.mxu0 %v907
      %1163 = vmatprep.subr.bf16.mxu0 0
      %1164 = vmatpush2.bf16.msra.mxu0 %v906
      %1165 = vmatprep.subr.bf16.mxu0 0
      %1166 = vmatpush2.bf16.msra.mxu0 %v905
      %1167 = vmatprep.subr.bf16.mxu0 0
      %1168 = vmatpush2.bf16.msra.mxu0 %v904
      %1169 = vmatprep.subr.bf16.mxu0 0
      %1170 = vmatpush2.bf16.msra.mxu0 %v903
      %1171 = vmatprep.mubr.bf16.mxu0 %v1132
      %1172 = vmatmul.mubr.bf16.gmra.mxu0 %v1131
      %v1173 = vpop.f32.mrf.mxu0
      %v1174 = vadd.f32 0.0, %v1173
      %v1175 = vpop.f32.mrf.mxu0
      %v1176 = vpop.f32.mrf.mxu0
      %v1177 = vpop.f32.mrf.mxu0
      %1178 = vdwg.mxu0
      %1179 = vmatprep.subr.bf16.mxu0 0
      %1180 = vmatpush1.bf16.msra.mxu0 %v918
      %1181 = vmatprep.subr.bf16.mxu0 0
      %1182 = vmatpush1.bf16.msra.mxu0 %v917
      %1183 = vmatprep.subr.bf16.mxu0 0
      %1184 = vmatpush1.bf16.msra.mxu0 %v916
      %1185 = vmatprep.subr.bf16.mxu0 0
      %1186 = vmatpush1.bf16.msra.mxu0 %v915
      %1187 = vmatprep.subr.bf16.mxu0 0
      %1188 = vmatpush1.bf16.msra.mxu0 %v914
      %1189 = vmatprep.subr.bf16.mxu0 0
      %1190 = vmatpush1.bf16.msra.mxu0 %v913
      %1191 = vmatprep.subr.bf16.mxu0 0
      %1192 = vmatpush1.bf16.msra.mxu0 %v912
      %1193 = vmatprep.subr.bf16.mxu0 0
      %1194 = vmatpush1.bf16.msra.mxu0 %v911
      %1195 = vmatprep.subr.bf16.mxu0 0
      %1196 = vmatpush2.bf16.msra.mxu0 %v926
      %1197 = vmatprep.subr.bf16.mxu0 0
      %1198 = vmatpush2.bf16.msra.mxu0 %v925
      %1199 = vmatprep.subr.bf16.mxu0 0
      %1200 = vmatpush2.bf16.msra.mxu0 %v924
      %1201 = vmatprep.subr.bf16.mxu0 0
      %1202 = vmatpush2.bf16.msra.mxu0 %v923
      %1203 = vmatprep.subr.bf16.mxu0 0
      %1204 = vmatpush2.bf16.msra.mxu0 %v922
      %1205 = vmatprep.subr.bf16.mxu0 0
      %1206 = vmatpush2.bf16.msra.mxu0 %v921
      %1207 = vmatprep.subr.bf16.mxu0 0
      %1208 = vmatpush2.bf16.msra.mxu0 %v920
      %1209 = vmatprep.subr.bf16.mxu0 0
      %1210 = vmatpush2.bf16.msra.mxu0 %v919
      %1211 = vmatprep.mubr.bf16.mxu0 %v1134
      %1212 = vmatmul.mubr.bf16.gmra.mxu0 %v1133
      %v1213 = vpop.f32.mrf.mxu0
      %v1214 = vadd.f32 %v1174, %v1213
      %v1215 = vpop.f32.mrf.mxu0
      %v1216 = vpop.f32.mrf.mxu0
      %v1217 = vpop.f32.mrf.mxu0
      %1218 = vdwg.mxu0
      %1219 = vmatprep.subr.bf16.mxu0 0
      %1220 = vmatpush1.bf16.msra.mxu0 0
      %1221 = vmatprep.subr.bf16.mxu0 0
      %1222 = vmatpush1.bf16.msra.mxu0 0
      %1223 = vmatprep.subr.bf16.mxu0 0
      %1224 = vmatpush1.bf16.msra.mxu0 0
      %1225 = vmatprep.subr.bf16.mxu0 0
      %1226 = vmatpush1.bf16.msra.mxu0 0
      %1227 = vmatprep.subr.bf16.mxu0 0
      %1228 = vmatpush1.bf16.msra.mxu0 %v930
      %1229 = vmatprep.subr.bf16.mxu0 0
      %1230 = vmatpush1.bf16.msra.mxu0 %v929
      %1231 = vmatprep.subr.bf16.mxu0 0
      %1232 = vmatpush1.bf16.msra.mxu0 %v928
      %1233 = vmatprep.subr.bf16.mxu0 0
      %1234 = vmatpush1.bf16.msra.mxu0 %v927
      %1235 = vmatprep.subr.bf16.mxu0 0
      %1236 = vmatpush2.bf16.msra.mxu0 0
      %1237 = vmatprep.subr.bf16.mxu0 0
      %1238 = vmatpush2.bf16.msra.mxu0 0
      %1239 = vmatprep.subr.bf16.mxu0 0
      %1240 = vmatpush2.bf16.msra.mxu0 0
      %1241 = vmatprep.subr.bf16.mxu0 0
      %1242 = vmatpush2.bf16.msra.mxu0 0
      %1243 = vmatprep.subr.bf16.mxu0 0
      %1244 = vmatpush2.bf16.msra.mxu0 0
      %1245 = vmatprep.subr.bf16.mxu0 0
      %1246 = vmatpush2.bf16.msra.mxu0 0
      %1247 = vmatprep.subr.bf16.mxu0 0
      %1248 = vmatpush2.bf16.msra.mxu0 0
      %1249 = vmatprep.subr.bf16.mxu0 0
      %1250 = vmatpush2.bf16.msra.mxu0 0
      %1251 = vmatprep.mubr.bf16.mxu0 0
      %1252 = vmatmul.mubr.bf16.gmra.mxu0 %v1137
      %v1253 = vpop.f32.mrf.mxu0
      %v1254 = vadd.f32 %v1214, %v1253
      %v1255 = vpop.f32.mrf.mxu0
      %v1256 = vpop.f32.mrf.mxu0
      %v1257 = vpop.f32.mrf.mxu0
      %1258 = vdwg.mxu0
      %s1259 = scalar_lea.vmem %s618, 4
      %1260 = vst.msk [vmem:[%s1259] sm:$0xf] %vm1090, %v1254
      %v1261 = vsel %vm1090, %v1254, 0.0
      %v1262 = vrot.slane %v1261, 4
      %v1263 = vadd.f32 %v1261, %v1262
      %v1264 = vrot.slane %v1263, 2
      %v1265 = vadd.f32 %v1263, %v1264
      %v1266 = vrot.slane %v1265, 1
      %v1267 = vadd.f32 %v1265, %v1266
      %v1268 = vadd.f32 %v1099, %v1267
      %v1269 = vmul.f32 %v1254, %v1254
      %v1270 = vsel %vm1090, %v1269, 0.0
      %v1271 = vrot.slane %v1270, 4
      %v1272 = vadd.f32 %v1270, %v1271
      %v1273 = vrot.slane %v1272, 2
      %v1274 = vadd.f32 %v1272, %v1273
      %v1275 = vrot.slane %v1274, 1
      %v1276 = vadd.f32 %v1274, %v1275
      %v1277 = vadd.f32 %v1108, %v1276
      %1278 = vrot.lane.b32.xlu0 %v712, 64
      %v1279 = vpop.permute.xlu0 %1278
      %1282 = vrot.lane.b32.xlu0 %v1125, 64
      %v1283 = vpop.permute.xlu0 %1282
      %v1286 = vrot.slane %v714, 1
      %1287 = vrot.lane.b32.xlu0 %v1286, 64
      %v1288 = vpop.permute.xlu0 %1287
      %v1290 = vrot.slane %v714, 2
      %v1292 = vsel %vm741, %v739, %v1279
      %v1293 = vsel %vm741, %v1121, %v1283
      %v1294 = vsel %vm741, %v714, %v1288
      %v1295 = vpack.c.bf16 %v1292, %v1292
      %v1296 = vpack.c.bf16 %v1293, %v1293
      %v1297 = vpack.c.bf16 %v1294, %v1294
      %v1298 = vpack.c.bf16 %v1290, %v1290
      %v1300 = vsel %vm741, %v1298, 0
      %1302 = vmatprep.subr.bf16.mxu0 0
      %1303 = vmatpush1.bf16.msra.mxu0 %v902
      %1304 = vmatprep.subr.bf16.mxu0 0
      %1305 = vmatpush1.bf16.msra.mxu0 %v901
      %1306 = vmatprep.subr.bf16.mxu0 0
      %1307 = vmatpush1.bf16.msra.mxu0 %v900
      %1308 = vmatprep.subr.bf16.mxu0 0
      %1309 = vmatpush1.bf16.msra.mxu0 %v899
      %1310 = vmatprep.subr.bf16.mxu0 0
      %1311 = vmatpush1.bf16.msra.mxu0 %v898
      %1312 = vmatprep.subr.bf16.mxu0 0
      %1313 = vmatpush1.bf16.msra.mxu0 %v897
      %1314 = vmatprep.subr.bf16.mxu0 0
      %1315 = vmatpush1.bf16.msra.mxu0 %v896
      %1316 = vmatprep.subr.bf16.mxu0 0
      %1317 = vmatpush1.bf16.msra.mxu0 %v895
      %1318 = vmatprep.subr.bf16.mxu0 0
      %1319 = vmatpush2.bf16.msra.mxu0 %v910
      %1320 = vmatprep.subr.bf16.mxu0 0
      %1321 = vmatpush2.bf16.msra.mxu0 %v909
      %1322 = vmatprep.subr.bf16.mxu0 0
      %1323 = vmatpush2.bf16.msra.mxu0 %v908
      %1324 = vmatprep.subr.bf16.mxu0 0
      %1325 = vmatpush2.bf16.msra.mxu0 %v907
      %1326 = vmatprep.subr.bf16.mxu0 0
      %1327 = vmatpush2.bf16.msra.mxu0 %v906
      %1328 = vmatprep.subr.bf16.mxu0 0
      %1329 = vmatpush2.bf16.msra.mxu0 %v905
      %1330 = vmatprep.subr.bf16.mxu0 0
      %1331 = vmatpush2.bf16.msra.mxu0 %v904
      %1332 = vmatprep.subr.bf16.mxu0 0
      %1333 = vmatpush2.bf16.msra.mxu0 %v903
      %1334 = vmatprep.mubr.bf16.mxu0 %v1295
      %1335 = vmatmul.mubr.bf16.gmra.mxu0 %v749
      %v1336 = vpop.f32.mrf.mxu0
      %v1337 = vadd.f32 0.0, %v1336
      %v1338 = vpop.f32.mrf.mxu0
      %v1339 = vpop.f32.mrf.mxu0
      %v1340 = vpop.f32.mrf.mxu0
      %1341 = vdwg.mxu0
      %1342 = vmatprep.subr.bf16.mxu0 0
      %1343 = vmatpush1.bf16.msra.mxu0 %v918
      %1344 = vmatprep.subr.bf16.mxu0 0
      %1345 = vmatpush1.bf16.msra.mxu0 %v917
      %1346 = vmatprep.subr.bf16.mxu0 0
      %1347 = vmatpush1.bf16.msra.mxu0 %v916
      %1348 = vmatprep.subr.bf16.mxu0 0
      %1349 = vmatpush1.bf16.msra.mxu0 %v915
      %1350 = vmatprep.subr.bf16.mxu0 0
      %1351 = vmatpush1.bf16.msra.mxu0 %v914
      %1352 = vmatprep.subr.bf16.mxu0 0
      %1353 = vmatpush1.bf16.msra.mxu0 %v913
      %1354 = vmatprep.subr.bf16.mxu0 0
      %1355 = vmatpush1.bf16.msra.mxu0 %v912
      %1356 = vmatprep.subr.bf16.mxu0 0
      %1357 = vmatpush1.bf16.msra.mxu0 %v911
      %1358 = vmatprep.subr.bf16.mxu0 0
      %1359 = vmatpush2.bf16.msra.mxu0 %v926
      %1360 = vmatprep.subr.bf16.mxu0 0
      %1361 = vmatpush2.bf16.msra.mxu0 %v925
      %1362 = vmatprep.subr.bf16.mxu0 0
      %1363 = vmatpush2.bf16.msra.mxu0 %v924
      %1364 = vmatprep.subr.bf16.mxu0 0
      %1365 = vmatpush2.bf16.msra.mxu0 %v923
      %1366 = vmatprep.subr.bf16.mxu0 0
      %1367 = vmatpush2.bf16.msra.mxu0 %v922
      %1368 = vmatprep.subr.bf16.mxu0 0
      %1369 = vmatpush2.bf16.msra.mxu0 %v921
      %1370 = vmatprep.subr.bf16.mxu0 0
      %1371 = vmatpush2.bf16.msra.mxu0 %v920
      %1372 = vmatprep.subr.bf16.mxu0 0
      %1373 = vmatpush2.bf16.msra.mxu0 %v919
      %1374 = vmatprep.mubr.bf16.mxu0 %v1297
      %1375 = vmatmul.mubr.bf16.gmra.mxu0 %v1296
      %v1376 = vpop.f32.mrf.mxu0
      %v1377 = vadd.f32 %v1337, %v1376
      %v1378 = vpop.f32.mrf.mxu0
      %v1379 = vpop.f32.mrf.mxu0
      %v1380 = vpop.f32.mrf.mxu0
      %1381 = vdwg.mxu0
      %1382 = vmatprep.subr.bf16.mxu0 0
      %1383 = vmatpush1.bf16.msra.mxu0 0
      %1384 = vmatprep.subr.bf16.mxu0 0
      %1385 = vmatpush1.bf16.msra.mxu0 0
      %1386 = vmatprep.subr.bf16.mxu0 0
      %1387 = vmatpush1.bf16.msra.mxu0 0
      %1388 = vmatprep.subr.bf16.mxu0 0
      %1389 = vmatpush1.bf16.msra.mxu0 0
      %1390 = vmatprep.subr.bf16.mxu0 0
      %1391 = vmatpush1.bf16.msra.mxu0 %v930
      %1392 = vmatprep.subr.bf16.mxu0 0
      %1393 = vmatpush1.bf16.msra.mxu0 %v929
      %1394 = vmatprep.subr.bf16.mxu0 0
      %1395 = vmatpush1.bf16.msra.mxu0 %v928
      %1396 = vmatprep.subr.bf16.mxu0 0
      %1397 = vmatpush1.bf16.msra.mxu0 %v927
      %1398 = vmatprep.subr.bf16.mxu0 0
      %1399 = vmatpush2.bf16.msra.mxu0 0
      %1400 = vmatprep.subr.bf16.mxu0 0
      %1401 = vmatpush2.bf16.msra.mxu0 0
      %1402 = vmatprep.subr.bf16.mxu0 0
      %1403 = vmatpush2.bf16.msra.mxu0 0
      %1404 = vmatprep.subr.bf16.mxu0 0
      %1405 = vmatpush2.bf16.msra.mxu0 0
      %1406 = vmatprep.subr.bf16.mxu0 0
      %1407 = vmatpush2.bf16.msra.mxu0 0
      %1408 = vmatprep.subr.bf16.mxu0 0
      %1409 = vmatpush2.bf16.msra.mxu0 0
      %1410 = vmatprep.subr.bf16.mxu0 0
      %1411 = vmatpush2.bf16.msra.mxu0 0
      %1412 = vmatprep.subr.bf16.mxu0 0
      %1413 = vmatpush2.bf16.msra.mxu0 0
      %1414 = vmatprep.mubr.bf16.mxu0 0
      %1415 = vmatmul.mubr.bf16.gmra.mxu0 %v1300
      %v1416 = vpop.f32.mrf.mxu0
      %v1417 = vadd.f32 %v1377, %v1416
      %v1418 = vpop.f32.mrf.mxu0
      %v1419 = vpop.f32.mrf.mxu0
      %v1420 = vpop.f32.mrf.mxu0
      %1421 = vdwg.mxu0
      %s1422 = scalar_lea.vmem %s618, 8
      %1423 = vst.msk [vmem:[%s1422] sm:$0xf] %vm1090, %v1417
      %v1424 = vsel %vm1090, %v1417, 0.0
      %v1425 = vrot.slane %v1424, 4
      %v1426 = vadd.f32 %v1424, %v1425
      %v1427 = vrot.slane %v1426, 2
      %v1428 = vadd.f32 %v1426, %v1427
      %v1429 = vrot.slane %v1428, 1
      %v1430 = vadd.f32 %v1428, %v1429
      %v1431 = vadd.f32 %v1268, %v1430
      %v1432 = vmul.f32 %v1417, %v1417
      %v1433 = vsel %vm1090, %v1432, 0.0
      %v1434 = vrot.slane %v1433, 4
      %v1435 = vadd.f32 %v1433, %v1434
      %v1436 = vrot.slane %v1435, 2
      %v1437 = vadd.f32 %v1435, %v1436
      %v1438 = vrot.slane %v1437, 1
      %v1439 = vadd.f32 %v1437, %v1438
      %v1440 = vadd.f32 %v1277, %v1439
      %1441 = vrot.lane.b32.xlu0 %v714, 64
      %v1442 = vpop.permute.xlu0 %1441
      %1445 = vrot.lane.b32.xlu0 %v1290, 64
      %v1446 = vpop.permute.xlu0 %1445
      %v1449 = vrot.slane %v716, 1
      %1450 = vrot.lane.b32.xlu0 %v1449, 64
      %v1451 = vpop.permute.xlu0 %1450
      %v1453 = vrot.slane %v716, 2
      %v1455 = vsel %vm741, %v1125, %v1442
      %v1456 = vsel %vm741, %v1286, %v1446
      %v1457 = vsel %vm741, %v716, %v1451
      %v1458 = vpack.c.bf16 %v1455, %v1455
      %v1459 = vpack.c.bf16 %v1456, %v1456
      %v1460 = vpack.c.bf16 %v1457, %v1457
      %v1461 = vpack.c.bf16 %v1453, %v1453
      %v1463 = vsel %vm741, %v1461, 0
      %1465 = vmatprep.subr.bf16.mxu0 0
      %1466 = vmatpush1.bf16.msra.mxu0 %v902
      %1467 = vmatprep.subr.bf16.mxu0 0
      %1468 = vmatpush1.bf16.msra.mxu0 %v901
      %1469 = vmatprep.subr.bf16.mxu0 0
      %1470 = vmatpush1.bf16.msra.mxu0 %v900
      %1471 = vmatprep.subr.bf16.mxu0 0
      %1472 = vmatpush1.bf16.msra.mxu0 %v899
      %1473 = vmatprep.subr.bf16.mxu0 0
      %1474 = vmatpush1.bf16.msra.mxu0 %v898
      %1475 = vmatprep.subr.bf16.mxu0 0
      %1476 = vmatpush1.bf16.msra.mxu0 %v897
      %1477 = vmatprep.subr.bf16.mxu0 0
      %1478 = vmatpush1.bf16.msra.mxu0 %v896
      %1479 = vmatprep.subr.bf16.mxu0 0
      %1480 = vmatpush1.bf16.msra.mxu0 %v895
      %1481 = vmatprep.subr.bf16.mxu0 0
      %1482 = vmatpush2.bf16.msra.mxu0 %v910
      %1483 = vmatprep.subr.bf16.mxu0 0
      %1484 = vmatpush2.bf16.msra.mxu0 %v909
      %1485 = vmatprep.subr.bf16.mxu0 0
      %1486 = vmatpush2.bf16.msra.mxu0 %v908
      %1487 = vmatprep.subr.bf16.mxu0 0
      %1488 = vmatpush2.bf16.msra.mxu0 %v907
      %1489 = vmatprep.subr.bf16.mxu0 0
      %1490 = vmatpush2.bf16.msra.mxu0 %v906
      %1491 = vmatprep.subr.bf16.mxu0 0
      %1492 = vmatpush2.bf16.msra.mxu0 %v905
      %1493 = vmatprep.subr.bf16.mxu0 0
      %1494 = vmatpush2.bf16.msra.mxu0 %v904
      %1495 = vmatprep.subr.bf16.mxu0 0
      %1496 = vmatpush2.bf16.msra.mxu0 %v903
      %1497 = vmatprep.mubr.bf16.mxu0 %v1458
      %1498 = vmatmul.mubr.bf16.gmra.mxu0 %v1134
      %v1499 = vpop.f32.mrf.mxu0
      %v1500 = vadd.f32 0.0, %v1499
      %v1501 = vpop.f32.mrf.mxu0
      %v1502 = vpop.f32.mrf.mxu0
      %v1503 = vpop.f32.mrf.mxu0
      %1504 = vdwg.mxu0
      %1505 = vmatprep.subr.bf16.mxu0 0
      %1506 = vmatpush1.bf16.msra.mxu0 %v918
      %1507 = vmatprep.subr.bf16.mxu0 0
      %1508 = vmatpush1.bf16.msra.mxu0 %v917
      %1509 = vmatprep.subr.bf16.mxu0 0
      %1510 = vmatpush1.bf16.msra.mxu0 %v916
      %1511 = vmatprep.subr.bf16.mxu0 0
      %1512 = vmatpush1.bf16.msra.mxu0 %v915
      %1513 = vmatprep.subr.bf16.mxu0 0
      %1514 = vmatpush1.bf16.msra.mxu0 %v914
      %1515 = vmatprep.subr.bf16.mxu0 0
      %1516 = vmatpush1.bf16.msra.mxu0 %v913
      %1517 = vmatprep.subr.bf16.mxu0 0
      %1518 = vmatpush1.bf16.msra.mxu0 %v912
      %1519 = vmatprep.subr.bf16.mxu0 0
      %1520 = vmatpush1.bf16.msra.mxu0 %v911
      %1521 = vmatprep.subr.bf16.mxu0 0
      %1522 = vmatpush2.bf16.msra.mxu0 %v926
      %1523 = vmatprep.subr.bf16.mxu0 0
      %1524 = vmatpush2.bf16.msra.mxu0 %v925
      %1525 = vmatprep.subr.bf16.mxu0 0
      %1526 = vmatpush2.bf16.msra.mxu0 %v924
      %1527 = vmatprep.subr.bf16.mxu0 0
      %1528 = vmatpush2.bf16.msra.mxu0 %v923
      %1529 = vmatprep.subr.bf16.mxu0 0
      %1530 = vmatpush2.bf16.msra.mxu0 %v922
      %1531 = vmatprep.subr.bf16.mxu0 0
      %1532 = vmatpush2.bf16.msra.mxu0 %v921
      %1533 = vmatprep.subr.bf16.mxu0 0
      %1534 = vmatpush2.bf16.msra.mxu0 %v920
      %1535 = vmatprep.subr.bf16.mxu0 0
      %1536 = vmatpush2.bf16.msra.mxu0 %v919
      %1537 = vmatprep.mubr.bf16.mxu0 %v1460
      %1538 = vmatmul.mubr.bf16.gmra.mxu0 %v1459
      %v1539 = vpop.f32.mrf.mxu0
      %v1540 = vadd.f32 %v1500, %v1539
      %v1541 = vpop.f32.mrf.mxu0
      %v1542 = vpop.f32.mrf.mxu0
      %v1543 = vpop.f32.mrf.mxu0
      %1544 = vdwg.mxu0
      %1545 = vmatprep.subr.bf16.mxu0 0
      %1546 = vmatpush1.bf16.msra.mxu0 0
      %1547 = vmatprep.subr.bf16.mxu0 0
      %1548 = vmatpush1.bf16.msra.mxu0 0
      %1549 = vmatprep.subr.bf16.mxu0 0
      %1550 = vmatpush1.bf16.msra.mxu0 0
      %1551 = vmatprep.subr.bf16.mxu0 0
      %1552 = vmatpush1.bf16.msra.mxu0 0
      %1553 = vmatprep.subr.bf16.mxu0 0
      %1554 = vmatpush1.bf16.msra.mxu0 %v930
      %1555 = vmatprep.subr.bf16.mxu0 0
      %1556 = vmatpush1.bf16.msra.mxu0 %v929
      %1557 = vmatprep.subr.bf16.mxu0 0
      %1558 = vmatpush1.bf16.msra.mxu0 %v928
      %1559 = vmatprep.subr.bf16.mxu0 0
      %1560 = vmatpush1.bf16.msra.mxu0 %v927
      %1561 = vmatprep.subr.bf16.mxu0 0
      %1562 = vmatpush2.bf16.msra.mxu0 0
      %1563 = vmatprep.subr.bf16.mxu0 0
      %1564 = vmatpush2.bf16.msra.mxu0 0
      %1565 = vmatprep.subr.bf16.mxu0 0
      %1566 = vmatpush2.bf16.msra.mxu0 0
      %1567 = vmatprep.subr.bf16.mxu0 0
      %1568 = vmatpush2.bf16.msra.mxu0 0
      %1569 = vmatprep.subr.bf16.mxu0 0
      %1570 = vmatpush2.bf16.msra.mxu0 0
      %1571 = vmatprep.subr.bf16.mxu0 0
      %1572 = vmatpush2.bf16.msra.mxu0 0
      %1573 = vmatprep.subr.bf16.mxu0 0
      %1574 = vmatpush2.bf16.msra.mxu0 0
      %1575 = vmatprep.subr.bf16.mxu0 0
      %1576 = vmatpush2.bf16.msra.mxu0 0
      %1577 = vmatprep.mubr.bf16.mxu0 0
      %1578 = vmatmul.mubr.bf16.gmra.mxu0 %v1463
      %v1579 = vpop.f32.mrf.mxu0
      %v1580 = vadd.f32 %v1540, %v1579
      %v1581 = vpop.f32.mrf.mxu0
      %v1582 = vpop.f32.mrf.mxu0
      %v1583 = vpop.f32.mrf.mxu0
      %1584 = vdwg.mxu0
      %s1585 = scalar_lea.vmem %s618, 12
      %1586 = vst.msk [vmem:[%s1585] sm:$0xf] %vm1090, %v1580
      %v1587 = vsel %vm1090, %v1580, 0.0
      %v1588 = vrot.slane %v1587, 4
      %v1589 = vadd.f32 %v1587, %v1588
      %v1590 = vrot.slane %v1589, 2
      %v1591 = vadd.f32 %v1589, %v1590
      %v1592 = vrot.slane %v1591, 1
      %v1593 = vadd.f32 %v1591, %v1592
      %v1594 = vadd.f32 %v1431, %v1593
      %v1595 = vmul.f32 %v1580, %v1580
      %v1596 = vsel %vm1090, %v1595, 0.0
      %v1597 = vrot.slane %v1596, 4
      %v1598 = vadd.f32 %v1596, %v1597
      %v1599 = vrot.slane %v1598, 2
      %v1600 = vadd.f32 %v1598, %v1599
      %v1601 = vrot.slane %v1600, 1
      %v1602 = vadd.f32 %v1600, %v1601
      %v1603 = vadd.f32 %v1440, %v1602
      %vm1604 = vcmask 516096
      %1605 = vst.msk [vmem:[%s625] sm:$0x1] %vm1604, %v1594
      %1606 = vst.msk [vmem:[%s631] sm:$0x1] %vm1604, %v1603
      %s1607 = smul.u32 4, %s26
      %p1608 = scmp.lt.s32.totalorder %s25, 1
      %s1609 = scalar_select %p1608, %s25, 1
      %p1610 = scmp.lt.s32.totalorder %s1607, 3
      %s1611 = scalar_select %p1610, %s1607, 3
      %s1612 = smul.addr %s1609, 4
      %s1613 = sadd.s32 %s1611, %s1612
      %s1614 = smul.addr %s1613, 4
      %s1615 = scalar_lea.vmem %s7, %s1614
      %p1616 = scmp.lt.s32.totalorder %s25, 1
      %s1617 = scalar_select %p1616, %s25, 1
      %p1618 = scmp.lt.s32.totalorder %s26, 0
      %s1619 = scalar_select %p1618, %s26, 0
      %s1620 = sadd.s32 %s1619, %s1617
      %s1621 = scalar_lea.vmem %s8, %s1620
      %p1622 = scmp.lt.s32.totalorder %s25, 1
      %s1623 = scalar_select %p1622, %s25, 1
      %p1624 = scmp.lt.s32.totalorder %s26, 0
      %s1625 = scalar_select %p1624, %s26, 0
      %s1626 = sadd.s32 %s1625, %s1623
      %s1627 = scalar_lea.vmem %s9, %s1626
      // Predicated region
      $region49: #{cnn_encoder_forward.12} parent=47 // pred_check
        %p1628 = pneg %p264
      $region50: #{cnn_encoder_forward.12} parent=47 // pred_check_branch
        %1630 = sbr.rel (%p1628) target = $region52
      $region51: #{cnn_encoder_forward.12} parent=47 // pred_region
        %s1631 = smul.u32 4, %s26
      $region52: #{cnn_encoder_forward.12} parent=47 // pred_fallthru
        _
      // Predicated region
      $region53: #{cnn_encoder_forward.12} parent=47 // pred_check
        %p1632 = pneg %p292
      $region54: #{cnn_encoder_forward.12} parent=47 // pred_check_branch
        %1634 = sbr.rel (%p1632) target = $region56
      $region55: #{cnn_encoder_forward.12} parent=47 // pred_region
        _
      $region56: #{cnn_encoder_forward.12} parent=47 // pred_fallthru
        _
      // Predicated region
      $region57: #{cnn_encoder_forward.12} parent=47 // pred_check
        %p1635 = pneg %p320
      $region58: #{cnn_encoder_forward.12} parent=47 // pred_check_branch
        %1637 = sbr.rel (%p1635) target = $region60
      $region59: #{cnn_encoder_forward.12} parent=47 // pred_region
        _
      $region60: #{cnn_encoder_forward.12} parent=47 // pred_fallthru
        _
    $region48: #{cnn_encoder_forward.12} parent=5 // pred_fallthru
      _
    %p1638 = scmp.le.s32.totalorder 2, %s16
    // Predicated region
    $region61: #{cnn_encoder_forward.12} parent=5 // pred_check
      %p1639 = pneg %p1638
    $region62: #{cnn_encoder_forward.12} parent=5 // pred_check_branch
      %1641 = sbr.rel (%p1639) target = $region64
    $region63: #{cnn_encoder_forward.12} parent=5 // pred_region
      %s1642 = ssub.s32 %s16, 2
      // Predicated region
      $region65: #{cnn_encoder_forward.12} parent=63 // pred_check
        %p1643 = pneg %p270
      $region66: #{cnn_encoder_forward.12} parent=63 // pred_check_branch
        %1645 = sbr.rel (%p1643) target = $region68
      $region67: #{cnn_encoder_forward.12} parent=63 // pred_region
        %s1646 = smul.u32 4, %s28
        %p1647 = scmp.lt.s32.totalorder %s27, 1
        %s1648 = scalar_select %p1647, %s27, 1
        %p1649 = scmp.lt.s32.totalorder %s1646, 3
        %s1650 = scalar_select %p1649, %s1646, 3
        %s1651 = smul.addr %s1648, 4
        %s1652 = sadd.s32 %s1650, %s1651
        %s1653 = smul.addr %s1652, 4
        %s1654 = scalar_lea.vmem %s7, %s1653
      $region68: #{cnn_encoder_forward.12} parent=63 // pred_fallthru
        _
      // Predicated region
      $region69: #{cnn_encoder_forward.12} parent=63 // pred_check
        %p1655 = pneg %p298
      $region70: #{cnn_encoder_forward.12} parent=63 // pred_check_branch
        %1657 = sbr.rel (%p1655) target = $region72
      $region71: #{cnn_encoder_forward.12} parent=63 // pred_region
        %p1658 = scmp.lt.s32.totalorder %s27, 1
        %s1659 = scalar_select %p1658, %s27, 1
        %p1660 = scmp.lt.s32.totalorder %s28, 0
        %s1661 = scalar_select %p1660, %s28, 0
        %s1662 = sadd.s32 %s1661, %s1659
        %s1663 = scalar_lea.vmem %s8, %s1662
      $region72: #{cnn_encoder_forward.12} parent=63 // pred_fallthru
        _
      // Predicated region
      $region73: #{cnn_encoder_forward.12} parent=63 // pred_check
        %p1664 = pneg %p326
      $region74: #{cnn_encoder_forward.12} parent=63 // pred_check_branch
        %1666 = sbr.rel (%p1664) target = $region76
      $region75: #{cnn_encoder_forward.12} parent=63 // pred_region
        %p1667 = scmp.lt.s32.totalorder %s27, 1
        %s1668 = scalar_select %p1667, %s27, 1
        %p1669 = scmp.lt.s32.totalorder %s28, 0
        %s1670 = scalar_select %p1669, %s28, 0
        %s1671 = sadd.s32 %s1670, %s1668
        %s1672 = scalar_lea.vmem %s9, %s1671
      $region76: #{cnn_encoder_forward.12} parent=63 // pred_fallthru
        _
    $region64: #{cnn_encoder_forward.12} parent=5 // pred_fallthru
      _
  $region6: #{cnn_encoder_forward.12} parent=0 // loop_footer
    %s20 = sadd.s32 1, %s16
  $region7: #{cnn_encoder_forward.12} parent=0 // loop_footer_branch
    %15 = sbr.rel target = $region3
  $region8: #{cnn_encoder_forward.12} parent=0 // loop_exit
    _

// kernel: cnn_encoder_forward.10
$region0: #{cnn_encoder_forward.10}
  #allocation0 [shape = 'u32[]', space=smem, size = 0x4, offset = 0x4, fixed_abs, tag = 'smem constant byte address 0x4 - core index']
  #allocation1 [shape = 'u32[144,128]{1,0:T(1,128)}', space=vmem, size = 0x12000, scoped, tag = 'internal scratch']
  %s0 = inlined_call_operand.vmem [shape: bf16[2,10,10,64], index: 0, kind: input, shape index: {}, may-alias: {0,1,2,3,4,5,6,7,8,9}]
  %s1 = inlined_call_operand.vmem [shape: bf16[2,10,10,64], index: 1, kind: input, shape index: {}, may-alias: {0,1,2,3,4,5,6,7,8,9}]
  %s2 = inlined_call_operand.vmem [shape: bf16[2,10,10,64], index: 2, kind: input, shape index: {}, may-alias: {0,1,2,3,4,5,6,7,8,9}]
  %s3 = inlined_call_operand.vmem [shape: bf16[2,10,10,64], index: 3, kind: input, shape index: {}, may-alias: {0,1,2,3,4,5,6,7,8,9}]
  %s4 = inlined_call_operand.vmem [shape: bf16[2,10,10,64], index: 4, kind: input, shape index: {}, may-alias: {0,1,2,3,4,5,6,7,8,9}]
  %s5 = inlined_call_operand.vmem [shape: bf16[2,10,10,64], index: 5, kind: input, shape index: {}, may-alias: {0,1,2,3,4,5,6,7,8,9}]
  %s6 = inlined_call_operand.vmem [shape: bf16[2,10,10,64], index: 6, kind: input, shape index: {}, may-alias: {0,1,2,3,4,5,6,7,8,9}]
  %s7 = inlined_call_operand.vmem [shape: bf16[2,10,10,64], index: 7, kind: input, shape index: {}, may-alias: {0,1,2,3,4,5,6,7,8,9}]
  %s8 = inlined_call_operand.vmem [shape: bf16[2,10,10,64], index: 8, kind: input, shape index: {}, may-alias: {0,1,2,3,4,5,6,7,8,9}]
  %s9 = inlined_call_operand.vmem [shape: bf16[2,10,10,64], index: 9, kind: input, shape index: {}, may-alias: {0,1,2,3,4,5,6,7,8,9}]
  %s10 = inlined_call_operand.vmem [shape: bf16[576,64], index: 10, kind: input, shape index: {}]
  %s11 = inlined_call_operand.vmem [shape: f32[2,8,8,64], index: 11, kind: output, shape index: {0}]
  %s12 = inlined_call_operand.vmem [shape: f32[2,1,1,64], index: 12, kind: output, shape index: {1}]
  %s13 = inlined_call_operand.vmem [shape: f32[2,1,1,64], index: 13, kind: output, shape index: {2}]
  %14 = xla_tuple %s11, %s12, %s13
  %s15 = sld [smem:[#allocation0]]
  $region93: #{cnn_encoder_forward.10} parent=0
    _
  %s17 = ssub.s32 1, %s15
  %s18 = scalar_select 0, %s17, %s15
  loop: start=0, step=1, limit=4
  $region2: #{cnn_encoder_forward.10} parent=0 // loop_pre_header
    _
  $region3: #{cnn_encoder_forward.10} parent=0 // loop_header
    %s20 = sphi 0, %s24
    %p21 = scmp.ge.s32.totalorder %s20, 4
    %s27 = sphi 0, %s39
    %s28 = sphi 0, %s35
    %s29 = sphi 0, %s27
    %s30 = sphi 0, %s28
    %s31 = sphi 0, %s29
    %s32 = sphi 0, %s30
    %s46 = sphi 0, %s48
    %s49 = sphi 0, %s46
    %s50 = sphi 0, %s49
    %s66 = sphi 0, %s50
    %s78 = sphi 0, %s80
    %s81 = sphi 0, %s78
    %s82 = sphi 0, %s81
    %s98 = sphi 0, %s82
    %s110 = sphi 0, %s112
    %s113 = sphi 0, %s110
    %s114 = sphi 0, %s113
    %s130 = sphi 0, %s114
    %s142 = sphi 0, %s144
    %s145 = sphi 0, %s142
    %s146 = sphi 0, %s145
    %s162 = sphi 0, %s146
    %s174 = sphi 0, %s176
    %s177 = sphi 0, %s174
    %s178 = sphi 0, %s177
    %s194 = sphi 0, %s178
    %s206 = sphi 0, %s208
    %s209 = sphi 0, %s206
    %s210 = sphi 0, %s209
    %s226 = sphi 0, %s210
    %s238 = sphi 0, %s240
    %s241 = sphi 0, %s238
    %s242 = sphi 0, %s241
    %s258 = sphi 0, %s242
    %s270 = sphi 0, %s272
    %s273 = sphi 0, %s270
    %s274 = sphi 0, %s273
    %s290 = sphi 0, %s274
    %s302 = sphi 0, %s304
    %s305 = sphi 0, %s302
    %s306 = sphi 0, %s305
    %s322 = sphi 0, %s306
    %s334 = sphi 0, %s336
    %s337 = sphi 0, %s334
    %s338 = sphi 0, %s337
    %s354 = sphi 0, %s338
    %s358 = sphi 0, %s358
    %s360 = sphi 0, %s358
    %s361 = sphi 0, %s360
    %s375 = sphi 0, %s361
    %s383 = sphi 0, %s385
    %s386 = sphi 0, %s383
    %s387 = sphi 0, %s386
    %s403 = sphi 0, %s387
    %s411 = sphi 0, %s413
    %s414 = sphi 0, %s411
    %s415 = sphi 0, %s414
    %s431 = sphi 0, %s415
    %s439 = sphi 0, %s441
    %s442 = sphi 0, %s439
    %s443 = sphi 0, %s442
    %s459 = sphi 0, %s443
  $region4: #{cnn_encoder_forward.10} parent=0 // loop_header_branch
    %23 = sbr.rel (%p21) target = $region8
  $region5: #{cnn_encoder_forward.10} parent=0 // loop_body
    %s25 = ssub.s32 %s20, 1
    %s26 = ssub.s32 %s20, 2
    %s33 = sadd.s32 1, %s28
    %p34 = scmp.ge.s32.totalorder %s33, 1
    %s35 = scalar_select %p34, 0, %s33
    %s36 = sadd.s32 1, %s27
    %s37 = scalar_select %p34, %s36, %s27
    %p38 = scmp.ge.s32.totalorder %s37, 2
    %s39 = scalar_select %p38, 0, %s37
    %s40 = smul.u32 %s28, 8
    %s41 = smul.u32 %s35, 8
    %s42 = ssub.s32 %s27, %s39
    %s43 = ssub.s32 %s40, %s41
    %s44 = sor.u32 %s42, %s43
    %p45 = scmp.eq.s32.totalorder %s44, 0
    %s47 = sadd.s32 %s46, 1
    %s48 = scalar_select %p45, %s46, %s47
    %p51 = pneg %p45
    %p52 = scmp.eq.s32.totalorder %s20, 1
    %p53 = por %p51, %p52
    %p54 = scmp.ne.s32.totalorder %s46, %s49
    %p55 = scmp.eq.s32.totalorder %s20, 0
    %p56 = por %p54, %p55
    %p57 = scmp.ne.s32.totalorder %s46, %s49
    %p58 = scmp.eq.s32.totalorder %s25, 1
    %p59 = por %p57, %p58
    %p60 = scmp.ne.s32.totalorder %s49, %s50
    %p61 = scmp.eq.s32.totalorder %s25, 0
    %p62 = por %p60, %p61
    %p63 = scmp.ne.s32.totalorder %s49, %s50
    %p64 = scmp.eq.s32.totalorder %s26, 1
    %p65 = por %p63, %p64
    %p67 = scmp.ne.s32.totalorder %s50, %s66
    %p68 = scmp.eq.s32.totalorder %s26, 0
    %p69 = por %p67, %p68
    %s70 = smul.u32 %s28, 8
    %s71 = sadd.s32 %s70, 1
    %s72 = smul.u32 %s35, 8
    %s73 = sadd.s32 %s72, 1
    %s74 = ssub.s32 %s27, %s39
    %s75 = ssub.s32 %s71, %s73
    %s76 = sor.u32 %s74, %s75
    %p77 = scmp.eq.s32.totalorder %s76, 0
    %s79 = sadd.s32 %s78, 1
    %s80 = scalar_select %p77, %s78, %s79
    %p83 = pneg %p77
    %p84 = scmp.eq.s32.totalorder %s20, 1
    %p85 = por %p83, %p84
    %p86 = scmp.ne.s32.totalorder %s78, %s81
    %p87 = scmp.eq.s32.totalorder %s20, 0
    %p88 = por %p86, %p87
    %p89 = scmp.ne.s32.totalorder %s78, %s81
    %p90 = scmp.eq.s32.totalorder %s25, 1
    %p91 = por %p89, %p90
    %p92 = scmp.ne.s32.totalorder %s81, %s82
    %p93 = scmp.eq.s32.totalorder %s25, 0
    %p94 = por %p92, %p93
    %p95 = scmp.ne.s32.totalorder %s81, %s82
    %p96 = scmp.eq.s32.totalorder %s26, 1
    %p97 = por %p95, %p96
    %p99 = scmp.ne.s32.totalorder %s82, %s98
    %p100 = scmp.eq.s32.totalorder %s26, 0
    %p101 = por %p99, %p100
    %s102 = smul.u32 %s28, 8
    %s103 = sadd.s32 %s102, 2
    %s104 = smul.u32 %s35, 8
    %s105 = sadd.s32 %s104, 2
    %s106 = ssub.s32 %s27, %s39
    %s107 = ssub.s32 %s103, %s105
    %s108 = sor.u32 %s106, %s107
    %p109 = scmp.eq.s32.totalorder %s108, 0
    %s111 = sadd.s32 %s110, 1
    %s112 = scalar_select %p109, %s110, %s111
    %p115 = pneg %p109
    %p116 = scmp.eq.s32.totalorder %s20, 1
    %p117 = por %p115, %p116
    %p118 = scmp.ne.s32.totalorder %s110, %s113
    %p119 = scmp.eq.s32.totalorder %s20, 0
    %p120 = por %p118, %p119
    %p121 = scmp.ne.s32.totalorder %s110, %s113
    %p122 = scmp.eq.s32.totalorder %s25, 1
    %p123 = por %p121, %p122
    %p124 = scmp.ne.s32.totalorder %s113, %s114
    %p125 = scmp.eq.s32.totalorder %s25, 0
    %p126 = por %p124, %p125
    %p127 = scmp.ne.s32.totalorder %s113, %s114
    %p128 = scmp.eq.s32.totalorder %s26, 1
    %p129 = por %p127, %p128
    %p131 = scmp.ne.s32.totalorder %s114, %s130
    %p132 = scmp.eq.s32.totalorder %s26, 0
    %p133 = por %p131, %p132
    %s134 = smul.u32 %s28, 8
    %s135 = sadd.s32 %s134, 3
    %s136 = smul.u32 %s35, 8
    %s137 = sadd.s32 %s136, 3
    %s138 = ssub.s32 %s27, %s39
    %s139 = ssub.s32 %s135, %s137
    %s140 = sor.u32 %s138, %s139
    %p141 = scmp.eq.s32.totalorder %s140, 0
    %s143 = sadd.s32 %s142, 1
    %s144 = scalar_select %p141, %s142, %s143
    %p147 = pneg %p141
    %p148 = scmp.eq.s32.totalorder %s20, 1
    %p149 = por %p147, %p148
    %p150 = scmp.ne.s32.totalorder %s142, %s145
    %p151 = scmp.eq.s32.totalorder %s20, 0
    %p152 = por %p150, %p151
    %p153 = scmp.ne.s32.totalorder %s142, %s145
    %p154 = scmp.eq.s32.totalorder %s25, 1
    %p155 = por %p153, %p154
    %p156 = scmp.ne.s32.totalorder %s145, %s146
    %p157 = scmp.eq.s32.totalorder %s25, 0
    %p158 = por %p156, %p157
    %p159 = scmp.ne.s32.totalorder %s145, %s146
    %p160 = scmp.eq.s32.totalorder %s26, 1
    %p161 = por %p159, %p160
    %p163 = scmp.ne.s32.totalorder %s146, %s162
    %p164 = scmp.eq.s32.totalorder %s26, 0
    %p165 = por %p163, %p164
    %s166 = smul.u32 %s28, 8
    %s167 = sadd.s32 %s166, 4
    %s168 = smul.u32 %s35, 8
    %s169 = sadd.s32 %s168, 4
    %s170 = ssub.s32 %s27, %s39
    %s171 = ssub.s32 %s167, %s169
    %s172 = sor.u32 %s170, %s171
    %p173 = scmp.eq.s32.totalorder %s172, 0
    %s175 = sadd.s32 %s174, 1
    %s176 = scalar_select %p173, %s174, %s175
    %p179 = pneg %p173
    %p180 = scmp.eq.s32.totalorder %s20, 1
    %p181 = por %p179, %p180
    %p182 = scmp.ne.s32.totalorder %s174, %s177
    %p183 = scmp.eq.s32.totalorder %s20, 0
    %p184 = por %p182, %p183
    %p185 = scmp.ne.s32.totalorder %s174, %s177
    %p186 = scmp.eq.s32.totalorder %s25, 1
    %p187 = por %p185, %p186
    %p188 = scmp.ne.s32.totalorder %s177, %s178
    %p189 = scmp.eq.s32.totalorder %s25, 0
    %p190 = por %p188, %p189
    %p191 = scmp.ne.s32.totalorder %s177, %s178
    %p192 = scmp.eq.s32.totalorder %s26, 1
    %p193 = por %p191, %p192
    %p195 = scmp.ne.s32.totalorder %s178, %s194
    %p196 = scmp.eq.s32.totalorder %s26, 0
    %p197 = por %p195, %p196
    %s198 = smul.u32 %s28, 8
    %s199 = sadd.s32 %s198, 5
    %s200 = smul.u32 %s35, 8
    %s201 = sadd.s32 %s200, 5
    %s202 = ssub.s32 %s27, %s39
    %s203 = ssub.s32 %s199, %s201
    %s204 = sor.u32 %s202, %s203
    %p205 = scmp.eq.s32.totalorder %s204, 0
    %s207 = sadd.s32 %s206, 1
    %s208 = scalar_select %p205, %s206, %s207
    %p211 = pneg %p205
    %p212 = scmp.eq.s32.totalorder %s20, 1
    %p213 = por %p211, %p212
    %p214 = scmp.ne.s32.totalorder %s206, %s209
    %p215 = scmp.eq.s32.totalorder %s20, 0
    %p216 = por %p214, %p215
    %p217 = scmp.ne.s32.totalorder %s206, %s209
    %p218 = scmp.eq.s32.totalorder %s25, 1
    %p219 = por %p217, %p218
    %p220 = scmp.ne.s32.totalorder %s209, %s210
    %p221 = scmp.eq.s32.totalorder %s25, 0
    %p222 = por %p220, %p221
    %p223 = scmp.ne.s32.totalorder %s209, %s210
    %p224 = scmp.eq.s32.totalorder %s26, 1
    %p225 = por %p223, %p224
    %p227 = scmp.ne.s32.totalorder %s210, %s226
    %p228 = scmp.eq.s32.totalorder %s26, 0
    %p229 = por %p227, %p228
    %s230 = smul.u32 %s28, 8
    %s231 = sadd.s32 %s230, 6
    %s232 = smul.u32 %s35, 8
    %s233 = sadd.s32 %s232, 6
    %s234 = ssub.s32 %s27, %s39
    %s235 = ssub.s32 %s231, %s233
    %s236 = sor.u32 %s234, %s235
    %p237 = scmp.eq.s32.totalorder %s236, 0
    %s239 = sadd.s32 %s238, 1
    %s240 = scalar_select %p237, %s238, %s239
    %p243 = pneg %p237
    %p244 = scmp.eq.s32.totalorder %s20, 1
    %p245 = por %p243, %p244
    %p246 = scmp.ne.s32.totalorder %s238, %s241
    %p247 = scmp.eq.s32.totalorder %s20, 0
    %p248 = por %p246, %p247
    %p249 = scmp.ne.s32.totalorder %s238, %s241
    %p250 = scmp.eq.s32.totalorder %s25, 1
    %p251 = por %p249, %p250
    %p252 = scmp.ne.s32.totalorder %s241, %s242
    %p253 = scmp.eq.s32.totalorder %s25, 0
    %p254 = por %p252, %p253
    %p255 = scmp.ne.s32.totalorder %s241, %s242
    %p256 = scmp.eq.s32.totalorder %s26, 1
    %p257 = por %p255, %p256
    %p259 = scmp.ne.s32.totalorder %s242, %s258
    %p260 = scmp.eq.s32.totalorder %s26, 0
    %p261 = por %p259, %p260
    %s262 = smul.u32 %s28, 8
    %s263 = sadd.s32 %s262, 7
    %s264 = smul.u32 %s35, 8
    %s265 = sadd.s32 %s264, 7
    %s266 = ssub.s32 %s27, %s39
    %s267 = ssub.s32 %s263, %s265
    %s268 = sor.u32 %s266, %s267
    %p269 = scmp.eq.s32.totalorder %s268, 0
    %s271 = sadd.s32 %s270, 1
    %s272 = scalar_select %p269, %s270, %s271
    %p275 = pneg %p269
    %p276 = scmp.eq.s32.totalorder %s20, 1
    %p277 = por %p275, %p276
    %p278 = scmp.ne.s32.totalorder %s270, %s273
    %p279 = scmp.eq.s32.totalorder %s20, 0
    %p280 = por %p278, %p279
    %p281 = scmp.ne.s32.totalorder %s270, %s273
    %p282 = scmp.eq.s32.totalorder %s25, 1
    %p283 = por %p281, %p282
    %p284 = scmp.ne.s32.totalorder %s273, %s274
    %p285 = scmp.eq.s32.totalorder %s25, 0
    %p286 = por %p284, %p285
    %p287 = scmp.ne.s32.totalorder %s273, %s274
    %p288 = scmp.eq.s32.totalorder %s26, 1
    %p289 = por %p287, %p288
    %p291 = scmp.ne.s32.totalorder %s274, %s290
    %p292 = scmp.eq.s32.totalorder %s26, 0
    %p293 = por %p291, %p292
    %s294 = smul.u32 %s28, 8
    %s295 = sadd.s32 %s294, 8
    %s296 = smul.u32 %s35, 8
    %s297 = sadd.s32 %s296, 8
    %s298 = ssub.s32 %s27, %s39
    %s299 = ssub.s32 %s295, %s297
    %s300 = sor.u32 %s298, %s299
    %p301 = scmp.eq.s32.totalorder %s300, 0
    %s303 = sadd.s32 %s302, 1
    %s304 = scalar_select %p301, %s302, %s303
    %p307 = pneg %p301
    %p308 = scmp.eq.s32.totalorder %s20, 1
    %p309 = por %p307, %p308
    %p310 = scmp.ne.s32.totalorder %s302, %s305
    %p311 = scmp.eq.s32.totalorder %s20, 0
    %p312 = por %p310, %p311
    %p313 = scmp.ne.s32.totalorder %s302, %s305
    %p314 = scmp.eq.s32.totalorder %s25, 1
    %p315 = por %p313, %p314
    %p316 = scmp.ne.s32.totalorder %s305, %s306
    %p317 = scmp.eq.s32.totalorder %s25, 0
    %p318 = por %p316, %p317
    %p319 = scmp.ne.s32.totalorder %s305, %s306
    %p320 = scmp.eq.s32.totalorder %s26, 1
    %p321 = por %p319, %p320
    %p323 = scmp.ne.s32.totalorder %s306, %s322
    %p324 = scmp.eq.s32.totalorder %s26, 0
    %p325 = por %p323, %p324
    %s326 = smul.u32 %s28, 8
    %s327 = sadd.s32 %s326, 9
    %s328 = smul.u32 %s35, 8
    %s329 = sadd.s32 %s328, 9
    %s330 = ssub.s32 %s27, %s39
    %s331 = ssub.s32 %s327, %s329
    %s332 = sor.u32 %s330, %s331
    %p333 = scmp.eq.s32.totalorder %s332, 0
    %s335 = sadd.s32 %s334, 1
    %s336 = scalar_select %p333, %s334, %s335
    %p339 = pneg %p333
    %p340 = scmp.eq.s32.totalorder %s20, 1
    %p341 = por %p339, %p340
    %p342 = scmp.ne.s32.totalorder %s334, %s337
    %p343 = scmp.eq.s32.totalorder %s20, 0
    %p344 = por %p342, %p343
    %p345 = scmp.ne.s32.totalorder %s334, %s337
    %p346 = scmp.eq.s32.totalorder %s25, 1
    %p347 = por %p345, %p346
    %p348 = scmp.ne.s32.totalorder %s337, %s338
    %p349 = scmp.eq.s32.totalorder %s25, 0
    %p350 = por %p348, %p349
    %p351 = scmp.ne.s32.totalorder %s337, %s338
    %p352 = scmp.eq.s32.totalorder %s26, 1
    %p353 = por %p351, %p352
    %p355 = scmp.ne.s32.totalorder %s338, %s354
    %p356 = scmp.eq.s32.totalorder %s26, 0
    %p357 = por %p355, %p356
    %s359 = sadd.s32 %s358, 1
    %p362 = scmp.eq.s32.totalorder %s20, 1
    %p363 = scmp.ne.s32.totalorder %s358, %s360
    %p364 = scmp.eq.s32.totalorder %s20, 0
    %p365 = por %p363, %p364
    %p366 = scmp.ne.s32.totalorder %s358, %s360
    %p367 = scmp.eq.s32.totalorder %s25, 1
    %p368 = por %p366, %p367
    %p369 = scmp.ne.s32.totalorder %s360, %s361
    %p370 = scmp.eq.s32.totalorder %s25, 0
    %p371 = por %p369, %p370
    %p372 = scmp.ne.s32.totalorder %s360, %s361
    %p373 = scmp.eq.s32.totalorder %s26, 1
    %p374 = por %p372, %p373
    %p376 = scmp.ne.s32.totalorder %s361, %s375
    %p377 = scmp.eq.s32.totalorder %s26, 0
    %p378 = por %p376, %p377
    %s379 = ssub.s32 %s27, %s39
    %s380 = ssub.s32 %s28, %s35
    %s381 = sor.u32 %s379, %s380
    %p382 = scmp.eq.s32.totalorder %s381, 0
    %s384 = sadd.s32 %s383, 1
    %s385 = scalar_select %p382, %s383, %s384
    %p388 = pneg %p382
    %p389 = scmp.eq.s32.totalorder %s20, 1
    %p390 = por %p388, %p389
    %p391 = scmp.ne.s32.totalorder %s383, %s386
    %p392 = scmp.eq.s32.totalorder %s20, 0
    %p393 = por %p391, %p392
    %p394 = scmp.ne.s32.totalorder %s383, %s386
    %p395 = scmp.eq.s32.totalorder %s25, 1
    %p396 = por %p394, %p395
    %p397 = scmp.ne.s32.totalorder %s386, %s387
    %p398 = scmp.eq.s32.totalorder %s25, 0
    %p399 = por %p397, %p398
    %p400 = scmp.ne.s32.totalorder %s386, %s387
    %p401 = scmp.eq.s32.totalorder %s26, 1
    %p402 = por %p400, %p401
    %p404 = scmp.ne.s32.totalorder %s387, %s403
    %p405 = scmp.eq.s32.totalorder %s26, 0
    %p406 = por %p404, %p405
    %s407 = ssub.s32 %s27, %s39
    %s408 = ssub.s32 %s28, %s35
    %s409 = sor.u32 %s407, %s408
    %p410 = scmp.eq.s32.totalorder %s409, 0
    %s412 = sadd.s32 %s411, 1
    %s413 = scalar_select %p410, %s411, %s412
    %p416 = pneg %p410
    %p417 = scmp.eq.s32.totalorder %s20, 1
    %p418 = por %p416, %p417
    %p419 = scmp.ne.s32.totalorder %s411, %s414
    %p420 = scmp.eq.s32.totalorder %s20, 0
    %p421 = por %p419, %p420
    %p422 = scmp.ne.s32.totalorder %s411, %s414
    %p423 = scmp.eq.s32.totalorder %s25, 1
    %p424 = por %p422, %p423
    %p425 = scmp.ne.s32.totalorder %s414, %s415
    %p426 = scmp.eq.s32.totalorder %s25, 0
    %p427 = por %p425, %p426
    %p428 = scmp.ne.s32.totalorder %s414, %s415
    %p429 = scmp.eq.s32.totalorder %s26, 1
    %p430 = por %p428, %p429
    %p432 = scmp.ne.s32.totalorder %s415, %s431
    %p433 = scmp.eq.s32.totalorder %s26, 0
    %p434 = por %p432, %p433
    %s435 = ssub.s32 %s27, %s39
    %s436 = ssub.s32 %s28, %s35
    %s437 = sor.u32 %s435, %s436
    %p438 = scmp.eq.s32.totalorder %s437, 0
    %s440 = sadd.s32 %s439, 1
    %s441 = scalar_select %p438, %s439, %s440
    %p444 = pneg %p438
    %p445 = scmp.eq.s32.totalorder %s20, 1
    %p446 = por %p444, %p445
    %p447 = scmp.ne.s32.totalorder %s439, %s442
    %p448 = scmp.eq.s32.totalorder %s20, 0
    %p449 = por %p447, %p448
    %p450 = scmp.ne.s32.totalorder %s439, %s442
    %p451 = scmp.eq.s32.totalorder %s25, 1
    %p452 = por %p450, %p451
    %p453 = scmp.ne.s32.totalorder %s442, %s443
    %p454 = scmp.eq.s32.totalorder %s25, 0
    %p455 = por %p453, %p454
    %p456 = scmp.ne.s32.totalorder %s442, %s443
    %p457 = scmp.eq.s32.totalorder %s26, 1
    %p458 = por %p456, %p457
    %p460 = scmp.ne.s32.totalorder %s443, %s459
    %p461 = scmp.eq.s32.totalorder %s26, 0
    %p462 = por %p460, %p461
    %p463 = scmp.le.s32.totalorder 1, %s20
    %p464 = scmp.lt.s32.totalorder %s20, 3
    %p465 = pnand %p463, %p464
    %p466 = pneg %p465
    // Predicated region
    $region9: #{cnn_encoder_forward.10} parent=5 // pred_check
      _
    $region10: #{cnn_encoder_forward.10} parent=5 // pred_check_branch
      %468 = sbr.rel (%p465) target = $region12
    $region11: #{cnn_encoder_forward.10} parent=5 // pred_region
      %s469 = ssub.s32 %s20, 1
      // Predicated region
      $region13: #{cnn_encoder_forward.10} parent=11 // pred_check
        %p470 = pneg %p371
      $region14: #{cnn_encoder_forward.10} parent=11 // pred_check_branch
        %472 = sbr.rel (%p470) target = $region16
      $region15: #{cnn_encoder_forward.10} parent=11 // pred_region
        _
      $region16: #{cnn_encoder_forward.10} parent=11 // pred_fallthru
        _
    $region12: #{cnn_encoder_forward.10} parent=5 // pred_fallthru
      _
    %p473 = scmp.lt.s32.totalorder %s20, 2
    // Predicated region
    $region17: #{cnn_encoder_forward.10} parent=5 // pred_check
      %p474 = pneg %p473
    $region18: #{cnn_encoder_forward.10} parent=5 // pred_check_branch
      %476 = sbr.rel (%p474) target = $region20
    $region19: #{cnn_encoder_forward.10} parent=5 // pred_region
      // Predicated region
      $region21: #{cnn_encoder_forward.10} parent=19 // pred_check
        %p477 = pneg %p56
      $region22: #{cnn_encoder_forward.10} parent=19 // pred_check_branch
        %479 = sbr.rel (%p477) target = $region24
      $region23: #{cnn_encoder_forward.10} parent=19 // pred_region
        %s480 = smul.u32 %s28, 8
        %p481 = scmp.lt.s32.totalorder %s27, 1
        %s482 = scalar_select %p481, %s27, 1
        %p483 = scmp.lt.s32.totalorder %s480, 9
        %s484 = scalar_select %p483, %s480, 9
        %s485 = smul.addr %s484, 2
        %s486 = smul.addr %s482, 20
        %s487 = sadd.s32 %s485, %s486
        %s488 = smul.addr %s487, 4
        %s489 = scalar_lea.vmem %s0, %s488
        %s490 = smul.u32 %s28, 8
      $region24: #{cnn_encoder_forward.10} parent=19 // pred_fallthru
        _
      // Predicated region
      $region25: #{cnn_encoder_forward.10} parent=19 // pred_check
        %p491 = pneg %p88
      $region26: #{cnn_encoder_forward.10} parent=19 // pred_check_branch
        %493 = sbr.rel (%p491) target = $region28
      $region27: #{cnn_encoder_forward.10} parent=19 // pred_region
        %s494 = smul.u32 %s28, 8
        %s495 = sadd.s32 %s494, 1
        %p496 = scmp.lt.s32.totalorder %s27, 1
        %s497 = scalar_select %p496, %s27, 1
        %p498 = scmp.lt.s32.totalorder %s495, 9
        %s499 = scalar_select %p498, %s495, 9
        %s500 = smul.addr %s499, 2
        %s501 = smul.addr %s497, 20
        %s502 = sadd.s32 %s500, %s501
        %s503 = smul.addr %s502, 4
        %s504 = scalar_lea.vmem %s1, %s503
        %s505 = smul.u32 %s28, 8
        %s506 = sadd.s32 %s505, 1
      $region28: #{cnn_encoder_forward.10} parent=19 // pred_fallthru
        _
      // Predicated region
      $region29: #{cnn_encoder_forward.10} parent=19 // pred_check
        %p507 = pneg %p120
      $region30: #{cnn_encoder_forward.10} parent=19 // pred_check_branch
        %509 = sbr.rel (%p507) target = $region32
      $region31: #{cnn_encoder_forward.10} parent=19 // pred_region
        %s510 = smul.u32 %s28, 8
        %s511 = sadd.s32 %s510, 2
        %p512 = scmp.lt.s32.totalorder %s27, 1
        %s513 = scalar_select %p512, %s27, 1
        %p514 = scmp.lt.s32.totalorder %s511, 9
        %s515 = scalar_select %p514, %s511, 9
        %s516 = smul.addr %s515, 2
        %s517 = smul.addr %s513, 20
        %s518 = sadd.s32 %s516, %s517
        %s519 = smul.addr %s518, 4
        %s520 = scalar_lea.vmem %s2, %s519
        %s521 = smul.u32 %s28, 8
        %s522 = sadd.s32 %s521, 2
      $region32: #{cnn_encoder_forward.10} parent=19 // pred_fallthru
        _
      // Predicated region
      $region33: #{cnn_encoder_forward.10} parent=19 // pred_check
        %p523 = pneg %p152
      $region34: #{cnn_encoder_forward.10} parent=19 // pred_check_branch
        %525 = sbr.rel (%p523) target = $region36
      $region35: #{cnn_encoder_forward.10} parent=19 // pred_region
        %s526 = smul.u32 %s28, 8
        %s527 = sadd.s32 %s526, 3
        %p528 = scmp.lt.s32.totalorder %s27, 1
        %s529 = scalar_select %p528, %s27, 1
        %p530 = scmp.lt.s32.totalorder %s527, 9
        %s531 = scalar_select %p530, %s527, 9
        %s532 = smul.addr %s531, 2
        %s533 = smul.addr %s529, 20
        %s534 = sadd.s32 %s532, %s533
        %s535 = smul.addr %s534, 4
        %s536 = scalar_lea.vmem %s3, %s535
        %s537 = smul.u32 %s28, 8
        %s538 = sadd.s32 %s537, 3
      $region36: #{cnn_encoder_forward.10} parent=19 // pred_fallthru
        _
      // Predicated region
      $region37: #{cnn_encoder_forward.10} parent=19 // pred_check
        %p539 = pneg %p184
      $region38: #{cnn_encoder_forward.10} parent=19 // pred_check_branch
        %541 = sbr.rel (%p539) target = $region40
      $region39: #{cnn_encoder_forward.10} parent=19 // pred_region
        %s542 = smul.u32 %s28, 8
        %s543 = sadd.s32 %s542, 4
        %p544 = scmp.lt.s32.totalorder %s27, 1
        %s545 = scalar_select %p544, %s27, 1
        %p546 = scmp.lt.s32.totalorder %s543, 9
        %s547 = scalar_select %p546, %s543, 9
        %s548 = smul.addr %s547, 2
        %s549 = smul.addr %s545, 20
        %s550 = sadd.s32 %s548, %s549
        %s551 = smul.addr %s550, 4
        %s552 = scalar_lea.vmem %s4, %s551
        %s553 = smul.u32 %s28, 8
        %s554 = sadd.s32 %s553, 4
      $region40: #{cnn_encoder_forward.10} parent=19 // pred_fallthru
        _
      // Predicated region
      $region41: #{cnn_encoder_forward.10} parent=19 // pred_check
        %p555 = pneg %p216
      $region42: #{cnn_encoder_forward.10} parent=19 // pred_check_branch
        %557 = sbr.rel (%p555) target = $region44
      $region43: #{cnn_encoder_forward.10} parent=19 // pred_region
        %s558 = smul.u32 %s28, 8
        %s559 = sadd.s32 %s558, 5
        %p560 = scmp.lt.s32.totalorder %s27, 1
        %s561 = scalar_select %p560, %s27, 1
        %p562 = scmp.lt.s32.totalorder %s559, 9
        %s563 = scalar_select %p562, %s559, 9
        %s564 = smul.addr %s563, 2
        %s565 = smul.addr %s561, 20
        %s566 = sadd.s32 %s564, %s565
        %s567 = smul.addr %s566, 4
        %s568 = scalar_lea.vmem %s5, %s567
        %s569 = smul.u32 %s28, 8
        %s570 = sadd.s32 %s569, 5
      $region44: #{cnn_encoder_forward.10} parent=19 // pred_fallthru
        _
      // Predicated region
      $region45: #{cnn_encoder_forward.10} parent=19 // pred_check
        %p571 = pneg %p248
      $region46: #{cnn_encoder_forward.10} parent=19 // pred_check_branch
        %573 = sbr.rel (%p571) target = $region48
      $region47: #{cnn_encoder_forward.10} parent=19 // pred_region
        %s574 = smul.u32 %s28, 8
        %s575 = sadd.s32 %s574, 6
        %p576 = scmp.lt.s32.totalorder %s27, 1
        %s577 = scalar_select %p576, %s27, 1
        %p578 = scmp.lt.s32.totalorder %s575, 9
        %s579 = scalar_select %p578, %s575, 9
        %s580 = smul.addr %s579, 2
        %s581 = smul.addr %s577, 20
        %s582 = sadd.s32 %s580, %s581
        %s583 = smul.addr %s582, 4
        %s584 = scalar_lea.vmem %s6, %s583
        %s585 = smul.u32 %s28, 8
        %s586 = sadd.s32 %s585, 6
      $region48: #{cnn_encoder_forward.10} parent=19 // pred_fallthru
        _
      // Predicated region
      $region49: #{cnn_encoder_forward.10} parent=19 // pred_check
        %p587 = pneg %p280
      $region50: #{cnn_encoder_forward.10} parent=19 // pred_check_branch
        %589 = sbr.rel (%p587) target = $region52
      $region51: #{cnn_encoder_forward.10} parent=19 // pred_region
        %s590 = smul.u32 %s28, 8
        %s591 = sadd.s32 %s590, 7
        %p592 = scmp.lt.s32.totalorder %s27, 1
        %s593 = scalar_select %p592, %s27, 1
        %p594 = scmp.lt.s32.totalorder %s591, 9
        %s595 = scalar_select %p594, %s591, 9
        %s596 = smul.addr %s595, 2
        %s597 = smul.addr %s593, 20
        %s598 = sadd.s32 %s596, %s597
        %s599 = smul.addr %s598, 4
        %s600 = scalar_lea.vmem %s7, %s599
        %s601 = smul.u32 %s28, 8
        %s602 = sadd.s32 %s601, 7
      $region52: #{cnn_encoder_forward.10} parent=19 // pred_fallthru
        _
      // Predicated region
      $region53: #{cnn_encoder_forward.10} parent=19 // pred_check
        %p603 = pneg %p312
      $region54: #{cnn_encoder_forward.10} parent=19 // pred_check_branch
        %605 = sbr.rel (%p603) target = $region56
      $region55: #{cnn_encoder_forward.10} parent=19 // pred_region
        %s606 = smul.u32 %s28, 8
        %s607 = sadd.s32 %s606, 8
        %p608 = scmp.lt.s32.totalorder %s27, 1
        %s609 = scalar_select %p608, %s27, 1
        %p610 = scmp.lt.s32.totalorder %s607, 9
        %s611 = scalar_select %p610, %s607, 9
        %s612 = smul.addr %s611, 2
        %s613 = smul.addr %s609, 20
        %s614 = sadd.s32 %s612, %s613
        %s615 = smul.addr %s614, 4
        %s616 = scalar_lea.vmem %s8, %s615
        %s617 = smul.u32 %s28, 8
        %s618 = sadd.s32 %s617, 8
      $region56: #{cnn_encoder_forward.10} parent=19 // pred_fallthru
        _
      // Predicated region
      $region57: #{cnn_encoder_forward.10} parent=19 // pred_check
        %p619 = pneg %p344
      $region58: #{cnn_encoder_forward.10} parent=19 // pred_check_branch
        %621 = sbr.rel (%p619) target = $region60
      $region59: #{cnn_encoder_forward.10} parent=19 // pred_region
        %s622 = smul.u32 %s28, 8
        %s623 = sadd.s32 %s622, 9
        %p624 = scmp.lt.s32.totalorder %s27, 1
        %s625 = scalar_select %p624, %s27, 1
        %p626 = scmp.lt.s32.totalorder %s623, 9
        %s627 = scalar_select %p626, %s623, 9
        %s628 = smul.addr %s627, 2
        %s629 = smul.addr %s625, 20
        %s630 = sadd.s32 %s628, %s629
        %s631 = smul.addr %s630, 4
        %s632 = scalar_lea.vmem %s9, %s631
        %s633 = smul.u32 %s28, 8
        %s634 = sadd.s32 %s633, 9
      $region60: #{cnn_encoder_forward.10} parent=19 // pred_fallthru
        _
    $region20: #{cnn_encoder_forward.10} parent=5 // pred_fallthru
      _
    %p635 = scmp.le.s32.totalorder 1, %s20
    %p636 = scmp.lt.s32.totalorder %s20, 3
    %p637 = pnand %p635, %p636
    %p638 = pneg %p637
    // Predicated region
    $region61: #{cnn_encoder_forward.10} parent=5 // pred_check
      _
    $region62: #{cnn_encoder_forward.10} parent=5 // pred_check_branch
      %640 = sbr.rel (%p637) target = $region64
    $region63: #{cnn_encoder_forward.10} parent=5 // pred_region
      %s641 = ssub.s32 %s20, 1
      %s642 = smul.u32 %s30, 8
      %p643 = scmp.lt.s32.totalorder %s29, 1
      %s644 = scalar_select %p643, %s29, 1
      %p645 = scmp.lt.s32.totalorder %s642, 9
      %s646 = scalar_select %p645, %s642, 9
      %s647 = smul.addr %s646, 2
      %s648 = smul.addr %s644, 20
      %s649 = sadd.s32 %s647, %s648
      %s650 = smul.addr %s649, 4
      %s651 = scalar_lea.vmem %s0, %s650
      %p652 = pneg %p62
      %p653 = pneg %p59
      %s654 = smul.u32 %s30, 8
      %s655 = sadd.s32 %s654, 1
      %p656 = scmp.lt.s32.totalorder %s29, 1
      %s657 = scalar_select %p656, %s29, 1
      %p658 = scmp.lt.s32.totalorder %s655, 9
      %s659 = scalar_select %p658, %s655, 9
      %s660 = smul.addr %s659, 2
      %s661 = smul.addr %s657, 20
      %s662 = sadd.s32 %s660, %s661
      %s663 = smul.addr %s662, 4
      %s664 = scalar_lea.vmem %s1, %s663
      %p665 = pneg %p94
      %p666 = pneg %p91
      %s667 = smul.u32 %s30, 8
      %s668 = sadd.s32 %s667, 2
      %p669 = scmp.lt.s32.totalorder %s29, 1
      %s670 = scalar_select %p669, %s29, 1
      %p671 = scmp.lt.s32.totalorder %s668, 9
      %s672 = scalar_select %p671, %s668, 9
      %s673 = smul.addr %s672, 2
      %s674 = smul.addr %s670, 20
      %s675 = sadd.s32 %s673, %s674
      %s676 = smul.addr %s675, 4
      %s677 = scalar_lea.vmem %s2, %s676
      %p678 = pneg %p126
      %p679 = pneg %p123
      %s680 = smul.u32 %s30, 8
      %s681 = sadd.s32 %s680, 3
      %p682 = scmp.lt.s32.totalorder %s29, 1
      %s683 = scalar_select %p682, %s29, 1
      %p684 = scmp.lt.s32.totalorder %s681, 9
      %s685 = scalar_select %p684, %s681, 9
      %s686 = smul.addr %s685, 2
      %s687 = smul.addr %s683, 20
      %s688 = sadd.s32 %s686, %s687
      %s689 = smul.addr %s688, 4
      %s690 = scalar_lea.vmem %s3, %s689
      %p691 = pneg %p158
      %p692 = pneg %p155
      %s693 = smul.u32 %s30, 8
      %s694 = sadd.s32 %s693, 4
      %p695 = scmp.lt.s32.totalorder %s29, 1
      %s696 = scalar_select %p695, %s29, 1
      %p697 = scmp.lt.s32.totalorder %s694, 9
      %s698 = scalar_select %p697, %s694, 9
      %s699 = smul.addr %s698, 2
      %s700 = smul.addr %s696, 20
      %s701 = sadd.s32 %s699, %s700
      %s702 = smul.addr %s701, 4
      %s703 = scalar_lea.vmem %s4, %s702
      %p704 = pneg %p190
      %p705 = pneg %p187
      %s706 = smul.u32 %s30, 8
      %s707 = sadd.s32 %s706, 5
      %p708 = scmp.lt.s32.totalorder %s29, 1
      %s709 = scalar_select %p708, %s29, 1
      %p710 = scmp.lt.s32.totalorder %s707, 9
      %s711 = scalar_select %p710, %s707, 9
      %s712 = smul.addr %s711, 2
      %s713 = smul.addr %s709, 20
      %s714 = sadd.s32 %s712, %s713
      %s715 = smul.addr %s714, 4
      %s716 = scalar_lea.vmem %s5, %s715
      %p717 = pneg %p222
      %p718 = pneg %p219
      %s719 = smul.u32 %s30, 8
      %s720 = sadd.s32 %s719, 6
      %p721 = scmp.lt.s32.totalorder %s29, 1
      %s722 = scalar_select %p721, %s29, 1
      %p723 = scmp.lt.s32.totalorder %s720, 9
      %s724 = scalar_select %p723, %s720, 9
      %s725 = smul.addr %s724, 2
      %s726 = smul.addr %s722, 20
      %s727 = sadd.s32 %s725, %s726
      %s728 = smul.addr %s727, 4
      %s729 = scalar_lea.vmem %s6, %s728
      %p730 = pneg %p254
      %p731 = pneg %p251
      %s732 = smul.u32 %s30, 8
      %s733 = sadd.s32 %s732, 7
      %p734 = scmp.lt.s32.totalorder %s29, 1
      %s735 = scalar_select %p734, %s29, 1
      %p736 = scmp.lt.s32.totalorder %s733, 9
      %s737 = scalar_select %p736, %s733, 9
      %s738 = smul.addr %s737, 2
      %s739 = smul.addr %s735, 20
      %s740 = sadd.s32 %s738, %s739
      %s741 = smul.addr %s740, 4
      %s742 = scalar_lea.vmem %s7, %s741
      %p743 = pneg %p286
      %p744 = pneg %p283
      %s745 = smul.u32 %s30, 8
      %s746 = sadd.s32 %s745, 8
      %p747 = scmp.lt.s32.totalorder %s29, 1
      %s748 = scalar_select %p747, %s29, 1
      %p749 = scmp.lt.s32.totalorder %s746, 9
      %s750 = scalar_select %p749, %s746, 9
      %s751 = smul.addr %s750, 2
      %s752 = smul.addr %s748, 20
      %s753 = sadd.s32 %s751, %s752
      %s754 = smul.addr %s753, 4
      %s755 = scalar_lea.vmem %s8, %s754
      %p756 = pneg %p318
      %p757 = pneg %p315
      %s758 = smul.u32 %s30, 8
      %s759 = sadd.s32 %s758, 9
      %p760 = scmp.lt.s32.totalorder %s29, 1
      %s761 = scalar_select %p760, %s29, 1
      %p762 = scmp.lt.s32.totalorder %s759, 9
      %s763 = scalar_select %p762, %s759, 9
      %s764 = smul.addr %s763, 2
      %s765 = smul.addr %s761, 20
      %s766 = sadd.s32 %s764, %s765
      %s767 = smul.addr %s766, 4
      %s768 = scalar_lea.vmem %s9, %s767
      %p769 = pneg %p350
      %p770 = pneg %p347
      %p771 = pneg %p371
      %p772 = pneg %p368
      %p773 = pneg %p399
      %p774 = pneg %p396
      %s775 = smul.u32 8, %s30
      %p776 = scmp.lt.s32.totalorder %s29, 1
      %s777 = scalar_select %p776, %s29, 1
      %p778 = scmp.lt.s32.totalorder %s775, 7
      %s779 = scalar_select %p778, %s775, 7
      %s780 = smul.addr %s777, 8
      %s781 = sadd.s32 %s779, %s780
      %s782 = smul.addr %s781, 8
      %s783 = scalar_lea.vmem %s11, %s782
      %p784 = pneg %p427
      %p785 = pneg %p424
      %p786 = scmp.lt.s32.totalorder %s29, 1
      %s787 = scalar_select %p786, %s29, 1
      %p788 = scmp.lt.s32.totalorder %s30, 0
      %s789 = scalar_select %p788, %s30, 0
      %s790 = sadd.s32 %s789, %s787
      %s791 = scalar_lea.vmem %s12, %s790
      %p792 = pneg %p455
      %p793 = pneg %p452
      %p794 = scmp.lt.s32.totalorder %s29, 1
      %s795 = scalar_select %p794, %s29, 1
      %p796 = scmp.lt.s32.totalorder %s30, 0
      %s797 = scalar_select %p796, %s30, 0
      %s798 = sadd.s32 %s797, %s795
      %s799 = scalar_lea.vmem %s13, %s798
      %s800 = smul.u32 %s30, 8
      %p801 = scmp.lt.s32.totalorder %s29, 1
      %s802 = scalar_select %p801, %s29, 1
      %p803 = scmp.lt.s32.totalorder %s800, 9
      %s804 = scalar_select %p803, %s800, 9
      %s805 = smul.addr %s804, 2
      %s806 = smul.addr %s802, 20
      %s807 = sadd.s32 %s805, %s806
      %s808 = smul.addr %s807, 4
      %s809 = scalar_lea.vmem %s0, %s808
      %s810 = smul.u32 %s30, 8
      %s811 = smul.u32 %s30, 8
      %s812 = sadd.s32 %s811, 1
      %p813 = scmp.lt.s32.totalorder %s29, 1
      %s814 = scalar_select %p813, %s29, 1
      %p815 = scmp.lt.s32.totalorder %s812, 9
      %s816 = scalar_select %p815, %s812, 9
      %s817 = smul.addr %s816, 2
      %s818 = smul.addr %s814, 20
      %s819 = sadd.s32 %s817, %s818
      %s820 = smul.addr %s819, 4
      %s821 = scalar_lea.vmem %s1, %s820
      %s822 = smul.u32 %s30, 8
      %s823 = sadd.s32 %s822, 1
      %s824 = smul.u32 %s30, 8
      %s825 = sadd.s32 %s824, 2
      %p826 = scmp.lt.s32.totalorder %s29, 1
      %s827 = scalar_select %p826, %s29, 1
      %p828 = scmp.lt.s32.totalorder %s825, 9
      %s829 = scalar_select %p828, %s825, 9
      %s830 = smul.addr %s829, 2
      %s831 = smul.addr %s827, 20
      %s832 = sadd.s32 %s830, %s831
      %s833 = smul.addr %s832, 4
      %s834 = scalar_lea.vmem %s2, %s833
      %s835 = smul.u32 %s30, 8
      %s836 = sadd.s32 %s835, 2
      %s837 = smul.u32 %s30, 8
      %s838 = sadd.s32 %s837, 3
      %p839 = scmp.lt.s32.totalorder %s29, 1
      %s840 = scalar_select %p839, %s29, 1
      %p841 = scmp.lt.s32.totalorder %s838, 9
      %s842 = scalar_select %p841, %s838, 9
      %s843 = smul.addr %s842, 2
      %s844 = smul.addr %s840, 20
      %s845 = sadd.s32 %s843, %s844
      %s846 = smul.addr %s845, 4
      %s847 = scalar_lea.vmem %s3, %s846
      %s848 = smul.u32 %s30, 8
      %s849 = sadd.s32 %s848, 3
      %s850 = smul.u32 %s30, 8
      %s851 = sadd.s32 %s850, 4
      %p852 = scmp.lt.s32.totalorder %s29, 1
      %s853 = scalar_select %p852, %s29, 1
      %p854 = scmp.lt.s32.totalorder %s851, 9
      %s855 = scalar_select %p854, %s851, 9
      %s856 = smul.addr %s855, 2
      %s857 = smul.addr %s853, 20
      %s858 = sadd.s32 %s856, %s857
      %s859 = smul.addr %s858, 4
      %s860 = scalar_lea.vmem %s4, %s859
      %s861 = smul.u32 %s30, 8
      %s862 = sadd.s32 %s861, 4
      %s863 = smul.u32 %s30, 8
      %s864 = sadd.s32 %s863, 5
      %p865 = scmp.lt.s32.totalorder %s29, 1
      %s866 = scalar_select %p865, %s29, 1
      %p867 = scmp.lt.s32.totalorder %s864, 9
      %s868 = scalar_select %p867, %s864, 9
      %s869 = smul.addr %s868, 2
      %s870 = smul.addr %s866, 20
      %s871 = sadd.s32 %s869, %s870
      %s872 = smul.addr %s871, 4
      %s873 = scalar_lea.vmem %s5, %s872
      %s874 = smul.u32 %s30, 8
      %s875 = sadd.s32 %s874, 5
      %s876 = smul.u32 %s30, 8
      %s877 = sadd.s32 %s876, 6
      %p878 = scmp.lt.s32.totalorder %s29, 1
      %s879 = scalar_select %p878, %s29, 1
      %p880 = scmp.lt.s32.totalorder %s877, 9
      %s881 = scalar_select %p880, %s877, 9
      %s882 = smul.addr %s881, 2
      %s883 = smul.addr %s879, 20
      %s884 = sadd.s32 %s882, %s883
      %s885 = smul.addr %s884, 4
      %s886 = scalar_lea.vmem %s6, %s885
      %s887 = smul.u32 %s30, 8
      %s888 = sadd.s32 %s887, 6
      %s889 = smul.u32 %s30, 8
      %s890 = sadd.s32 %s889, 7
      %p891 = scmp.lt.s32.totalorder %s29, 1
      %s892 = scalar_select %p891, %s29, 1
      %p893 = scmp.lt.s32.totalorder %s890, 9
      %s894 = scalar_select %p893, %s890, 9
      %s895 = smul.addr %s894, 2
      %s896 = smul.addr %s892, 20
      %s897 = sadd.s32 %s895, %s896
      %s898 = smul.addr %s897, 4
      %s899 = scalar_lea.vmem %s7, %s898
      %s900 = smul.u32 %s30, 8
      %s901 = sadd.s32 %s900, 7
      %s902 = smul.u32 %s30, 8
      %s903 = sadd.s32 %s902, 8
      %p904 = scmp.lt.s32.totalorder %s29, 1
      %s905 = scalar_select %p904, %s29, 1
      %p906 = scmp.lt.s32.totalorder %s903, 9
      %s907 = scalar_select %p906, %s903, 9
      %s908 = smul.addr %s907, 2
      %s909 = smul.addr %s905, 20
      %s910 = sadd.s32 %s908, %s909
      %s911 = smul.addr %s910, 4
      %s912 = scalar_lea.vmem %s8, %s911
      %s913 = smul.u32 %s30, 8
      %s914 = sadd.s32 %s913, 8
      %s915 = smul.u32 %s30, 8
      %s916 = sadd.s32 %s915, 9
      %p917 = scmp.lt.s32.totalorder %s29, 1
      %s918 = scalar_select %p917, %s29, 1
      %p919 = scmp.lt.s32.totalorder %s916, 9
      %s920 = scalar_select %p919, %s916, 9
      %s921 = smul.addr %s920, 2
      %s922 = smul.addr %s918, 20
      %s923 = sadd.s32 %s921, %s922
      %s924 = smul.addr %s923, 4
      %s925 = scalar_lea.vmem %s9, %s924
      %s926 = smul.u32 %s30, 8
      %s927 = sadd.s32 %s926, 9
      %s928 = smul.u32 8, %s30
      %p929 = scmp.lt.s32.totalorder %s29, 1
      %s930 = scalar_select %p929, %s29, 1
      %p931 = scmp.lt.s32.totalorder %s928, 7
      %s932 = scalar_select %p931, %s928, 7
      %s933 = smul.addr %s930, 8
      %s934 = sadd.s32 %s932, %s933
      %s935 = smul.addr %s934, 8
      %s936 = scalar_lea.vmem %s11, %s935
      %s937 = smul.u32 8, %s30
      %p938 = scmp.lt.s32.totalorder %s29, 1
      %s939 = scalar_select %p938, %s29, 1
      %p940 = scmp.lt.s32.totalorder %s30, 0
      %s941 = scalar_select %p940, %s30, 0
      %s942 = sadd.s32 %s941, %s939
      %s943 = scalar_lea.vmem %s12, %s942
      %p944 = scmp.lt.s32.totalorder %s29, 1
      %s945 = scalar_select %p944, %s29, 1
      %p946 = scmp.lt.s32.totalorder %s30, 0
      %s947 = scalar_select %p946, %s30, 0
      %s948 = sadd.s32 %s947, %s945
      %s949 = scalar_lea.vmem %s13, %s948
      %v951 = vld [vmem:[%s10] sm:$0xf]
      %v952 = vld [vmem:[%s10 + $0x4] sm:$0xf]
      %v953 = vld [vmem:[%s10 + $0x8] sm:$0xf]
      %v954 = vld [vmem:[%s10 + $0xc] sm:$0xf]
      %v955 = vld [vmem:[%s10 + $0x10] sm:$0xf]
      %v956 = vld [vmem:[%s10 + $0x14] sm:$0xf]
      %v957 = vld [vmem:[%s10 + $0x18] sm:$0xf]
      %v958 = vld [vmem:[%s10 + $0x1c] sm:$0xf]
      %v959 = vld [vmem:[%s10 + $0x20] sm:$0xf]
      %v960 = vld [vmem:[%s10 + $0x24] sm:$0xf]
      %v961 = vld [vmem:[%s10 + $0x28] sm:$0xf]
      %v962 = vld [vmem:[%s10 + $0x2c] sm:$0xf]
      %v963 = vld [vmem:[%s10 + $0x30] sm:$0xf]
      %v964 = vld [vmem:[%s10 + $0x34] sm:$0xf]
      %v965 = vld [vmem:[%s10 + $0x38] sm:$0xf]
      %v966 = vld [vmem:[%s10 + $0x3c] sm:$0xf]
      %v967 = vld [vmem:[%s10 + $0x40] sm:$0xf]
      %v968 = vld [vmem:[%s10 + $0x44] sm:$0xf]
      %v969 = vld [vmem:[%s10 + $0x48] sm:$0xf]
      %v970 = vld [vmem:[%s10 + $0x4c] sm:$0xf]
      %v971 = vld [vmem:[%s10 + $0x50] sm:$0xf]
      %v972 = vld [vmem:[%s10 + $0x54] sm:$0xf]
      %v973 = vld [vmem:[%s10 + $0x58] sm:$0xf]
      %v974 = vld [vmem:[%s10 + $0x5c] sm:$0xf]
      %v975 = vld [vmem:[%s10 + $0x60] sm:$0xf]
      %v976 = vld [vmem:[%s10 + $0x64] sm:$0xf]
      %v977 = vld [vmem:[%s10 + $0x68] sm:$0xf]
      %v978 = vld [vmem:[%s10 + $0x6c] sm:$0xf]
      %v979 = vld [vmem:[%s10 + $0x70] sm:$0xf]
      %v980 = vld [vmem:[%s10 + $0x74] sm:$0xf]
      %v981 = vld [vmem:[%s10 + $0x78] sm:$0xf]
      %v982 = vld [vmem:[%s10 + $0x7c] sm:$0xf]
      %v983 = vld [vmem:[%s10 + $0x80] sm:$0xf]
      %v984 = vld [vmem:[%s10 + $0x84] sm:$0xf]
      %v985 = vld [vmem:[%s10 + $0x88] sm:$0xf]
      %v986 = vld [vmem:[%s10 + $0x8c] sm:$0xf]
      %v987 = vld [vmem:[%s10 + $0x90] sm:$0xf]
      %v988 = vld [vmem:[%s10 + $0x94] sm:$0xf]
      %v989 = vld [vmem:[%s10 + $0x98] sm:$0xf]
      %v990 = vld [vmem:[%s10 + $0x9c] sm:$0xf]
      %v991 = vld [vmem:[%s10 + $0xa0] sm:$0xf]
      %v992 = vld [vmem:[%s10 + $0xa4] sm:$0xf]
      %v993 = vld [vmem:[%s10 + $0xa8] sm:$0xf]
      %v994 = vld [vmem:[%s10 + $0xac] sm:$0xf]
      %v995 = vld [vmem:[%s10 + $0xb0] sm:$0xf]
      %v996 = vld [vmem:[%s10 + $0xb4] sm:$0xf]
      %v997 = vld [vmem:[%s10 + $0xb8] sm:$0xf]
      %v998 = vld [vmem:[%s10 + $0xbc] sm:$0xf]
      %v999 = vld [vmem:[%s10 + $0xc0] sm:$0xf]
      %v1000 = vld [vmem:[%s10 + $0xc4] sm:$0xf]
      %v1001 = vld [vmem:[%s10 + $0xc8] sm:$0xf]
      %v1002 = vld [vmem:[%s10 + $0xcc] sm:$0xf]
      %v1003 = vld [vmem:[%s10 + $0xd0] sm:$0xf]
      %v1004 = vld [vmem:[%s10 + $0xd4] sm:$0xf]
      %v1005 = vld [vmem:[%s10 + $0xd8] sm:$0xf]
      %v1006 = vld [vmem:[%s10 + $0xdc] sm:$0xf]
      %v1007 = vld [vmem:[%s10 + $0xe0] sm:$0xf]
      %v1008 = vld [vmem:[%s10 + $0xe4] sm:$0xf]
      %v1009 = vld [vmem:[%s10 + $0xe8] sm:$0xf]
      %v1010 = vld [vmem:[%s10 + $0xec] sm:$0xf]
      %v1011 = vld [vmem:[%s10 + $0xf0] sm:$0xf]
      %v1012 = vld [vmem:[%s10 + $0xf4] sm:$0xf]
      %v1013 = vld [vmem:[%s10 + $0xf8] sm:$0xf]
      %v1014 = vld [vmem:[%s10 + $0xfc] sm:$0xf]
      %v1015 = vld [vmem:[%s10 + $0x100] sm:$0xf]
      %v1016 = vld [vmem:[%s10 + $0x104] sm:$0xf]
      %v1017 = vld [vmem:[%s10 + $0x108] sm:$0xf]
      %v1018 = vld [vmem:[%s10 + $0x10c] sm:$0xf]
      %v1019 = vld [vmem:[%s10 + $0x110] sm:$0xf]
      %v1020 = vld [vmem:[%s10 + $0x114] sm:$0xf]
      %v1021 = vld [vmem:[%s10 + $0x118] sm:$0xf]
      %v1022 = vld [vmem:[%s10 + $0x11c] sm:$0xf]
      %v1023 = vld [vmem:[%s809] sm:$0xf]
      %v1024 = vld [vmem:[%s809 + $0x4] sm:$0x1]
      %v1025 = vunpack.c.l.bf16 %v1023
      %v1026 = vunpack.c.l.bf16 %v1024
      %v1027 = vld [vmem:[%s821] sm:$0xf]
      %v1028 = vld [vmem:[%s821 + $0x4] sm:$0x1]
      %v1029 = vunpack.c.l.bf16 %v1027
      %v1030 = vunpack.c.l.bf16 %v1028
      %v1031 = vld [vmem:[%s834] sm:$0xf]
      %v1032 = vld [vmem:[%s834 + $0x4] sm:$0x1]
      %v1033 = vunpack.c.l.bf16 %v1031
      %v1034 = vunpack.c.l.bf16 %v1032
      %v1035 = vld [vmem:[%s847] sm:$0xf]
      %v1036 = vld [vmem:[%s847 + $0x4] sm:$0x1]
      %v1037 = vunpack.c.l.bf16 %v1035
      %v1038 = vunpack.c.l.bf16 %v1036
      %v1039 = vld [vmem:[%s860] sm:$0xf]
      %v1040 = vld [vmem:[%s860 + $0x4] sm:$0x1]
      %v1041 = vunpack.c.l.bf16 %v1039
      %v1042 = vunpack.c.l.bf16 %v1040
      %v1043 = vld [vmem:[%s873] sm:$0xf]
      %v1044 = vld [vmem:[%s873 + $0x4] sm:$0x1]
      %v1045 = vunpack.c.l.bf16 %v1043
      %v1046 = vunpack.c.l.bf16 %v1044
      %v1047 = vld [vmem:[%s886] sm:$0xf]
      %v1048 = vld [vmem:[%s886 + $0x4] sm:$0x1]
      %v1049 = vunpack.c.l.bf16 %v1047
      %v1050 = vunpack.c.l.bf16 %v1048
      %v1051 = vld [vmem:[%s899] sm:$0xf]
      %v1052 = vld [vmem:[%s899 + $0x4] sm:$0x1]
      %v1053 = vunpack.c.l.bf16 %v1051
      %v1054 = vunpack.c.l.bf16 %v1052
      %v1055 = vld [vmem:[%s912] sm:$0xf]
      %v1056 = vld [vmem:[%s912 + $0x4] sm:$0x1]
      %v1057 = vunpack.c.l.bf16 %v1055
      %v1058 = vunpack.c.l.bf16 %v1056
      %v1059 = vld [vmem:[%s925] sm:$0xf]
      %v1060 = vld [vmem:[%s925 + $0x4] sm:$0x1]
      %v1061 = vunpack.c.l.bf16 %v1059
      %v1062 = vunpack.c.l.bf16 %v1060
      %vm1065 = vcmask 1046528
      %v1066 = vrot.slane %v1025, 1
      %v1067 = vrot.slane %v1026, 1
      %v1068 = vsel %vm1065, %v1066, %v1067
      %1069 = vrot.lane.b32.xlu0 %v1068, 64
      %v1070 = vpop.permute.xlu0 %1069
      %vm1072 = vcmask 1045504
      %v1073 = vrot.slane %v1025, 2
      %v1074 = vrot.slane %v1026, 2
      %v1075 = vsel %vm1072, %v1073, %v1074
      %1078 = vrot.lane.b32.xlu0 %v1029, 64
      %v1079 = vpop.permute.xlu0 %1078
      %v1082 = vrot.slane %v1029, 1
      %v1083 = vrot.slane %v1030, 1
      %v1084 = vsel %vm1065, %v1082, %v1083
      %v1086 = vrot.slane %v1029, 2
      %v1087 = vrot.slane %v1030, 2
      %v1088 = vsel %vm1072, %v1086, %v1087
      %1089 = vrot.lane.b32.xlu0 %v1088, 64
      %v1090 = vpop.permute.xlu0 %1089
      %v1094 = vrot.slane %v1033, 1
      %v1095 = vrot.slane %v1034, 1
      %v1096 = vsel %vm1065, %v1094, %v1095
      %1097 = vrot.lane.b32.xlu0 %v1096, 64
      %v1098 = vpop.permute.xlu0 %1097
      %v1100 = vrot.slane %v1033, 2
      %v1101 = vrot.slane %v1034, 2
      %v1102 = vsel %vm1072, %v1100, %v1101
      %vm1104 = vcmask 523264
      %v1105 = vsel %vm1104, %v1025, %v1070
      %v1106 = vsel %vm1104, %v1075, %v1079
      %v1107 = vsel %vm1104, %v1084, %v1090
      %v1108 = vsel %vm1104, %v1033, %v1098
      %v1109 = vpack.c.bf16 %v1105, %v1105
      %v1110 = vpack.c.bf16 %v1106, %v1106
      %v1111 = vpack.c.bf16 %v1107, %v1107
      %v1112 = vpack.c.bf16 %v1108, %v1108
      %v1113 = vpack.c.bf16 %v1102, %v1102
      %v1186 = vunpack.c.l.b16 %v951
      %v1187 = vunpack.c.l.b16 %v952
      %v1188 = vunpack.c.l.b16 %v953
      %v1189 = vunpack.c.l.b16 %v954
      %v1190 = vunpack.c.l.b16 %v955
      %v1191 = vunpack.c.l.b16 %v956
      %v1192 = vunpack.c.l.b16 %v957
      %v1193 = vunpack.c.l.b16 %v958
      %v1194 = vunpack.c.l.b16 %v959
      %v1195 = vunpack.c.l.b16 %v960
      %v1196 = vunpack.c.l.b16 %v961
      %v1197 = vunpack.c.l.b16 %v962
      %v1198 = vunpack.c.l.b16 %v963
      %v1199 = vunpack.c.l.b16 %v964
      %v1200 = vunpack.c.l.b16 %v965
      %v1201 = vunpack.c.l.b16 %v966
      %v1202 = vunpack.c.l.b16 %v967
      %v1203 = vunpack.c.l.b16 %v968
      %v1204 = vunpack.c.l.b16 %v969
      %v1205 = vunpack.c.l.b16 %v970
      %v1206 = vunpack.c.l.b16 %v971
      %v1207 = vunpack.c.l.b16 %v972
      %v1208 = vunpack.c.l.b16 %v973
      %v1209 = vunpack.c.l.b16 %v974
      %v1210 = vunpack.c.l.b16 %v975
      %v1211 = vunpack.c.l.b16 %v976
      %v1212 = vunpack.c.l.b16 %v977
      %v1213 = vunpack.c.l.b16 %v978
      %v1214 = vunpack.c.l.b16 %v979
      %v1215 = vunpack.c.l.b16 %v980
      %v1216 = vunpack.c.l.b16 %v981
      %v1217 = vunpack.c.l.b16 %v982
      %v1218 = vunpack.c.l.b16 %v983
      %v1219 = vunpack.c.l.b16 %v984
      %v1220 = vunpack.c.l.b16 %v985
      %v1221 = vunpack.c.l.b16 %v986
      %v1222 = vunpack.c.l.b16 %v987
      %v1223 = vunpack.c.l.b16 %v988
      %v1224 = vunpack.c.l.b16 %v989
      %v1225 = vunpack.c.l.b16 %v990
      %v1226 = vunpack.c.l.b16 %v991
      %v1227 = vunpack.c.l.b16 %v992
      %v1228 = vunpack.c.l.b16 %v993
      %v1229 = vunpack.c.l.b16 %v994
      %v1230 = vunpack.c.l.b16 %v995
      %v1231 = vunpack.c.l.b16 %v996
      %v1232 = vunpack.c.l.b16 %v997
      %v1233 = vunpack.c.l.b16 %v998
      %v1234 = vunpack.c.l.b16 %v999
      %v1235 = vunpack.c.l.b16 %v1000
      %v1236 = vunpack.c.l.b16 %v1001
      %v1237 = vunpack.c.l.b16 %v1002
      %v1238 = vunpack.c.l.b16 %v1003
      %v1239 = vunpack.c.l.b16 %v1004
      %v1240 = vunpack.c.l.b16 %v1005
      %v1241 = vunpack.c.l.b16 %v1006
      %v1242 = vunpack.c.l.b16 %v1007
      %v1243 = vunpack.c.l.b16 %v1008
      %v1244 = vunpack.c.l.b16 %v1009
      %v1245 = vunpack.c.l.b16 %v1010
      %v1246 = vunpack.c.l.b16 %v1011
      %v1247 = vunpack.c.l.b16 %v1012
      %v1248 = vunpack.c.l.b16 %v1013
      %v1249 = vunpack.c.l.b16 %v1014
      %v1250 = vunpack.c.l.b16 %v1015
      %v1251 = vunpack.c.l.b16 %v1016
      %v1252 = vunpack.c.l.b16 %v1017
      %v1253 = vunpack.c.l.b16 %v1018
      %v1254 = vunpack.c.l.b16 %v1019
      %v1255 = vunpack.c.l.b16 %v1020
      %v1256 = vunpack.c.l.b16 %v1021
      %v1257 = vunpack.c.l.b16 %v1022
      %v1258 = vpack.c.b16 %v1187, %v1186
      %v1259 = vpack.c.b16 %v1189, %v1188
      %v1260 = vpack.c.b16 %v1191, %v1190
      %v1261 = vpack.c.b16 %v1193, %v1192
      %v1262 = vpack.c.b16 %v1195, %v1194
      %v1263 = vpack.c.b16 %v1197, %v1196
      %v1264 = vpack.c.b16 %v1199, %v1198
      %v1265 = vpack.c.b16 %v1201, %v1200
      %v1266 = vpack.c.b16 %v1203, %v1202
      %v1267 = vpack.c.b16 %v1205, %v1204
      %v1268 = vpack.c.b16 %v1207, %v1206
      %v1269 = vpack.c.b16 %v1209, %v1208
      %v1270 = vpack.c.b16 %v1211, %v1210
      %v1271 = vpack.c.b16 %v1213, %v1212
      %v1272 = vpack.c.b16 %v1215, %v1214
      %v1273 = vpack.c.b16 %v1217, %v1216
      %v1274 = vpack.c.b16 %v1219, %v1218
      %v1275 = vpack.c.b16 %v1221, %v1220
      %v1276 = vpack.c.b16 %v1223, %v1222
      %v1277 = vpack.c.b16 %v1225, %v1224
      %v1278 = vpack.c.b16 %v1227, %v1226
      %v1279 = vpack.c.b16 %v1229, %v1228
      %v1280 = vpack.c.b16 %v1231, %v1230
      %v1281 = vpack.c.b16 %v1233, %v1232
      %v1282 = vpack.c.b16 %v1235, %v1234
      %v1283 = vpack.c.b16 %v1237, %v1236
      %v1284 = vpack.c.b16 %v1239, %v1238
      %v1285 = vpack.c.b16 %v1241, %v1240
      %v1286 = vpack.c.b16 %v1243, %v1242
      %v1287 = vpack.c.b16 %v1245, %v1244
      %v1288 = vpack.c.b16 %v1247, %v1246
      %v1289 = vpack.c.b16 %v1249, %v1248
      %v1290 = vpack.c.b16 %v1251, %v1250
      %v1291 = vpack.c.b16 %v1253, %v1252
      %v1292 = vpack.c.b16 %v1255, %v1254
      %v1293 = vpack.c.b16 %v1257, %v1256
      %v1331 = vsel %vm1104, %v1113, 0
      %1333 = vmatprep.subr.bf16.mxu0 0
      %1334 = vmatpush1.bf16.msra.mxu0 %v1265
      %1335 = vmatprep.subr.bf16.mxu0 0
      %1336 = vmatpush1.bf16.msra.mxu0 %v1264
      %1337 = vmatprep.subr.bf16.mxu0 0
      %1338 = vmatpush1.bf16.msra.mxu0 %v1263
      %1339 = vmatprep.subr.bf16.mxu0 0
      %1340 = vmatpush1.bf16.msra.mxu0 %v1262
      %1341 = vmatprep.subr.bf16.mxu0 0
      %1342 = vmatpush1.bf16.msra.mxu0 %v1261
      %1343 = vmatprep.subr.bf16.mxu0 0
      %1344 = vmatpush1.bf16.msra.mxu0 %v1260
      %1345 = vmatprep.subr.bf16.mxu0 0
      %1346 = vmatpush1.bf16.msra.mxu0 %v1259
      %1347 = vmatprep.subr.bf16.mxu0 0
      %1348 = vmatpush1.bf16.msra.mxu0 %v1258
      %1349 = vmatprep.subr.bf16.mxu0 0
      %1350 = vmatpush2.bf16.msra.mxu0 %v1273
      %1351 = vmatprep.subr.bf16.mxu0 0
      %1352 = vmatpush2.bf16.msra.mxu0 %v1272
      %1353 = vmatprep.subr.bf16.mxu0 0
      %1354 = vmatpush2.bf16.msra.mxu0 %v1271
      %1355 = vmatprep.subr.bf16.mxu0 0
      %1356 = vmatpush2.bf16.msra.mxu0 %v1270
      %1357 = vmatprep.subr.bf16.mxu0 0
      %1358 = vmatpush2.bf16.msra.mxu0 %v1269
      %1359 = vmatprep.subr.bf16.mxu0 0
      %1360 = vmatpush2.bf16.msra.mxu0 %v1268
      %1361 = vmatprep.subr.bf16.mxu0 0
      %1362 = vmatpush2.bf16.msra.mxu0 %v1267
      %1363 = vmatprep.subr.bf16.mxu0 0
      %1364 = vmatpush2.bf16.msra.mxu0 %v1266
      %1365 = vmatprep.mubr.bf16.mxu0 %v1110
      %1366 = vmatmul.mubr.bf16.gmra.mxu0 %v1109
      %v1367 = vpop.f32.mrf.mxu0
      %v1368 = vadd.f32 0.0, %v1367
      %v1369 = vpop.f32.mrf.mxu0
      %v1370 = vpop.f32.mrf.mxu0
      %v1371 = vpop.f32.mrf.mxu0
      %1372 = vdwg.mxu0
      %1373 = vmatprep.subr.bf16.mxu0 0
      %1374 = vmatpush1.bf16.msra.mxu0 %v1281
      %1375 = vmatprep.subr.bf16.mxu0 0
      %1376 = vmatpush1.bf16.msra.mxu0 %v1280
      %1377 = vmatprep.subr.bf16.mxu0 0
      %1378 = vmatpush1.bf16.msra.mxu0 %v1279
      %1379 = vmatprep.subr.bf16.mxu0 0
      %1380 = vmatpush1.bf16.msra.mxu0 %v1278
      %1381 = vmatprep.subr.bf16.mxu0 0
      %1382 = vmatpush1.bf16.msra.mxu0 %v1277
      %1383 = vmatprep.subr.bf16.mxu0 0
      %1384 = vmatpush1.bf16.msra.mxu0 %v1276
      %1385 = vmatprep.subr.bf16.mxu0 0
      %1386 = vmatpush1.bf16.msra.mxu0 %v1275
      %1387 = vmatprep.subr.bf16.mxu0 0
      %1388 = vmatpush1.bf16.msra.mxu0 %v1274
      %1389 = vmatprep.subr.bf16.mxu0 0
      %1390 = vmatpush2.bf16.msra.mxu0 %v1289
      %1391 = vmatprep.subr.bf16.mxu0 0
      %1392 = vmatpush2.bf16.msra.mxu0 %v1288
      %1393 = vmatprep.subr.bf16.mxu0 0
      %1394 = vmatpush2.bf16.msra.mxu0 %v1287
      %1395 = vmatprep.subr.bf16.mxu0 0
      %1396 = vmatpush2.bf16.msra.mxu0 %v1286
      %1397 = vmatprep.subr.bf16.mxu0 0
      %1398 = vmatpush2.bf16.msra.mxu0 %v1285
      %1399 = vmatprep.subr.bf16.mxu0 0
      %1400 = vmatpush2.bf16.msra.mxu0 %v1284
      %1401 = vmatprep.subr.bf16.mxu0 0
      %1402 = vmatpush2.bf16.msra.mxu0 %v1283
      %1403 = vmatprep.subr.bf16.mxu0 0
      %1404 = vmatpush2.bf16.msra.mxu0 %v1282
      %1405 = vmatprep.mubr.bf16.mxu0 %v1112
      %1406 = vmatmul.mubr.bf16.gmra.mxu0 %v1111
      %v1407 = vpop.f32.mrf.mxu0
      %v1408 = vadd.f32 %v1368, %v1407
      %v1409 = vpop.f32.mrf.mxu0
      %v1410 = vpop.f32.mrf.mxu0
      %v1411 = vpop.f32.mrf.mxu0
      %1412 = vdwg.mxu0
      %1413 = vmatprep.subr.bf16.mxu0 0
      %1414 = vmatpush1.bf16.msra.mxu0 0
      %1415 = vmatprep.subr.bf16.mxu0 0
      %1416 = vmatpush1.bf16.msra.mxu0 0
      %1417 = vmatprep.subr.bf16.mxu0 0
      %1418 = vmatpush1.bf16.msra.mxu0 0
      %1419 = vmatprep.subr.bf16.mxu0 0
      %1420 = vmatpush1.bf16.msra.mxu0 0
      %1421 = vmatprep.subr.bf16.mxu0 0
      %1422 = vmatpush1.bf16.msra.mxu0 %v1293
      %1423 = vmatprep.subr.bf16.mxu0 0
      %1424 = vmatpush1.bf16.msra.mxu0 %v1292
      %1425 = vmatprep.subr.bf16.mxu0 0
      %1426 = vmatpush1.bf16.msra.mxu0 %v1291
      %1427 = vmatprep.subr.bf16.mxu0 0
      %1428 = vmatpush1.bf16.msra.mxu0 %v1290
      %1429 = vmatprep.subr.bf16.mxu0 0
      %1430 = vmatpush2.bf16.msra.mxu0 0
      %1431 = vmatprep.subr.bf16.mxu0 0
      %1432 = vmatpush2.bf16.msra.mxu0 0
      %1433 = vmatprep.subr.bf16.mxu0 0
      %1434 = vmatpush2.bf16.msra.mxu0 0
      %1435 = vmatprep.subr.bf16.mxu0 0
      %1436 = vmatpush2.bf16.msra.mxu0 0
      %1437 = vmatprep.subr.bf16.mxu0 0
      %1438 = vmatpush2.bf16.msra.mxu0 0
      %1439 = vmatprep.subr.bf16.mxu0 0
      %1440 = vmatpush2.bf16.msra.mxu0 0
      %1441 = vmatprep.subr.bf16.mxu0 0
      %1442 = vmatpush2.bf16.msra.mxu0 0
      %1443 = vmatprep.subr.bf16.mxu0 0
      %1444 = vmatpush2.bf16.msra.mxu0 0
      %1445 = vmatprep.mubr.bf16.mxu0 0
      %1446 = vmatmul.mubr.bf16.gmra.mxu0 %v1331
      %v1447 = vpop.f32.mrf.mxu0
      %v1448 = vadd.f32 %v1408, %v1447
      %v1449 = vpop.f32.mrf.mxu0
      %v1450 = vpop.f32.mrf.mxu0
      %v1451 = vpop.f32.mrf.mxu0
      %1452 = vdwg.mxu0
      %1453 = vst.msk [vmem:[%s936] sm:$0xff] %vm1104, %v1448
      %v1454 = vsel %vm1104, %v1448, 0.0
      %v1455 = vrot.slane %v1454, 4
      %v1456 = vadd.f32 %v1454, %v1455
      %v1457 = vrot.slane %v1456, 2
      %v1458 = vadd.f32 %v1456, %v1457
      %v1459 = vrot.slane %v1458, 1
      %v1460 = vadd.f32 %v1458, %v1459
      %v1461 = vadd.f32 %v1460, 0.0
      %v1462 = vmul.f32 %v1448, %v1448
      %v1463 = vsel %vm1104, %v1462, 0.0
      %v1464 = vrot.slane %v1463, 4
      %v1465 = vadd.f32 %v1463, %v1464
      %v1466 = vrot.slane %v1465, 2
      %v1467 = vadd.f32 %v1465, %v1466
      %v1468 = vrot.slane %v1467, 1
      %v1469 = vadd.f32 %v1467, %v1468
      %v1470 = vadd.f32 %v1469, 0.0
      %1471 = vrot.lane.b32.xlu0 %v1084, 64
      %v1472 = vpop.permute.xlu0 %1471
      %1475 = vrot.lane.b32.xlu0 %v1033, 64
      %v1476 = vpop.permute.xlu0 %1475
      %1479 = vrot.lane.b32.xlu0 %v1102, 64
      %v1480 = vpop.permute.xlu0 %1479
      %v1484 = vrot.slane %v1037, 1
      %v1485 = vrot.slane %v1038, 1
      %v1486 = vsel %vm1065, %v1484, %v1485
      %1487 = vrot.lane.b32.xlu0 %v1486, 64
      %v1488 = vpop.permute.xlu0 %1487
      %v1490 = vrot.slane %v1037, 2
      %v1491 = vrot.slane %v1038, 2
      %v1492 = vsel %vm1072, %v1490, %v1491
      %v1494 = vsel %vm1104, %v1029, %v1472
      %v1495 = vsel %vm1104, %v1088, %v1476
      %v1496 = vsel %vm1104, %v1096, %v1480
      %v1497 = vsel %vm1104, %v1037, %v1488
      %v1498 = vpack.c.bf16 %v1494, %v1494
      %v1499 = vpack.c.bf16 %v1495, %v1495
      %v1500 = vpack.c.bf16 %v1496, %v1496
      %v1501 = vpack.c.bf16 %v1497, %v1497
      %v1502 = vpack.c.bf16 %v1492, %v1492
      %v1504 = vsel %vm1104, %v1502, 0
      %1506 = vmatprep.subr.bf16.mxu0 0
      %1507 = vmatpush1.bf16.msra.mxu0 %v1265
      %1508 = vmatprep.subr.bf16.mxu0 0
      %1509 = vmatpush1.bf16.msra.mxu0 %v1264
      %1510 = vmatprep.subr.bf16.mxu0 0
      %1511 = vmatpush1.bf16.msra.mxu0 %v1263
      %1512 = vmatprep.subr.bf16.mxu0 0
      %1513 = vmatpush1.bf16.msra.mxu0 %v1262
      %1514 = vmatprep.subr.bf16.mxu0 0
      %1515 = vmatpush1.bf16.msra.mxu0 %v1261
      %1516 = vmatprep.subr.bf16.mxu0 0
      %1517 = vmatpush1.bf16.msra.mxu0 %v1260
      %1518 = vmatprep.subr.bf16.mxu0 0
      %1519 = vmatpush1.bf16.msra.mxu0 %v1259
      %1520 = vmatprep.subr.bf16.mxu0 0
      %1521 = vmatpush1.bf16.msra.mxu0 %v1258
      %1522 = vmatprep.subr.bf16.mxu0 0
      %1523 = vmatpush2.bf16.msra.mxu0 %v1273
      %1524 = vmatprep.subr.bf16.mxu0 0
      %1525 = vmatpush2.bf16.msra.mxu0 %v1272
      %1526 = vmatprep.subr.bf16.mxu0 0
      %1527 = vmatpush2.bf16.msra.mxu0 %v1271
      %1528 = vmatprep.subr.bf16.mxu0 0
      %1529 = vmatpush2.bf16.msra.mxu0 %v1270
      %1530 = vmatprep.subr.bf16.mxu0 0
      %1531 = vmatpush2.bf16.msra.mxu0 %v1269
      %1532 = vmatprep.subr.bf16.mxu0 0
      %1533 = vmatpush2.bf16.msra.mxu0 %v1268
      %1534 = vmatprep.subr.bf16.mxu0 0
      %1535 = vmatpush2.bf16.msra.mxu0 %v1267
      %1536 = vmatprep.subr.bf16.mxu0 0
      %1537 = vmatpush2.bf16.msra.mxu0 %v1266
      %1538 = vmatprep.mubr.bf16.mxu0 %v1499
      %1539 = vmatmul.mubr.bf16.gmra.mxu0 %v1498
      %v1540 = vpop.f32.mrf.mxu0
      %v1541 = vadd.f32 0.0, %v1540
      %v1542 = vpop.f32.mrf.mxu0
      %v1543 = vpop.f32.mrf.mxu0
      %v1544 = vpop.f32.mrf.mxu0
      %1545 = vdwg.mxu0
      %1546 = vmatprep.subr.bf16.mxu0 0
      %1547 = vmatpush1.bf16.msra.mxu0 %v1281
      %1548 = vmatprep.subr.bf16.mxu0 0
      %1549 = vmatpush1.bf16.msra.mxu0 %v1280
      %1550 = vmatprep.subr.bf16.mxu0 0
      %1551 = vmatpush1.bf16.msra.mxu0 %v1279
      %1552 = vmatprep.subr.bf16.mxu0 0
      %1553 = vmatpush1.bf16.msra.mxu0 %v1278
      %1554 = vmatprep.subr.bf16.mxu0 0
      %1555 = vmatpush1.bf16.msra.mxu0 %v1277
      %1556 = vmatprep.subr.bf16.mxu0 0
      %1557 = vmatpush1.bf16.msra.mxu0 %v1276
      %1558 = vmatprep.subr.bf16.mxu0 0
      %1559 = vmatpush1.bf16.msra.mxu0 %v1275
      %1560 = vmatprep.subr.bf16.mxu0 0
      %1561 = vmatpush1.bf16.msra.mxu0 %v1274
      %1562 = vmatprep.subr.bf16.mxu0 0
      %1563 = vmatpush2.bf16.msra.mxu0 %v1289
      %1564 = vmatprep.subr.bf16.mxu0 0
      %1565 = vmatpush2.bf16.msra.mxu0 %v1288
      %1566 = vmatprep.subr.bf16.mxu0 0
      %1567 = vmatpush2.bf16.msra.mxu0 %v1287
      %1568 = vmatprep.subr.bf16.mxu0 0
      %1569 = vmatpush2.bf16.msra.mxu0 %v1286
      %1570 = vmatprep.subr.bf16.mxu0 0
      %1571 = vmatpush2.bf16.msra.mxu0 %v1285
      %1572 = vmatprep.subr.bf16.mxu0 0
      %1573 = vmatpush2.bf16.msra.mxu0 %v1284
      %1574 = vmatprep.subr.bf16.mxu0 0
      %1575 = vmatpush2.bf16.msra.mxu0 %v1283
      %1576 = vmatprep.subr.bf16.mxu0 0
      %1577 = vmatpush2.bf16.msra.mxu0 %v1282
      %1578 = vmatprep.mubr.bf16.mxu0 %v1501
      %1579 = vmatmul.mubr.bf16.gmra.mxu0 %v1500
      %v1580 = vpop.f32.mrf.mxu0
      %v1581 = vadd.f32 %v1541, %v1580
      %v1582 = vpop.f32.mrf.mxu0
      %v1583 = vpop.f32.mrf.mxu0
      %v1584 = vpop.f32.mrf.mxu0
      %1585 = vdwg.mxu0
      %1586 = vmatprep.subr.bf16.mxu0 0
      %1587 = vmatpush1.bf16.msra.mxu0 0
      %1588 = vmatprep.subr.bf16.mxu0 0
      %1589 = vmatpush1.bf16.msra.mxu0 0
      %1590 = vmatprep.subr.bf16.mxu0 0
      %1591 = vmatpush1.bf16.msra.mxu0 0
      %1592 = vmatprep.subr.bf16.mxu0 0
      %1593 = vmatpush1.bf16.msra.mxu0 0
      %1594 = vmatprep.subr.bf16.mxu0 0
      %1595 = vmatpush1.bf16.msra.mxu0 %v1293
      %1596 = vmatprep.subr.bf16.mxu0 0
      %1597 = vmatpush1.bf16.msra.mxu0 %v1292
      %1598 = vmatprep.subr.bf16.mxu0 0
      %1599 = vmatpush1.bf16.msra.mxu0 %v1291
      %1600 = vmatprep.subr.bf16.mxu0 0
      %1601 = vmatpush1.bf16.msra.mxu0 %v1290
      %1602 = vmatprep.subr.bf16.mxu0 0
      %1603 = vmatpush2.bf16.msra.mxu0 0
      %1604 = vmatprep.subr.bf16.mxu0 0
      %1605 = vmatpush2.bf16.msra.mxu0 0
      %1606 = vmatprep.subr.bf16.mxu0 0
      %1607 = vmatpush2.bf16.msra.mxu0 0
      %1608 = vmatprep.subr.bf16.mxu0 0
      %1609 = vmatpush2.bf16.msra.mxu0 0
      %1610 = vmatprep.subr.bf16.mxu0 0
      %1611 = vmatpush2.bf16.msra.mxu0 0
      %1612 = vmatprep.subr.bf16.mxu0 0
      %1613 = vmatpush2.bf16.msra.mxu0 0
      %1614 = vmatprep.subr.bf16.mxu0 0
      %1615 = vmatpush2.bf16.msra.mxu0 0
      %1616 = vmatprep.subr.bf16.mxu0 0
      %1617 = vmatpush2.bf16.msra.mxu0 0
      %1618 = vmatprep.mubr.bf16.mxu0 0
      %1619 = vmatmul.mubr.bf16.gmra.mxu0 %v1504
      %v1620 = vpop.f32.mrf.mxu0
      %v1621 = vadd.f32 %v1581, %v1620
      %v1622 = vpop.f32.mrf.mxu0
      %v1623 = vpop.f32.mrf.mxu0
      %v1624 = vpop.f32.mrf.mxu0
      %1625 = vdwg.mxu0
      %s1626 = scalar_lea.vmem %s936, 8
      %1627 = vst.msk [vmem:[%s1626] sm:$0xff] %vm1104, %v1621
      %v1628 = vsel %vm1104, %v1621, 0.0
      %v1629 = vrot.slane %v1628, 4
      %v1630 = vadd.f32 %v1628, %v1629
      %v1631 = vrot.slane %v1630, 2
      %v1632 = vadd.f32 %v1630, %v1631
      %v1633 = vrot.slane %v1632, 1
      %v1634 = vadd.f32 %v1632, %v1633
      %v1635 = vadd.f32 %v1461, %v1634
      %v1636 = vmul.f32 %v1621, %v1621
      %v1637 = vsel %vm1104, %v1636, 0.0
      %v1638 = vrot.slane %v1637, 4
      %v1639 = vadd.f32 %v1637, %v1638
      %v1640 = vrot.slane %v1639, 2
      %v1641 = vadd.f32 %v1639, %v1640
      %v1642 = vrot.slane %v1641, 1
      %v1643 = vadd.f32 %v1641, %v1642
      %v1644 = vadd.f32 %v1470, %v1643
      %1645 = vrot.lane.b32.xlu0 %v1037, 64
      %v1646 = vpop.permute.xlu0 %1645
      %1649 = vrot.lane.b32.xlu0 %v1492, 64
      %v1650 = vpop.permute.xlu0 %1649
      %v1654 = vrot.slane %v1041, 1
      %v1655 = vrot.slane %v1042, 1
      %v1656 = vsel %vm1065, %v1654, %v1655
      %1657 = vrot.lane.b32.xlu0 %v1656, 64
      %v1658 = vpop.permute.xlu0 %1657
      %v1660 = vrot.slane %v1041, 2
      %v1661 = vrot.slane %v1042, 2
      %v1662 = vsel %vm1072, %v1660, %v1661
      %v1664 = vsel %vm1104, %v1102, %v1646
      %v1665 = vsel %vm1104, %v1486, %v1650
      %v1666 = vsel %vm1104, %v1041, %v1658
      %v1667 = vpack.c.bf16 %v1664, %v1664
      %v1668 = vpack.c.bf16 %v1665, %v1665
      %v1669 = vpack.c.bf16 %v1666, %v1666
      %v1670 = vpack.c.bf16 %v1662, %v1662
      %v1672 = vsel %vm1104, %v1670, 0
      %1674 = vmatprep.subr.bf16.mxu0 0
      %1675 = vmatpush1.bf16.msra.mxu0 %v1265
      %1676 = vmatprep.subr.bf16.mxu0 0
      %1677 = vmatpush1.bf16.msra.mxu0 %v1264
      %1678 = vmatprep.subr.bf16.mxu0 0
      %1679 = vmatpush1.bf16.msra.mxu0 %v1263
      %1680 = vmatprep.subr.bf16.mxu0 0
      %1681 = vmatpush1.bf16.msra.mxu0 %v1262
      %1682 = vmatprep.subr.bf16.mxu0 0
      %1683 = vmatpush1.bf16.msra.mxu0 %v1261
      %1684 = vmatprep.subr.bf16.mxu0 0
      %1685 = vmatpush1.bf16.msra.mxu0 %v1260
      %1686 = vmatprep.subr.bf16.mxu0 0
      %1687 = vmatpush1.bf16.msra.mxu0 %v1259
      %1688 = vmatprep.subr.bf16.mxu0 0
      %1689 = vmatpush1.bf16.msra.mxu0 %v1258
      %1690 = vmatprep.subr.bf16.mxu0 0
      %1691 = vmatpush2.bf16.msra.mxu0 %v1273
      %1692 = vmatprep.subr.bf16.mxu0 0
      %1693 = vmatpush2.bf16.msra.mxu0 %v1272
      %1694 = vmatprep.subr.bf16.mxu0 0
      %1695 = vmatpush2.bf16.msra.mxu0 %v1271
      %1696 = vmatprep.subr.bf16.mxu0 0
      %1697 = vmatpush2.bf16.msra.mxu0 %v1270
      %1698 = vmatprep.subr.bf16.mxu0 0
      %1699 = vmatpush2.bf16.msra.mxu0 %v1269
      %1700 = vmatprep.subr.bf16.mxu0 0
      %1701 = vmatpush2.bf16.msra.mxu0 %v1268
      %1702 = vmatprep.subr.bf16.mxu0 0
      %1703 = vmatpush2.bf16.msra.mxu0 %v1267
      %1704 = vmatprep.subr.bf16.mxu0 0
      %1705 = vmatpush2.bf16.msra.mxu0 %v1266
      %1706 = vmatprep.mubr.bf16.mxu0 %v1667
      %1707 = vmatmul.mubr.bf16.gmra.mxu0 %v1112
      %v1708 = vpop.f32.mrf.mxu0
      %v1709 = vadd.f32 0.0, %v1708
      %v1710 = vpop.f32.mrf.mxu0
      %v1711 = vpop.f32.mrf.mxu0
      %v1712 = vpop.f32.mrf.mxu0
      %1713 = vdwg.mxu0
      %1714 = vmatprep.subr.bf16.mxu0 0
      %1715 = vmatpush1.bf16.msra.mxu0 %v1281
      %1716 = vmatprep.subr.bf16.mxu0 0
      %1717 = vmatpush1.bf16.msra.mxu0 %v1280
      %1718 = vmatprep.subr.bf16.mxu0 0
      %1719 = vmatpush1.bf16.msra.mxu0 %v1279
      %1720 = vmatprep.subr.bf16.mxu0 0
      %1721 = vmatpush1.bf16.msra.mxu0 %v1278
      %1722 = vmatprep.subr.bf16.mxu0 0
      %1723 = vmatpush1.bf16.msra.mxu0 %v1277
      %1724 = vmatprep.subr.bf16.mxu0 0
      %1725 = vmatpush1.bf16.msra.mxu0 %v1276
      %1726 = vmatprep.subr.bf16.mxu0 0
      %1727 = vmatpush1.bf16.msra.mxu0 %v1275
      %1728 = vmatprep.subr.bf16.mxu0 0
      %1729 = vmatpush1.bf16.msra.mxu0 %v1274
      %1730 = vmatprep.subr.bf16.mxu0 0
      %1731 = vmatpush2.bf16.msra.mxu0 %v1289
      %1732 = vmatprep.subr.bf16.mxu0 0
      %1733 = vmatpush2.bf16.msra.mxu0 %v1288
      %1734 = vmatprep.subr.bf16.mxu0 0
      %1735 = vmatpush2.bf16.msra.mxu0 %v1287
      %1736 = vmatprep.subr.bf16.mxu0 0
      %1737 = vmatpush2.bf16.msra.mxu0 %v1286
      %1738 = vmatprep.subr.bf16.mxu0 0
      %1739 = vmatpush2.bf16.msra.mxu0 %v1285
      %1740 = vmatprep.subr.bf16.mxu0 0
      %1741 = vmatpush2.bf16.msra.mxu0 %v1284
      %1742 = vmatprep.subr.bf16.mxu0 0
      %1743 = vmatpush2.bf16.msra.mxu0 %v1283
      %1744 = vmatprep.subr.bf16.mxu0 0
      %1745 = vmatpush2.bf16.msra.mxu0 %v1282
      %1746 = vmatprep.mubr.bf16.mxu0 %v1669
      %1747 = vmatmul.mubr.bf16.gmra.mxu0 %v1668
      %v1748 = vpop.f32.mrf.mxu0
      %v1749 = vadd.f32 %v1709, %v1748
      %v1750 = vpop.f32.mrf.mxu0
      %v1751 = vpop.f32.mrf.mxu0
      %v1752 = vpop.f32.mrf.mxu0
      %1753 = vdwg.mxu0
      %1754 = vmatprep.subr.bf16.mxu0 0
      %1755 = vmatpush1.bf16.msra.mxu0 0
      %1756 = vmatprep.subr.bf16.mxu0 0
      %1757 = vmatpush1.bf16.msra.mxu0 0
      %1758 = vmatprep.subr.bf16.mxu0 0
      %1759 = vmatpush1.bf16.msra.mxu0 0
      %1760 = vmatprep.subr.bf16.mxu0 0
      %1761 = vmatpush1.bf16.msra.mxu0 0
      %1762 = vmatprep.subr.bf16.mxu0 0
      %1763 = vmatpush1.bf16.msra.mxu0 %v1293
      %1764 = vmatprep.subr.bf16.mxu0 0
      %1765 = vmatpush1.bf16.msra.mxu0 %v1292
      %1766 = vmatprep.subr.bf16.mxu0 0
      %1767 = vmatpush1.bf16.msra.mxu0 %v1291
      %1768 = vmatprep.subr.bf16.mxu0 0
      %1769 = vmatpush1.bf16.msra.mxu0 %v1290
      %1770 = vmatprep.subr.bf16.mxu0 0
      %1771 = vmatpush2.bf16.msra.mxu0 0
      %1772 = vmatprep.subr.bf16.mxu0 0
      %1773 = vmatpush2.bf16.msra.mxu0 0
      %1774 = vmatprep.subr.bf16.mxu0 0
      %1775 = vmatpush2.bf16.msra.mxu0 0
      %1776 = vmatprep.subr.bf16.mxu0 0
      %1777 = vmatpush2.bf16.msra.mxu0 0
      %1778 = vmatprep.subr.bf16.mxu0 0
      %1779 = vmatpush2.bf16.msra.mxu0 0
      %1780 = vmatprep.subr.bf16.mxu0 0
      %1781 = vmatpush2.bf16.msra.mxu0 0
      %1782 = vmatprep.subr.bf16.mxu0 0
      %1783 = vmatpush2.bf16.msra.mxu0 0
      %1784 = vmatprep.subr.bf16.mxu0 0
      %1785 = vmatpush2.bf16.msra.mxu0 0
      %1786 = vmatprep.mubr.bf16.mxu0 0
      %1787 = vmatmul.mubr.bf16.gmra.mxu0 %v1672
      %v1788 = vpop.f32.mrf.mxu0
      %v1789 = vadd.f32 %v1749, %v1788
      %v1790 = vpop.f32.mrf.mxu0
      %v1791 = vpop.f32.mrf.mxu0
      %v1792 = vpop.f32.mrf.mxu0
      %1793 = vdwg.mxu0
      %s1794 = scalar_lea.vmem %s936, 16
      %1795 = vst.msk [vmem:[%s1794] sm:$0xff] %vm1104, %v1789
      %v1796 = vsel %vm1104, %v1789, 0.0
      %v1797 = vrot.slane %v1796, 4
      %v1798 = vadd.f32 %v1796, %v1797
      %v1799 = vrot.slane %v1798, 2
      %v1800 = vadd.f32 %v1798, %v1799
      %v1801 = vrot.slane %v1800, 1
      %v1802 = vadd.f32 %v1800, %v1801
      %v1803 = vadd.f32 %v1635, %v1802
      %v1804 = vmul.f32 %v1789, %v1789
      %v1805 = vsel %vm1104, %v1804, 0.0
      %v1806 = vrot.slane %v1805, 4
      %v1807 = vadd.f32 %v1805, %v1806
      %v1808 = vrot.slane %v1807, 2
      %v1809 = vadd.f32 %v1807, %v1808
      %v1810 = vrot.slane %v1809, 1
      %v1811 = vadd.f32 %v1809, %v1810
      %v1812 = vadd.f32 %v1644, %v1811
      %1813 = vrot.lane.b32.xlu0 %v1041, 64
      %v1814 = vpop.permute.xlu0 %1813
      %1817 = vrot.lane.b32.xlu0 %v1662, 64
      %v1818 = vpop.permute.xlu0 %1817
      %v1822 = vrot.slane %v1045, 1
      %v1823 = vrot.slane %v1046, 1
      %v1824 = vsel %vm1065, %v1822, %v1823
      %1825 = vrot.lane.b32.xlu0 %v1824, 64
      %v1826 = vpop.permute.xlu0 %1825
      %v1828 = vrot.slane %v1045, 2
      %v1829 = vrot.slane %v1046, 2
      %v1830 = vsel %vm1072, %v1828, %v1829
      %v1832 = vsel %vm1104, %v1492, %v1814
      %v1833 = vsel %vm1104, %v1656, %v1818
      %v1834 = vsel %vm1104, %v1045, %v1826
      %v1835 = vpack.c.bf16 %v1832, %v1832
      %v1836 = vpack.c.bf16 %v1833, %v1833
      %v1837 = vpack.c.bf16 %v1834, %v1834
      %v1838 = vpack.c.bf16 %v1830, %v1830
      %v1840 = vsel %vm1104, %v1838, 0
      %1842 = vmatprep.subr.bf16.mxu0 0
      %1843 = vmatpush1.bf16.msra.mxu0 %v1265
      %1844 = vmatprep.subr.bf16.mxu0 0
      %1845 = vmatpush1.bf16.msra.mxu0 %v1264
      %1846 = vmatprep.subr.bf16.mxu0 0
      %1847 = vmatpush1.bf16.msra.mxu0 %v1263
      %1848 = vmatprep.subr.bf16.mxu0 0
      %1849 = vmatpush1.bf16.msra.mxu0 %v1262
      %1850 = vmatprep.subr.bf16.mxu0 0
      %1851 = vmatpush1.bf16.msra.mxu0 %v1261
      %1852 = vmatprep.subr.bf16.mxu0 0
      %1853 = vmatpush1.bf16.msra.mxu0 %v1260
      %1854 = vmatprep.subr.bf16.mxu0 0
      %1855 = vmatpush1.bf16.msra.mxu0 %v1259
      %1856 = vmatprep.subr.bf16.mxu0 0
      %1857 = vmatpush1.bf16.msra.mxu0 %v1258
      %1858 = vmatprep.subr.bf16.mxu0 0
      %1859 = vmatpush2.bf16.msra.mxu0 %v1273
      %1860 = vmatprep.subr.bf16.mxu0 0
      %1861 = vmatpush2.bf16.msra.mxu0 %v1272
      %1862 = vmatprep.subr.bf16.mxu0 0
      %1863 = vmatpush2.bf16.msra.mxu0 %v1271
      %1864 = vmatprep.subr.bf16.mxu0 0
      %1865 = vmatpush2.bf16.msra.mxu0 %v1270
      %1866 = vmatprep.subr.bf16.mxu0 0
      %1867 = vmatpush2.bf16.msra.mxu0 %v1269
      %1868 = vmatprep.subr.bf16.mxu0 0
      %1869 = vmatpush2.bf16.msra.mxu0 %v1268
      %1870 = vmatprep.subr.bf16.mxu0 0
      %1871 = vmatpush2.bf16.msra.mxu0 %v1267
      %1872 = vmatprep.subr.bf16.mxu0 0
      %1873 = vmatpush2.bf16.msra.mxu0 %v1266
      %1874 = vmatprep.mubr.bf16.mxu0 %v1835
      %1875 = vmatmul.mubr.bf16.gmra.mxu0 %v1501
      %v1876 = vpop.f32.mrf.mxu0
      %v1877 = vadd.f32 0.0, %v1876
      %v1878 = vpop.f32.mrf.mxu0
      %v1879 = vpop.f32.mrf.mxu0
      %v1880 = vpop.f32.mrf.mxu0
      %1881 = vdwg.mxu0
      %1882 = vmatprep.subr.bf16.mxu0 0
      %1883 = vmatpush1.bf16.msra.mxu0 %v1281
      %1884 = vmatprep.subr.bf16.mxu0 0
      %1885 = vmatpush1.bf16.msra.mxu0 %v1280
      %1886 = vmatprep.subr.bf16.mxu0 0
      %1887 = vmatpush1.bf16.msra.mxu0 %v1279
      %1888 = vmatprep.subr.bf16.mxu0 0
      %1889 = vmatpush1.bf16.msra.mxu0 %v1278
      %1890 = vmatprep.subr.bf16.mxu0 0
      %1891 = vmatpush1.bf16.msra.mxu0 %v1277
      %1892 = vmatprep.subr.bf16.mxu0 0
      %1893 = vmatpush1.bf16.msra.mxu0 %v1276
      %1894 = vmatprep.subr.bf16.mxu0 0
      %1895 = vmatpush1.bf16.msra.mxu0 %v1275
      %1896 = vmatprep.subr.bf16.mxu0 0
      %1897 = vmatpush1.bf16.msra.mxu0 %v1274
      %1898 = vmatprep.subr.bf16.mxu0 0
      %1899 = vmatpush2.bf16.msra.mxu0 %v1289
      %1900 = vmatprep.subr.bf16.mxu0 0
      %1901 = vmatpush2.bf16.msra.mxu0 %v1288
      %1902 = vmatprep.subr.bf16.mxu0 0
      %1903 = vmatpush2.bf16.msra.mxu0 %v1287
      %1904 = vmatprep.subr.bf16.mxu0 0
      %1905 = vmatpush2.bf16.msra.mxu0 %v1286
      %1906 = vmatprep.subr.bf16.mxu0 0
      %1907 = vmatpush2.bf16.msra.mxu0 %v1285
      %1908 = vmatprep.subr.bf16.mxu0 0
      %1909 = vmatpush2.bf16.msra.mxu0 %v1284
      %1910 = vmatprep.subr.bf16.mxu0 0
      %1911 = vmatpush2.bf16.msra.mxu0 %v1283
      %1912 = vmatprep.subr.bf16.mxu0 0
      %1913 = vmatpush2.bf16.msra.mxu0 %v1282
      %1914 = vmatprep.mubr.bf16.mxu0 %v1837
      %1915 = vmatmul.mubr.bf16.gmra.mxu0 %v1836
      %v1916 = vpop.f32.mrf.mxu0
      %v1917 = vadd.f32 %v1877, %v1916
      %v1918 = vpop.f32.mrf.mxu0
      %v1919 = vpop.f32.mrf.mxu0
      %v1920 = vpop.f32.mrf.mxu0
      %1921 = vdwg.mxu0
      %1922 = vmatprep.subr.bf16.mxu0 0
      %1923 = vmatpush1.bf16.msra.mxu0 0
      %1924 = vmatprep.subr.bf16.mxu0 0
      %1925 = vmatpush1.bf16.msra.mxu0 0
      %1926 = vmatprep.subr.bf16.mxu0 0
      %1927 = vmatpush1.bf16.msra.mxu0 0
      %1928 = vmatprep.subr.bf16.mxu0 0
      %1929 = vmatpush1.bf16.msra.mxu0 0
      %1930 = vmatprep.subr.bf16.mxu0 0
      %1931 = vmatpush1.bf16.msra.mxu0 %v1293
      %1932 = vmatprep.subr.bf16.mxu0 0
      %1933 = vmatpush1.bf16.msra.mxu0 %v1292
      %1934 = vmatprep.subr.bf16.mxu0 0
      %1935 = vmatpush1.bf16.msra.mxu0 %v1291
      %1936 = vmatprep.subr.bf16.mxu0 0
      %1937 = vmatpush1.bf16.msra.mxu0 %v1290
      %1938 = vmatprep.subr.bf16.mxu0 0
      %1939 = vmatpush2.bf16.msra.mxu0 0
      %1940 = vmatprep.subr.bf16.mxu0 0
      %1941 = vmatpush2.bf16.msra.mxu0 0
      %1942 = vmatprep.subr.bf16.mxu0 0
      %1943 = vmatpush2.bf16.msra.mxu0 0
      %1944 = vmatprep.subr.bf16.mxu0 0
      %1945 = vmatpush2.bf16.msra.mxu0 0
      %1946 = vmatprep.subr.bf16.mxu0 0
      %1947 = vmatpush2.bf16.msra.mxu0 0
      %1948 = vmatprep.subr.bf16.mxu0 0
      %1949 = vmatpush2.bf16.msra.mxu0 0
      %1950 = vmatprep.subr.bf16.mxu0 0
      %1951 = vmatpush2.bf16.msra.mxu0 0
      %1952 = vmatprep.subr.bf16.mxu0 0
      %1953 = vmatpush2.bf16.msra.mxu0 0
      %1954 = vmatprep.mubr.bf16.mxu0 0
      %1955 = vmatmul.mubr.bf16.gmra.mxu0 %v1840
      %v1956 = vpop.f32.mrf.mxu0
      %v1957 = vadd.f32 %v1917, %v1956
      %v1958 = vpop.f32.mrf.mxu0
      %v1959 = vpop.f32.mrf.mxu0
      %v1960 = vpop.f32.mrf.mxu0
      %1961 = vdwg.mxu0
      %s1962 = scalar_lea.vmem %s936, 24
      %1963 = vst.msk [vmem:[%s1962] sm:$0xff] %vm1104, %v1957
      %v1964 = vsel %vm1104, %v1957, 0.0
      %v1965 = vrot.slane %v1964, 4
      %v1966 = vadd.f32 %v1964, %v1965
      %v1967 = vrot.slane %v1966, 2
      %v1968 = vadd.f32 %v1966, %v1967
      %v1969 = vrot.slane %v1968, 1
      %v1970 = vadd.f32 %v1968, %v1969
      %v1971 = vadd.f32 %v1803, %v1970
      %v1972 = vmul.f32 %v1957, %v1957
      %v1973 = vsel %vm1104, %v1972, 0.0
      %v1974 = vrot.slane %v1973, 4
      %v1975 = vadd.f32 %v1973, %v1974
      %v1976 = vrot.slane %v1975, 2
      %v1977 = vadd.f32 %v1975, %v1976
      %v1978 = vrot.slane %v1977, 1
      %v1979 = vadd.f32 %v1977, %v1978
      %v1980 = vadd.f32 %v1812, %v1979
      %1981 = vrot.lane.b32.xlu0 %v1045, 64
      %v1982 = vpop.permute.xlu0 %1981
      %1985 = vrot.lane.b32.xlu0 %v1830, 64
      %v1986 = vpop.permute.xlu0 %1985
      %v1990 = vrot.slane %v1049, 1
      %v1991 = vrot.slane %v1050, 1
      %v1992 = vsel %vm1065, %v1990, %v1991
      %1993 = vrot.lane.b32.xlu0 %v1992, 64
      %v1994 = vpop.permute.xlu0 %1993
      %v1996 = vrot.slane %v1049, 2
      %v1997 = vrot.slane %v1050, 2
      %v1998 = vsel %vm1072, %v1996, %v1997
      %v2000 = vsel %vm1104, %v1662, %v1982
      %v2001 = vsel %vm1104, %v1824, %v1986
      %v2002 = vsel %vm1104, %v1049, %v1994
      %v2003 = vpack.c.bf16 %v2000, %v2000
      %v2004 = vpack.c.bf16 %v2001, %v2001
      %v2005 = vpack.c.bf16 %v2002, %v2002
      %v2006 = vpack.c.bf16 %v1998, %v1998
      %v2008 = vsel %vm1104, %v2006, 0
      %2010 = vmatprep.subr.bf16.mxu0 0
      %2011 = vmatpush1.bf16.msra.mxu0 %v1265
      %2012 = vmatprep.subr.bf16.mxu0 0
      %2013 = vmatpush1.bf16.msra.mxu0 %v1264
      %2014 = vmatprep.subr.bf16.mxu0 0
      %2015 = vmatpush1.bf16.msra.mxu0 %v1263
      %2016 = vmatprep.subr.bf16.mxu0 0
      %2017 = vmatpush1.bf16.msra.mxu0 %v1262
      %2018 = vmatprep.subr.bf16.mxu0 0
      %2019 = vmatpush1.bf16.msra.mxu0 %v1261
      %2020 = vmatprep.subr.bf16.mxu0 0
      %2021 = vmatpush1.bf16.msra.mxu0 %v1260
      %2022 = vmatprep.subr.bf16.mxu0 0
      %2023 = vmatpush1.bf16.msra.mxu0 %v1259
      %2024 = vmatprep.subr.bf16.mxu0 0
      %2025 = vmatpush1.bf16.msra.mxu0 %v1258
      %2026 = vmatprep.subr.bf16.mxu0 0
      %2027 = vmatpush2.bf16.msra.mxu0 %v1273
      %2028 = vmatprep.subr.bf16.mxu0 0
      %2029 = vmatpush2.bf16.msra.mxu0 %v1272
      %2030 = vmatprep.subr.bf16.mxu0 0
      %2031 = vmatpush2.bf16.msra.mxu0 %v1271
      %2032 = vmatprep.subr.bf16.mxu0 0
      %2033 = vmatpush2.bf16.msra.mxu0 %v1270
      %2034 = vmatprep.subr.bf16.mxu0 0
      %2035 = vmatpush2.bf16.msra.mxu0 %v1269
      %2036 = vmatprep.subr.bf16.mxu0 0
      %2037 = vmatpush2.bf16.msra.mxu0 %v1268
      %2038 = vmatprep.subr.bf16.mxu0 0
      %2039 = vmatpush2.bf16.msra.mxu0 %v1267
      %2040 = vmatprep.subr.bf16.mxu0 0
      %2041 = vmatpush2.bf16.msra.mxu0 %v1266
      %2042 = vmatprep.mubr.bf16.mxu0 %v2003
      %2043 = vmatmul.mubr.bf16.gmra.mxu0 %v1669
      %v2044 = vpop.f32.mrf.mxu0
      %v2045 = vadd.f32 0.0, %v2044
      %v2046 = vpop.f32.mrf.mxu0
      %v2047 = vpop.f32.mrf.mxu0
      %v2048 = vpop.f32.mrf.mxu0
      %2049 = vdwg.mxu0
      %2050 = vmatprep.subr.bf16.mxu0 0
      %2051 = vmatpush1.bf16.msra.mxu0 %v1281
      %2052 = vmatprep.subr.bf16.mxu0 0
      %2053 = vmatpush1.bf16.msra.mxu0 %v1280
      %2054 = vmatprep.subr.bf16.mxu0 0
      %2055 = vmatpush1.bf16.msra.mxu0 %v1279
      %2056 = vmatprep.subr.bf16.mxu0 0
      %2057 = vmatpush1.bf16.msra.mxu0 %v1278
      %2058 = vmatprep.subr.bf16.mxu0 0
      %2059 = vmatpush1.bf16.msra.mxu0 %v1277
      %2060 = vmatprep.subr.bf16.mxu0 0
      %2061 = vmatpush1.bf16.msra.mxu0 %v1276
      %2062 = vmatprep.subr.bf16.mxu0 0
      %2063 = vmatpush1.bf16.msra.mxu0 %v1275
      %2064 = vmatprep.subr.bf16.mxu0 0
      %2065 = vmatpush1.bf16.msra.mxu0 %v1274
      %2066 = vmatprep.subr.bf16.mxu0 0
      %2067 = vmatpush2.bf16.msra.mxu0 %v1289
      %2068 = vmatprep.subr.bf16.mxu0 0
      %2069 = vmatpush2.bf16.msra.mxu0 %v1288
      %2070 = vmatprep.subr.bf16.mxu0 0
      %2071 = vmatpush2.bf16.msra.mxu0 %v1287
      %2072 = vmatprep.subr.bf16.mxu0 0
      %2073 = vmatpush2.bf16.msra.mxu0 %v1286
      %2074 = vmatprep.subr.bf16.mxu0 0
      %2075 = vmatpush2.bf16.msra.mxu0 %v1285
      %2076 = vmatprep.subr.bf16.mxu0 0
      %2077 = vmatpush2.bf16.msra.mxu0 %v1284
      %2078 = vmatprep.subr.bf16.mxu0 0
      %2079 = vmatpush2.bf16.msra.mxu0 %v1283
      %2080 = vmatprep.subr.bf16.mxu0 0
      %2081 = vmatpush2.bf16.msra.mxu0 %v1282
      %2082 = vmatprep.mubr.bf16.mxu0 %v2005
      %2083 = vmatmul.mubr.bf16.gmra.mxu0 %v2004
      %v2084 = vpop.f32.mrf.mxu0
      %v2085 = vadd.f32 %v2045, %v2084
      %v2086 = vpop.f32.mrf.mxu0
      %v2087 = vpop.f32.mrf.mxu0
      %v2088 = vpop.f32.mrf.mxu0
      %2089 = vdwg.mxu0
      %2090 = vmatprep.subr.bf16.mxu0 0
      %2091 = vmatpush1.bf16.msra.mxu0 0
      %2092 = vmatprep.subr.bf16.mxu0 0
      %2093 = vmatpush1.bf16.msra.mxu0 0
      %2094 = vmatprep.subr.bf16.mxu0 0
      %2095 = vmatpush1.bf16.msra.mxu0 0
      %2096 = vmatprep.subr.bf16.mxu0 0
      %2097 = vmatpush1.bf16.msra.mxu0 0
      %2098 = vmatprep.subr.bf16.mxu0 0
      %2099 = vmatpush1.bf16.msra.mxu0 %v1293
      %2100 = vmatprep.subr.bf16.mxu0 0
      %2101 = vmatpush1.bf16.msra.mxu0 %v1292
      %2102 = vmatprep.subr.bf16.mxu0 0
      %2103 = vmatpush1.bf16.msra.mxu0 %v1291
      %2104 = vmatprep.subr.bf16.mxu0 0
      %2105 = vmatpush1.bf16.msra.mxu0 %v1290
      %2106 = vmatprep.subr.bf16.mxu0 0
      %2107 = vmatpush2.bf16.msra.mxu0 0
      %2108 = vmatprep.subr.bf16.mxu0 0
      %2109 = vmatpush2.bf16.msra.mxu0 0
      %2110 = vmatprep.subr.bf16.mxu0 0
      %2111 = vmatpush2.bf16.msra.mxu0 0
      %2112 = vmatprep.subr.bf16.mxu0 0
      %2113 = vmatpush2.bf16.msra.mxu0 0
      %2114 = vmatprep.subr.bf16.mxu0 0
      %2115 = vmatpush2.bf16.msra.mxu0 0
      %2116 = vmatprep.subr.bf16.mxu0 0
      %2117 = vmatpush2.bf16.msra.mxu0 0
      %2118 = vmatprep.subr.bf16.mxu0 0
      %2119 = vmatpush2.bf16.msra.mxu0 0
      %2120 = vmatprep.subr.bf16.mxu0 0
      %2121 = vmatpush2.bf16.msra.mxu0 0
      %2122 = vmatprep.mubr.bf16.mxu0 0
      %2123 = vmatmul.mubr.bf16.gmra.mxu0 %v2008
      %v2124 = vpop.f32.mrf.mxu0
      %v2125 = vadd.f32 %v2085, %v2124
      %v2126 = vpop.f32.mrf.mxu0
      %v2127 = vpop.f32.mrf.mxu0
      %v2128 = vpop.f32.mrf.mxu0
      %2129 = vdwg.mxu0
      %s2130 = scalar_lea.vmem %s936, 32
      %2131 = vst.msk [vmem:[%s2130] sm:$0xff] %vm1104, %v2125
      %v2132 = vsel %vm1104, %v2125, 0.0
      %v2133 = vrot.slane %v2132, 4
      %v2134 = vadd.f32 %v2132, %v2133
      %v2135 = vrot.slane %v2134, 2
      %v2136 = vadd.f32 %v2134, %v2135
      %v2137 = vrot.slane %v2136, 1
      %v2138 = vadd.f32 %v2136, %v2137
      %v2139 = vadd.f32 %v1971, %v2138
      %v2140 = vmul.f32 %v2125, %v2125
      %v2141 = vsel %vm1104, %v2140, 0.0
      %v2142 = vrot.slane %v2141, 4
      %v2143 = vadd.f32 %v2141, %v2142
      %v2144 = vrot.slane %v2143, 2
      %v2145 = vadd.f32 %v2143, %v2144
      %v2146 = vrot.slane %v2145, 1
      %v2147 = vadd.f32 %v2145, %v2146
      %v2148 = vadd.f32 %v1980, %v2147
      %2149 = vrot.lane.b32.xlu0 %v1049, 64
      %v2150 = vpop.permute.xlu0 %2149
      %2153 = vrot.lane.b32.xlu0 %v1998, 64
      %v2154 = vpop.permute.xlu0 %2153
      %v2158 = vrot.slane %v1053, 1
      %v2159 = vrot.slane %v1054, 1
      %v2160 = vsel %vm1065, %v2158, %v2159
      %2161 = vrot.lane.b32.xlu0 %v2160, 64
      %v2162 = vpop.permute.xlu0 %2161
      %v2164 = vrot.slane %v1053, 2
      %v2165 = vrot.slane %v1054, 2
      %v2166 = vsel %vm1072, %v2164, %v2165
      %v2168 = vsel %vm1104, %v1830, %v2150
      %v2169 = vsel %vm1104, %v1992, %v2154
      %v2170 = vsel %vm1104, %v1053, %v2162
      %v2171 = vpack.c.bf16 %v2168, %v2168
      %v2172 = vpack.c.bf16 %v2169, %v2169
      %v2173 = vpack.c.bf16 %v2170, %v2170
      %v2174 = vpack.c.bf16 %v2166, %v2166
      %v2176 = vsel %vm1104, %v2174, 0
      %2178 = vmatprep.subr.bf16.mxu0 0
      %2179 = vmatpush1.bf16.msra.mxu0 %v1265
      %2180 = vmatprep.subr.bf16.mxu0 0
      %2181 = vmatpush1.bf16.msra.mxu0 %v1264
      %2182 = vmatprep.subr.bf16.mxu0 0
      %2183 = vmatpush1.bf16.msra.mxu0 %v1263
      %2184 = vmatprep.subr.bf16.mxu0 0
      %2185 = vmatpush1.bf16.msra.mxu0 %v1262
      %2186 = vmatprep.subr.bf16.mxu0 0
      %2187 = vmatpush1.bf16.msra.mxu0 %v1261
      %2188 = vmatprep.subr.bf16.mxu0 0
      %2189 = vmatpush1.bf16.msra.mxu0 %v1260
      %2190 = vmatprep.subr.bf16.mxu0 0
      %2191 = vmatpush1.bf16.msra.mxu0 %v1259
      %2192 = vmatprep.subr.bf16.mxu0 0
      %2193 = vmatpush1.bf16.msra.mxu0 %v1258
      %2194 = vmatprep.subr.bf16.mxu0 0
      %2195 = vmatpush2.bf16.msra.mxu0 %v1273
      %2196 = vmatprep.subr.bf16.mxu0 0
      %2197 = vmatpush2.bf16.msra.mxu0 %v1272
      %2198 = vmatprep.subr.bf16.mxu0 0
      %2199 = vmatpush2.bf16.msra.mxu0 %v1271
      %2200 = vmatprep.subr.bf16.mxu0 0
      %2201 = vmatpush2.bf16.msra.mxu0 %v1270
      %2202 = vmatprep.subr.bf16.mxu0 0
      %2203 = vmatpush2.bf16.msra.mxu0 %v1269
      %2204 = vmatprep.subr.bf16.mxu0 0
      %2205 = vmatpush2.bf16.msra.mxu0 %v1268
      %2206 = vmatprep.subr.bf16.mxu0 0
      %2207 = vmatpush2.bf16.msra.mxu0 %v1267
      %2208 = vmatprep.subr.bf16.mxu0 0
      %2209 = vmatpush2.bf16.msra.mxu0 %v1266
      %2210 = vmatprep.mubr.bf16.mxu0 %v2171
      %2211 = vmatmul.mubr.bf16.gmra.mxu0 %v1837
      %v2212 = vpop.f32.mrf.mxu0
      %v2213 = vadd.f32 0.0, %v2212
      %v2214 = vpop.f32.mrf.mxu0
      %v2215 = vpop.f32.mrf.mxu0
      %v2216 = vpop.f32.mrf.mxu0
      %2217 = vdwg.mxu0
      %2218 = vmatprep.subr.bf16.mxu0 0
      %2219 = vmatpush1.bf16.msra.mxu0 %v1281
      %2220 = vmatprep.subr.bf16.mxu0 0
      %2221 = vmatpush1.bf16.msra.mxu0 %v1280
      %2222 = vmatprep.subr.bf16.mxu0 0
      %2223 = vmatpush1.bf16.msra.mxu0 %v1279
      %2224 = vmatprep.subr.bf16.mxu0 0
      %2225 = vmatpush1.bf16.msra.mxu0 %v1278
      %2226 = vmatprep.subr.bf16.mxu0 0
      %2227 = vmatpush1.bf16.msra.mxu0 %v1277
      %2228 = vmatprep.subr.bf16.mxu0 0
      %2229 = vmatpush1.bf16.msra.mxu0 %v1276
      %2230 = vmatprep.subr.bf16.mxu0 0
      %2231 = vmatpush1.bf16.msra.mxu0 %v1275
      %2232 = vmatprep.subr.bf16.mxu0 0
      %2233 = vmatpush1.bf16.msra.mxu0 %v1274
      %2234 = vmatprep.subr.bf16.mxu0 0
      %2235 = vmatpush2.bf16.msra.mxu0 %v1289
      %2236 = vmatprep.subr.bf16.mxu0 0
      %2237 = vmatpush2.bf16.msra.mxu0 %v1288
      %2238 = vmatprep.subr.bf16.mxu0 0
      %2239 = vmatpush2.bf16.msra.mxu0 %v1287
      %2240 = vmatprep.subr.bf16.mxu0 0
      %2241 = vmatpush2.bf16.msra.mxu0 %v1286
      %2242 = vmatprep.subr.bf16.mxu0 0
      %2243 = vmatpush2.bf16.msra.mxu0 %v1285
      %2244 = vmatprep.subr.bf16.mxu0 0
      %2245 = vmatpush2.bf16.msra.mxu0 %v1284
      %2246 = vmatprep.subr.bf16.mxu0 0
      %2247 = vmatpush2.bf16.msra.mxu0 %v1283
      %2248 = vmatprep.subr.bf16.mxu0 0
      %2249 = vmatpush2.bf16.msra.mxu0 %v1282
      %2250 = vmatprep.mubr.bf16.mxu0 %v2173
      %2251 = vmatmul.mubr.bf16.gmra.mxu0 %v2172
      %v2252 = vpop.f32.mrf.mxu0
      %v2253 = vadd.f32 %v2213, %v2252
      %v2254 = vpop.f32.mrf.mxu0
      %v2255 = vpop.f32.mrf.mxu0
      %v2256 = vpop.f32.mrf.mxu0
      %2257 = vdwg.mxu0
      %2258 = vmatprep.subr.bf16.mxu0 0
      %2259 = vmatpush1.bf16.msra.mxu0 0
      %2260 = vmatprep.subr.bf16.mxu0 0
      %2261 = vmatpush1.bf16.msra.mxu0 0
      %2262 = vmatprep.subr.bf16.mxu0 0
      %2263 = vmatpush1.bf16.msra.mxu0 0
      %2264 = vmatprep.subr.bf16.mxu0 0
      %2265 = vmatpush1.bf16.msra.mxu0 0
      %2266 = vmatprep.subr.bf16.mxu0 0
      %2267 = vmatpush1.bf16.msra.mxu0 %v1293
      %2268 = vmatprep.subr.bf16.mxu0 0
      %2269 = vmatpush1.bf16.msra.mxu0 %v1292
      %2270 = vmatprep.subr.bf16.mxu0 0
      %2271 = vmatpush1.bf16.msra.mxu0 %v1291
      %2272 = vmatprep.subr.bf16.mxu0 0
      %2273 = vmatpush1.bf16.msra.mxu0 %v1290
      %2274 = vmatprep.subr.bf16.mxu0 0
      %2275 = vmatpush2.bf16.msra.mxu0 0
      %2276 = vmatprep.subr.bf16.mxu0 0
      %2277 = vmatpush2.bf16.msra.mxu0 0
      %2278 = vmatprep.subr.bf16.mxu0 0
      %2279 = vmatpush2.bf16.msra.mxu0 0
      %2280 = vmatprep.subr.bf16.mxu0 0
      %2281 = vmatpush2.bf16.msra.mxu0 0
      %2282 = vmatprep.subr.bf16.mxu0 0
      %2283 = vmatpush2.bf16.msra.mxu0 0
      %2284 = vmatprep.subr.bf16.mxu0 0
      %2285 = vmatpush2.bf16.msra.mxu0 0
      %2286 = vmatprep.subr.bf16.mxu0 0
      %2287 = vmatpush2.bf16.msra.mxu0 0
      %2288 = vmatprep.subr.bf16.mxu0 0
      %2289 = vmatpush2.bf16.msra.mxu0 0
      %2290 = vmatprep.mubr.bf16.mxu0 0
      %2291 = vmatmul.mubr.bf16.gmra.mxu0 %v2176
      %v2292 = vpop.f32.mrf.mxu0
      %v2293 = vadd.f32 %v2253, %v2292
      %v2294 = vpop.f32.mrf.mxu0
      %v2295 = vpop.f32.mrf.mxu0
      %v2296 = vpop.f32.mrf.mxu0
      %2297 = vdwg.mxu0
      %s2298 = scalar_lea.vmem %s936, 40
      %2299 = vst.msk [vmem:[%s2298] sm:$0xff] %vm1104, %v2293
      %v2300 = vsel %vm1104, %v2293, 0.0
      %v2301 = vrot.slane %v2300, 4
      %v2302 = vadd.f32 %v2300, %v2301
      %v2303 = vrot.slane %v2302, 2
      %v2304 = vadd.f32 %v2302, %v2303
      %v2305 = vrot.slane %v2304, 1
      %v2306 = vadd.f32 %v2304, %v2305
      %v2307 = vadd.f32 %v2139, %v2306
      %v2308 = vmul.f32 %v2293, %v2293
      %v2309 = vsel %vm1104, %v2308, 0.0
      %v2310 = vrot.slane %v2309, 4
      %v2311 = vadd.f32 %v2309, %v2310
      %v2312 = vrot.slane %v2311, 2
      %v2313 = vadd.f32 %v2311, %v2312
      %v2314 = vrot.slane %v2313, 1
      %v2315 = vadd.f32 %v2313, %v2314
      %v2316 = vadd.f32 %v2148, %v2315
      %2317 = vrot.lane.b32.xlu0 %v1053, 64
      %v2318 = vpop.permute.xlu0 %2317
      %2321 = vrot.lane.b32.xlu0 %v2166, 64
      %v2322 = vpop.permute.xlu0 %2321
      %v2326 = vrot.slane %v1057, 1
      %v2327 = vrot.slane %v1058, 1
      %v2328 = vsel %vm1065, %v2326, %v2327
      %2329 = vrot.lane.b32.xlu0 %v2328, 64
      %v2330 = vpop.permute.xlu0 %2329
      %v2332 = vrot.slane %v1057, 2
      %v2333 = vrot.slane %v1058, 2
      %v2334 = vsel %vm1072, %v2332, %v2333
      %v2336 = vsel %vm1104, %v1998, %v2318
      %v2337 = vsel %vm1104, %v2160, %v2322
      %v2338 = vsel %vm1104, %v1057, %v2330
      %v2339 = vpack.c.bf16 %v2336, %v2336
      %v2340 = vpack.c.bf16 %v2337, %v2337
      %v2341 = vpack.c.bf16 %v2338, %v2338
      %v2342 = vpack.c.bf16 %v2334, %v2334
      %v2344 = vsel %vm1104, %v2342, 0
      %2346 = vmatprep.subr.bf16.mxu0 0
      %2347 = vmatpush1.bf16.msra.mxu0 %v1265
      %2348 = vmatprep.subr.bf16.mxu0 0
      %2349 = vmatpush1.bf16.msra.mxu0 %v1264
      %2350 = vmatprep.subr.bf16.mxu0 0
      %2351 = vmatpush1.bf16.msra.mxu0 %v1263
      %2352 = vmatprep.subr.bf16.mxu0 0
      %2353 = vmatpush1.bf16.msra.mxu0 %v1262
      %2354 = vmatprep.subr.bf16.mxu0 0
      %2355 = vmatpush1.bf16.msra.mxu0 %v1261
      %2356 = vmatprep.subr.bf16.mxu0 0
      %2357 = vmatpush1.bf16.msra.mxu0 %v1260
      %2358 = vmatprep.subr.bf16.mxu0 0
      %2359 = vmatpush1.bf16.msra.mxu0 %v1259
      %2360 = vmatprep.subr.bf16.mxu0 0
      %2361 = vmatpush1.bf16.msra.mxu0 %v1258
      %2362 = vmatprep.subr.bf16.mxu0 0
      %2363 = vmatpush2.bf16.msra.mxu0 %v1273
      %2364 = vmatprep.subr.bf16.mxu0 0
      %2365 = vmatpush2.bf16.msra.mxu0 %v1272
      %2366 = vmatprep.subr.bf16.mxu0 0
      %2367 = vmatpush2.bf16.msra.mxu0 %v1271
      %2368 = vmatprep.subr.bf16.mxu0 0
      %2369 = vmatpush2.bf16.msra.mxu0 %v1270
      %2370 = vmatprep.subr.bf16.mxu0 0
      %2371 = vmatpush2.bf16.msra.mxu0 %v1269
      %2372 = vmatprep.subr.bf16.mxu0 0
      %2373 = vmatpush2.bf16.msra.mxu0 %v1268
      %2374 = vmatprep.subr.bf16.mxu0 0
      %2375 = vmatpush2.bf16.msra.mxu0 %v1267
      %2376 = vmatprep.subr.bf16.mxu0 0
      %2377 = vmatpush2.bf16.msra.mxu0 %v1266
      %2378 = vmatprep.mubr.bf16.mxu0 %v2339
      %2379 = vmatmul.mubr.bf16.gmra.mxu0 %v2005
      %v2380 = vpop.f32.mrf.mxu0
      %v2381 = vadd.f32 0.0, %v2380
      %v2382 = vpop.f32.mrf.mxu0
      %v2383 = vpop.f32.mrf.mxu0
      %v2384 = vpop.f32.mrf.mxu0
      %2385 = vdwg.mxu0
      %2386 = vmatprep.subr.bf16.mxu0 0
      %2387 = vmatpush1.bf16.msra.mxu0 %v1281
      %2388 = vmatprep.subr.bf16.mxu0 0
      %2389 = vmatpush1.bf16.msra.mxu0 %v1280
      %2390 = vmatprep.subr.bf16.mxu0 0
      %2391 = vmatpush1.bf16.msra.mxu0 %v1279
      %2392 = vmatprep.subr.bf16.mxu0 0
      %2393 = vmatpush1.bf16.msra.mxu0 %v1278
      %2394 = vmatprep.subr.bf16.mxu0 0
      %2395 = vmatpush1.bf16.msra.mxu0 %v1277
      %2396 = vmatprep.subr.bf16.mxu0 0
      %2397 = vmatpush1.bf16.msra.mxu0 %v1276
      %2398 = vmatprep.subr.bf16.mxu0 0
      %2399 = vmatpush1.bf16.msra.mxu0 %v1275
      %2400 = vmatprep.subr.bf16.mxu0 0
      %2401 = vmatpush1.bf16.msra.mxu0 %v1274
      %2402 = vmatprep.subr.bf16.mxu0 0
      %2403 = vmatpush2.bf16.msra.mxu0 %v1289
      %2404 = vmatprep.subr.bf16.mxu0 0
      %2405 = vmatpush2.bf16.msra.mxu0 %v1288
      %2406 = vmatprep.subr.bf16.mxu0 0
      %2407 = vmatpush2.bf16.msra.mxu0 %v1287
      %2408 = vmatprep.subr.bf16.mxu0 0
      %2409 = vmatpush2.bf16.msra.mxu0 %v1286
      %2410 = vmatprep.subr.bf16.mxu0 0
      %2411 = vmatpush2.bf16.msra.mxu0 %v1285
      %2412 = vmatprep.subr.bf16.mxu0 0
      %2413 = vmatpush2.bf16.msra.mxu0 %v1284
      %2414 = vmatprep.subr.bf16.mxu0 0
      %2415 = vmatpush2.bf16.msra.mxu0 %v1283
      %2416 = vmatprep.subr.bf16.mxu0 0
      %2417 = vmatpush2.bf16.msra.mxu0 %v1282
      %2418 = vmatprep.mubr.bf16.mxu0 %v2341
      %2419 = vmatmul.mubr.bf16.gmra.mxu0 %v2340
      %v2420 = vpop.f32.mrf.mxu0
      %v2421 = vadd.f32 %v2381, %v2420
      %v2422 = vpop.f32.mrf.mxu0
      %v2423 = vpop.f32.mrf.mxu0
      %v2424 = vpop.f32.mrf.mxu0
      %2425 = vdwg.mxu0
      %2426 = vmatprep.subr.bf16.mxu0 0
      %2427 = vmatpush1.bf16.msra.mxu0 0
      %2428 = vmatprep.subr.bf16.mxu0 0
      %2429 = vmatpush1.bf16.msra.mxu0 0
      %2430 = vmatprep.subr.bf16.mxu0 0
      %2431 = vmatpush1.bf16.msra.mxu0 0
      %2432 = vmatprep.subr.bf16.mxu0 0
      %2433 = vmatpush1.bf16.msra.mxu0 0
      %2434 = vmatprep.subr.bf16.mxu0 0
      %2435 = vmatpush1.bf16.msra.mxu0 %v1293
      %2436 = vmatprep.subr.bf16.mxu0 0
      %2437 = vmatpush1.bf16.msra.mxu0 %v1292
      %2438 = vmatprep.subr.bf16.mxu0 0
      %2439 = vmatpush1.bf16.msra.mxu0 %v1291
      %2440 = vmatprep.subr.bf16.mxu0 0
      %2441 = vmatpush1.bf16.msra.mxu0 %v1290
      %2442 = vmatprep.subr.bf16.mxu0 0
      %2443 = vmatpush2.bf16.msra.mxu0 0
      %2444 = vmatprep.subr.bf16.mxu0 0
      %2445 = vmatpush2.bf16.msra.mxu0 0
      %2446 = vmatprep.subr.bf16.mxu0 0
      %2447 = vmatpush2.bf16.msra.mxu0 0
      %2448 = vmatprep.subr.bf16.mxu0 0
      %2449 = vmatpush2.bf16.msra.mxu0 0
      %2450 = vmatprep.subr.bf16.mxu0 0
      %2451 = vmatpush2.bf16.msra.mxu0 0
      %2452 = vmatprep.subr.bf16.mxu0 0
      %2453 = vmatpush2.bf16.msra.mxu0 0
      %2454 = vmatprep.subr.bf16.mxu0 0
      %2455 = vmatpush2.bf16.msra.mxu0 0
      %2456 = vmatprep.subr.bf16.mxu0 0
      %2457 = vmatpush2.bf16.msra.mxu0 0
      %2458 = vmatprep.mubr.bf16.mxu0 0
      %2459 = vmatmul.mubr.bf16.gmra.mxu0 %v2344
      %v2460 = vpop.f32.mrf.mxu0
      %v2461 = vadd.f32 %v2421, %v2460
      %v2462 = vpop.f32.mrf.mxu0
      %v2463 = vpop.f32.mrf.mxu0
      %v2464 = vpop.f32.mrf.mxu0
      %2465 = vdwg.mxu0
      %s2466 = scalar_lea.vmem %s936, 48
      %2467 = vst.msk [vmem:[%s2466] sm:$0xff] %vm1104, %v2461
      %v2468 = vsel %vm1104, %v2461, 0.0
      %v2469 = vrot.slane %v2468, 4
      %v2470 = vadd.f32 %v2468, %v2469
      %v2471 = vrot.slane %v2470, 2
      %v2472 = vadd.f32 %v2470, %v2471
      %v2473 = vrot.slane %v2472, 1
      %v2474 = vadd.f32 %v2472, %v2473
      %v2475 = vadd.f32 %v2307, %v2474
      %v2476 = vmul.f32 %v2461, %v2461
      %v2477 = vsel %vm1104, %v2476, 0.0
      %v2478 = vrot.slane %v2477, 4
      %v2479 = vadd.f32 %v2477, %v2478
      %v2480 = vrot.slane %v2479, 2
      %v2481 = vadd.f32 %v2479, %v2480
      %v2482 = vrot.slane %v2481, 1
      %v2483 = vadd.f32 %v2481, %v2482
      %v2484 = vadd.f32 %v2316, %v2483
      %2485 = vrot.lane.b32.xlu0 %v1057, 64
      %v2486 = vpop.permute.xlu0 %2485
      %2489 = vrot.lane.b32.xlu0 %v2334, 64
      %v2490 = vpop.permute.xlu0 %2489
      %v2494 = vrot.slane %v1061, 1
      %v2495 = vrot.slane %v1062, 1
      %v2496 = vsel %vm1065, %v2494, %v2495
      %2497 = vrot.lane.b32.xlu0 %v2496, 64
      %v2498 = vpop.permute.xlu0 %2497
      %v2500 = vrot.slane %v1061, 2
      %v2501 = vrot.slane %v1062, 2
      %v2502 = vsel %vm1072, %v2500, %v2501
      %v2504 = vsel %vm1104, %v2166, %v2486
      %v2505 = vsel %vm1104, %v2328, %v2490
      %v2506 = vsel %vm1104, %v1061, %v2498
      %v2507 = vpack.c.bf16 %v2504, %v2504
      %v2508 = vpack.c.bf16 %v2505, %v2505
      %v2509 = vpack.c.bf16 %v2506, %v2506
      %v2510 = vpack.c.bf16 %v2502, %v2502
      %v2512 = vsel %vm1104, %v2510, 0
      %2514 = vmatprep.subr.bf16.mxu0 0
      %2515 = vmatpush1.bf16.msra.mxu0 %v1265
      %2516 = vmatprep.subr.bf16.mxu0 0
      %2517 = vmatpush1.bf16.msra.mxu0 %v1264
      %2518 = vmatprep.subr.bf16.mxu0 0
      %2519 = vmatpush1.bf16.msra.mxu0 %v1263
      %2520 = vmatprep.subr.bf16.mxu0 0
      %2521 = vmatpush1.bf16.msra.mxu0 %v1262
      %2522 = vmatprep.subr.bf16.mxu0 0
      %2523 = vmatpush1.bf16.msra.mxu0 %v1261
      %2524 = vmatprep.subr.bf16.mxu0 0
      %2525 = vmatpush1.bf16.msra.mxu0 %v1260
      %2526 = vmatprep.subr.bf16.mxu0 0
      %2527 = vmatpush1.bf16.msra.mxu0 %v1259
      %2528 = vmatprep.subr.bf16.mxu0 0
      %2529 = vmatpush1.bf16.msra.mxu0 %v1258
      %2530 = vmatprep.subr.bf16.mxu0 0
      %2531 = vmatpush2.bf16.msra.mxu0 %v1273
      %2532 = vmatprep.subr.bf16.mxu0 0
      %2533 = vmatpush2.bf16.msra.mxu0 %v1272
      %2534 = vmatprep.subr.bf16.mxu0 0
      %2535 = vmatpush2.bf16.msra.mxu0 %v1271
      %2536 = vmatprep.subr.bf16.mxu0 0
      %2537 = vmatpush2.bf16.msra.mxu0 %v1270
      %2538 = vmatprep.subr.bf16.mxu0 0
      %2539 = vmatpush2.bf16.msra.mxu0 %v1269
      %2540 = vmatprep.subr.bf16.mxu0 0
      %2541 = vmatpush2.bf16.msra.mxu0 %v1268
      %2542 = vmatprep.subr.bf16.mxu0 0
      %2543 = vmatpush2.bf16.msra.mxu0 %v1267
      %2544 = vmatprep.subr.bf16.mxu0 0
      %2545 = vmatpush2.bf16.msra.mxu0 %v1266
      %2546 = vmatprep.mubr.bf16.mxu0 %v2507
      %2547 = vmatmul.mubr.bf16.gmra.mxu0 %v2173
      %v2548 = vpop.f32.mrf.mxu0
      %v2549 = vadd.f32 0.0, %v2548
      %v2550 = vpop.f32.mrf.mxu0
      %v2551 = vpop.f32.mrf.mxu0
      %v2552 = vpop.f32.mrf.mxu0
      %2553 = vdwg.mxu0
      %2554 = vmatprep.subr.bf16.mxu0 0
      %2555 = vmatpush1.bf16.msra.mxu0 %v1281
      %2556 = vmatprep.subr.bf16.mxu0 0
      %2557 = vmatpush1.bf16.msra.mxu0 %v1280
      %2558 = vmatprep.subr.bf16.mxu0 0
      %2559 = vmatpush1.bf16.msra.mxu0 %v1279
      %2560 = vmatprep.subr.bf16.mxu0 0
      %2561 = vmatpush1.bf16.msra.mxu0 %v1278
      %2562 = vmatprep.subr.bf16.mxu0 0
      %2563 = vmatpush1.bf16.msra.mxu0 %v1277
      %2564 = vmatprep.subr.bf16.mxu0 0
      %2565 = vmatpush1.bf16.msra.mxu0 %v1276
      %2566 = vmatprep.subr.bf16.mxu0 0
      %2567 = vmatpush1.bf16.msra.mxu0 %v1275
      %2568 = vmatprep.subr.bf16.mxu0 0
      %2569 = vmatpush1.bf16.msra.mxu0 %v1274
      %2570 = vmatprep.subr.bf16.mxu0 0
      %2571 = vmatpush2.bf16.msra.mxu0 %v1289
      %2572 = vmatprep.subr.bf16.mxu0 0
      %2573 = vmatpush2.bf16.msra.mxu0 %v1288
      %2574 = vmatprep.subr.bf16.mxu0 0
      %2575 = vmatpush2.bf16.msra.mxu0 %v1287
      %2576 = vmatprep.subr.bf16.mxu0 0
      %2577 = vmatpush2.bf16.msra.mxu0 %v1286
      %2578 = vmatprep.subr.bf16.mxu0 0
      %2579 = vmatpush2.bf16.msra.mxu0 %v1285
      %2580 = vmatprep.subr.bf16.mxu0 0
      %2581 = vmatpush2.bf16.msra.mxu0 %v1284
      %2582 = vmatprep.subr.bf16.mxu0 0
      %2583 = vmatpush2.bf16.msra.mxu0 %v1283
      %2584 = vmatprep.subr.bf16.mxu0 0
      %2585 = vmatpush2.bf16.msra.mxu0 %v1282
      %2586 = vmatprep.mubr.bf16.mxu0 %v2509
      %2587 = vmatmul.mubr.bf16.gmra.mxu0 %v2508
      %v2588 = vpop.f32.mrf.mxu0
      %v2589 = vadd.f32 %v2549, %v2588
      %v2590 = vpop.f32.mrf.mxu0
      %v2591 = vpop.f32.mrf.mxu0
      %v2592 = vpop.f32.mrf.mxu0
      %2593 = vdwg.mxu0
      %2594 = vmatprep.subr.bf16.mxu0 0
      %2595 = vmatpush1.bf16.msra.mxu0 0
      %2596 = vmatprep.subr.bf16.mxu0 0
      %2597 = vmatpush1.bf16.msra.mxu0 0
      %2598 = vmatprep.subr.bf16.mxu0 0
      %2599 = vmatpush1.bf16.msra.mxu0 0
      %2600 = vmatprep.subr.bf16.mxu0 0
      %2601 = vmatpush1.bf16.msra.mxu0 0
      %2602 = vmatprep.subr.bf16.mxu0 0
      %2603 = vmatpush1.bf16.msra.mxu0 %v1293
      %2604 = vmatprep.subr.bf16.mxu0 0
      %2605 = vmatpush1.bf16.msra.mxu0 %v1292
      %2606 = vmatprep.subr.bf16.mxu0 0
      %2607 = vmatpush1.bf16.msra.mxu0 %v1291
      %2608 = vmatprep.subr.bf16.mxu0 0
      %2609 = vmatpush1.bf16.msra.mxu0 %v1290
      %2610 = vmatprep.subr.bf16.mxu0 0
      %2611 = vmatpush2.bf16.msra.mxu0 0
      %2612 = vmatprep.subr.bf16.mxu0 0
      %2613 = vmatpush2.bf16.msra.mxu0 0
      %2614 = vmatprep.subr.bf16.mxu0 0
      %2615 = vmatpush2.bf16.msra.mxu0 0
      %2616 = vmatprep.subr.bf16.mxu0 0
      %2617 = vmatpush2.bf16.msra.mxu0 0
      %2618 = vmatprep.subr.bf16.mxu0 0
      %2619 = vmatpush2.bf16.msra.mxu0 0
      %2620 = vmatprep.subr.bf16.mxu0 0
      %2621 = vmatpush2.bf16.msra.mxu0 0
      %2622 = vmatprep.subr.bf16.mxu0 0
      %2623 = vmatpush2.bf16.msra.mxu0 0
      %2624 = vmatprep.subr.bf16.mxu0 0
      %2625 = vmatpush2.bf16.msra.mxu0 0
      %2626 = vmatprep.mubr.bf16.mxu0 0
      %2627 = vmatmul.mubr.bf16.gmra.mxu0 %v2512
      %v2628 = vpop.f32.mrf.mxu0
      %v2629 = vadd.f32 %v2589, %v2628
      %v2630 = vpop.f32.mrf.mxu0
      %v2631 = vpop.f32.mrf.mxu0
      %v2632 = vpop.f32.mrf.mxu0
      %2633 = vdwg.mxu0
      %s2634 = scalar_lea.vmem %s936, 56
      %2635 = vst.msk [vmem:[%s2634] sm:$0xff] %vm1104, %v2629
      %v2636 = vsel %vm1104, %v2629, 0.0
      %v2637 = vrot.slane %v2636, 4
      %v2638 = vadd.f32 %v2636, %v2637
      %v2639 = vrot.slane %v2638, 2
      %v2640 = vadd.f32 %v2638, %v2639
      %v2641 = vrot.slane %v2640, 1
      %v2642 = vadd.f32 %v2640, %v2641
      %v2643 = vadd.f32 %v2475, %v2642
      %v2644 = vmul.f32 %v2629, %v2629
      %v2645 = vsel %vm1104, %v2644, 0.0
      %v2646 = vrot.slane %v2645, 4
      %v2647 = vadd.f32 %v2645, %v2646
      %v2648 = vrot.slane %v2647, 2
      %v2649 = vadd.f32 %v2647, %v2648
      %v2650 = vrot.slane %v2649, 1
      %v2651 = vadd.f32 %v2649, %v2650
      %v2652 = vadd.f32 %v2484, %v2651
      %vm2653 = vcmask 516096
      %2654 = vst.msk [vmem:[%s943] sm:$0x1] %vm2653, %v2643
      %2655 = vst.msk [vmem:[%s949] sm:$0x1] %vm2653, %v2652
      %s2656 = smul.u32 8, %s30
      %p2657 = scmp.lt.s32.totalorder %s29, 1
      %s2658 = scalar_select %p2657, %s29, 1
      %p2659 = scmp.lt.s32.totalorder %s2656, 7
      %s2660 = scalar_select %p2659, %s2656, 7
      %s2661 = smul.addr %s2658, 8
      %s2662 = sadd.s32 %s2660, %s2661
      %s2663 = smul.addr %s2662, 8
      %s2664 = scalar_lea.vmem %s11, %s2663
      %p2665 = scmp.lt.s32.totalorder %s29, 1
      %s2666 = scalar_select %p2665, %s29, 1
      %p2667 = scmp.lt.s32.totalorder %s30, 0
      %s2668 = scalar_select %p2667, %s30, 0
      %s2669 = sadd.s32 %s2668, %s2666
      %s2670 = scalar_lea.vmem %s12, %s2669
      %p2671 = scmp.lt.s32.totalorder %s29, 1
      %s2672 = scalar_select %p2671, %s29, 1
      %p2673 = scmp.lt.s32.totalorder %s30, 0
      %s2674 = scalar_select %p2673, %s30, 0
      %s2675 = sadd.s32 %s2674, %s2672
      %s2676 = scalar_lea.vmem %s13, %s2675
      // Predicated region
      $region65: #{cnn_encoder_forward.10} parent=63 // pred_check
        %p2677 = pneg %p396
      $region66: #{cnn_encoder_forward.10} parent=63 // pred_check_branch
        %2679 = sbr.rel (%p2677) target = $region68
      $region67: #{cnn_encoder_forward.10} parent=63 // pred_region
        %s2680 = smul.u32 8, %s30
      $region68: #{cnn_encoder_forward.10} parent=63 // pred_fallthru
        _
      // Predicated region
      $region69: #{cnn_encoder_forward.10} parent=63 // pred_check
        %p2681 = pneg %p424
      $region70: #{cnn_encoder_forward.10} parent=63 // pred_check_branch
        %2683 = sbr.rel (%p2681) target = $region72
      $region71: #{cnn_encoder_forward.10} parent=63 // pred_region
        _
      $region72: #{cnn_encoder_forward.10} parent=63 // pred_fallthru
        _
      // Predicated region
      $region73: #{cnn_encoder_forward.10} parent=63 // pred_check
        %p2684 = pneg %p452
      $region74: #{cnn_encoder_forward.10} parent=63 // pred_check_branch
        %2686 = sbr.rel (%p2684) target = $region76
      $region75: #{cnn_encoder_forward.10} parent=63 // pred_region
        _
      $region76: #{cnn_encoder_forward.10} parent=63 // pred_fallthru
        _
    $region64: #{cnn_encoder_forward.10} parent=5 // pred_fallthru
      _
    %p2687 = scmp.le.s32.totalorder 2, %s20
    // Predicated region
    $region77: #{cnn_encoder_forward.10} parent=5 // pred_check
      %p2688 = pneg %p2687
    $region78: #{cnn_encoder_forward.10} parent=5 // pred_check_branch
      %2690 = sbr.rel (%p2688) target = $region80
    $region79: #{cnn_encoder_forward.10} parent=5 // pred_region
      %s2691 = ssub.s32 %s20, 2
      // Predicated region
      $region81: #{cnn_encoder_forward.10} parent=79 // pred_check
        %p2692 = pneg %p402
      $region82: #{cnn_encoder_forward.10} parent=79 // pred_check_branch
        %2694 = sbr.rel (%p2692) target = $region84
      $region83: #{cnn_encoder_forward.10} parent=79 // pred_region
        %s2695 = smul.u32 8, %s32
        %p2696 = scmp.lt.s32.totalorder %s31, 1
        %s2697 = scalar_select %p2696, %s31, 1
        %p2698 = scmp.lt.s32.totalorder %s2695, 7
        %s2699 = scalar_select %p2698, %s2695, 7
        %s2700 = smul.addr %s2697, 8
        %s2701 = sadd.s32 %s2699, %s2700
        %s2702 = smul.addr %s2701, 8
        %s2703 = scalar_lea.vmem %s11, %s2702
      $region84: #{cnn_encoder_forward.10} parent=79 // pred_fallthru
        _
      // Predicated region
      $region85: #{cnn_encoder_forward.10} parent=79 // pred_check
        %p2704 = pneg %p430
      $region86: #{cnn_encoder_forward.10} parent=79 // pred_check_branch
        %2706 = sbr.rel (%p2704) target = $region88
      $region87: #{cnn_encoder_forward.10} parent=79 // pred_region
        %p2707 = scmp.lt.s32.totalorder %s31, 1
        %s2708 = scalar_select %p2707, %s31, 1
        %p2709 = scmp.lt.s32.totalorder %s32, 0
        %s2710 = scalar_select %p2709, %s32, 0
        %s2711 = sadd.s32 %s2710, %s2708
        %s2712 = scalar_lea.vmem %s12, %s2711
      $region88: #{cnn_encoder_forward.10} parent=79 // pred_fallthru
        _
      // Predicated region
      $region89: #{cnn_encoder_forward.10} parent=79 // pred_check
        %p2713 = pneg %p458
      $region90: #{cnn_encoder_forward.10} parent=79 // pred_check_branch
        %2715 = sbr.rel (%p2713) target = $region92
      $region91: #{cnn_encoder_forward.10} parent=79 // pred_region
        %p2716 = scmp.lt.s32.totalorder %s31, 1
        %s2717 = scalar_select %p2716, %s31, 1
        %p2718 = scmp.lt.s32.totalorder %s32, 0
        %s2719 = scalar_select %p2718, %s32, 0
        %s2720 = sadd.s32 %s2719, %s2717
        %s2721 = scalar_lea.vmem %s13, %s2720
      $region92: #{cnn_encoder_forward.10} parent=79 // pred_fallthru
        _
    $region80: #{cnn_encoder_forward.10} parent=5 // pred_fallthru
      _
  $region6: #{cnn_encoder_forward.10} parent=0 // loop_footer
    %s24 = sadd.s32 1, %s20
  $region7: #{cnn_encoder_forward.10} parent=0 // loop_footer_branch
    %19 = sbr.rel target = $region3
  $region8: #{cnn_encoder_forward.10} parent=0 // loop_exit
    _

</llo_original>
